<compile_context>
chip_gen: v7x
topology: tpu7x:2x2x1
jax: 0.10.0
libtpu: 0.0.40
codegen_flags: <defaults>
</compile_context>

<pallas_src>
import numpy as np
import jax
import jax.numpy as jnp
from jax.experimental import pallas as pl
from jax.experimental.pallas import tpu as pltpu

BN_EPS = 1e-5


# ---------------------------------------------------------------------------
# Host-side static planning
# ---------------------------------------------------------------------------
def _phase_info(H_in, H_out, k, s, p):
    """Per output-row phase r (oh == r mod s): (dmin, H_r); plus n_slab, pads."""
    raw = []
    for r in range(s):
        H_r = max(0, -(-(H_out - r) // s))                    # ceil((H_out-r)/s)
        d_vals = [(r + p - kh) // s for kh in range(k) if (r + p - kh) % s == 0]
        dmin = min(d_vals) if d_vals else 0
        dmax = max(d_vals) if d_vals else 0
        raw.append((dmin, dmax, H_r))
    n_slab = max(1, max(dmax - dmin + 1 for dmin, dmax, _ in raw))
    P_lo = max(0, max(-dmin for dmin, _, _ in raw))
    P_hi = 0
    for dmin, _dmax, H_r in raw:
        if H_r:
            P_hi = max(P_hi, (H_r - 1 + dmin + n_slab - 1) - (H_in - 1))
    P_hi = max(0, P_hi)
    return [(dmin, H_r) for dmin, _d, H_r in raw], n_slab, P_lo, P_hi


def _build_row_toeplitz(w_t, k, s, p, W_in, W_out, phases, n_slab, Cout_pad):
    """(n_phase, n_slab*W_in*Cin, W_out*Cout_pad): one-output-row weight per phase."""
    Cin, Cout = w_t.shape[0], w_t.shape[1]
    W = np.zeros((len(phases), n_slab, W_in, Cin, W_out, Cout_pad), np.float32)
    for r, (dmin, _H_r) in enumerate(phases):
        for kh in range(k):
            if (r + p - kh) % s != 0:
                continue
            t = (r + p - kh) // s - dmin
            if not (0 <= t < n_slab):
                continue
            for ow in range(W_out):
                for iw in range(W_in):
                    kw = ow + p - s * iw
                    if 0 <= kw < k:
                        W[r, t, iw, :, ow, :Cout] = w_t[:, :, kh, kw]
    return W.reshape(len(phases), n_slab * W_in * Cin, W_out * Cout_pad)


def _build_dense(w_t, k, s, p, H_in, W_in, H_out, W_out, Cout_pad):
    """Full dense (H_in*W_in*Cin, H_out*W_out*Cout_pad) linear map of one ConvT."""
    Cin, Cout = w_t.shape[0], w_t.shape[1]
    W = np.zeros((H_in * W_in * Cin, H_out * W_out * Cout_pad), np.float32)
    for ih in range(H_in):
        for kh in range(k):
            oh = ih * s - p + kh
            if not (0 <= oh < H_out):
                continue
            for iw in range(W_in):
                for kw in range(k):
                    ow = iw * s - p + kw
                    if not (0 <= ow < W_out):
                        continue
                    rr = (ih * W_in + iw) * Cin
                    cc = (oh * W_out + ow) * Cout_pad
                    W[rr:rr + Cin, cc:cc + Cout] = w_t[:, :, kh, kw]
    return W


def _zero_map(ndim):
    return lambda i, _n=ndim: (0,) * _n


# ---------------------------------------------------------------------------
# The single fused Pallas kernel (all layers, fully unrolled)
# ---------------------------------------------------------------------------
def _make_fused_kernel(metas, N):
    def kernel(*refs):
        pos = 0
        x_ref = refs[pos]; pos += 1
        prms = []
        for m in metas:
            d = {"w": refs[pos]}; pos += 1
            if m["has_bn"]:
                d["G"], d["GT"], d["gb"] = refs[pos], refs[pos + 1], refs[pos + 2]
                pos += 3
            else:
                d["b"] = refs[pos]; pos += 1
            prms.append(d)
        out_ref = refs[pos]

        cur = x_ref[...]                                   # (N, H*W*C) lane-major
        for li, m in enumerate(metas):
            prm = prms[li]
            if m["dense"]:
                # ---- layer collapsed into one dense matmul (K = H*W*Cin)
                y = jnp.dot(cur, prm["w"][...],
                            preferred_element_type=jnp.float32)
            else:
                # ---- transposed conv: one K = n_slab*W_in*Cin matmul per out row
                WC = m["W_in"] * m["Cin"]
                if m["P_lo"] or m["P_hi"]:                 # zero pad rows in lanes
                    pads = []
                    if m["P_lo"]:
                        pads.append(jnp.zeros((N, m["P_lo"] * WC), jnp.float32))
                    pads.append(cur)
                    if m["P_hi"]:
                        pads.append(jnp.zeros((N, m["P_hi"] * WC), jnp.float32))
                    cur = jnp.concatenate(pads, axis=1)
                K = m["n_slab"] * WC
                rows = [None] * m["H_out"]
                for r, (dmin, H_r) in enumerate(m["phases"]):
                    w_r = prm["w"][r]                      # (K, L) reused across rows
                    for i in range(H_r):
                        a = (m["P_lo"] + i + dmin) * WC    # static, 128-lane aligned
                        rows[m["s"] * i + r] = jnp.dot(
                            cur[:, a:a + K], w_r,
                            preferred_element_type=jnp.float32)
                y = jnp.concatenate(rows, axis=1)          # (N, H_out*W_out*Cout_pad)

            if m["has_bn"]:
                # ---- BatchNorm (train-mode batch stats) + ReLU, fused stat dots
                cnt = float(N * m["H_out"] * m["W_out"])
                s1 = jnp.sum(y, axis=0, keepdims=True)
                s2 = jnp.sum(y * y, axis=0, keepdims=True)
                pooled = jnp.dot(jnp.concatenate([s1, s2], axis=0), prm["G"][...],
                                 preferred_element_type=jnp.float32)      # (2, C)
                mean = pooled[0:1, :] * (1.0 / cnt)
                var = pooled[1:2, :] * (1.0 / cnt) - mean * mean
                scale = prm["gb"][0:1, :] * jax.lax.rsqrt(var + BN_EPS)
                shift = prm["gb"][1:2, :] - mean * scale
                slsh = jnp.dot(jnp.concatenate([scale, shift], axis=0),
                               prm["GT"][...],
                               preferred_element_type=jnp.float32)        # (2, L)
                y = jnp.maximum(y * slsh[0:1, :] + slsh[1:2, :], 0.0)
            else:
                y = jnp.tanh(y + prm["b"][...])
            cur = y

        out_ref[...] = cur
    return kernel


# ---------------------------------------------------------------------------
# Generator (JAX / Pallas port of the PyTorch module)
# ---------------------------------------------------------------------------
class Generator:
    def __init__(self, in_channels, out_channels, kernel_size, stride, padding, *, key):
        self.cfg = list(zip(in_channels, out_channels, kernel_size, stride, padding))
        self.n_layers = len(in_channels)
        self.params = []
        for i, (ci, co, k, s, p) in enumerate(self.cfg):
            key, kw_, kb_, kg_ = jax.random.split(key, 4)
            # ConvTranspose2d weight, torch layout (Cin, Cout, kH, kW), ~N(0, 0.02)
            w_t = 0.02 * jax.random.normal(kw_, (ci, co, k, k), jnp.float32)
            bias = 0.02 * jax.random.normal(kb_, (co,), jnp.float32)
            if i < self.n_layers - 1:
                gamma = 0.02 * jax.random.normal(kg_, (co,), jnp.float32)  # init_weights
                beta = jnp.zeros((co,), jnp.float32)                       # BN bias default
            else:
                gamma = beta = None
            self.params.append(dict(w_t=w_t, b=bias, gamma=gamma, beta=beta,
                                    k=k, s=s, p=p, ci=ci, co=co))
        self._plans = {}

    def _plan(self, H_in, W_in, N):
        cache_key = (H_in, W_in, N)
        if cache_key in self._plans:
            return self._plans[cache_key]
        metas, flat_inputs = [], []
        h, w = H_in, W_in
        for i, P in enumerate(self.params):
            k, s, p, ci, co = P["k"], P["s"], P["p"], P["ci"], P["co"]
            H_out = (h - 1) * s - 2 * p + k
            W_out = (w - 1) * s - 2 * p + k
            has_bn = P["gamma"] is not None
            last = i == self.n_layers - 1
            # Pad the final layer's Cout so the per-row output width is lane-dense.
            co_pad = co
            if last:
                while (W_out * co_pad) % 128 != 0 and co_pad < co + 128:
                    co_pad += 1
                if (W_out * co_pad) % 128 != 0:
                    co_pad = co
            w_np = np.asarray(P["w_t"], np.float32)
            dense = (i == 0 and h * w * ci <= 2048)        # layer-0 dense collapse
            phases, n_slab, P_lo, P_hi = _phase_info(h, H_out, k, s, p)
            metas.append(dict(dense=dense, H_in=h, W_in=w, H_out=H_out, W_out=W_out,
                              Cin=ci, Cout=co, Cout_pad=co_pad, s=s, n_slab=n_slab,
                              P_lo=P_lo, P_hi=P_hi, phases=phases, has_bn=has_bn))
            if dense:
                flat_inputs.append(jnp.asarray(
                    _build_dense(w_np, k, s, p, h, w, H_out, W_out, co_pad)))
            else:
                flat_inputs.append(jnp.asarray(
                    _build_row_toeplitz(w_np, k, s, p, w, W_out, phases, n_slab, co_pad)))
            if has_bn:
                # conv bias is mathematically absorbed by train-mode BatchNorm -> dropped
                G = np.tile(np.eye(co, dtype=np.float32), (H_out * W_out, 1))  # (L, C)
                gb = np.stack([np.asarray(P["gamma"], np.float32),
                               np.asarray(P["beta"], np.float32)])             # (2, C)
                flat_inputs += [jnp.asarray(G), jnp.asarray(G.T), jnp.asarray(gb)]
            else:
                b_row = np.zeros((co_pad,), np.float32)
                b_row[:co] = np.asarray(P["b"], np.float32)
                flat_inputs.append(jnp.asarray(
                    np.tile(b_row, H_out * W_out).reshape(1, H_out * W_out * co_pad)))
            h, w = H_out, W_out
        plan = (metas, flat_inputs)
        self._plans[cache_key] = plan
        return plan

    def __call__(self, x_nchw):
        N, _C, H_in, W_in = x_nchw.shape
        metas, flat_inputs = self._plan(H_in, W_in, N)
        m0, mN = metas[0], metas[-1]

        # NCHW -> lane-major (N, H*W*C) with c fastest
        x2d = jnp.transpose(x_nchw, (0, 2, 3, 1)).reshape(N, H_in * W_in * m0["Cin"])
        inputs = [x2d] + list(flat_inputs)
        out_cols = mN["H_out"] * mN["W_out"] * mN["Cout_pad"]

        in_specs = [pl.BlockSpec(tuple(a.shape), _zero_map(a.ndim)) for a in inputs]
        out = pl.pallas_call(
            _make_fused_kernel(metas, N),
            out_shape=jax.ShapeDtypeStruct((N, out_cols), jnp.float32),
            grid=(1,),
            in_specs=in_specs,
            out_specs=pl.BlockSpec((N, out_cols), lambda i: (0, 0)),
            compiler_params=pltpu.CompilerParams(dimension_semantics=("arbitrary",)),
        )(*inputs)

        # (N, H*W*Cout_pad) -> NCHW, dropping the lane-padding channel(s)
        out = out.reshape(N, mN["H_out"], mN["W_out"], mN["Cout_pad"])[..., :mN["Cout"]]
        return jnp.transpose(out, (0, 3, 1, 2))


# ---------------------------------------------------------------------------
# Pure-JAX reference (independent XLA conv path) for correctness checking
# ---------------------------------------------------------------------------
def _reference_forward(gen, x_nchw):
    x = jnp.transpose(x_nchw, (0, 2, 3, 1))
    for i, P in enumerate(gen.params):
        k, s, p = P["k"], P["s"], P["p"]
        w_conv = jnp.transpose(jnp.flip(P["w_t"], axis=(2, 3)), (2, 3, 0, 1))
        out = jax.lax.conv_general_dilated(
            x, w_conv, window_strides=(1, 1),
            padding=[(k - 1 - p, k - 1 - p)] * 2,
            lhs_dilation=(s, s),
            dimension_numbers=("NHWC", "HWIO", "NHWC"))
        out = out + P["b"]
        if i < gen.n_layers - 1:
            mean = out.mean(axis=(0, 1, 2), keepdims=True)
            var = ((out - mean) ** 2).mean(axis=(0, 1, 2), keepdims=True)
            out = P["gamma"] * (out - mean) * jax.lax.rsqrt(var + BN_EPS) + P["beta"]
            out = jnp.maximum(out, 0.0)
        else:
            out = jnp.tanh(out)
        x = out
    return jnp.transpose(x, (0, 3, 1, 2))


if __name__ == "__main__":
    key = jax.random.PRNGKey(0)
    k_param, k_x = jax.random.split(key)

    # Small DCGAN-style configuration
    in_channels = [8, 16, 8]
    out_channels = [16, 8, 3]
    kernel_size = [4, 4, 4]
    stride = [2, 2, 2]
    padding = [1, 1, 1]

    gen = Generator(in_channels, out_channels, kernel_size, stride, padding, key=k_param)

    # PyTorch-style NCHW input
    x = jax.random.normal(k_x, (2, 8, 4, 4), jnp.float32)

    y = jax.block_until_ready(gen(x))
    assert y.shape == (2, 3, 32, 32), y.shape

    y_ref = _reference_forward(gen, x)
    assert jnp.allclose(y, y_ref, atol=1e-4, rtol=1e-4), float(jnp.max(jnp.abs(y - y_ref)))

    print("KERNEL_OK")
</pallas_src>

<mosaic_0001>
module attributes {stable_mosaic.version = 11 : i64} {
  func.func @kernel(%arg0: i32, %arg1: memref<2x128xf32, #tpu.memory_space<vmem>>, %arg2: memref<128x1024xf32, #tpu.memory_space<vmem>>, %arg3: memref<1024x16xf32, #tpu.memory_space<vmem>>, %arg4: memref<16x1024xf32, #tpu.memory_space<vmem>>, %arg5: memref<2x16xf32, #tpu.memory_space<vmem>>, %arg6: memref<2x256x128xf32, #tpu.memory_space<vmem>>, %arg7: memref<2048x8xf32, #tpu.memory_space<vmem>>, %arg8: memref<8x2048xf32, #tpu.memory_space<vmem>>, %arg9: memref<2x8xf32, #tpu.memory_space<vmem>>, %arg10: memref<2x256x128xf32, #tpu.memory_space<vmem>>, %arg11: memref<1x4096xf32, #tpu.memory_space<vmem>>, %arg12: memref<2x4096xf32, #tpu.memory_space<vmem>>) attributes {dimension_semantics = [#tpu.dimension_semantics<arbitrary>], iteration_bounds = array<i64: 1>, scalar_prefetch = 0 : i64, scratch_operands = 0 : i64, tpu.core_type = #tpu.core_type<tc>, window_params = [{pipeline_mode = #tpu.pipeline_mode<synchronous>, transform_indices = @transform_0, window_bounds = array<i64: 2, 128>}, {pipeline_mode = #tpu.pipeline_mode<synchronous>, transform_indices = @transform_1, window_bounds = array<i64: 128, 1024>}, {pipeline_mode = #tpu.pipeline_mode<synchronous>, transform_indices = @transform_2, window_bounds = array<i64: 1024, 16>}, {pipeline_mode = #tpu.pipeline_mode<synchronous>, transform_indices = @transform_3, window_bounds = array<i64: 16, 1024>}, {pipeline_mode = #tpu.pipeline_mode<synchronous>, transform_indices = @transform_4, window_bounds = array<i64: 2, 16>}, {pipeline_mode = #tpu.pipeline_mode<synchronous>, transform_indices = @transform_5, window_bounds = array<i64: 2, 256, 128>}, {pipeline_mode = #tpu.pipeline_mode<synchronous>, transform_indices = @transform_6, window_bounds = array<i64: 2048, 8>}, {pipeline_mode = #tpu.pipeline_mode<synchronous>, transform_indices = @transform_7, window_bounds = array<i64: 8, 2048>}, {pipeline_mode = #tpu.pipeline_mode<synchronous>, transform_indices = @transform_8, window_bounds = array<i64: 2, 8>}, {pipeline_mode = #tpu.pipeline_mode<synchronous>, transform_indices = @transform_9, window_bounds = array<i64: 2, 256, 128>}, {pipeline_mode = #tpu.pipeline_mode<synchronous>, transform_indices = @transform_10, window_bounds = array<i64: 1, 4096>}, {pipeline_mode = #tpu.pipeline_mode<synchronous>, transform_indices = @transform_11, window_bounds = array<i64: 2, 4096>}]} {
    %c0 = arith.constant 0 : index
    %c0_0 = arith.constant 0 : index
    %0 = vector.load %arg1[%c0, %c0_0] : memref<2x128xf32, #tpu.memory_space<vmem>>, vector<2x128xf32>
    %c0_1 = arith.constant 0 : index
    %c0_2 = arith.constant 0 : index
    %1 = vector.load %arg2[%c0_1, %c0_2] : memref<128x1024xf32, #tpu.memory_space<vmem>>, vector<128x1024xf32>
    %cst = arith.constant dense<0.000000e+00> : vector<2x1024xf32>
    %2 = tpu.matmul %0, %1, %cst {dimension_numbers = #tpu.dot_dimension_numbers<[1], [0], [0], [1], [0, 0, 1, 1], [], []>} : vector<2x128xf32>, vector<128x1024xf32>, vector<2x1024xf32> -> vector<2x1024xf32>
    %cst_3 = arith.constant dense<0.000000e+00> : vector<1024xf32>
    %3 = vector.multi_reduction <add>, %2, %cst_3 [0] : vector<2x1024xf32> to vector<1024xf32>
    %4 = vector.shape_cast %3 : vector<1024xf32> to vector<1x1024xf32>
    %5 = arith.mulf %2, %2 : vector<2x1024xf32>
    %cst_4 = arith.constant dense<0.000000e+00> : vector<1024xf32>
    %6 = vector.multi_reduction <add>, %5, %cst_4 [0] : vector<2x1024xf32> to vector<1024xf32>
    %7 = vector.shape_cast %6 : vector<1024xf32> to vector<1x1024xf32>
    %8 = tpu.concatenate %4, %7 in 0 : vector<1x1024xf32>, vector<1x1024xf32> -> vector<2x1024xf32>
    %c0_5 = arith.constant 0 : index
    %c0_6 = arith.constant 0 : index
    %9 = vector.load %arg3[%c0_5, %c0_6] : memref<1024x16xf32, #tpu.memory_space<vmem>>, vector<1024x16xf32>
    %cst_7 = arith.constant dense<0.000000e+00> : vector<2x16xf32>
    %10 = tpu.matmul %8, %9, %cst_7 {dimension_numbers = #tpu.dot_dimension_numbers<[1], [0], [0], [1], [0, 0, 1, 1], [], []>} : vector<2x1024xf32>, vector<1024x16xf32>, vector<2x16xf32> -> vector<2x16xf32>
    %11 = vector.extract_strided_slice %10 {offsets = [0, 0], sizes = [1, 16], strides = [1, 1]} : vector<2x16xf32> to vector<1x16xf32>
    %cst_8 = arith.constant 7.812500e-03 : f32
    %12 = vector.broadcast %cst_8 : f32 to vector<1x16xf32>
    %13 = arith.mulf %11, %12 : vector<1x16xf32>
    %14 = vector.extract_strided_slice %10 {offsets = [1, 0], sizes = [1, 16], strides = [1, 1]} : vector<2x16xf32> to vector<1x16xf32>
    %cst_9 = arith.constant 7.812500e-03 : f32
    %15 = vector.broadcast %cst_9 : f32 to vector<1x16xf32>
    %16 = arith.mulf %14, %15 : vector<1x16xf32>
    %17 = arith.mulf %13, %13 : vector<1x16xf32>
    %18 = arith.subf %16, %17 : vector<1x16xf32>
    %c0_10 = arith.constant 0 : index
    %c0_11 = arith.constant 0 : index
    %19 = vector.load %arg5[%c0_10, %c0_11] : memref<2x16xf32, #tpu.memory_space<vmem>>, vector<1x16xf32>
    %cst_12 = arith.constant 9.99999974E-6 : f32
    %20 = vector.broadcast %cst_12 : f32 to vector<1x16xf32>
    %21 = arith.addf %18, %20 : vector<1x16xf32>
    %22 = math.rsqrt %21 : vector<1x16xf32>
    %23 = arith.mulf %19, %22 : vector<1x16xf32>
    %c1 = arith.constant 1 : index
    %c0_13 = arith.constant 0 : index
    %24 = vector.load %arg5[%c1, %c0_13] : memref<2x16xf32, #tpu.memory_space<vmem>>, vector<1x16xf32>
    %25 = arith.mulf %13, %23 : vector<1x16xf32>
    %26 = arith.subf %24, %25 : vector<1x16xf32>
    %27 = tpu.concatenate %23, %26 in 0 : vector<1x16xf32>, vector<1x16xf32> -> vector<2x16xf32>
    %c0_14 = arith.constant 0 : index
    %c0_15 = arith.constant 0 : index
    %28 = vector.load %arg4[%c0_14, %c0_15] : memref<16x1024xf32, #tpu.memory_space<vmem>>, vector<16x1024xf32>
    %cst_16 = arith.constant dense<0.000000e+00> : vector<2x1024xf32>
    %29 = tpu.matmul %27, %28, %cst_16 {dimension_numbers = #tpu.dot_dimension_numbers<[1], [0], [0], [1], [0, 0, 1, 1], [], []>} : vector<2x16xf32>, vector<16x1024xf32>, vector<2x1024xf32> -> vector<2x1024xf32>
    %30 = vector.extract_strided_slice %29 {offsets = [0, 0], sizes = [1, 1024], strides = [1, 1]} : vector<2x1024xf32> to vector<1x1024xf32>
    %31 = vector.broadcast %30 : vector<1x1024xf32> to vector<2x1024xf32>
    %32 = arith.mulf %2, %31 : vector<2x1024xf32>
    %33 = vector.extract_strided_slice %29 {offsets = [1, 0], sizes = [1, 1024], strides = [1, 1]} : vector<2x1024xf32> to vector<1x1024xf32>
    %34 = vector.broadcast %33 : vector<1x1024xf32> to vector<2x1024xf32>
    %35 = arith.addf %32, %34 : vector<2x1024xf32>
    %cst_17 = arith.constant 0.000000e+00 : f32
    %36 = vector.broadcast %cst_17 : f32 to vector<2x1024xf32>
    %37 = arith.maximumf %35, %36 : vector<2x1024xf32>
    %cst_18 = arith.constant 0.000000e+00 : f32
    %38 = vector.broadcast %cst_18 : f32 to vector<2x128xf32>
    %cst_19 = arith.constant 0.000000e+00 : f32
    %39 = vector.broadcast %cst_19 : f32 to vector<2x128xf32>
    %40 = tpu.concatenate %38, %37, %39 in 1 : vector<2x128xf32>, vector<2x1024xf32>, vector<2x128xf32> -> vector<2x1280xf32>
    %c0_20 = arith.constant 0 : index
    %c0_21 = arith.constant 0 : index
    %c0_22 = arith.constant 0 : index
    %41 = vector.load %arg6[%c0_20, %c0_21, %c0_22] : memref<2x256x128xf32, #tpu.memory_space<vmem>>, vector<1x256x128xf32>
    %42 = vector.shape_cast %41 : vector<1x256x128xf32> to vector<256x128xf32>
    %43 = vector.extract_strided_slice %40 {offsets = [0, 0], sizes = [2, 256], strides = [1, 1]} : vector<2x1280xf32> to vector<2x256xf32>
    %cst_23 = arith.constant dense<0.000000e+00> : vector<2x128xf32>
    %44 = tpu.matmul %43, %42, %cst_23 {dimension_numbers = #tpu.dot_dimension_numbers<[1], [0], [0], [1], [0, 0, 1, 1], [], []>} : vector<2x256xf32>, vector<256x128xf32>, vector<2x128xf32> -> vector<2x128xf32>
    %45 = vector.extract_strided_slice %40 {offsets = [0, 128], sizes = [2, 256], strides = [1, 1]} : vector<2x1280xf32> to vector<2x256xf32>
    %cst_24 = arith.constant dense<0.000000e+00> : vector<2x128xf32>
    %46 = tpu.matmul %45, %42, %cst_24 {dimension_numbers = #tpu.dot_dimension_numbers<[1], [0], [0], [1], [0, 0, 1, 1], [], []>} : vector<2x256xf32>, vector<256x128xf32>, vector<2x128xf32> -> vector<2x128xf32>
    %47 = vector.extract_strided_slice %40 {offsets = [0, 256], sizes = [2, 256], strides = [1, 1]} : vector<2x1280xf32> to vector<2x256xf32>
    %cst_25 = arith.constant dense<0.000000e+00> : vector<2x128xf32>
    %48 = tpu.matmul %47, %42, %cst_25 {dimension_numbers = #tpu.dot_dimension_numbers<[1], [0], [0], [1], [0, 0, 1, 1], [], []>} : vector<2x256xf32>, vector<256x128xf32>, vector<2x128xf32> -> vector<2x128xf32>
    %49 = vector.extract_strided_slice %40 {offsets = [0, 384], sizes = [2, 256], strides = [1, 1]} : vector<2x1280xf32> to vector<2x256xf32>
    %cst_26 = arith.constant dense<0.000000e+00> : vector<2x128xf32>
    %50 = tpu.matmul %49, %42, %cst_26 {dimension_numbers = #tpu.dot_dimension_numbers<[1], [0], [0], [1], [0, 0, 1, 1], [], []>} : vector<2x256xf32>, vector<256x128xf32>, vector<2x128xf32> -> vector<2x128xf32>
    %51 = vector.extract_strided_slice %40 {offsets = [0, 512], sizes = [2, 256], strides = [1, 1]} : vector<2x1280xf32> to vector<2x256xf32>
    %cst_27 = arith.constant dense<0.000000e+00> : vector<2x128xf32>
    %52 = tpu.matmul %51, %42, %cst_27 {dimension_numbers = #tpu.dot_dimension_numbers<[1], [0], [0], [1], [0, 0, 1, 1], [], []>} : vector<2x256xf32>, vector<256x128xf32>, vector<2x128xf32> -> vector<2x128xf32>
    %53 = vector.extract_strided_slice %40 {offsets = [0, 640], sizes = [2, 256], strides = [1, 1]} : vector<2x1280xf32> to vector<2x256xf32>
    %cst_28 = arith.constant dense<0.000000e+00> : vector<2x128xf32>
    %54 = tpu.matmul %53, %42, %cst_28 {dimension_numbers = #tpu.dot_dimension_numbers<[1], [0], [0], [1], [0, 0, 1, 1], [], []>} : vector<2x256xf32>, vector<256x128xf32>, vector<2x128xf32> -> vector<2x128xf32>
    %55 = vector.extract_strided_slice %40 {offsets = [0, 768], sizes = [2, 256], strides = [1, 1]} : vector<2x1280xf32> to vector<2x256xf32>
    %cst_29 = arith.constant dense<0.000000e+00> : vector<2x128xf32>
    %56 = tpu.matmul %55, %42, %cst_29 {dimension_numbers = #tpu.dot_dimension_numbers<[1], [0], [0], [1], [0, 0, 1, 1], [], []>} : vector<2x256xf32>, vector<256x128xf32>, vector<2x128xf32> -> vector<2x128xf32>
    %57 = vector.extract_strided_slice %40 {offsets = [0, 896], sizes = [2, 256], strides = [1, 1]} : vector<2x1280xf32> to vector<2x256xf32>
    %cst_30 = arith.constant dense<0.000000e+00> : vector<2x128xf32>
    %58 = tpu.matmul %57, %42, %cst_30 {dimension_numbers = #tpu.dot_dimension_numbers<[1], [0], [0], [1], [0, 0, 1, 1], [], []>} : vector<2x256xf32>, vector<256x128xf32>, vector<2x128xf32> -> vector<2x128xf32>
    %c1_31 = arith.constant 1 : index
    %c0_32 = arith.constant 0 : index
    %c0_33 = arith.constant 0 : index
    %59 = vector.load %arg6[%c1_31, %c0_32, %c0_33] : memref<2x256x128xf32, #tpu.memory_space<vmem>>, vector<1x256x128xf32>
    %60 = vector.shape_cast %59 : vector<1x256x128xf32> to vector<256x128xf32>
    %61 = vector.extract_strided_slice %40 {offsets = [0, 128], sizes = [2, 256], strides = [1, 1]} : vector<2x1280xf32> to vector<2x256xf32>
    %cst_34 = arith.constant dense<0.000000e+00> : vector<2x128xf32>
    %62 = tpu.matmul %61, %60, %cst_34 {dimension_numbers = #tpu.dot_dimension_numbers<[1], [0], [0], [1], [0, 0, 1, 1], [], []>} : vector<2x256xf32>, vector<256x128xf32>, vector<2x128xf32> -> vector<2x128xf32>
    %63 = vector.extract_strided_slice %40 {offsets = [0, 256], sizes = [2, 256], strides = [1, 1]} : vector<2x1280xf32> to vector<2x256xf32>
    %cst_35 = arith.constant dense<0.000000e+00> : vector<2x128xf32>
    %64 = tpu.matmul %63, %60, %cst_35 {dimension_numbers = #tpu.dot_dimension_numbers<[1], [0], [0], [1], [0, 0, 1, 1], [], []>} : vector<2x256xf32>, vector<256x128xf32>, vector<2x128xf32> -> vector<2x128xf32>
    %65 = vector.extract_strided_slice %40 {offsets = [0, 384], sizes = [2, 256], strides = [1, 1]} : vector<2x1280xf32> to vector<2x256xf32>
    %cst_36 = arith.constant dense<0.000000e+00> : vector<2x128xf32>
    %66 = tpu.matmul %65, %60, %cst_36 {dimension_numbers = #tpu.dot_dimension_numbers<[1], [0], [0], [1], [0, 0, 1, 1], [], []>} : vector<2x256xf32>, vector<256x128xf32>, vector<2x128xf32> -> vector<2x128xf32>
    %67 = vector.extract_strided_slice %40 {offsets = [0, 512], sizes = [2, 256], strides = [1, 1]} : vector<2x1280xf32> to vector<2x256xf32>
    %cst_37 = arith.constant dense<0.000000e+00> : vector<2x128xf32>
    %68 = tpu.matmul %67, %60, %cst_37 {dimension_numbers = #tpu.dot_dimension_numbers<[1], [0], [0], [1], [0, 0, 1, 1], [], []>} : vector<2x256xf32>, vector<256x128xf32>, vector<2x128xf32> -> vector<2x128xf32>
    %69 = vector.extract_strided_slice %40 {offsets = [0, 640], sizes = [2, 256], strides = [1, 1]} : vector<2x1280xf32> to vector<2x256xf32>
    %cst_38 = arith.constant dense<0.000000e+00> : vector<2x128xf32>
    %70 = tpu.matmul %69, %60, %cst_38 {dimension_numbers = #tpu.dot_dimension_numbers<[1], [0], [0], [1], [0, 0, 1, 1], [], []>} : vector<2x256xf32>, vector<256x128xf32>, vector<2x128xf32> -> vector<2x128xf32>
    %71 = vector.extract_strided_slice %40 {offsets = [0, 768], sizes = [2, 256], strides = [1, 1]} : vector<2x1280xf32> to vector<2x256xf32>
    %cst_39 = arith.constant dense<0.000000e+00> : vector<2x128xf32>
    %72 = tpu.matmul %71, %60, %cst_39 {dimension_numbers = #tpu.dot_dimension_numbers<[1], [0], [0], [1], [0, 0, 1, 1], [], []>} : vector<2x256xf32>, vector<256x128xf32>, vector<2x128xf32> -> vector<2x128xf32>
    %73 = vector.extract_strided_slice %40 {offsets = [0, 896], sizes = [2, 256], strides = [1, 1]} : vector<2x1280xf32> to vector<2x256xf32>
    %cst_40 = arith.constant dense<0.000000e+00> : vector<2x128xf32>
    %74 = tpu.matmul %73, %60, %cst_40 {dimension_numbers = #tpu.dot_dimension_numbers<[1], [0], [0], [1], [0, 0, 1, 1], [], []>} : vector<2x256xf32>, vector<256x128xf32>, vector<2x128xf32> -> vector<2x128xf32>
    %75 = vector.extract_strided_slice %40 {offsets = [0, 1024], sizes = [2, 256], strides = [1, 1]} : vector<2x1280xf32> to vector<2x256xf32>
    %cst_41 = arith.constant dense<0.000000e+00> : vector<2x128xf32>
    %76 = tpu.matmul %75, %60, %cst_41 {dimension_numbers = #tpu.dot_dimension_numbers<[1], [0], [0], [1], [0, 0, 1, 1], [], []>} : vector<2x256xf32>, vector<256x128xf32>, vector<2x128xf32> -> vector<2x128xf32>
    %77 = tpu.concatenate %44, %62, %46, %64, %48, %66, %50, %68, %52, %70, %54, %72, %56, %74, %58, %76 in 1 : vector<2x128xf32>, vector<2x128xf32>, vector<2x128xf32>, vector<2x128xf32>, vector<2x128xf32>, vector<2x128xf32>, vector<2x128xf32>, vector<2x128xf32>, vector<2x128xf32>, vector<2x128xf32>, vector<2x128xf32>, vector<2x128xf32>, vector<2x128xf32>, vector<2x128xf32>, vector<2x128xf32>, vector<2x128xf32> -> vector<2x2048xf32>
    %cst_42 = arith.constant dense<0.000000e+00> : vector<2048xf32>
    %78 = vector.multi_reduction <add>, %77, %cst_42 [0] : vector<2x2048xf32> to vector<2048xf32>
    %79 = vector.shape_cast %78 : vector<2048xf32> to vector<1x2048xf32>
    %80 = arith.mulf %77, %77 : vector<2x2048xf32>
    %cst_43 = arith.constant dense<0.000000e+00> : vector<2048xf32>
    %81 = vector.multi_reduction <add>, %80, %cst_43 [0] : vector<2x2048xf32> to vector<2048xf32>
    %82 = vector.shape_cast %81 : vector<2048xf32> to vector<1x2048xf32>
    %83 = tpu.concatenate %79, %82 in 0 : vector<1x2048xf32>, vector<1x2048xf32> -> vector<2x2048xf32>
    %c0_44 = arith.constant 0 : index
    %c0_45 = arith.constant 0 : index
    %84 = vector.load %arg7[%c0_44, %c0_45] : memref<2048x8xf32, #tpu.memory_space<vmem>>, vector<2048x8xf32>
    %cst_46 = arith.constant dense<0.000000e+00> : vector<2x8xf32>
    %85 = tpu.matmul %83, %84, %cst_46 {dimension_numbers = #tpu.dot_dimension_numbers<[1], [0], [0], [1], [0, 0, 1, 1], [], []>} : vector<2x2048xf32>, vector<2048x8xf32>, vector<2x8xf32> -> vector<2x8xf32>
    %86 = vector.extract_strided_slice %85 {offsets = [0, 0], sizes = [1, 8], strides = [1, 1]} : vector<2x8xf32> to vector<1x8xf32>
    %cst_47 = arith.constant 0.001953125 : f32
    %87 = vector.broadcast %cst_47 : f32 to vector<1x8xf32>
    %88 = arith.mulf %86, %87 : vector<1x8xf32>
    %89 = vector.extract_strided_slice %85 {offsets = [1, 0], sizes = [1, 8], strides = [1, 1]} : vector<2x8xf32> to vector<1x8xf32>
    %cst_48 = arith.constant 0.001953125 : f32
    %90 = vector.broadcast %cst_48 : f32 to vector<1x8xf32>
    %91 = arith.mulf %89, %90 : vector<1x8xf32>
    %92 = arith.mulf %88, %88 : vector<1x8xf32>
    %93 = arith.subf %91, %92 : vector<1x8xf32>
    %c0_49 = arith.constant 0 : index
    %c0_50 = arith.constant 0 : index
    %94 = vector.load %arg9[%c0_49, %c0_50] : memref<2x8xf32, #tpu.memory_space<vmem>>, vector<1x8xf32>
    %cst_51 = arith.constant 9.99999974E-6 : f32
    %95 = vector.broadcast %cst_51 : f32 to vector<1x8xf32>
    %96 = arith.addf %93, %95 : vector<1x8xf32>
    %97 = math.rsqrt %96 : vector<1x8xf32>
    %98 = arith.mulf %94, %97 : vector<1x8xf32>
    %c1_52 = arith.constant 1 : index
    %c0_53 = arith.constant 0 : index
    %99 = vector.load %arg9[%c1_52, %c0_53] : memref<2x8xf32, #tpu.memory_space<vmem>>, vector<1x8xf32>
    %100 = arith.mulf %88, %98 : vector<1x8xf32>
    %101 = arith.subf %99, %100 : vector<1x8xf32>
    %102 = tpu.concatenate %98, %101 in 0 : vector<1x8xf32>, vector<1x8xf32> -> vector<2x8xf32>
    %c0_54 = arith.constant 0 : index
    %c0_55 = arith.constant 0 : index
    %103 = vector.load %arg8[%c0_54, %c0_55] : memref<8x2048xf32, #tpu.memory_space<vmem>>, vector<8x2048xf32>
    %cst_56 = arith.constant dense<0.000000e+00> : vector<2x2048xf32>
    %104 = tpu.matmul %102, %103, %cst_56 {dimension_numbers = #tpu.dot_dimension_numbers<[1], [0], [0], [1], [0, 0, 1, 1], [], []>} : vector<2x8xf32>, vector<8x2048xf32>, vector<2x2048xf32> -> vector<2x2048xf32>
    %105 = vector.extract_strided_slice %104 {offsets = [0, 0], sizes = [1, 2048], strides = [1, 1]} : vector<2x2048xf32> to vector<1x2048xf32>
    %106 = vector.broadcast %105 : vector<1x2048xf32> to vector<2x2048xf32>
    %107 = arith.mulf %77, %106 : vector<2x2048xf32>
    %108 = vector.extract_strided_slice %104 {offsets = [1, 0], sizes = [1, 2048], strides = [1, 1]} : vector<2x2048xf32> to vector<1x2048xf32>
    %109 = vector.broadcast %108 : vector<1x2048xf32> to vector<2x2048xf32>
    %110 = arith.addf %107, %109 : vector<2x2048xf32>
    %cst_57 = arith.constant 0.000000e+00 : f32
    %111 = vector.broadcast %cst_57 : f32 to vector<2x2048xf32>
    %112 = arith.maximumf %110, %111 : vector<2x2048xf32>
    %cst_58 = arith.constant 0.000000e+00 : f32
    %113 = vector.broadcast %cst_58 : f32 to vector<2x128xf32>
    %cst_59 = arith.constant 0.000000e+00 : f32
    %114 = vector.broadcast %cst_59 : f32 to vector<2x128xf32>
    %115 = tpu.concatenate %113, %112, %114 in 1 : vector<2x128xf32>, vector<2x2048xf32>, vector<2x128xf32> -> vector<2x2304xf32>
    %c0_60 = arith.constant 0 : index
    %c0_61 = arith.constant 0 : index
    %c0_62 = arith.constant 0 : index
    %116 = vector.load %arg10[%c0_60, %c0_61, %c0_62] : memref<2x256x128xf32, #tpu.memory_space<vmem>>, vector<1x256x128xf32>
    %117 = vector.shape_cast %116 : vector<1x256x128xf32> to vector<256x128xf32>
    %118 = vector.extract_strided_slice %115 {offsets = [0, 0], sizes = [2, 256], strides = [1, 1]} : vector<2x2304xf32> to vector<2x256xf32>
    %cst_63 = arith.constant dense<0.000000e+00> : vector<2x128xf32>
    %119 = tpu.matmul %118, %117, %cst_63 {dimension_numbers = #tpu.dot_dimension_numbers<[1], [0], [0], [1], [0, 0, 1, 1], [], []>} : vector<2x256xf32>, vector<256x128xf32>, vector<2x128xf32> -> vector<2x128xf32>
    %120 = vector.extract_strided_slice %115 {offsets = [0, 128], sizes = [2, 256], strides = [1, 1]} : vector<2x2304xf32> to vector<2x256xf32>
    %cst_64 = arith.constant dense<0.000000e+00> : vector<2x128xf32>
    %121 = tpu.matmul %120, %117, %cst_64 {dimension_numbers = #tpu.dot_dimension_numbers<[1], [0], [0], [1], [0, 0, 1, 1], [], []>} : vector<2x256xf32>, vector<256x128xf32>, vector<2x128xf32> -> vector<2x128xf32>
    %122 = vector.extract_strided_slice %115 {offsets = [0, 256], sizes = [2, 256], strides = [1, 1]} : vector<2x2304xf32> to vector<2x256xf32>
    %cst_65 = arith.constant dense<0.000000e+00> : vector<2x128xf32>
    %123 = tpu.matmul %122, %117, %cst_65 {dimension_numbers = #tpu.dot_dimension_numbers<[1], [0], [0], [1], [0, 0, 1, 1], [], []>} : vector<2x256xf32>, vector<256x128xf32>, vector<2x128xf32> -> vector<2x128xf32>
    %124 = vector.extract_strided_slice %115 {offsets = [0, 384], sizes = [2, 256], strides = [1, 1]} : vector<2x2304xf32> to vector<2x256xf32>
    %cst_66 = arith.constant dense<0.000000e+00> : vector<2x128xf32>
    %125 = tpu.matmul %124, %117, %cst_66 {dimension_numbers = #tpu.dot_dimension_numbers<[1], [0], [0], [1], [0, 0, 1, 1], [], []>} : vector<2x256xf32>, vector<256x128xf32>, vector<2x128xf32> -> vector<2x128xf32>
    %126 = vector.extract_strided_slice %115 {offsets = [0, 512], sizes = [2, 256], strides = [1, 1]} : vector<2x2304xf32> to vector<2x256xf32>
    %cst_67 = arith.constant dense<0.000000e+00> : vector<2x128xf32>
    %127 = tpu.matmul %126, %117, %cst_67 {dimension_numbers = #tpu.dot_dimension_numbers<[1], [0], [0], [1], [0, 0, 1, 1], [], []>} : vector<2x256xf32>, vector<256x128xf32>, vector<2x128xf32> -> vector<2x128xf32>
    %128 = vector.extract_strided_slice %115 {offsets = [0, 640], sizes = [2, 256], strides = [1, 1]} : vector<2x2304xf32> to vector<2x256xf32>
    %cst_68 = arith.constant dense<0.000000e+00> : vector<2x128xf32>
    %129 = tpu.matmul %128, %117, %cst_68 {dimension_numbers = #tpu.dot_dimension_numbers<[1], [0], [0], [1], [0, 0, 1, 1], [], []>} : vector<2x256xf32>, vector<256x128xf32>, vector<2x128xf32> -> vector<2x128xf32>
    %130 = vector.extract_strided_slice %115 {offsets = [0, 768], sizes = [2, 256], strides = [1, 1]} : vector<2x2304xf32> to vector<2x256xf32>
    %cst_69 = arith.constant dense<0.000000e+00> : vector<2x128xf32>
    %131 = tpu.matmul %130, %117, %cst_69 {dimension_numbers = #tpu.dot_dimension_numbers<[1], [0], [0], [1], [0, 0, 1, 1], [], []>} : vector<2x256xf32>, vector<256x128xf32>, vector<2x128xf32> -> vector<2x128xf32>
    %132 = vector.extract_strided_slice %115 {offsets = [0, 896], sizes = [2, 256], strides = [1, 1]} : vector<2x2304xf32> to vector<2x256xf32>
    %cst_70 = arith.constant dense<0.000000e+00> : vector<2x128xf32>
    %133 = tpu.matmul %132, %117, %cst_70 {dimension_numbers = #tpu.dot_dimension_numbers<[1], [0], [0], [1], [0, 0, 1, 1], [], []>} : vector<2x256xf32>, vector<256x128xf32>, vector<2x128xf32> -> vector<2x128xf32>
    %134 = vector.extract_strided_slice %115 {offsets = [0, 1024], sizes = [2, 256], strides = [1, 1]} : vector<2x2304xf32> to vector<2x256xf32>
    %cst_71 = arith.constant dense<0.000000e+00> : vector<2x128xf32>
    %135 = tpu.matmul %134, %117, %cst_71 {dimension_numbers = #tpu.dot_dimension_numbers<[1], [0], [0], [1], [0, 0, 1, 1], [], []>} : vector<2x256xf32>, vector<256x128xf32>, vector<2x128xf32> -> vector<2x128xf32>
    %136 = vector.extract_strided_slice %115 {offsets = [0, 1152], sizes = [2, 256], strides = [1, 1]} : vector<2x2304xf32> to vector<2x256xf32>
    %cst_72 = arith.constant dense<0.000000e+00> : vector<2x128xf32>
    %137 = tpu.matmul %136, %117, %cst_72 {dimension_numbers = #tpu.dot_dimension_numbers<[1], [0], [0], [1], [0, 0, 1, 1], [], []>} : vector<2x256xf32>, vector<256x128xf32>, vector<2x128xf32> -> vector<2x128xf32>
    %138 = vector.extract_strided_slice %115 {offsets = [0, 1280], sizes = [2, 256], strides = [1, 1]} : vector<2x2304xf32> to vector<2x256xf32>
    %cst_73 = arith.constant dense<0.000000e+00> : vector<2x128xf32>
    %139 = tpu.matmul %138, %117, %cst_73 {dimension_numbers = #tpu.dot_dimension_numbers<[1], [0], [0], [1], [0, 0, 1, 1], [], []>} : vector<2x256xf32>, vector<256x128xf32>, vector<2x128xf32> -> vector<2x128xf32>
    %140 = vector.extract_strided_slice %115 {offsets = [0, 1408], sizes = [2, 256], strides = [1, 1]} : vector<2x2304xf32> to vector<2x256xf32>
    %cst_74 = arith.constant dense<0.000000e+00> : vector<2x128xf32>
    %141 = tpu.matmul %140, %117, %cst_74 {dimension_numbers = #tpu.dot_dimension_numbers<[1], [0], [0], [1], [0, 0, 1, 1], [], []>} : vector<2x256xf32>, vector<256x128xf32>, vector<2x128xf32> -> vector<2x128xf32>
    %142 = vector.extract_strided_slice %115 {offsets = [0, 1536], sizes = [2, 256], strides = [1, 1]} : vector<2x2304xf32> to vector<2x256xf32>
    %cst_75 = arith.constant dense<0.000000e+00> : vector<2x128xf32>
    %143 = tpu.matmul %142, %117, %cst_75 {dimension_numbers = #tpu.dot_dimension_numbers<[1], [0], [0], [1], [0, 0, 1, 1], [], []>} : vector<2x256xf32>, vector<256x128xf32>, vector<2x128xf32> -> vector<2x128xf32>
    %144 = vector.extract_strided_slice %115 {offsets = [0, 1664], sizes = [2, 256], strides = [1, 1]} : vector<2x2304xf32> to vector<2x256xf32>
    %cst_76 = arith.constant dense<0.000000e+00> : vector<2x128xf32>
    %145 = tpu.matmul %144, %117, %cst_76 {dimension_numbers = #tpu.dot_dimension_numbers<[1], [0], [0], [1], [0, 0, 1, 1], [], []>} : vector<2x256xf32>, vector<256x128xf32>, vector<2x128xf32> -> vector<2x128xf32>
    %146 = vector.extract_strided_slice %115 {offsets = [0, 1792], sizes = [2, 256], strides = [1, 1]} : vector<2x2304xf32> to vector<2x256xf32>
    %cst_77 = arith.constant dense<0.000000e+00> : vector<2x128xf32>
    %147 = tpu.matmul %146, %117, %cst_77 {dimension_numbers = #tpu.dot_dimension_numbers<[1], [0], [0], [1], [0, 0, 1, 1], [], []>} : vector<2x256xf32>, vector<256x128xf32>, vector<2x128xf32> -> vector<2x128xf32>
    %148 = vector.extract_strided_slice %115 {offsets = [0, 1920], sizes = [2, 256], strides = [1, 1]} : vector<2x2304xf32> to vector<2x256xf32>
    %cst_78 = arith.constant dense<0.000000e+00> : vector<2x128xf32>
    %149 = tpu.matmul %148, %117, %cst_78 {dimension_numbers = #tpu.dot_dimension_numbers<[1], [0], [0], [1], [0, 0, 1, 1], [], []>} : vector<2x256xf32>, vector<256x128xf32>, vector<2x128xf32> -> vector<2x128xf32>
    %c1_79 = arith.constant 1 : index
    %c0_80 = arith.constant 0 : index
    %c0_81 = arith.constant 0 : index
    %150 = vector.load %arg10[%c1_79, %c0_80, %c0_81] : memref<2x256x128xf32, #tpu.memory_space<vmem>>, vector<1x256x128xf32>
    %151 = vector.shape_cast %150 : vector<1x256x128xf32> to vector<256x128xf32>
    %152 = vector.extract_strided_slice %115 {offsets = [0, 128], sizes = [2, 256], strides = [1, 1]} : vector<2x2304xf32> to vector<2x256xf32>
    %cst_82 = arith.constant dense<0.000000e+00> : vector<2x128xf32>
    %153 = tpu.matmul %152, %151, %cst_82 {dimension_numbers = #tpu.dot_dimension_numbers<[1], [0], [0], [1], [0, 0, 1, 1], [], []>} : vector<2x256xf32>, vector<256x128xf32>, vector<2x128xf32> -> vector<2x128xf32>
    %154 = vector.extract_strided_slice %115 {offsets = [0, 256], sizes = [2, 256], strides = [1, 1]} : vector<2x2304xf32> to vector<2x256xf32>
    %cst_83 = arith.constant dense<0.000000e+00> : vector<2x128xf32>
    %155 = tpu.matmul %154, %151, %cst_83 {dimension_numbers = #tpu.dot_dimension_numbers<[1], [0], [0], [1], [0, 0, 1, 1], [], []>} : vector<2x256xf32>, vector<256x128xf32>, vector<2x128xf32> -> vector<2x128xf32>
    %156 = vector.extract_strided_slice %115 {offsets = [0, 384], sizes = [2, 256], strides = [1, 1]} : vector<2x2304xf32> to vector<2x256xf32>
    %cst_84 = arith.constant dense<0.000000e+00> : vector<2x128xf32>
    %157 = tpu.matmul %156, %151, %cst_84 {dimension_numbers = #tpu.dot_dimension_numbers<[1], [0], [0], [1], [0, 0, 1, 1], [], []>} : vector<2x256xf32>, vector<256x128xf32>, vector<2x128xf32> -> vector<2x128xf32>
    %158 = vector.extract_strided_slice %115 {offsets = [0, 512], sizes = [2, 256], strides = [1, 1]} : vector<2x2304xf32> to vector<2x256xf32>
    %cst_85 = arith.constant dense<0.000000e+00> : vector<2x128xf32>
    %159 = tpu.matmul %158, %151, %cst_85 {dimension_numbers = #tpu.dot_dimension_numbers<[1], [0], [0], [1], [0, 0, 1, 1], [], []>} : vector<2x256xf32>, vector<256x128xf32>, vector<2x128xf32> -> vector<2x128xf32>
    %160 = vector.extract_strided_slice %115 {offsets = [0, 640], sizes = [2, 256], strides = [1, 1]} : vector<2x2304xf32> to vector<2x256xf32>
    %cst_86 = arith.constant dense<0.000000e+00> : vector<2x128xf32>
    %161 = tpu.matmul %160, %151, %cst_86 {dimension_numbers = #tpu.dot_dimension_numbers<[1], [0], [0], [1], [0, 0, 1, 1], [], []>} : vector<2x256xf32>, vector<256x128xf32>, vector<2x128xf32> -> vector<2x128xf32>
    %162 = vector.extract_strided_slice %115 {offsets = [0, 768], sizes = [2, 256], strides = [1, 1]} : vector<2x2304xf32> to vector<2x256xf32>
    %cst_87 = arith.constant dense<0.000000e+00> : vector<2x128xf32>
    %163 = tpu.matmul %162, %151, %cst_87 {dimension_numbers = #tpu.dot_dimension_numbers<[1], [0], [0], [1], [0, 0, 1, 1], [], []>} : vector<2x256xf32>, vector<256x128xf32>, vector<2x128xf32> -> vector<2x128xf32>
    %164 = vector.extract_strided_slice %115 {offsets = [0, 896], sizes = [2, 256], strides = [1, 1]} : vector<2x2304xf32> to vector<2x256xf32>
    %cst_88 = arith.constant dense<0.000000e+00> : vector<2x128xf32>
    %165 = tpu.matmul %164, %151, %cst_88 {dimension_numbers = #tpu.dot_dimension_numbers<[1], [0], [0], [1], [0, 0, 1, 1], [], []>} : vector<2x256xf32>, vector<256x128xf32>, vector<2x128xf32> -> vector<2x128xf32>
    %166 = vector.extract_strided_slice %115 {offsets = [0, 1024], sizes = [2, 256], strides = [1, 1]} : vector<2x2304xf32> to vector<2x256xf32>
    %cst_89 = arith.constant dense<0.000000e+00> : vector<2x128xf32>
    %167 = tpu.matmul %166, %151, %cst_89 {dimension_numbers = #tpu.dot_dimension_numbers<[1], [0], [0], [1], [0, 0, 1, 1], [], []>} : vector<2x256xf32>, vector<256x128xf32>, vector<2x128xf32> -> vector<2x128xf32>
    %168 = vector.extract_strided_slice %115 {offsets = [0, 1152], sizes = [2, 256], strides = [1, 1]} : vector<2x2304xf32> to vector<2x256xf32>
    %cst_90 = arith.constant dense<0.000000e+00> : vector<2x128xf32>
    %169 = tpu.matmul %168, %151, %cst_90 {dimension_numbers = #tpu.dot_dimension_numbers<[1], [0], [0], [1], [0, 0, 1, 1], [], []>} : vector<2x256xf32>, vector<256x128xf32>, vector<2x128xf32> -> vector<2x128xf32>
    %170 = vector.extract_strided_slice %115 {offsets = [0, 1280], sizes = [2, 256], strides = [1, 1]} : vector<2x2304xf32> to vector<2x256xf32>
    %cst_91 = arith.constant dense<0.000000e+00> : vector<2x128xf32>
    %171 = tpu.matmul %170, %151, %cst_91 {dimension_numbers = #tpu.dot_dimension_numbers<[1], [0], [0], [1], [0, 0, 1, 1], [], []>} : vector<2x256xf32>, vector<256x128xf32>, vector<2x128xf32> -> vector<2x128xf32>
    %172 = vector.extract_strided_slice %115 {offsets = [0, 1408], sizes = [2, 256], strides = [1, 1]} : vector<2x2304xf32> to vector<2x256xf32>
    %cst_92 = arith.constant dense<0.000000e+00> : vector<2x128xf32>
    %173 = tpu.matmul %172, %151, %cst_92 {dimension_numbers = #tpu.dot_dimension_numbers<[1], [0], [0], [1], [0, 0, 1, 1], [], []>} : vector<2x256xf32>, vector<256x128xf32>, vector<2x128xf32> -> vector<2x128xf32>
    %174 = vector.extract_strided_slice %115 {offsets = [0, 1536], sizes = [2, 256], strides = [1, 1]} : vector<2x2304xf32> to vector<2x256xf32>
    %cst_93 = arith.constant dense<0.000000e+00> : vector<2x128xf32>
    %175 = tpu.matmul %174, %151, %cst_93 {dimension_numbers = #tpu.dot_dimension_numbers<[1], [0], [0], [1], [0, 0, 1, 1], [], []>} : vector<2x256xf32>, vector<256x128xf32>, vector<2x128xf32> -> vector<2x128xf32>
    %176 = vector.extract_strided_slice %115 {offsets = [0, 1664], sizes = [2, 256], strides = [1, 1]} : vector<2x2304xf32> to vector<2x256xf32>
    %cst_94 = arith.constant dense<0.000000e+00> : vector<2x128xf32>
    %177 = tpu.matmul %176, %151, %cst_94 {dimension_numbers = #tpu.dot_dimension_numbers<[1], [0], [0], [1], [0, 0, 1, 1], [], []>} : vector<2x256xf32>, vector<256x128xf32>, vector<2x128xf32> -> vector<2x128xf32>
    %178 = vector.extract_strided_slice %115 {offsets = [0, 1792], sizes = [2, 256], strides = [1, 1]} : vector<2x2304xf32> to vector<2x256xf32>
    %cst_95 = arith.constant dense<0.000000e+00> : vector<2x128xf32>
    %179 = tpu.matmul %178, %151, %cst_95 {dimension_numbers = #tpu.dot_dimension_numbers<[1], [0], [0], [1], [0, 0, 1, 1], [], []>} : vector<2x256xf32>, vector<256x128xf32>, vector<2x128xf32> -> vector<2x128xf32>
    %180 = vector.extract_strided_slice %115 {offsets = [0, 1920], sizes = [2, 256], strides = [1, 1]} : vector<2x2304xf32> to vector<2x256xf32>
    %cst_96 = arith.constant dense<0.000000e+00> : vector<2x128xf32>
    %181 = tpu.matmul %180, %151, %cst_96 {dimension_numbers = #tpu.dot_dimension_numbers<[1], [0], [0], [1], [0, 0, 1, 1], [], []>} : vector<2x256xf32>, vector<256x128xf32>, vector<2x128xf32> -> vector<2x128xf32>
    %182 = vector.extract_strided_slice %115 {offsets = [0, 2048], sizes = [2, 256], strides = [1, 1]} : vector<2x2304xf32> to vector<2x256xf32>
    %cst_97 = arith.constant dense<0.000000e+00> : vector<2x128xf32>
    %183 = tpu.matmul %182, %151, %cst_97 {dimension_numbers = #tpu.dot_dimension_numbers<[1], [0], [0], [1], [0, 0, 1, 1], [], []>} : vector<2x256xf32>, vector<256x128xf32>, vector<2x128xf32> -> vector<2x128xf32>
    %184 = tpu.concatenate %119, %153, %121, %155, %123, %157, %125, %159, %127, %161, %129, %163, %131, %165, %133, %167 in 1 : vector<2x128xf32>, vector<2x128xf32>, vector<2x128xf32>, vector<2x128xf32>, vector<2x128xf32>, vector<2x128xf32>, vector<2x128xf32>, vector<2x128xf32>, vector<2x128xf32>, vector<2x128xf32>, vector<2x128xf32>, vector<2x128xf32>, vector<2x128xf32>, vector<2x128xf32>, vector<2x128xf32>, vector<2x128xf32> -> vector<2x2048xf32>
    %185 = tpu.concatenate %135, %169, %137, %171, %139, %173, %141, %175, %143, %177, %145, %179, %147, %181, %149, %183 in 1 : vector<2x128xf32>, vector<2x128xf32>, vector<2x128xf32>, vector<2x128xf32>, vector<2x128xf32>, vector<2x128xf32>, vector<2x128xf32>, vector<2x128xf32>, vector<2x128xf32>, vector<2x128xf32>, vector<2x128xf32>, vector<2x128xf32>, vector<2x128xf32>, vector<2x128xf32>, vector<2x128xf32>, vector<2x128xf32> -> vector<2x2048xf32>
    %186 = tpu.concatenate %184, %185 in 1 : vector<2x2048xf32>, vector<2x2048xf32> -> vector<2x4096xf32>
    %c0_98 = arith.constant 0 : index
    %c0_99 = arith.constant 0 : index
    %187 = vector.load %arg11[%c0_98, %c0_99] : memref<1x4096xf32, #tpu.memory_space<vmem>>, vector<1x4096xf32>
    %188 = vector.broadcast %187 : vector<1x4096xf32> to vector<2x4096xf32>
    %189 = arith.addf %186, %188 : vector<2x4096xf32>
    %190 = math.tanh %189 : vector<2x4096xf32>
    %c0_100 = arith.constant 0 : index
    %c0_101 = arith.constant 0 : index
    %191 = vector.load %arg12[%c0_100, %c0_101] : memref<2x4096xf32, #tpu.memory_space<vmem>>, vector<2x4096xf32>
    tpu.vector_store %arg12[%c0_100, %c0_101], %190 {strides = array<i32>} : memref<2x4096xf32, #tpu.memory_space<vmem>>, vector<2x4096xf32>,
    return
  }
  func.func @transform_0(%arg0: i32) -> (i32, i32) {
    %c0_i32 = arith.constant 0 : i32
    %c0_i32_0 = arith.constant 0 : i32
    %c0_i32_1 = arith.constant 0 : i32
    return %c0_i32, %c0_i32_0 : i32, i32
  }
  func.func @transform_1(%arg0: i32) -> (i32, i32) {
    %c0_i32 = arith.constant 0 : i32
    %c0_i32_0 = arith.constant 0 : i32
    %c0_i32_1 = arith.constant 0 : i32
    return %c0_i32, %c0_i32_0 : i32, i32
  }
  func.func @transform_2(%arg0: i32) -> (i32, i32) {
    %c0_i32 = arith.constant 0 : i32
    %c0_i32_0 = arith.constant 0 : i32
    %c0_i32_1 = arith.constant 0 : i32
    return %c0_i32, %c0_i32_0 : i32, i32
  }
  func.func @transform_3(%arg0: i32) -> (i32, i32) {
    %c0_i32 = arith.constant 0 : i32
    %c0_i32_0 = arith.constant 0 : i32
    %c0_i32_1 = arith.constant 0 : i32
    return %c0_i32, %c0_i32_0 : i32, i32
  }
  func.func @transform_4(%arg0: i32) -> (i32, i32) {
    %c0_i32 = arith.constant 0 : i32
    %c0_i32_0 = arith.constant 0 : i32
    %c0_i32_1 = arith.constant 0 : i32
    return %c0_i32, %c0_i32_0 : i32, i32
  }
  func.func @transform_5(%arg0: i32) -> (i32, i32, i32) {
    %c0_i32 = arith.constant 0 : i32
    %c0_i32_0 = arith.constant 0 : i32
    %c0_i32_1 = arith.constant 0 : i32
    %c0_i32_2 = arith.constant 0 : i32
    return %c0_i32, %c0_i32_0, %c0_i32_1 : i32, i32, i32
  }
  func.func @transform_6(%arg0: i32) -> (i32, i32) {
    %c0_i32 = arith.constant 0 : i32
    %c0_i32_0 = arith.constant 0 : i32
    %c0_i32_1 = arith.constant 0 : i32
    return %c0_i32, %c0_i32_0 : i32, i32
  }
  func.func @transform_7(%arg0: i32) -> (i32, i32) {
    %c0_i32 = arith.constant 0 : i32
    %c0_i32_0 = arith.constant 0 : i32
    %c0_i32_1 = arith.constant 0 : i32
    return %c0_i32, %c0_i32_0 : i32, i32
  }
  func.func @transform_8(%arg0: i32) -> (i32, i32) {
    %c0_i32 = arith.constant 0 : i32
    %c0_i32_0 = arith.constant 0 : i32
    %c0_i32_1 = arith.constant 0 : i32
    return %c0_i32, %c0_i32_0 : i32, i32
  }
  func.func @transform_9(%arg0: i32) -> (i32, i32, i32) {
    %c0_i32 = arith.constant 0 : i32
    %c0_i32_0 = arith.constant 0 : i32
    %c0_i32_1 = arith.constant 0 : i32
    %c0_i32_2 = arith.constant 0 : i32
    return %c0_i32, %c0_i32_0, %c0_i32_1 : i32, i32, i32
  }
  func.func @transform_10(%arg0: i32) -> (i32, i32) {
    %c0_i32 = arith.constant 0 : i32
    %c0_i32_0 = arith.constant 0 : i32
    %c0_i32_1 = arith.constant 0 : i32
    return %c0_i32, %c0_i32_0 : i32, i32
  }
  func.func @transform_11(%arg0: i32) -> (i32, i32) {
    %c0_i32 = arith.constant 0 : i32
    %c0_i32_0 = arith.constant 0 : i32
    %c0_i32_1 = arith.constant 0 : i32
    return %c0_i32, %c0_i32_0 : i32, i32
  }
}

</mosaic_0001>

<llo_original>
// kernel: tpu_custom_call.1
$region0: #{tpu_custom_call.1}
  #allocation0 [shape = 'u32[]', space=smem, size = 0x4, offset = 0x4, fixed_abs, tag = 'smem constant byte address 0x4 - core index']
  #allocation1 [shape = 'u32[144,128]{1,0:T(1,128)}', space=vmem, size = 0x12000, scoped, tag = 'internal scratch']
  %s0 = inlined_call_operand.vmem [shape: f32[2,128], index: 0, kind: input, shape index: {}]
  %s1 = inlined_call_operand.vmem [shape: f32[128,1024], index: 1, kind: input, shape index: {}]
  %s2 = inlined_call_operand.vmem [shape: f32[1024,16], index: 2, kind: input, shape index: {}]
  %s3 = inlined_call_operand.vmem [shape: f32[16,1024], index: 3, kind: input, shape index: {}]
  %s4 = inlined_call_operand.vmem [shape: f32[2,16], index: 4, kind: input, shape index: {}]
  %s5 = inlined_call_operand.vmem [shape: f32[2,256,128], index: 5, kind: input, shape index: {}]
  %s6 = inlined_call_operand.vmem [shape: f32[2048,8], index: 6, kind: input, shape index: {}]
  %s7 = inlined_call_operand.vmem [shape: f32[8,2048], index: 7, kind: input, shape index: {}]
  %s8 = inlined_call_operand.vmem [shape: f32[2,8], index: 8, kind: input, shape index: {}]
  %s9 = inlined_call_operand.vmem [shape: f32[2,256,128], index: 9, kind: input, shape index: {}]
  %s10 = inlined_call_operand.vmem [shape: f32[1,4096], index: 10, kind: input, shape index: {}]
  %s11 = inlined_call_operand.hbm [shape: f32[2,4096], index: 11, kind: output, shape index: {}]
  %s12 = sld [smem:[#allocation0]]
  $region54: #{tpu_custom_call.1} parent=0
    _
  %s14 = ssub.s32 1, %s12
  %s15 = scalar_select 0, %s14, %s12
  $region1: #{tpu_custom_call.1} parent=0
    #allocation2 [shape = 'u8[32768]{0}', space=vmem, size = 0x8000, scoped, tag = 'output window, operand 0, single buffered']
    #allocation3 [shape = 's32[1]{0}', space=sflag, size = 0x4, scoped, tag = 'scoped memory for tpu_custom_call.1']
    %16 = vsyncpa [#allocation3], 0
    // Predicated region
    $region2: #{tpu_custom_call.1} parent=1 // pred_check
      _
    $region3: #{tpu_custom_call.1} parent=1 // pred_check_branch
      %18 = sbr.rel (0) target = $region5
    $region4: #{tpu_custom_call.1} parent=1 // pred_region
      _
    $region5: #{tpu_custom_call.1} parent=1 // pred_fallthru
      _
    // Predicated region
    $region6: #{tpu_custom_call.1} parent=1 // pred_check
      _
    $region7: #{tpu_custom_call.1} parent=1 // pred_check_branch
      %20 = sbr.rel (0) target = $region9
    $region8: #{tpu_custom_call.1} parent=1 // pred_region
      _
    $region9: #{tpu_custom_call.1} parent=1 // pred_fallthru
      _
    // Predicated region
    $region10: #{tpu_custom_call.1} parent=1 // pred_check
      _
    $region11: #{tpu_custom_call.1} parent=1 // pred_check_branch
      %22 = sbr.rel (0) target = $region13
    $region12: #{tpu_custom_call.1} parent=1 // pred_region
      _
    $region13: #{tpu_custom_call.1} parent=1 // pred_fallthru
      _
    // Predicated region
    $region14: #{tpu_custom_call.1} parent=1 // pred_check
      _
    $region15: #{tpu_custom_call.1} parent=1 // pred_check_branch
      %24 = sbr.rel (0) target = $region17
    $region16: #{tpu_custom_call.1} parent=1 // pred_region
      _
    $region17: #{tpu_custom_call.1} parent=1 // pred_fallthru
      _
    // Predicated region
    $region18: #{tpu_custom_call.1} parent=1 // pred_check
      _
    $region19: #{tpu_custom_call.1} parent=1 // pred_check_branch
      %26 = sbr.rel (0) target = $region21
    $region20: #{tpu_custom_call.1} parent=1 // pred_region
      _
    $region21: #{tpu_custom_call.1} parent=1 // pred_fallthru
      _
    // Predicated region
    $region22: #{tpu_custom_call.1} parent=1 // pred_check
      _
    $region23: #{tpu_custom_call.1} parent=1 // pred_check_branch
      %28 = sbr.rel (0) target = $region25
    $region24: #{tpu_custom_call.1} parent=1 // pred_region
      _
    $region25: #{tpu_custom_call.1} parent=1 // pred_fallthru
      _
    // Predicated region
    $region26: #{tpu_custom_call.1} parent=1 // pred_check
      _
    $region27: #{tpu_custom_call.1} parent=1 // pred_check_branch
      %30 = sbr.rel (0) target = $region29
    $region28: #{tpu_custom_call.1} parent=1 // pred_region
      _
    $region29: #{tpu_custom_call.1} parent=1 // pred_fallthru
      _
    // Predicated region
    $region30: #{tpu_custom_call.1} parent=1 // pred_check
      _
    $region31: #{tpu_custom_call.1} parent=1 // pred_check_branch
      %32 = sbr.rel (0) target = $region33
    $region32: #{tpu_custom_call.1} parent=1 // pred_region
      _
    $region33: #{tpu_custom_call.1} parent=1 // pred_fallthru
      _
    // Predicated region
    $region34: #{tpu_custom_call.1} parent=1 // pred_check
      _
    $region35: #{tpu_custom_call.1} parent=1 // pred_check_branch
      %34 = sbr.rel (0) target = $region37
    $region36: #{tpu_custom_call.1} parent=1 // pred_region
      _
    $region37: #{tpu_custom_call.1} parent=1 // pred_fallthru
      _
    // Predicated region
    $region38: #{tpu_custom_call.1} parent=1 // pred_check
      _
    $region39: #{tpu_custom_call.1} parent=1 // pred_check_branch
      %36 = sbr.rel (0) target = $region41
    $region40: #{tpu_custom_call.1} parent=1 // pred_region
      _
    $region41: #{tpu_custom_call.1} parent=1 // pred_fallthru
      _
    // Predicated region
    $region42: #{tpu_custom_call.1} parent=1 // pred_check
      _
    $region43: #{tpu_custom_call.1} parent=1 // pred_check_branch
      %38 = sbr.rel (0) target = $region45
    $region44: #{tpu_custom_call.1} parent=1 // pred_region
      _
    $region45: #{tpu_custom_call.1} parent=1 // pred_fallthru
      _
    %v39 = vld [vmem:[%s0] sm:$0x3]
    %v40 = vld [vmem:[%s1] sm:$0xff]
    %v41 = vld [vmem:[%s1 + $0x8] sm:$0xff]
    %v42 = vld [vmem:[%s1 + $0x10] sm:$0xff]
    %v43 = vld [vmem:[%s1 + $0x18] sm:$0xff]
    %v44 = vld [vmem:[%s1 + $0x20] sm:$0xff]
    %v45 = vld [vmem:[%s1 + $0x28] sm:$0xff]
    %v46 = vld [vmem:[%s1 + $0x30] sm:$0xff]
    %v47 = vld [vmem:[%s1 + $0x38] sm:$0xff]
    %v48 = vld [vmem:[%s1 + $0x40] sm:$0xff]
    %v49 = vld [vmem:[%s1 + $0x48] sm:$0xff]
    %v50 = vld [vmem:[%s1 + $0x50] sm:$0xff]
    %v51 = vld [vmem:[%s1 + $0x58] sm:$0xff]
    %v52 = vld [vmem:[%s1 + $0x60] sm:$0xff]
    %v53 = vld [vmem:[%s1 + $0x68] sm:$0xff]
    %v54 = vld [vmem:[%s1 + $0x70] sm:$0xff]
    %v55 = vld [vmem:[%s1 + $0x78] sm:$0xff]
    %v56 = vld [vmem:[%s1 + $0x80] sm:$0xff]
    %v57 = vld [vmem:[%s1 + $0x88] sm:$0xff]
    %v58 = vld [vmem:[%s1 + $0x90] sm:$0xff]
    %v59 = vld [vmem:[%s1 + $0x98] sm:$0xff]
    %v60 = vld [vmem:[%s1 + $0xa0] sm:$0xff]
    %v61 = vld [vmem:[%s1 + $0xa8] sm:$0xff]
    %v62 = vld [vmem:[%s1 + $0xb0] sm:$0xff]
    %v63 = vld [vmem:[%s1 + $0xb8] sm:$0xff]
    %v64 = vld [vmem:[%s1 + $0xc0] sm:$0xff]
    %v65 = vld [vmem:[%s1 + $0xc8] sm:$0xff]
    %v66 = vld [vmem:[%s1 + $0xd0] sm:$0xff]
    %v67 = vld [vmem:[%s1 + $0xd8] sm:$0xff]
    %v68 = vld [vmem:[%s1 + $0xe0] sm:$0xff]
    %v69 = vld [vmem:[%s1 + $0xe8] sm:$0xff]
    %v70 = vld [vmem:[%s1 + $0xf0] sm:$0xff]
    %v71 = vld [vmem:[%s1 + $0xf8] sm:$0xff]
    %v72 = vld [vmem:[%s1 + $0x100] sm:$0xff]
    %v73 = vld [vmem:[%s1 + $0x108] sm:$0xff]
    %v74 = vld [vmem:[%s1 + $0x110] sm:$0xff]
    %v75 = vld [vmem:[%s1 + $0x118] sm:$0xff]
    %v76 = vld [vmem:[%s1 + $0x120] sm:$0xff]
    %v77 = vld [vmem:[%s1 + $0x128] sm:$0xff]
    %v78 = vld [vmem:[%s1 + $0x130] sm:$0xff]
    %v79 = vld [vmem:[%s1 + $0x138] sm:$0xff]
    %v80 = vld [vmem:[%s1 + $0x140] sm:$0xff]
    %v81 = vld [vmem:[%s1 + $0x148] sm:$0xff]
    %v82 = vld [vmem:[%s1 + $0x150] sm:$0xff]
    %v83 = vld [vmem:[%s1 + $0x158] sm:$0xff]
    %v84 = vld [vmem:[%s1 + $0x160] sm:$0xff]
    %v85 = vld [vmem:[%s1 + $0x168] sm:$0xff]
    %v86 = vld [vmem:[%s1 + $0x170] sm:$0xff]
    %v87 = vld [vmem:[%s1 + $0x178] sm:$0xff]
    %v88 = vld [vmem:[%s1 + $0x180] sm:$0xff]
    %v89 = vld [vmem:[%s1 + $0x188] sm:$0xff]
    %v90 = vld [vmem:[%s1 + $0x190] sm:$0xff]
    %v91 = vld [vmem:[%s1 + $0x198] sm:$0xff]
    %v92 = vld [vmem:[%s1 + $0x1a0] sm:$0xff]
    %v93 = vld [vmem:[%s1 + $0x1a8] sm:$0xff]
    %v94 = vld [vmem:[%s1 + $0x1b0] sm:$0xff]
    %v95 = vld [vmem:[%s1 + $0x1b8] sm:$0xff]
    %v96 = vld [vmem:[%s1 + $0x1c0] sm:$0xff]
    %v97 = vld [vmem:[%s1 + $0x1c8] sm:$0xff]
    %v98 = vld [vmem:[%s1 + $0x1d0] sm:$0xff]
    %v99 = vld [vmem:[%s1 + $0x1d8] sm:$0xff]
    %v100 = vld [vmem:[%s1 + $0x1e0] sm:$0xff]
    %v101 = vld [vmem:[%s1 + $0x1e8] sm:$0xff]
    %v102 = vld [vmem:[%s1 + $0x1f0] sm:$0xff]
    %v103 = vld [vmem:[%s1 + $0x1f8] sm:$0xff]
    %v104 = vld [vmem:[%s1 + $0x200] sm:$0xff]
    %v105 = vld [vmem:[%s1 + $0x208] sm:$0xff]
    %v106 = vld [vmem:[%s1 + $0x210] sm:$0xff]
    %v107 = vld [vmem:[%s1 + $0x218] sm:$0xff]
    %v108 = vld [vmem:[%s1 + $0x220] sm:$0xff]
    %v109 = vld [vmem:[%s1 + $0x228] sm:$0xff]
    %v110 = vld [vmem:[%s1 + $0x230] sm:$0xff]
    %v111 = vld [vmem:[%s1 + $0x238] sm:$0xff]
    %v112 = vld [vmem:[%s1 + $0x240] sm:$0xff]
    %v113 = vld [vmem:[%s1 + $0x248] sm:$0xff]
    %v114 = vld [vmem:[%s1 + $0x250] sm:$0xff]
    %v115 = vld [vmem:[%s1 + $0x258] sm:$0xff]
    %v116 = vld [vmem:[%s1 + $0x260] sm:$0xff]
    %v117 = vld [vmem:[%s1 + $0x268] sm:$0xff]
    %v118 = vld [vmem:[%s1 + $0x270] sm:$0xff]
    %v119 = vld [vmem:[%s1 + $0x278] sm:$0xff]
    %v120 = vld [vmem:[%s1 + $0x280] sm:$0xff]
    %v121 = vld [vmem:[%s1 + $0x288] sm:$0xff]
    %v122 = vld [vmem:[%s1 + $0x290] sm:$0xff]
    %v123 = vld [vmem:[%s1 + $0x298] sm:$0xff]
    %v124 = vld [vmem:[%s1 + $0x2a0] sm:$0xff]
    %v125 = vld [vmem:[%s1 + $0x2a8] sm:$0xff]
    %v126 = vld [vmem:[%s1 + $0x2b0] sm:$0xff]
    %v127 = vld [vmem:[%s1 + $0x2b8] sm:$0xff]
    %v128 = vld [vmem:[%s1 + $0x2c0] sm:$0xff]
    %v129 = vld [vmem:[%s1 + $0x2c8] sm:$0xff]
    %v130 = vld [vmem:[%s1 + $0x2d0] sm:$0xff]
    %v131 = vld [vmem:[%s1 + $0x2d8] sm:$0xff]
    %v132 = vld [vmem:[%s1 + $0x2e0] sm:$0xff]
    %v133 = vld [vmem:[%s1 + $0x2e8] sm:$0xff]
    %v134 = vld [vmem:[%s1 + $0x2f0] sm:$0xff]
    %v135 = vld [vmem:[%s1 + $0x2f8] sm:$0xff]
    %v136 = vld [vmem:[%s1 + $0x300] sm:$0xff]
    %v137 = vld [vmem:[%s1 + $0x308] sm:$0xff]
    %v138 = vld [vmem:[%s1 + $0x310] sm:$0xff]
    %v139 = vld [vmem:[%s1 + $0x318] sm:$0xff]
    %v140 = vld [vmem:[%s1 + $0x320] sm:$0xff]
    %v141 = vld [vmem:[%s1 + $0x328] sm:$0xff]
    %v142 = vld [vmem:[%s1 + $0x330] sm:$0xff]
    %v143 = vld [vmem:[%s1 + $0x338] sm:$0xff]
    %v144 = vld [vmem:[%s1 + $0x340] sm:$0xff]
    %v145 = vld [vmem:[%s1 + $0x348] sm:$0xff]
    %v146 = vld [vmem:[%s1 + $0x350] sm:$0xff]
    %v147 = vld [vmem:[%s1 + $0x358] sm:$0xff]
    %v148 = vld [vmem:[%s1 + $0x360] sm:$0xff]
    %v149 = vld [vmem:[%s1 + $0x368] sm:$0xff]
    %v150 = vld [vmem:[%s1 + $0x370] sm:$0xff]
    %v151 = vld [vmem:[%s1 + $0x378] sm:$0xff]
    %v152 = vld [vmem:[%s1 + $0x380] sm:$0xff]
    %v153 = vld [vmem:[%s1 + $0x388] sm:$0xff]
    %v154 = vld [vmem:[%s1 + $0x390] sm:$0xff]
    %v155 = vld [vmem:[%s1 + $0x398] sm:$0xff]
    %v156 = vld [vmem:[%s1 + $0x3a0] sm:$0xff]
    %v157 = vld [vmem:[%s1 + $0x3a8] sm:$0xff]
    %v158 = vld [vmem:[%s1 + $0x3b0] sm:$0xff]
    %v159 = vld [vmem:[%s1 + $0x3b8] sm:$0xff]
    %v160 = vld [vmem:[%s1 + $0x3c0] sm:$0xff]
    %v161 = vld [vmem:[%s1 + $0x3c8] sm:$0xff]
    %v162 = vld [vmem:[%s1 + $0x3d0] sm:$0xff]
    %v163 = vld [vmem:[%s1 + $0x3d8] sm:$0xff]
    %v164 = vld [vmem:[%s1 + $0x3e0] sm:$0xff]
    %v165 = vld [vmem:[%s1 + $0x3e8] sm:$0xff]
    %v166 = vld [vmem:[%s1 + $0x3f0] sm:$0xff]
    %v167 = vld [vmem:[%s1 + $0x3f8] sm:$0xff]
    %168 = vmatprep.subr.mxu0 %v41
    %169 = vmatpush1.msra.mxu0 %v40
    %170 = vmatprep.subr.mxu0 %v49
    %171 = vmatpush1.msra.mxu0 %v48
    %172 = vmatprep.subr.mxu0 %v57
    %173 = vmatpush1.msra.mxu0 %v56
    %174 = vmatprep.subr.mxu0 %v65
    %175 = vmatpush1.msra.mxu0 %v64
    %176 = vmatprep.subr.mxu0 %v73
    %177 = vmatpush1.msra.mxu0 %v72
    %178 = vmatprep.subr.mxu0 %v81
    %179 = vmatpush1.msra.mxu0 %v80
    %180 = vmatprep.subr.mxu0 %v89
    %181 = vmatpush1.msra.mxu0 %v88
    %182 = vmatprep.subr.mxu0 %v97
    %183 = vmatpush1.msra.mxu0 %v96
    %184 = vmatprep.subr.mxu0 %v105
    %185 = vmatpush1.msra.mxu0 %v104
    %186 = vmatprep.subr.mxu0 %v113
    %187 = vmatpush1.msra.mxu0 %v112
    %188 = vmatprep.subr.mxu0 %v121
    %189 = vmatpush1.msra.mxu0 %v120
    %190 = vmatprep.subr.mxu0 %v129
    %191 = vmatpush1.msra.mxu0 %v128
    %192 = vmatprep.subr.mxu0 %v137
    %193 = vmatpush1.msra.mxu0 %v136
    %194 = vmatprep.subr.mxu0 %v145
    %195 = vmatpush1.msra.mxu0 %v144
    %196 = vmatprep.subr.mxu0 %v153
    %197 = vmatpush1.msra.mxu0 %v152
    %198 = vmatprep.subr.mxu0 %v161
    %199 = vmatpush1.msra.mxu0 %v160
    %200 = vmatprep.subr.mxu0 0.0
    %201 = vmatpush1.msra.mxu0 0.0
    %202 = vmatprep.subr.mxu0 0.0
    %203 = vmatpush1.msra.mxu0 0.0
    %204 = vmatprep.subr.mxu0 0.0
    %205 = vmatpush1.msra.mxu0 0.0
    %206 = vmatprep.subr.mxu0 0.0
    %207 = vmatpush1.msra.mxu0 0.0
    %208 = vmatprep.subr.mxu0 0.0
    %209 = vmatpush1.msra.mxu0 0.0
    %210 = vmatprep.subr.mxu0 0.0
    %211 = vmatpush1.msra.mxu0 0.0
    %212 = vmatprep.subr.mxu0 0.0
    %213 = vmatpush1.msra.mxu0 0.0
    %214 = vmatprep.subr.mxu0 0.0
    %215 = vmatpush1.msra.mxu0 0.0
    %216 = vmatprep.subr.mxu0 0.0
    %217 = vmatpush1.msra.mxu0 0.0
    %218 = vmatprep.subr.mxu0 0.0
    %219 = vmatpush1.msra.mxu0 0.0
    %220 = vmatprep.subr.mxu0 0.0
    %221 = vmatpush1.msra.mxu0 0.0
    %222 = vmatprep.subr.mxu0 0.0
    %223 = vmatpush1.msra.mxu0 0.0
    %224 = vmatprep.subr.mxu0 0.0
    %225 = vmatpush1.msra.mxu0 0.0
    %226 = vmatprep.subr.mxu0 0.0
    %227 = vmatpush1.msra.mxu0 0.0
    %228 = vmatprep.subr.mxu0 0.0
    %229 = vmatpush1.msra.mxu0 0.0
    %230 = vmatprep.subr.mxu0 0.0
    %231 = vmatpush1.msra.mxu0 0.0
    %232 = vmatprep.mubr.f32.mxu0 0.0
    %233 = vmatmul.mubr.f32.gmra.mrb[0].mxu0 %v39
    %v234 = vpop.f32.mrb[0].mxu0
    %v235 = vadd.f32 0.0, %v234
    %v236 = vpop.f32.mrb[0].mxu0
    %v237 = vadd.f32 0.0, %v236
    %238 = vdwg.mxu0
    %239 = vmatprep.subr.mxu0 %v43
    %240 = vmatpush1.msra.mxu0 %v42
    %241 = vmatprep.subr.mxu0 %v51
    %242 = vmatpush1.msra.mxu0 %v50
    %243 = vmatprep.subr.mxu0 %v59
    %244 = vmatpush1.msra.mxu0 %v58
    %245 = vmatprep.subr.mxu0 %v67
    %246 = vmatpush1.msra.mxu0 %v66
    %247 = vmatprep.subr.mxu0 %v75
    %248 = vmatpush1.msra.mxu0 %v74
    %249 = vmatprep.subr.mxu0 %v83
    %250 = vmatpush1.msra.mxu0 %v82
    %251 = vmatprep.subr.mxu0 %v91
    %252 = vmatpush1.msra.mxu0 %v90
    %253 = vmatprep.subr.mxu0 %v99
    %254 = vmatpush1.msra.mxu0 %v98
    %255 = vmatprep.subr.mxu0 %v107
    %256 = vmatpush1.msra.mxu0 %v106
    %257 = vmatprep.subr.mxu0 %v115
    %258 = vmatpush1.msra.mxu0 %v114
    %259 = vmatprep.subr.mxu0 %v123
    %260 = vmatpush1.msra.mxu0 %v122
    %261 = vmatprep.subr.mxu0 %v131
    %262 = vmatpush1.msra.mxu0 %v130
    %263 = vmatprep.subr.mxu0 %v139
    %264 = vmatpush1.msra.mxu0 %v138
    %265 = vmatprep.subr.mxu0 %v147
    %266 = vmatpush1.msra.mxu0 %v146
    %267 = vmatprep.subr.mxu0 %v155
    %268 = vmatpush1.msra.mxu0 %v154
    %269 = vmatprep.subr.mxu0 %v163
    %270 = vmatpush1.msra.mxu0 %v162
    %271 = vmatprep.subr.mxu0 0.0
    %272 = vmatpush1.msra.mxu0 0.0
    %273 = vmatprep.subr.mxu0 0.0
    %274 = vmatpush1.msra.mxu0 0.0
    %275 = vmatprep.subr.mxu0 0.0
    %276 = vmatpush1.msra.mxu0 0.0
    %277 = vmatprep.subr.mxu0 0.0
    %278 = vmatpush1.msra.mxu0 0.0
    %279 = vmatprep.subr.mxu0 0.0
    %280 = vmatpush1.msra.mxu0 0.0
    %281 = vmatprep.subr.mxu0 0.0
    %282 = vmatpush1.msra.mxu0 0.0
    %283 = vmatprep.subr.mxu0 0.0
    %284 = vmatpush1.msra.mxu0 0.0
    %285 = vmatprep.subr.mxu0 0.0
    %286 = vmatpush1.msra.mxu0 0.0
    %287 = vmatprep.subr.mxu0 0.0
    %288 = vmatpush1.msra.mxu0 0.0
    %289 = vmatprep.subr.mxu0 0.0
    %290 = vmatpush1.msra.mxu0 0.0
    %291 = vmatprep.subr.mxu0 0.0
    %292 = vmatpush1.msra.mxu0 0.0
    %293 = vmatprep.subr.mxu0 0.0
    %294 = vmatpush1.msra.mxu0 0.0
    %295 = vmatprep.subr.mxu0 0.0
    %296 = vmatpush1.msra.mxu0 0.0
    %297 = vmatprep.subr.mxu0 0.0
    %298 = vmatpush1.msra.mxu0 0.0
    %299 = vmatprep.subr.mxu0 0.0
    %300 = vmatpush1.msra.mxu0 0.0
    %301 = vmatprep.subr.mxu0 0.0
    %302 = vmatpush1.msra.mxu0 0.0
    %303 = vmatprep.mubr.f32.mxu0 0.0
    %304 = vmatmul.mubr.f32.gmra.mrb[0].mxu0 %v39
    %v305 = vpop.f32.mrb[0].mxu0
    %v306 = vadd.f32 0.0, %v305
    %v307 = vpop.f32.mrb[0].mxu0
    %v308 = vadd.f32 0.0, %v307
    %309 = vdwg.mxu0
    %310 = vmatprep.subr.mxu0 %v45
    %311 = vmatpush1.msra.mxu0 %v44
    %312 = vmatprep.subr.mxu0 %v53
    %313 = vmatpush1.msra.mxu0 %v52
    %314 = vmatprep.subr.mxu0 %v61
    %315 = vmatpush1.msra.mxu0 %v60
    %316 = vmatprep.subr.mxu0 %v69
    %317 = vmatpush1.msra.mxu0 %v68
    %318 = vmatprep.subr.mxu0 %v77
    %319 = vmatpush1.msra.mxu0 %v76
    %320 = vmatprep.subr.mxu0 %v85
    %321 = vmatpush1.msra.mxu0 %v84
    %322 = vmatprep.subr.mxu0 %v93
    %323 = vmatpush1.msra.mxu0 %v92
    %324 = vmatprep.subr.mxu0 %v101
    %325 = vmatpush1.msra.mxu0 %v100
    %326 = vmatprep.subr.mxu0 %v109
    %327 = vmatpush1.msra.mxu0 %v108
    %328 = vmatprep.subr.mxu0 %v117
    %329 = vmatpush1.msra.mxu0 %v116
    %330 = vmatprep.subr.mxu0 %v125
    %331 = vmatpush1.msra.mxu0 %v124
    %332 = vmatprep.subr.mxu0 %v133
    %333 = vmatpush1.msra.mxu0 %v132
    %334 = vmatprep.subr.mxu0 %v141
    %335 = vmatpush1.msra.mxu0 %v140
    %336 = vmatprep.subr.mxu0 %v149
    %337 = vmatpush1.msra.mxu0 %v148
    %338 = vmatprep.subr.mxu0 %v157
    %339 = vmatpush1.msra.mxu0 %v156
    %340 = vmatprep.subr.mxu0 %v165
    %341 = vmatpush1.msra.mxu0 %v164
    %342 = vmatprep.subr.mxu0 0.0
    %343 = vmatpush1.msra.mxu0 0.0
    %344 = vmatprep.subr.mxu0 0.0
    %345 = vmatpush1.msra.mxu0 0.0
    %346 = vmatprep.subr.mxu0 0.0
    %347 = vmatpush1.msra.mxu0 0.0
    %348 = vmatprep.subr.mxu0 0.0
    %349 = vmatpush1.msra.mxu0 0.0
    %350 = vmatprep.subr.mxu0 0.0
    %351 = vmatpush1.msra.mxu0 0.0
    %352 = vmatprep.subr.mxu0 0.0
    %353 = vmatpush1.msra.mxu0 0.0
    %354 = vmatprep.subr.mxu0 0.0
    %355 = vmatpush1.msra.mxu0 0.0
    %356 = vmatprep.subr.mxu0 0.0
    %357 = vmatpush1.msra.mxu0 0.0
    %358 = vmatprep.subr.mxu0 0.0
    %359 = vmatpush1.msra.mxu0 0.0
    %360 = vmatprep.subr.mxu0 0.0
    %361 = vmatpush1.msra.mxu0 0.0
    %362 = vmatprep.subr.mxu0 0.0
    %363 = vmatpush1.msra.mxu0 0.0
    %364 = vmatprep.subr.mxu0 0.0
    %365 = vmatpush1.msra.mxu0 0.0
    %366 = vmatprep.subr.mxu0 0.0
    %367 = vmatpush1.msra.mxu0 0.0
    %368 = vmatprep.subr.mxu0 0.0
    %369 = vmatpush1.msra.mxu0 0.0
    %370 = vmatprep.subr.mxu0 0.0
    %371 = vmatpush1.msra.mxu0 0.0
    %372 = vmatprep.subr.mxu0 0.0
    %373 = vmatpush1.msra.mxu0 0.0
    %374 = vmatprep.mubr.f32.mxu0 0.0
    %375 = vmatmul.mubr.f32.gmra.mrb[0].mxu0 %v39
    %v376 = vpop.f32.mrb[0].mxu0
    %v377 = vadd.f32 0.0, %v376
    %v378 = vpop.f32.mrb[0].mxu0
    %v379 = vadd.f32 0.0, %v378
    %380 = vdwg.mxu0
    %381 = vmatprep.subr.mxu0 %v47
    %382 = vmatpush1.msra.mxu0 %v46
    %383 = vmatprep.subr.mxu0 %v55
    %384 = vmatpush1.msra.mxu0 %v54
    %385 = vmatprep.subr.mxu0 %v63
    %386 = vmatpush1.msra.mxu0 %v62
    %387 = vmatprep.subr.mxu0 %v71
    %388 = vmatpush1.msra.mxu0 %v70
    %389 = vmatprep.subr.mxu0 %v79
    %390 = vmatpush1.msra.mxu0 %v78
    %391 = vmatprep.subr.mxu0 %v87
    %392 = vmatpush1.msra.mxu0 %v86
    %393 = vmatprep.subr.mxu0 %v95
    %394 = vmatpush1.msra.mxu0 %v94
    %395 = vmatprep.subr.mxu0 %v103
    %396 = vmatpush1.msra.mxu0 %v102
    %397 = vmatprep.subr.mxu0 %v111
    %398 = vmatpush1.msra.mxu0 %v110
    %399 = vmatprep.subr.mxu0 %v119
    %400 = vmatpush1.msra.mxu0 %v118
    %401 = vmatprep.subr.mxu0 %v127
    %402 = vmatpush1.msra.mxu0 %v126
    %403 = vmatprep.subr.mxu0 %v135
    %404 = vmatpush1.msra.mxu0 %v134
    %405 = vmatprep.subr.mxu0 %v143
    %406 = vmatpush1.msra.mxu0 %v142
    %407 = vmatprep.subr.mxu0 %v151
    %408 = vmatpush1.msra.mxu0 %v150
    %409 = vmatprep.subr.mxu0 %v159
    %410 = vmatpush1.msra.mxu0 %v158
    %411 = vmatprep.subr.mxu0 %v167
    %412 = vmatpush1.msra.mxu0 %v166
    %413 = vmatprep.subr.mxu0 0.0
    %414 = vmatpush1.msra.mxu0 0.0
    %415 = vmatprep.subr.mxu0 0.0
    %416 = vmatpush1.msra.mxu0 0.0
    %417 = vmatprep.subr.mxu0 0.0
    %418 = vmatpush1.msra.mxu0 0.0
    %419 = vmatprep.subr.mxu0 0.0
    %420 = vmatpush1.msra.mxu0 0.0
    %421 = vmatprep.subr.mxu0 0.0
    %422 = vmatpush1.msra.mxu0 0.0
    %423 = vmatprep.subr.mxu0 0.0
    %424 = vmatpush1.msra.mxu0 0.0
    %425 = vmatprep.subr.mxu0 0.0
    %426 = vmatpush1.msra.mxu0 0.0
    %427 = vmatprep.subr.mxu0 0.0
    %428 = vmatpush1.msra.mxu0 0.0
    %429 = vmatprep.subr.mxu0 0.0
    %430 = vmatpush1.msra.mxu0 0.0
    %431 = vmatprep.subr.mxu0 0.0
    %432 = vmatpush1.msra.mxu0 0.0
    %433 = vmatprep.subr.mxu0 0.0
    %434 = vmatpush1.msra.mxu0 0.0
    %435 = vmatprep.subr.mxu0 0.0
    %436 = vmatpush1.msra.mxu0 0.0
    %437 = vmatprep.subr.mxu0 0.0
    %438 = vmatpush1.msra.mxu0 0.0
    %439 = vmatprep.subr.mxu0 0.0
    %440 = vmatpush1.msra.mxu0 0.0
    %441 = vmatprep.subr.mxu0 0.0
    %442 = vmatpush1.msra.mxu0 0.0
    %443 = vmatprep.subr.mxu0 0.0
    %444 = vmatpush1.msra.mxu0 0.0
    %445 = vmatprep.mubr.f32.mxu0 0.0
    %446 = vmatmul.mubr.f32.gmra.mrb[0].mxu0 %v39
    %v447 = vpop.f32.mrb[0].mxu0
    %v448 = vadd.f32 0.0, %v447
    %v449 = vpop.f32.mrb[0].mxu0
    %v450 = vadd.f32 0.0, %v449
    %451 = vdwg.mxu0
    %vm452 = vcmask 1041408
    %v453 = vsel %vm452, %v235, 0.0
    %v454 = vrot.slane %v453, 4
    %v455 = vadd.f32 %v453, %v454
    %v456 = vrot.slane %v455, 2
    %v457 = vadd.f32 %v455, %v456
    %v458 = vrot.slane %v457, 1
    %v459 = vadd.f32 %v457, %v458
    %v460 = vsel %vm452, %v237, 0.0
    %v461 = vrot.slane %v460, 4
    %v462 = vadd.f32 %v460, %v461
    %v463 = vrot.slane %v462, 2
    %v464 = vadd.f32 %v462, %v463
    %v465 = vrot.slane %v464, 1
    %v466 = vadd.f32 %v464, %v465
    %v467 = vsel %vm452, %v306, 0.0
    %v468 = vrot.slane %v467, 4
    %v469 = vadd.f32 %v467, %v468
    %v470 = vrot.slane %v469, 2
    %v471 = vadd.f32 %v469, %v470
    %v472 = vrot.slane %v471, 1
    %v473 = vadd.f32 %v471, %v472
    %v474 = vsel %vm452, %v308, 0.0
    %v475 = vrot.slane %v474, 4
    %v476 = vadd.f32 %v474, %v475
    %v477 = vrot.slane %v476, 2
    %v478 = vadd.f32 %v476, %v477
    %v479 = vrot.slane %v478, 1
    %v480 = vadd.f32 %v478, %v479
    %v481 = vsel %vm452, %v377, 0.0
    %v482 = vrot.slane %v481, 4
    %v483 = vadd.f32 %v481, %v482
    %v484 = vrot.slane %v483, 2
    %v485 = vadd.f32 %v483, %v484
    %v486 = vrot.slane %v485, 1
    %v487 = vadd.f32 %v485, %v486
    %v488 = vsel %vm452, %v379, 0.0
    %v489 = vrot.slane %v488, 4
    %v490 = vadd.f32 %v488, %v489
    %v491 = vrot.slane %v490, 2
    %v492 = vadd.f32 %v490, %v491
    %v493 = vrot.slane %v492, 1
    %v494 = vadd.f32 %v492, %v493
    %v495 = vsel %vm452, %v448, 0.0
    %v496 = vrot.slane %v495, 4
    %v497 = vadd.f32 %v495, %v496
    %v498 = vrot.slane %v497, 2
    %v499 = vadd.f32 %v497, %v498
    %v500 = vrot.slane %v499, 1
    %v501 = vadd.f32 %v499, %v500
    %v502 = vsel %vm452, %v450, 0.0
    %v503 = vrot.slane %v502, 4
    %v504 = vadd.f32 %v502, %v503
    %v505 = vrot.slane %v504, 2
    %v506 = vadd.f32 %v504, %v505
    %v507 = vrot.slane %v506, 1
    %v508 = vadd.f32 %v506, %v507
    %v509 = vmul.f32 %v235, %v235
    %v510 = vmul.f32 %v237, %v237
    %v511 = vmul.f32 %v306, %v306
    %v512 = vmul.f32 %v308, %v308
    %v513 = vmul.f32 %v377, %v377
    %v514 = vmul.f32 %v379, %v379
    %v515 = vmul.f32 %v448, %v448
    %v516 = vmul.f32 %v450, %v450
    %v517 = vsel %vm452, %v509, 0.0
    %v518 = vrot.slane %v517, 4
    %v519 = vadd.f32 %v517, %v518
    %v520 = vrot.slane %v519, 2
    %v521 = vadd.f32 %v519, %v520
    %v522 = vrot.slane %v521, 1
    %v523 = vadd.f32 %v521, %v522
    %v524 = vsel %vm452, %v510, 0.0
    %v525 = vrot.slane %v524, 4
    %v526 = vadd.f32 %v524, %v525
    %v527 = vrot.slane %v526, 2
    %v528 = vadd.f32 %v526, %v527
    %v529 = vrot.slane %v528, 1
    %v530 = vadd.f32 %v528, %v529
    %v531 = vsel %vm452, %v511, 0.0
    %v532 = vrot.slane %v531, 4
    %v533 = vadd.f32 %v531, %v532
    %v534 = vrot.slane %v533, 2
    %v535 = vadd.f32 %v533, %v534
    %v536 = vrot.slane %v535, 1
    %v537 = vadd.f32 %v535, %v536
    %v538 = vsel %vm452, %v512, 0.0
    %v539 = vrot.slane %v538, 4
    %v540 = vadd.f32 %v538, %v539
    %v541 = vrot.slane %v540, 2
    %v542 = vadd.f32 %v540, %v541
    %v543 = vrot.slane %v542, 1
    %v544 = vadd.f32 %v542, %v543
    %v545 = vsel %vm452, %v513, 0.0
    %v546 = vrot.slane %v545, 4
    %v547 = vadd.f32 %v545, %v546
    %v548 = vrot.slane %v547, 2
    %v549 = vadd.f32 %v547, %v548
    %v550 = vrot.slane %v549, 1
    %v551 = vadd.f32 %v549, %v550
    %v552 = vsel %vm452, %v514, 0.0
    %v553 = vrot.slane %v552, 4
    %v554 = vadd.f32 %v552, %v553
    %v555 = vrot.slane %v554, 2
    %v556 = vadd.f32 %v554, %v555
    %v557 = vrot.slane %v556, 1
    %v558 = vadd.f32 %v556, %v557
    %v559 = vsel %vm452, %v515, 0.0
    %v560 = vrot.slane %v559, 4
    %v561 = vadd.f32 %v559, %v560
    %v562 = vrot.slane %v561, 2
    %v563 = vadd.f32 %v561, %v562
    %v564 = vrot.slane %v563, 1
    %v565 = vadd.f32 %v563, %v564
    %v566 = vsel %vm452, %v516, 0.0
    %v567 = vrot.slane %v566, 4
    %v568 = vadd.f32 %v566, %v567
    %v569 = vrot.slane %v568, 2
    %v570 = vadd.f32 %v568, %v569
    %v571 = vrot.slane %v570, 1
    %v572 = vadd.f32 %v570, %v571
    %vm573 = vcmask 1040384
    %v574 = vsel %vm573, %v459, %v523
    %v575 = vsel %vm573, %v466, %v530
    %v576 = vsel %vm573, %v473, %v537
    %v577 = vsel %vm573, %v480, %v544
    %v578 = vsel %vm573, %v487, %v551
    %v579 = vsel %vm573, %v494, %v558
    %v580 = vsel %vm573, %v501, %v565
    %v581 = vsel %vm573, %v508, %v572
    %v582 = vld [vmem:[%s2] sm:$0xff]
    %v583 = vld [vmem:[%s2 + $0x8] sm:$0xff]
    %v584 = vld [vmem:[%s2 + $0x10] sm:$0xff]
    %v585 = vld [vmem:[%s2 + $0x18] sm:$0xff]
    %v586 = vld [vmem:[%s2 + $0x20] sm:$0xff]
    %v587 = vld [vmem:[%s2 + $0x28] sm:$0xff]
    %v588 = vld [vmem:[%s2 + $0x30] sm:$0xff]
    %v589 = vld [vmem:[%s2 + $0x38] sm:$0xff]
    %v590 = vld [vmem:[%s2 + $0x40] sm:$0xff]
    %v591 = vld [vmem:[%s2 + $0x48] sm:$0xff]
    %v592 = vld [vmem:[%s2 + $0x50] sm:$0xff]
    %v593 = vld [vmem:[%s2 + $0x58] sm:$0xff]
    %v594 = vld [vmem:[%s2 + $0x60] sm:$0xff]
    %v595 = vld [vmem:[%s2 + $0x68] sm:$0xff]
    %v596 = vld [vmem:[%s2 + $0x70] sm:$0xff]
    %v597 = vld [vmem:[%s2 + $0x78] sm:$0xff]
    %v598 = vld [vmem:[%s2 + $0x80] sm:$0xff]
    %v599 = vld [vmem:[%s2 + $0x88] sm:$0xff]
    %v600 = vld [vmem:[%s2 + $0x90] sm:$0xff]
    %v601 = vld [vmem:[%s2 + $0x98] sm:$0xff]
    %v602 = vld [vmem:[%s2 + $0xa0] sm:$0xff]
    %v603 = vld [vmem:[%s2 + $0xa8] sm:$0xff]
    %v604 = vld [vmem:[%s2 + $0xb0] sm:$0xff]
    %v605 = vld [vmem:[%s2 + $0xb8] sm:$0xff]
    %v606 = vld [vmem:[%s2 + $0xc0] sm:$0xff]
    %v607 = vld [vmem:[%s2 + $0xc8] sm:$0xff]
    %v608 = vld [vmem:[%s2 + $0xd0] sm:$0xff]
    %v609 = vld [vmem:[%s2 + $0xd8] sm:$0xff]
    %v610 = vld [vmem:[%s2 + $0xe0] sm:$0xff]
    %v611 = vld [vmem:[%s2 + $0xe8] sm:$0xff]
    %v612 = vld [vmem:[%s2 + $0xf0] sm:$0xff]
    %v613 = vld [vmem:[%s2 + $0xf8] sm:$0xff]
    %v614 = vld [vmem:[%s2 + $0x100] sm:$0xff]
    %v615 = vld [vmem:[%s2 + $0x108] sm:$0xff]
    %v616 = vld [vmem:[%s2 + $0x110] sm:$0xff]
    %v617 = vld [vmem:[%s2 + $0x118] sm:$0xff]
    %v618 = vld [vmem:[%s2 + $0x120] sm:$0xff]
    %v619 = vld [vmem:[%s2 + $0x128] sm:$0xff]
    %v620 = vld [vmem:[%s2 + $0x130] sm:$0xff]
    %v621 = vld [vmem:[%s2 + $0x138] sm:$0xff]
    %v622 = vld [vmem:[%s2 + $0x140] sm:$0xff]
    %v623 = vld [vmem:[%s2 + $0x148] sm:$0xff]
    %v624 = vld [vmem:[%s2 + $0x150] sm:$0xff]
    %v625 = vld [vmem:[%s2 + $0x158] sm:$0xff]
    %v626 = vld [vmem:[%s2 + $0x160] sm:$0xff]
    %v627 = vld [vmem:[%s2 + $0x168] sm:$0xff]
    %v628 = vld [vmem:[%s2 + $0x170] sm:$0xff]
    %v629 = vld [vmem:[%s2 + $0x178] sm:$0xff]
    %v630 = vld [vmem:[%s2 + $0x180] sm:$0xff]
    %v631 = vld [vmem:[%s2 + $0x188] sm:$0xff]
    %v632 = vld [vmem:[%s2 + $0x190] sm:$0xff]
    %v633 = vld [vmem:[%s2 + $0x198] sm:$0xff]
    %v634 = vld [vmem:[%s2 + $0x1a0] sm:$0xff]
    %v635 = vld [vmem:[%s2 + $0x1a8] sm:$0xff]
    %v636 = vld [vmem:[%s2 + $0x1b0] sm:$0xff]
    %v637 = vld [vmem:[%s2 + $0x1b8] sm:$0xff]
    %v638 = vld [vmem:[%s2 + $0x1c0] sm:$0xff]
    %v639 = vld [vmem:[%s2 + $0x1c8] sm:$0xff]
    %v640 = vld [vmem:[%s2 + $0x1d0] sm:$0xff]
    %v641 = vld [vmem:[%s2 + $0x1d8] sm:$0xff]
    %v642 = vld [vmem:[%s2 + $0x1e0] sm:$0xff]
    %v643 = vld [vmem:[%s2 + $0x1e8] sm:$0xff]
    %v644 = vld [vmem:[%s2 + $0x1f0] sm:$0xff]
    %v645 = vld [vmem:[%s2 + $0x1f8] sm:$0xff]
    %v646 = vld [vmem:[%s2 + $0x200] sm:$0xff]
    %v647 = vld [vmem:[%s2 + $0x208] sm:$0xff]
    %v648 = vld [vmem:[%s2 + $0x210] sm:$0xff]
    %v649 = vld [vmem:[%s2 + $0x218] sm:$0xff]
    %v650 = vld [vmem:[%s2 + $0x220] sm:$0xff]
    %v651 = vld [vmem:[%s2 + $0x228] sm:$0xff]
    %v652 = vld [vmem:[%s2 + $0x230] sm:$0xff]
    %v653 = vld [vmem:[%s2 + $0x238] sm:$0xff]
    %v654 = vld [vmem:[%s2 + $0x240] sm:$0xff]
    %v655 = vld [vmem:[%s2 + $0x248] sm:$0xff]
    %v656 = vld [vmem:[%s2 + $0x250] sm:$0xff]
    %v657 = vld [vmem:[%s2 + $0x258] sm:$0xff]
    %v658 = vld [vmem:[%s2 + $0x260] sm:$0xff]
    %v659 = vld [vmem:[%s2 + $0x268] sm:$0xff]
    %v660 = vld [vmem:[%s2 + $0x270] sm:$0xff]
    %v661 = vld [vmem:[%s2 + $0x278] sm:$0xff]
    %v662 = vld [vmem:[%s2 + $0x280] sm:$0xff]
    %v663 = vld [vmem:[%s2 + $0x288] sm:$0xff]
    %v664 = vld [vmem:[%s2 + $0x290] sm:$0xff]
    %v665 = vld [vmem:[%s2 + $0x298] sm:$0xff]
    %v666 = vld [vmem:[%s2 + $0x2a0] sm:$0xff]
    %v667 = vld [vmem:[%s2 + $0x2a8] sm:$0xff]
    %v668 = vld [vmem:[%s2 + $0x2b0] sm:$0xff]
    %v669 = vld [vmem:[%s2 + $0x2b8] sm:$0xff]
    %v670 = vld [vmem:[%s2 + $0x2c0] sm:$0xff]
    %v671 = vld [vmem:[%s2 + $0x2c8] sm:$0xff]
    %v672 = vld [vmem:[%s2 + $0x2d0] sm:$0xff]
    %v673 = vld [vmem:[%s2 + $0x2d8] sm:$0xff]
    %v674 = vld [vmem:[%s2 + $0x2e0] sm:$0xff]
    %v675 = vld [vmem:[%s2 + $0x2e8] sm:$0xff]
    %v676 = vld [vmem:[%s2 + $0x2f0] sm:$0xff]
    %v677 = vld [vmem:[%s2 + $0x2f8] sm:$0xff]
    %v678 = vld [vmem:[%s2 + $0x300] sm:$0xff]
    %v679 = vld [vmem:[%s2 + $0x308] sm:$0xff]
    %v680 = vld [vmem:[%s2 + $0x310] sm:$0xff]
    %v681 = vld [vmem:[%s2 + $0x318] sm:$0xff]
    %v682 = vld [vmem:[%s2 + $0x320] sm:$0xff]
    %v683 = vld [vmem:[%s2 + $0x328] sm:$0xff]
    %v684 = vld [vmem:[%s2 + $0x330] sm:$0xff]
    %v685 = vld [vmem:[%s2 + $0x338] sm:$0xff]
    %v686 = vld [vmem:[%s2 + $0x340] sm:$0xff]
    %v687 = vld [vmem:[%s2 + $0x348] sm:$0xff]
    %v688 = vld [vmem:[%s2 + $0x350] sm:$0xff]
    %v689 = vld [vmem:[%s2 + $0x358] sm:$0xff]
    %v690 = vld [vmem:[%s2 + $0x360] sm:$0xff]
    %v691 = vld [vmem:[%s2 + $0x368] sm:$0xff]
    %v692 = vld [vmem:[%s2 + $0x370] sm:$0xff]
    %v693 = vld [vmem:[%s2 + $0x378] sm:$0xff]
    %v694 = vld [vmem:[%s2 + $0x380] sm:$0xff]
    %v695 = vld [vmem:[%s2 + $0x388] sm:$0xff]
    %v696 = vld [vmem:[%s2 + $0x390] sm:$0xff]
    %v697 = vld [vmem:[%s2 + $0x398] sm:$0xff]
    %v698 = vld [vmem:[%s2 + $0x3a0] sm:$0xff]
    %v699 = vld [vmem:[%s2 + $0x3a8] sm:$0xff]
    %v700 = vld [vmem:[%s2 + $0x3b0] sm:$0xff]
    %v701 = vld [vmem:[%s2 + $0x3b8] sm:$0xff]
    %v702 = vld [vmem:[%s2 + $0x3c0] sm:$0xff]
    %v703 = vld [vmem:[%s2 + $0x3c8] sm:$0xff]
    %v704 = vld [vmem:[%s2 + $0x3d0] sm:$0xff]
    %v705 = vld [vmem:[%s2 + $0x3d8] sm:$0xff]
    %v706 = vld [vmem:[%s2 + $0x3e0] sm:$0xff]
    %v707 = vld [vmem:[%s2 + $0x3e8] sm:$0xff]
    %v708 = vld [vmem:[%s2 + $0x3f0] sm:$0xff]
    %v709 = vld [vmem:[%s2 + $0x3f8] sm:$0xff]
    %710 = vmatprep.subr.mxu0 0.0
    %711 = vmatpush1.msra.mxu0 %v582
    %712 = vmatprep.subr.mxu0 0.0
    %713 = vmatpush1.msra.mxu0 %v583
    %714 = vmatprep.subr.mxu0 0.0
    %715 = vmatpush1.msra.mxu0 %v584
    %716 = vmatprep.subr.mxu0 0.0
    %717 = vmatpush1.msra.mxu0 %v585
    %718 = vmatprep.subr.mxu0 0.0
    %719 = vmatpush1.msra.mxu0 %v586
    %720 = vmatprep.subr.mxu0 0.0
    %721 = vmatpush1.msra.mxu0 %v587
    %722 = vmatprep.subr.mxu0 0.0
    %723 = vmatpush1.msra.mxu0 %v588
    %724 = vmatprep.subr.mxu0 0.0
    %725 = vmatpush1.msra.mxu0 %v589
    %726 = vmatprep.subr.mxu0 0.0
    %727 = vmatpush1.msra.mxu0 %v590
    %728 = vmatprep.subr.mxu0 0.0
    %729 = vmatpush1.msra.mxu0 %v591
    %730 = vmatprep.subr.mxu0 0.0
    %731 = vmatpush1.msra.mxu0 %v592
    %732 = vmatprep.subr.mxu0 0.0
    %733 = vmatpush1.msra.mxu0 %v593
    %734 = vmatprep.subr.mxu0 0.0
    %735 = vmatpush1.msra.mxu0 %v594
    %736 = vmatprep.subr.mxu0 0.0
    %737 = vmatpush1.msra.mxu0 %v595
    %738 = vmatprep.subr.mxu0 0.0
    %739 = vmatpush1.msra.mxu0 %v596
    %740 = vmatprep.subr.mxu0 0.0
    %741 = vmatpush1.msra.mxu0 %v597
    %742 = vmatprep.subr.mxu0 0.0
    %743 = vmatpush1.msra.mxu0 %v598
    %744 = vmatprep.subr.mxu0 0.0
    %745 = vmatpush1.msra.mxu0 %v599
    %746 = vmatprep.subr.mxu0 0.0
    %747 = vmatpush1.msra.mxu0 %v600
    %748 = vmatprep.subr.mxu0 0.0
    %749 = vmatpush1.msra.mxu0 %v601
    %750 = vmatprep.subr.mxu0 0.0
    %751 = vmatpush1.msra.mxu0 %v602
    %752 = vmatprep.subr.mxu0 0.0
    %753 = vmatpush1.msra.mxu0 %v603
    %754 = vmatprep.subr.mxu0 0.0
    %755 = vmatpush1.msra.mxu0 %v604
    %756 = vmatprep.subr.mxu0 0.0
    %757 = vmatpush1.msra.mxu0 %v605
    %758 = vmatprep.subr.mxu0 0.0
    %759 = vmatpush1.msra.mxu0 %v606
    %760 = vmatprep.subr.mxu0 0.0
    %761 = vmatpush1.msra.mxu0 %v607
    %762 = vmatprep.subr.mxu0 0.0
    %763 = vmatpush1.msra.mxu0 %v608
    %764 = vmatprep.subr.mxu0 0.0
    %765 = vmatpush1.msra.mxu0 %v609
    %766 = vmatprep.subr.mxu0 0.0
    %767 = vmatpush1.msra.mxu0 %v610
    %768 = vmatprep.subr.mxu0 0.0
    %769 = vmatpush1.msra.mxu0 %v611
    %770 = vmatprep.subr.mxu0 0.0
    %771 = vmatpush1.msra.mxu0 %v612
    %772 = vmatprep.subr.mxu0 0.0
    %773 = vmatpush1.msra.mxu0 %v613
    %774 = vmatprep.mubr.f32.mxu0 %v575
    %775 = vmatmul.mubr.f32.gmra.mrb[0].mxu0 %v574
    %v776 = vpop.f32.mrb[0].mxu0
    %v777 = vadd.f32 0.0, %v776
    %v778 = vpop.f32.mrb[0].mxu0
    %779 = vdwg.mxu0
    %780 = vmatprep.subr.mxu0 0.0
    %781 = vmatpush1.msra.mxu0 %v614
    %782 = vmatprep.subr.mxu0 0.0
    %783 = vmatpush1.msra.mxu0 %v615
    %784 = vmatprep.subr.mxu0 0.0
    %785 = vmatpush1.msra.mxu0 %v616
    %786 = vmatprep.subr.mxu0 0.0
    %787 = vmatpush1.msra.mxu0 %v617
    %788 = vmatprep.subr.mxu0 0.0
    %789 = vmatpush1.msra.mxu0 %v618
    %790 = vmatprep.subr.mxu0 0.0
    %791 = vmatpush1.msra.mxu0 %v619
    %792 = vmatprep.subr.mxu0 0.0
    %793 = vmatpush1.msra.mxu0 %v620
    %794 = vmatprep.subr.mxu0 0.0
    %795 = vmatpush1.msra.mxu0 %v621
    %796 = vmatprep.subr.mxu0 0.0
    %797 = vmatpush1.msra.mxu0 %v622
    %798 = vmatprep.subr.mxu0 0.0
    %799 = vmatpush1.msra.mxu0 %v623
    %800 = vmatprep.subr.mxu0 0.0
    %801 = vmatpush1.msra.mxu0 %v624
    %802 = vmatprep.subr.mxu0 0.0
    %803 = vmatpush1.msra.mxu0 %v625
    %804 = vmatprep.subr.mxu0 0.0
    %805 = vmatpush1.msra.mxu0 %v626
    %806 = vmatprep.subr.mxu0 0.0
    %807 = vmatpush1.msra.mxu0 %v627
    %808 = vmatprep.subr.mxu0 0.0
    %809 = vmatpush1.msra.mxu0 %v628
    %810 = vmatprep.subr.mxu0 0.0
    %811 = vmatpush1.msra.mxu0 %v629
    %812 = vmatprep.subr.mxu0 0.0
    %813 = vmatpush1.msra.mxu0 %v630
    %814 = vmatprep.subr.mxu0 0.0
    %815 = vmatpush1.msra.mxu0 %v631
    %816 = vmatprep.subr.mxu0 0.0
    %817 = vmatpush1.msra.mxu0 %v632
    %818 = vmatprep.subr.mxu0 0.0
    %819 = vmatpush1.msra.mxu0 %v633
    %820 = vmatprep.subr.mxu0 0.0
    %821 = vmatpush1.msra.mxu0 %v634
    %822 = vmatprep.subr.mxu0 0.0
    %823 = vmatpush1.msra.mxu0 %v635
    %824 = vmatprep.subr.mxu0 0.0
    %825 = vmatpush1.msra.mxu0 %v636
    %826 = vmatprep.subr.mxu0 0.0
    %827 = vmatpush1.msra.mxu0 %v637
    %828 = vmatprep.subr.mxu0 0.0
    %829 = vmatpush1.msra.mxu0 %v638
    %830 = vmatprep.subr.mxu0 0.0
    %831 = vmatpush1.msra.mxu0 %v639
    %832 = vmatprep.subr.mxu0 0.0
    %833 = vmatpush1.msra.mxu0 %v640
    %834 = vmatprep.subr.mxu0 0.0
    %835 = vmatpush1.msra.mxu0 %v641
    %836 = vmatprep.subr.mxu0 0.0
    %837 = vmatpush1.msra.mxu0 %v642
    %838 = vmatprep.subr.mxu0 0.0
    %839 = vmatpush1.msra.mxu0 %v643
    %840 = vmatprep.subr.mxu0 0.0
    %841 = vmatpush1.msra.mxu0 %v644
    %842 = vmatprep.subr.mxu0 0.0
    %843 = vmatpush1.msra.mxu0 %v645
    %844 = vmatprep.mubr.f32.mxu0 %v577
    %845 = vmatmul.mubr.f32.gmra.mrb[0].mxu0 %v576
    %v846 = vpop.f32.mrb[0].mxu0
    %v847 = vadd.f32 %v777, %v846
    %v848 = vpop.f32.mrb[0].mxu0
    %849 = vdwg.mxu0
    %850 = vmatprep.subr.mxu0 0.0
    %851 = vmatpush1.msra.mxu0 %v646
    %852 = vmatprep.subr.mxu0 0.0
    %853 = vmatpush1.msra.mxu0 %v647
    %854 = vmatprep.subr.mxu0 0.0
    %855 = vmatpush1.msra.mxu0 %v648
    %856 = vmatprep.subr.mxu0 0.0
    %857 = vmatpush1.msra.mxu0 %v649
    %858 = vmatprep.subr.mxu0 0.0
    %859 = vmatpush1.msra.mxu0 %v650
    %860 = vmatprep.subr.mxu0 0.0
    %861 = vmatpush1.msra.mxu0 %v651
    %862 = vmatprep.subr.mxu0 0.0
    %863 = vmatpush1.msra.mxu0 %v652
    %864 = vmatprep.subr.mxu0 0.0
    %865 = vmatpush1.msra.mxu0 %v653
    %866 = vmatprep.subr.mxu0 0.0
    %867 = vmatpush1.msra.mxu0 %v654
    %868 = vmatprep.subr.mxu0 0.0
    %869 = vmatpush1.msra.mxu0 %v655
    %870 = vmatprep.subr.mxu0 0.0
    %871 = vmatpush1.msra.mxu0 %v656
    %872 = vmatprep.subr.mxu0 0.0
    %873 = vmatpush1.msra.mxu0 %v657
    %874 = vmatprep.subr.mxu0 0.0
    %875 = vmatpush1.msra.mxu0 %v658
    %876 = vmatprep.subr.mxu0 0.0
    %877 = vmatpush1.msra.mxu0 %v659
    %878 = vmatprep.subr.mxu0 0.0
    %879 = vmatpush1.msra.mxu0 %v660
    %880 = vmatprep.subr.mxu0 0.0
    %881 = vmatpush1.msra.mxu0 %v661
    %882 = vmatprep.subr.mxu0 0.0
    %883 = vmatpush1.msra.mxu0 %v662
    %884 = vmatprep.subr.mxu0 0.0
    %885 = vmatpush1.msra.mxu0 %v663
    %886 = vmatprep.subr.mxu0 0.0
    %887 = vmatpush1.msra.mxu0 %v664
    %888 = vmatprep.subr.mxu0 0.0
    %889 = vmatpush1.msra.mxu0 %v665
    %890 = vmatprep.subr.mxu0 0.0
    %891 = vmatpush1.msra.mxu0 %v666
    %892 = vmatprep.subr.mxu0 0.0
    %893 = vmatpush1.msra.mxu0 %v667
    %894 = vmatprep.subr.mxu0 0.0
    %895 = vmatpush1.msra.mxu0 %v668
    %896 = vmatprep.subr.mxu0 0.0
    %897 = vmatpush1.msra.mxu0 %v669
    %898 = vmatprep.subr.mxu0 0.0
    %899 = vmatpush1.msra.mxu0 %v670
    %900 = vmatprep.subr.mxu0 0.0
    %901 = vmatpush1.msra.mxu0 %v671
    %902 = vmatprep.subr.mxu0 0.0
    %903 = vmatpush1.msra.mxu0 %v672
    %904 = vmatprep.subr.mxu0 0.0
    %905 = vmatpush1.msra.mxu0 %v673
    %906 = vmatprep.subr.mxu0 0.0
    %907 = vmatpush1.msra.mxu0 %v674
    %908 = vmatprep.subr.mxu0 0.0
    %909 = vmatpush1.msra.mxu0 %v675
    %910 = vmatprep.subr.mxu0 0.0
    %911 = vmatpush1.msra.mxu0 %v676
    %912 = vmatprep.subr.mxu0 0.0
    %913 = vmatpush1.msra.mxu0 %v677
    %914 = vmatprep.mubr.f32.mxu0 %v579
    %915 = vmatmul.mubr.f32.gmra.mrb[0].mxu0 %v578
    %v916 = vpop.f32.mrb[0].mxu0
    %v917 = vadd.f32 %v847, %v916
    %v918 = vpop.f32.mrb[0].mxu0
    %919 = vdwg.mxu0
    %920 = vmatprep.subr.mxu0 0.0
    %921 = vmatpush1.msra.mxu0 %v678
    %922 = vmatprep.subr.mxu0 0.0
    %923 = vmatpush1.msra.mxu0 %v679
    %924 = vmatprep.subr.mxu0 0.0
    %925 = vmatpush1.msra.mxu0 %v680
    %926 = vmatprep.subr.mxu0 0.0
    %927 = vmatpush1.msra.mxu0 %v681
    %928 = vmatprep.subr.mxu0 0.0
    %929 = vmatpush1.msra.mxu0 %v682
    %930 = vmatprep.subr.mxu0 0.0
    %931 = vmatpush1.msra.mxu0 %v683
    %932 = vmatprep.subr.mxu0 0.0
    %933 = vmatpush1.msra.mxu0 %v684
    %934 = vmatprep.subr.mxu0 0.0
    %935 = vmatpush1.msra.mxu0 %v685
    %936 = vmatprep.subr.mxu0 0.0
    %937 = vmatpush1.msra.mxu0 %v686
    %938 = vmatprep.subr.mxu0 0.0
    %939 = vmatpush1.msra.mxu0 %v687
    %940 = vmatprep.subr.mxu0 0.0
    %941 = vmatpush1.msra.mxu0 %v688
    %942 = vmatprep.subr.mxu0 0.0
    %943 = vmatpush1.msra.mxu0 %v689
    %944 = vmatprep.subr.mxu0 0.0
    %945 = vmatpush1.msra.mxu0 %v690
    %946 = vmatprep.subr.mxu0 0.0
    %947 = vmatpush1.msra.mxu0 %v691
    %948 = vmatprep.subr.mxu0 0.0
    %949 = vmatpush1.msra.mxu0 %v692
    %950 = vmatprep.subr.mxu0 0.0
    %951 = vmatpush1.msra.mxu0 %v693
    %952 = vmatprep.subr.mxu0 0.0
    %953 = vmatpush1.msra.mxu0 %v694
    %954 = vmatprep.subr.mxu0 0.0
    %955 = vmatpush1.msra.mxu0 %v695
    %956 = vmatprep.subr.mxu0 0.0
    %957 = vmatpush1.msra.mxu0 %v696
    %958 = vmatprep.subr.mxu0 0.0
    %959 = vmatpush1.msra.mxu0 %v697
    %960 = vmatprep.subr.mxu0 0.0
    %961 = vmatpush1.msra.mxu0 %v698
    %962 = vmatprep.subr.mxu0 0.0
    %963 = vmatpush1.msra.mxu0 %v699
    %964 = vmatprep.subr.mxu0 0.0
    %965 = vmatpush1.msra.mxu0 %v700
    %966 = vmatprep.subr.mxu0 0.0
    %967 = vmatpush1.msra.mxu0 %v701
    %968 = vmatprep.subr.mxu0 0.0
    %969 = vmatpush1.msra.mxu0 %v702
    %970 = vmatprep.subr.mxu0 0.0
    %971 = vmatpush1.msra.mxu0 %v703
    %972 = vmatprep.subr.mxu0 0.0
    %973 = vmatpush1.msra.mxu0 %v704
    %974 = vmatprep.subr.mxu0 0.0
    %975 = vmatpush1.msra.mxu0 %v705
    %976 = vmatprep.subr.mxu0 0.0
    %977 = vmatpush1.msra.mxu0 %v706
    %978 = vmatprep.subr.mxu0 0.0
    %979 = vmatpush1.msra.mxu0 %v707
    %980 = vmatprep.subr.mxu0 0.0
    %981 = vmatpush1.msra.mxu0 %v708
    %982 = vmatprep.subr.mxu0 0.0
    %983 = vmatpush1.msra.mxu0 %v709
    %984 = vmatprep.mubr.f32.mxu0 %v581
    %985 = vmatmul.mubr.f32.gmra.mrb[0].mxu0 %v580
    %v986 = vpop.f32.mrb[0].mxu0
    %v987 = vadd.f32 %v917, %v986
    %v988 = vpop.f32.mrb[0].mxu0
    %989 = vdwg.mxu0
    %v990 = vmul.f32 %v987, 0.0078125
    %v991 = vmul.f32 %v990, %v990
    %v993 = vrot.slane %v991, 7
    %v995 = vsub.f32 %v990, %v993
    %v996 = vld [vmem:[%s4] sm:$0x1]
    %v997 = vadd.f32 %v995, 1e-05
    %v998 = vrsqrt.pop %v997
    %v1000 = vrot.slane %v998, 1
    %v1002 = vmul.f32 %v996, %v1000
    %v1003 = vld [vmem:[%s4 + $0x1] sm:$0x1]
    %v1004 = vmul.f32 %v990, %v1002
    %v1005 = vsub.f32 %v1003, %v1004
    %v1007 = vrot.slane %v1005, 7
    %v1009 = vsel %vm573, %v1002, %v1007
    %v1010 = vld [vmem:[%s3] sm:$0xff]
    %v1011 = vld [vmem:[%s3 + $0x8] sm:$0xff]
    %v1012 = vld [vmem:[%s3 + $0x10] sm:$0xff]
    %v1013 = vld [vmem:[%s3 + $0x18] sm:$0xff]
    %v1014 = vld [vmem:[%s3 + $0x20] sm:$0xff]
    %v1015 = vld [vmem:[%s3 + $0x28] sm:$0xff]
    %v1016 = vld [vmem:[%s3 + $0x30] sm:$0xff]
    %v1017 = vld [vmem:[%s3 + $0x38] sm:$0xff]
    %v1018 = vld [vmem:[%s3 + $0x40] sm:$0xff]
    %v1019 = vld [vmem:[%s3 + $0x48] sm:$0xff]
    %v1020 = vld [vmem:[%s3 + $0x50] sm:$0xff]
    %v1021 = vld [vmem:[%s3 + $0x58] sm:$0xff]
    %v1022 = vld [vmem:[%s3 + $0x60] sm:$0xff]
    %v1023 = vld [vmem:[%s3 + $0x68] sm:$0xff]
    %v1024 = vld [vmem:[%s3 + $0x70] sm:$0xff]
    %v1025 = vld [vmem:[%s3 + $0x78] sm:$0xff]
    %vm1026 = vcmask 130048
    %v1028 = vsel %vm1026, %v1009, 0
    %1030 = vmatprep.subr.mxu0 %v1011
    %1031 = vmatpush1.msra.mxu0 %v1010
    %1032 = vmatprep.subr.mxu0 %v1019
    %1033 = vmatpush1.msra.mxu0 %v1018
    %1034 = vmatprep.subr.mxu0 0.0
    %1035 = vmatpush1.msra.mxu0 0.0
    %1036 = vmatprep.subr.mxu0 0.0
    %1037 = vmatpush1.msra.mxu0 0.0
    %1038 = vmatprep.subr.mxu0 0.0
    %1039 = vmatpush1.msra.mxu0 0.0
    %1040 = vmatprep.subr.mxu0 0.0
    %1041 = vmatpush1.msra.mxu0 0.0
    %1042 = vmatprep.subr.mxu0 0.0
    %1043 = vmatpush1.msra.mxu0 0.0
    %1044 = vmatprep.subr.mxu0 0.0
    %1045 = vmatpush1.msra.mxu0 0.0
    %1046 = vmatprep.subr.mxu0 0.0
    %1047 = vmatpush1.msra.mxu0 0.0
    %1048 = vmatprep.subr.mxu0 0.0
    %1049 = vmatpush1.msra.mxu0 0.0
    %1050 = vmatprep.subr.mxu0 0.0
    %1051 = vmatpush1.msra.mxu0 0.0
    %1052 = vmatprep.subr.mxu0 0.0
    %1053 = vmatpush1.msra.mxu0 0.0
    %1054 = vmatprep.subr.mxu0 0.0
    %1055 = vmatpush1.msra.mxu0 0.0
    %1056 = vmatprep.subr.mxu0 0.0
    %1057 = vmatpush1.msra.mxu0 0.0
    %1058 = vmatprep.subr.mxu0 0.0
    %1059 = vmatpush1.msra.mxu0 0.0
    %1060 = vmatprep.subr.mxu0 0.0
    %1061 = vmatpush1.msra.mxu0 0.0
    %1062 = vmatprep.subr.mxu0 0.0
    %1063 = vmatpush1.msra.mxu0 0.0
    %1064 = vmatprep.subr.mxu0 0.0
    %1065 = vmatpush1.msra.mxu0 0.0
    %1066 = vmatprep.subr.mxu0 0.0
    %1067 = vmatpush1.msra.mxu0 0.0
    %1068 = vmatprep.subr.mxu0 0.0
    %1069 = vmatpush1.msra.mxu0 0.0
    %1070 = vmatprep.subr.mxu0 0.0
    %1071 = vmatpush1.msra.mxu0 0.0
    %1072 = vmatprep.subr.mxu0 0.0
    %1073 = vmatpush1.msra.mxu0 0.0
    %1074 = vmatprep.subr.mxu0 0.0
    %1075 = vmatpush1.msra.mxu0 0.0
    %1076 = vmatprep.subr.mxu0 0.0
    %1077 = vmatpush1.msra.mxu0 0.0
    %1078 = vmatprep.subr.mxu0 0.0
    %1079 = vmatpush1.msra.mxu0 0.0
    %1080 = vmatprep.subr.mxu0 0.0
    %1081 = vmatpush1.msra.mxu0 0.0
    %1082 = vmatprep.subr.mxu0 0.0
    %1083 = vmatpush1.msra.mxu0 0.0
    %1084 = vmatprep.subr.mxu0 0.0
    %1085 = vmatpush1.msra.mxu0 0.0
    %1086 = vmatprep.subr.mxu0 0.0
    %1087 = vmatpush1.msra.mxu0 0.0
    %1088 = vmatprep.subr.mxu0 0.0
    %1089 = vmatpush1.msra.mxu0 0.0
    %1090 = vmatprep.subr.mxu0 0.0
    %1091 = vmatpush1.msra.mxu0 0.0
    %1092 = vmatprep.subr.mxu0 0.0
    %1093 = vmatpush1.msra.mxu0 0.0
    %1094 = vmatprep.mubr.f32.mxu0 0.0
    %1095 = vmatmul.mubr.f32.gmra.mrb[0].mxu0 %v1028
    %v1096 = vpop.f32.mrb[0].mxu0
    %v1097 = vadd.f32 0.0, %v1096
    %v1098 = vpop.f32.mrb[0].mxu0
    %v1099 = vadd.f32 0.0, %v1098
    %1100 = vdwg.mxu0
    %1101 = vmatprep.subr.mxu0 %v1013
    %1102 = vmatpush1.msra.mxu0 %v1012
    %1103 = vmatprep.subr.mxu0 %v1021
    %1104 = vmatpush1.msra.mxu0 %v1020
    %1105 = vmatprep.subr.mxu0 0.0
    %1106 = vmatpush1.msra.mxu0 0.0
    %1107 = vmatprep.subr.mxu0 0.0
    %1108 = vmatpush1.msra.mxu0 0.0
    %1109 = vmatprep.subr.mxu0 0.0
    %1110 = vmatpush1.msra.mxu0 0.0
    %1111 = vmatprep.subr.mxu0 0.0
    %1112 = vmatpush1.msra.mxu0 0.0
    %1113 = vmatprep.subr.mxu0 0.0
    %1114 = vmatpush1.msra.mxu0 0.0
    %1115 = vmatprep.subr.mxu0 0.0
    %1116 = vmatpush1.msra.mxu0 0.0
    %1117 = vmatprep.subr.mxu0 0.0
    %1118 = vmatpush1.msra.mxu0 0.0
    %1119 = vmatprep.subr.mxu0 0.0
    %1120 = vmatpush1.msra.mxu0 0.0
    %1121 = vmatprep.subr.mxu0 0.0
    %1122 = vmatpush1.msra.mxu0 0.0
    %1123 = vmatprep.subr.mxu0 0.0
    %1124 = vmatpush1.msra.mxu0 0.0
    %1125 = vmatprep.subr.mxu0 0.0
    %1126 = vmatpush1.msra.mxu0 0.0
    %1127 = vmatprep.subr.mxu0 0.0
    %1128 = vmatpush1.msra.mxu0 0.0
    %1129 = vmatprep.subr.mxu0 0.0
    %1130 = vmatpush1.msra.mxu0 0.0
    %1131 = vmatprep.subr.mxu0 0.0
    %1132 = vmatpush1.msra.mxu0 0.0
    %1133 = vmatprep.subr.mxu0 0.0
    %1134 = vmatpush1.msra.mxu0 0.0
    %1135 = vmatprep.subr.mxu0 0.0
    %1136 = vmatpush1.msra.mxu0 0.0
    %1137 = vmatprep.subr.mxu0 0.0
    %1138 = vmatpush1.msra.mxu0 0.0
    %1139 = vmatprep.subr.mxu0 0.0
    %1140 = vmatpush1.msra.mxu0 0.0
    %1141 = vmatprep.subr.mxu0 0.0
    %1142 = vmatpush1.msra.mxu0 0.0
    %1143 = vmatprep.subr.mxu0 0.0
    %1144 = vmatpush1.msra.mxu0 0.0
    %1145 = vmatprep.subr.mxu0 0.0
    %1146 = vmatpush1.msra.mxu0 0.0
    %1147 = vmatprep.subr.mxu0 0.0
    %1148 = vmatpush1.msra.mxu0 0.0
    %1149 = vmatprep.subr.mxu0 0.0
    %1150 = vmatpush1.msra.mxu0 0.0
    %1151 = vmatprep.subr.mxu0 0.0
    %1152 = vmatpush1.msra.mxu0 0.0
    %1153 = vmatprep.subr.mxu0 0.0
    %1154 = vmatpush1.msra.mxu0 0.0
    %1155 = vmatprep.subr.mxu0 0.0
    %1156 = vmatpush1.msra.mxu0 0.0
    %1157 = vmatprep.subr.mxu0 0.0
    %1158 = vmatpush1.msra.mxu0 0.0
    %1159 = vmatprep.subr.mxu0 0.0
    %1160 = vmatpush1.msra.mxu0 0.0
    %1161 = vmatprep.subr.mxu0 0.0
    %1162 = vmatpush1.msra.mxu0 0.0
    %1163 = vmatprep.subr.mxu0 0.0
    %1164 = vmatpush1.msra.mxu0 0.0
    %1165 = vmatprep.mubr.f32.mxu0 0.0
    %1166 = vmatmul.mubr.f32.gmra.mrb[0].mxu0 %v1028
    %v1167 = vpop.f32.mrb[0].mxu0
    %v1168 = vadd.f32 0.0, %v1167
    %v1169 = vpop.f32.mrb[0].mxu0
    %v1170 = vadd.f32 0.0, %v1169
    %1171 = vdwg.mxu0
    %1172 = vmatprep.subr.mxu0 %v1015
    %1173 = vmatpush1.msra.mxu0 %v1014
    %1174 = vmatprep.subr.mxu0 %v1023
    %1175 = vmatpush1.msra.mxu0 %v1022
    %1176 = vmatprep.subr.mxu0 0.0
    %1177 = vmatpush1.msra.mxu0 0.0
    %1178 = vmatprep.subr.mxu0 0.0
    %1179 = vmatpush1.msra.mxu0 0.0
    %1180 = vmatprep.subr.mxu0 0.0
    %1181 = vmatpush1.msra.mxu0 0.0
    %1182 = vmatprep.subr.mxu0 0.0
    %1183 = vmatpush1.msra.mxu0 0.0
    %1184 = vmatprep.subr.mxu0 0.0
    %1185 = vmatpush1.msra.mxu0 0.0
    %1186 = vmatprep.subr.mxu0 0.0
    %1187 = vmatpush1.msra.mxu0 0.0
    %1188 = vmatprep.subr.mxu0 0.0
    %1189 = vmatpush1.msra.mxu0 0.0
    %1190 = vmatprep.subr.mxu0 0.0
    %1191 = vmatpush1.msra.mxu0 0.0
    %1192 = vmatprep.subr.mxu0 0.0
    %1193 = vmatpush1.msra.mxu0 0.0
    %1194 = vmatprep.subr.mxu0 0.0
    %1195 = vmatpush1.msra.mxu0 0.0
    %1196 = vmatprep.subr.mxu0 0.0
    %1197 = vmatpush1.msra.mxu0 0.0
    %1198 = vmatprep.subr.mxu0 0.0
    %1199 = vmatpush1.msra.mxu0 0.0
    %1200 = vmatprep.subr.mxu0 0.0
    %1201 = vmatpush1.msra.mxu0 0.0
    %1202 = vmatprep.subr.mxu0 0.0
    %1203 = vmatpush1.msra.mxu0 0.0
    %1204 = vmatprep.subr.mxu0 0.0
    %1205 = vmatpush1.msra.mxu0 0.0
    %1206 = vmatprep.subr.mxu0 0.0
    %1207 = vmatpush1.msra.mxu0 0.0
    %1208 = vmatprep.subr.mxu0 0.0
    %1209 = vmatpush1.msra.mxu0 0.0
    %1210 = vmatprep.subr.mxu0 0.0
    %1211 = vmatpush1.msra.mxu0 0.0
    %1212 = vmatprep.subr.mxu0 0.0
    %1213 = vmatpush1.msra.mxu0 0.0
    %1214 = vmatprep.subr.mxu0 0.0
    %1215 = vmatpush1.msra.mxu0 0.0
    %1216 = vmatprep.subr.mxu0 0.0
    %1217 = vmatpush1.msra.mxu0 0.0
    %1218 = vmatprep.subr.mxu0 0.0
    %1219 = vmatpush1.msra.mxu0 0.0
    %1220 = vmatprep.subr.mxu0 0.0
    %1221 = vmatpush1.msra.mxu0 0.0
    %1222 = vmatprep.subr.mxu0 0.0
    %1223 = vmatpush1.msra.mxu0 0.0
    %1224 = vmatprep.subr.mxu0 0.0
    %1225 = vmatpush1.msra.mxu0 0.0
    %1226 = vmatprep.subr.mxu0 0.0
    %1227 = vmatpush1.msra.mxu0 0.0
    %1228 = vmatprep.subr.mxu0 0.0
    %1229 = vmatpush1.msra.mxu0 0.0
    %1230 = vmatprep.subr.mxu0 0.0
    %1231 = vmatpush1.msra.mxu0 0.0
    %1232 = vmatprep.subr.mxu0 0.0
    %1233 = vmatpush1.msra.mxu0 0.0
    %1234 = vmatprep.subr.mxu0 0.0
    %1235 = vmatpush1.msra.mxu0 0.0
    %1236 = vmatprep.mubr.f32.mxu0 0.0
    %1237 = vmatmul.mubr.f32.gmra.mrb[0].mxu0 %v1028
    %v1238 = vpop.f32.mrb[0].mxu0
    %v1239 = vadd.f32 0.0, %v1238
    %v1240 = vpop.f32.mrb[0].mxu0
    %v1241 = vadd.f32 0.0, %v1240
    %1242 = vdwg.mxu0
    %1243 = vmatprep.subr.mxu0 %v1017
    %1244 = vmatpush1.msra.mxu0 %v1016
    %1245 = vmatprep.subr.mxu0 %v1025
    %1246 = vmatpush1.msra.mxu0 %v1024
    %1247 = vmatprep.subr.mxu0 0.0
    %1248 = vmatpush1.msra.mxu0 0.0
    %1249 = vmatprep.subr.mxu0 0.0
    %1250 = vmatpush1.msra.mxu0 0.0
    %1251 = vmatprep.subr.mxu0 0.0
    %1252 = vmatpush1.msra.mxu0 0.0
    %1253 = vmatprep.subr.mxu0 0.0
    %1254 = vmatpush1.msra.mxu0 0.0
    %1255 = vmatprep.subr.mxu0 0.0
    %1256 = vmatpush1.msra.mxu0 0.0
    %1257 = vmatprep.subr.mxu0 0.0
    %1258 = vmatpush1.msra.mxu0 0.0
    %1259 = vmatprep.subr.mxu0 0.0
    %1260 = vmatpush1.msra.mxu0 0.0
    %1261 = vmatprep.subr.mxu0 0.0
    %1262 = vmatpush1.msra.mxu0 0.0
    %1263 = vmatprep.subr.mxu0 0.0
    %1264 = vmatpush1.msra.mxu0 0.0
    %1265 = vmatprep.subr.mxu0 0.0
    %1266 = vmatpush1.msra.mxu0 0.0
    %1267 = vmatprep.subr.mxu0 0.0
    %1268 = vmatpush1.msra.mxu0 0.0
    %1269 = vmatprep.subr.mxu0 0.0
    %1270 = vmatpush1.msra.mxu0 0.0
    %1271 = vmatprep.subr.mxu0 0.0
    %1272 = vmatpush1.msra.mxu0 0.0
    %1273 = vmatprep.subr.mxu0 0.0
    %1274 = vmatpush1.msra.mxu0 0.0
    %1275 = vmatprep.subr.mxu0 0.0
    %1276 = vmatpush1.msra.mxu0 0.0
    %1277 = vmatprep.subr.mxu0 0.0
    %1278 = vmatpush1.msra.mxu0 0.0
    %1279 = vmatprep.subr.mxu0 0.0
    %1280 = vmatpush1.msra.mxu0 0.0
    %1281 = vmatprep.subr.mxu0 0.0
    %1282 = vmatpush1.msra.mxu0 0.0
    %1283 = vmatprep.subr.mxu0 0.0
    %1284 = vmatpush1.msra.mxu0 0.0
    %1285 = vmatprep.subr.mxu0 0.0
    %1286 = vmatpush1.msra.mxu0 0.0
    %1287 = vmatprep.subr.mxu0 0.0
    %1288 = vmatpush1.msra.mxu0 0.0
    %1289 = vmatprep.subr.mxu0 0.0
    %1290 = vmatpush1.msra.mxu0 0.0
    %1291 = vmatprep.subr.mxu0 0.0
    %1292 = vmatpush1.msra.mxu0 0.0
    %1293 = vmatprep.subr.mxu0 0.0
    %1294 = vmatpush1.msra.mxu0 0.0
    %1295 = vmatprep.subr.mxu0 0.0
    %1296 = vmatpush1.msra.mxu0 0.0
    %1297 = vmatprep.subr.mxu0 0.0
    %1298 = vmatpush1.msra.mxu0 0.0
    %1299 = vmatprep.subr.mxu0 0.0
    %1300 = vmatpush1.msra.mxu0 0.0
    %1301 = vmatprep.subr.mxu0 0.0
    %1302 = vmatpush1.msra.mxu0 0.0
    %1303 = vmatprep.subr.mxu0 0.0
    %1304 = vmatpush1.msra.mxu0 0.0
    %1305 = vmatprep.subr.mxu0 0.0
    %1306 = vmatpush1.msra.mxu0 0.0
    %1307 = vmatprep.mubr.f32.mxu0 0.0
    %1308 = vmatmul.mubr.f32.gmra.mrb[0].mxu0 %v1028
    %v1309 = vpop.f32.mrb[0].mxu0
    %v1310 = vadd.f32 0.0, %v1309
    %v1311 = vpop.f32.mrb[0].mxu0
    %v1312 = vadd.f32 0.0, %v1311
    %1313 = vdwg.mxu0
    %v1314 = vlaneseq
    %v1315 = vshrl.u32 %v1314, 7
    %v1316 = vsub.s32 0, %v1315
    %v1317 = vrot.slane %v1097, %v1316
    %v1318 = vlaneseq
    %v1319 = vshrl.u32 %v1318, 7
    %v1320 = vsub.s32 0, %v1319
    %v1321 = vrot.slane %v1099, %v1320
    %v1322 = vlaneseq
    %v1323 = vshrl.u32 %v1322, 7
    %v1324 = vsub.s32 0, %v1323
    %v1325 = vrot.slane %v1168, %v1324
    %v1326 = vlaneseq
    %v1327 = vshrl.u32 %v1326, 7
    %v1328 = vsub.s32 0, %v1327
    %v1329 = vrot.slane %v1170, %v1328
    %v1330 = vlaneseq
    %v1331 = vshrl.u32 %v1330, 7
    %v1332 = vsub.s32 0, %v1331
    %v1333 = vrot.slane %v1239, %v1332
    %v1334 = vlaneseq
    %v1335 = vshrl.u32 %v1334, 7
    %v1336 = vsub.s32 0, %v1335
    %v1337 = vrot.slane %v1241, %v1336
    %v1338 = vlaneseq
    %v1339 = vshrl.u32 %v1338, 7
    %v1340 = vsub.s32 0, %v1339
    %v1341 = vrot.slane %v1310, %v1340
    %v1342 = vlaneseq
    %v1343 = vshrl.u32 %v1342, 7
    %v1344 = vsub.s32 0, %v1343
    %v1345 = vrot.slane %v1312, %v1344
    %v1346 = vmul.f32 %v235, %v1317
    %v1347 = vmul.f32 %v237, %v1321
    %v1348 = vmul.f32 %v306, %v1325
    %v1349 = vmul.f32 %v308, %v1329
    %v1350 = vmul.f32 %v377, %v1333
    %v1351 = vmul.f32 %v379, %v1337
    %v1352 = vmul.f32 %v448, %v1341
    %v1353 = vmul.f32 %v450, %v1345
    %v1354 = vlaneseq
    %v1355 = vshrl.u32 %v1354, 7
    %v1356 = vsub.s32 1, %v1355
    %v1357 = vrot.slane %v1097, %v1356
    %v1358 = vlaneseq
    %v1359 = vshrl.u32 %v1358, 7
    %v1360 = vsub.s32 1, %v1359
    %v1361 = vrot.slane %v1099, %v1360
    %v1362 = vlaneseq
    %v1363 = vshrl.u32 %v1362, 7
    %v1364 = vsub.s32 1, %v1363
    %v1365 = vrot.slane %v1168, %v1364
    %v1366 = vlaneseq
    %v1367 = vshrl.u32 %v1366, 7
    %v1368 = vsub.s32 1, %v1367
    %v1369 = vrot.slane %v1170, %v1368
    %v1370 = vlaneseq
    %v1371 = vshrl.u32 %v1370, 7
    %v1372 = vsub.s32 1, %v1371
    %v1373 = vrot.slane %v1239, %v1372
    %v1374 = vlaneseq
    %v1375 = vshrl.u32 %v1374, 7
    %v1376 = vsub.s32 1, %v1375
    %v1377 = vrot.slane %v1241, %v1376
    %v1378 = vlaneseq
    %v1379 = vshrl.u32 %v1378, 7
    %v1380 = vsub.s32 1, %v1379
    %v1381 = vrot.slane %v1310, %v1380
    %v1382 = vlaneseq
    %v1383 = vshrl.u32 %v1382, 7
    %v1384 = vsub.s32 1, %v1383
    %v1385 = vrot.slane %v1312, %v1384
    %v1386 = vadd.f32 %v1346, %v1357
    %v1387 = vadd.f32 %v1347, %v1361
    %v1388 = vadd.f32 %v1348, %v1365
    %v1389 = vadd.f32 %v1349, %v1369
    %v1390 = vadd.f32 %v1350, %v1373
    %v1391 = vadd.f32 %v1351, %v1377
    %v1392 = vadd.f32 %v1352, %v1381
    %v1393 = vadd.f32 %v1353, %v1385
    %v1394 = vmax.f32 %v1386, 0.0
    %v1395 = vmax.f32 %v1387, 0.0
    %v1396 = vmax.f32 %v1388, 0.0
    %v1397 = vmax.f32 %v1389, 0.0
    %v1398 = vmax.f32 %v1390, 0.0
    %v1399 = vmax.f32 %v1391, 0.0
    %v1400 = vmax.f32 %v1392, 0.0
    %v1401 = vmax.f32 %v1393, 0.0
    %v1402 = vld [vmem:[%s5] sm:$0xff]
    %v1403 = vld [vmem:[%s5 + $0x8] sm:$0xff]
    %v1404 = vld [vmem:[%s5 + $0x10] sm:$0xff]
    %v1405 = vld [vmem:[%s5 + $0x18] sm:$0xff]
    %v1406 = vld [vmem:[%s5 + $0x20] sm:$0xff]
    %v1407 = vld [vmem:[%s5 + $0x28] sm:$0xff]
    %v1408 = vld [vmem:[%s5 + $0x30] sm:$0xff]
    %v1409 = vld [vmem:[%s5 + $0x38] sm:$0xff]
    %v1410 = vld [vmem:[%s5 + $0x40] sm:$0xff]
    %v1411 = vld [vmem:[%s5 + $0x48] sm:$0xff]
    %v1412 = vld [vmem:[%s5 + $0x50] sm:$0xff]
    %v1413 = vld [vmem:[%s5 + $0x58] sm:$0xff]
    %v1414 = vld [vmem:[%s5 + $0x60] sm:$0xff]
    %v1415 = vld [vmem:[%s5 + $0x68] sm:$0xff]
    %v1416 = vld [vmem:[%s5 + $0x70] sm:$0xff]
    %v1417 = vld [vmem:[%s5 + $0x78] sm:$0xff]
    %v1418 = vld [vmem:[%s5 + $0x80] sm:$0xff]
    %v1419 = vld [vmem:[%s5 + $0x88] sm:$0xff]
    %v1420 = vld [vmem:[%s5 + $0x90] sm:$0xff]
    %v1421 = vld [vmem:[%s5 + $0x98] sm:$0xff]
    %v1422 = vld [vmem:[%s5 + $0xa0] sm:$0xff]
    %v1423 = vld [vmem:[%s5 + $0xa8] sm:$0xff]
    %v1424 = vld [vmem:[%s5 + $0xb0] sm:$0xff]
    %v1425 = vld [vmem:[%s5 + $0xb8] sm:$0xff]
    %v1426 = vld [vmem:[%s5 + $0xc0] sm:$0xff]
    %v1427 = vld [vmem:[%s5 + $0xc8] sm:$0xff]
    %v1428 = vld [vmem:[%s5 + $0xd0] sm:$0xff]
    %v1429 = vld [vmem:[%s5 + $0xd8] sm:$0xff]
    %v1430 = vld [vmem:[%s5 + $0xe0] sm:$0xff]
    %v1431 = vld [vmem:[%s5 + $0xe8] sm:$0xff]
    %v1432 = vld [vmem:[%s5 + $0xf0] sm:$0xff]
    %v1433 = vld [vmem:[%s5 + $0xf8] sm:$0xff]
    %1434 = vmatprep.subr.mxu0 0.0
    %1435 = vmatpush1.msra.mxu0 %v1402
    %1436 = vmatprep.subr.mxu0 0.0
    %1437 = vmatpush1.msra.mxu0 %v1403
    %1438 = vmatprep.subr.mxu0 0.0
    %1439 = vmatpush1.msra.mxu0 %v1404
    %1440 = vmatprep.subr.mxu0 0.0
    %1441 = vmatpush1.msra.mxu0 %v1405
    %1442 = vmatprep.subr.mxu0 0.0
    %1443 = vmatpush1.msra.mxu0 %v1406
    %1444 = vmatprep.subr.mxu0 0.0
    %1445 = vmatpush1.msra.mxu0 %v1407
    %1446 = vmatprep.subr.mxu0 0.0
    %1447 = vmatpush1.msra.mxu0 %v1408
    %1448 = vmatprep.subr.mxu0 0.0
    %1449 = vmatpush1.msra.mxu0 %v1409
    %1450 = vmatprep.subr.mxu0 0.0
    %1451 = vmatpush1.msra.mxu0 %v1410
    %1452 = vmatprep.subr.mxu0 0.0
    %1453 = vmatpush1.msra.mxu0 %v1411
    %1454 = vmatprep.subr.mxu0 0.0
    %1455 = vmatpush1.msra.mxu0 %v1412
    %1456 = vmatprep.subr.mxu0 0.0
    %1457 = vmatpush1.msra.mxu0 %v1413
    %1458 = vmatprep.subr.mxu0 0.0
    %1459 = vmatpush1.msra.mxu0 %v1414
    %1460 = vmatprep.subr.mxu0 0.0
    %1461 = vmatpush1.msra.mxu0 %v1415
    %1462 = vmatprep.subr.mxu0 0.0
    %1463 = vmatpush1.msra.mxu0 %v1416
    %1464 = vmatprep.subr.mxu0 0.0
    %1465 = vmatpush1.msra.mxu0 %v1417
    %1466 = vmatprep.subr.mxu0 0.0
    %1467 = vmatpush1.msra.mxu0 %v1418
    %1468 = vmatprep.subr.mxu0 0.0
    %1469 = vmatpush1.msra.mxu0 %v1419
    %1470 = vmatprep.subr.mxu0 0.0
    %1471 = vmatpush1.msra.mxu0 %v1420
    %1472 = vmatprep.subr.mxu0 0.0
    %1473 = vmatpush1.msra.mxu0 %v1421
    %1474 = vmatprep.subr.mxu0 0.0
    %1475 = vmatpush1.msra.mxu0 %v1422
    %1476 = vmatprep.subr.mxu0 0.0
    %1477 = vmatpush1.msra.mxu0 %v1423
    %1478 = vmatprep.subr.mxu0 0.0
    %1479 = vmatpush1.msra.mxu0 %v1424
    %1480 = vmatprep.subr.mxu0 0.0
    %1481 = vmatpush1.msra.mxu0 %v1425
    %1482 = vmatprep.subr.mxu0 0.0
    %1483 = vmatpush1.msra.mxu0 %v1426
    %1484 = vmatprep.subr.mxu0 0.0
    %1485 = vmatpush1.msra.mxu0 %v1427
    %1486 = vmatprep.subr.mxu0 0.0
    %1487 = vmatpush1.msra.mxu0 %v1428
    %1488 = vmatprep.subr.mxu0 0.0
    %1489 = vmatpush1.msra.mxu0 %v1429
    %1490 = vmatprep.subr.mxu0 0.0
    %1491 = vmatpush1.msra.mxu0 %v1430
    %1492 = vmatprep.subr.mxu0 0.0
    %1493 = vmatpush1.msra.mxu0 %v1431
    %1494 = vmatprep.subr.mxu0 0.0
    %1495 = vmatpush1.msra.mxu0 %v1432
    %1496 = vmatprep.subr.mxu0 0.0
    %1497 = vmatpush1.msra.mxu0 %v1433
    %1498 = vmatprep.mubr.f32.mxu0 %v1394
    %1499 = vmatmul.mubr.f32.gmra.mrb[0].mxu0 0.0
    %v1500 = vpop.f32.mrb[0].mxu0
    %v1501 = vadd.f32 0.0, %v1500
    %v1502 = vpop.f32.mrb[0].mxu0
    %1503 = vdwg.mxu0
    %1504 = vmatprep.subr.mxu0 0.0
    %1505 = vmatpush1.msra.mxu0 %v1402
    %1506 = vmatprep.subr.mxu0 0.0
    %1507 = vmatpush1.msra.mxu0 %v1403
    %1508 = vmatprep.subr.mxu0 0.0
    %1509 = vmatpush1.msra.mxu0 %v1404
    %1510 = vmatprep.subr.mxu0 0.0
    %1511 = vmatpush1.msra.mxu0 %v1405
    %1512 = vmatprep.subr.mxu0 0.0
    %1513 = vmatpush1.msra.mxu0 %v1406
    %1514 = vmatprep.subr.mxu0 0.0
    %1515 = vmatpush1.msra.mxu0 %v1407
    %1516 = vmatprep.subr.mxu0 0.0
    %1517 = vmatpush1.msra.mxu0 %v1408
    %1518 = vmatprep.subr.mxu0 0.0
    %1519 = vmatpush1.msra.mxu0 %v1409
    %1520 = vmatprep.subr.mxu0 0.0
    %1521 = vmatpush1.msra.mxu0 %v1410
    %1522 = vmatprep.subr.mxu0 0.0
    %1523 = vmatpush1.msra.mxu0 %v1411
    %1524 = vmatprep.subr.mxu0 0.0
    %1525 = vmatpush1.msra.mxu0 %v1412
    %1526 = vmatprep.subr.mxu0 0.0
    %1527 = vmatpush1.msra.mxu0 %v1413
    %1528 = vmatprep.subr.mxu0 0.0
    %1529 = vmatpush1.msra.mxu0 %v1414
    %1530 = vmatprep.subr.mxu0 0.0
    %1531 = vmatpush1.msra.mxu0 %v1415
    %1532 = vmatprep.subr.mxu0 0.0
    %1533 = vmatpush1.msra.mxu0 %v1416
    %1534 = vmatprep.subr.mxu0 0.0
    %1535 = vmatpush1.msra.mxu0 %v1417
    %1536 = vmatprep.subr.mxu0 0.0
    %1537 = vmatpush1.msra.mxu0 %v1418
    %1538 = vmatprep.subr.mxu0 0.0
    %1539 = vmatpush1.msra.mxu0 %v1419
    %1540 = vmatprep.subr.mxu0 0.0
    %1541 = vmatpush1.msra.mxu0 %v1420
    %1542 = vmatprep.subr.mxu0 0.0
    %1543 = vmatpush1.msra.mxu0 %v1421
    %1544 = vmatprep.subr.mxu0 0.0
    %1545 = vmatpush1.msra.mxu0 %v1422
    %1546 = vmatprep.subr.mxu0 0.0
    %1547 = vmatpush1.msra.mxu0 %v1423
    %1548 = vmatprep.subr.mxu0 0.0
    %1549 = vmatpush1.msra.mxu0 %v1424
    %1550 = vmatprep.subr.mxu0 0.0
    %1551 = vmatpush1.msra.mxu0 %v1425
    %1552 = vmatprep.subr.mxu0 0.0
    %1553 = vmatpush1.msra.mxu0 %v1426
    %1554 = vmatprep.subr.mxu0 0.0
    %1555 = vmatpush1.msra.mxu0 %v1427
    %1556 = vmatprep.subr.mxu0 0.0
    %1557 = vmatpush1.msra.mxu0 %v1428
    %1558 = vmatprep.subr.mxu0 0.0
    %1559 = vmatpush1.msra.mxu0 %v1429
    %1560 = vmatprep.subr.mxu0 0.0
    %1561 = vmatpush1.msra.mxu0 %v1430
    %1562 = vmatprep.subr.mxu0 0.0
    %1563 = vmatpush1.msra.mxu0 %v1431
    %1564 = vmatprep.subr.mxu0 0.0
    %1565 = vmatpush1.msra.mxu0 %v1432
    %1566 = vmatprep.subr.mxu0 0.0
    %1567 = vmatpush1.msra.mxu0 %v1433
    %1568 = vmatprep.mubr.f32.mxu0 %v1395
    %1569 = vmatmul.mubr.f32.gmra.mrb[0].mxu0 %v1394
    %v1570 = vpop.f32.mrb[0].mxu0
    %v1571 = vadd.f32 0.0, %v1570
    %v1572 = vpop.f32.mrb[0].mxu0
    %1573 = vdwg.mxu0
    %1574 = vmatprep.subr.mxu0 0.0
    %1575 = vmatpush1.msra.mxu0 %v1402
    %1576 = vmatprep.subr.mxu0 0.0
    %1577 = vmatpush1.msra.mxu0 %v1403
    %1578 = vmatprep.subr.mxu0 0.0
    %1579 = vmatpush1.msra.mxu0 %v1404
    %1580 = vmatprep.subr.mxu0 0.0
    %1581 = vmatpush1.msra.mxu0 %v1405
    %1582 = vmatprep.subr.mxu0 0.0
    %1583 = vmatpush1.msra.mxu0 %v1406
    %1584 = vmatprep.subr.mxu0 0.0
    %1585 = vmatpush1.msra.mxu0 %v1407
    %1586 = vmatprep.subr.mxu0 0.0
    %1587 = vmatpush1.msra.mxu0 %v1408
    %1588 = vmatprep.subr.mxu0 0.0
    %1589 = vmatpush1.msra.mxu0 %v1409
    %1590 = vmatprep.subr.mxu0 0.0
    %1591 = vmatpush1.msra.mxu0 %v1410
    %1592 = vmatprep.subr.mxu0 0.0
    %1593 = vmatpush1.msra.mxu0 %v1411
    %1594 = vmatprep.subr.mxu0 0.0
    %1595 = vmatpush1.msra.mxu0 %v1412
    %1596 = vmatprep.subr.mxu0 0.0
    %1597 = vmatpush1.msra.mxu0 %v1413
    %1598 = vmatprep.subr.mxu0 0.0
    %1599 = vmatpush1.msra.mxu0 %v1414
    %1600 = vmatprep.subr.mxu0 0.0
    %1601 = vmatpush1.msra.mxu0 %v1415
    %1602 = vmatprep.subr.mxu0 0.0
    %1603 = vmatpush1.msra.mxu0 %v1416
    %1604 = vmatprep.subr.mxu0 0.0
    %1605 = vmatpush1.msra.mxu0 %v1417
    %1606 = vmatprep.subr.mxu0 0.0
    %1607 = vmatpush1.msra.mxu0 %v1418
    %1608 = vmatprep.subr.mxu0 0.0
    %1609 = vmatpush1.msra.mxu0 %v1419
    %1610 = vmatprep.subr.mxu0 0.0
    %1611 = vmatpush1.msra.mxu0 %v1420
    %1612 = vmatprep.subr.mxu0 0.0
    %1613 = vmatpush1.msra.mxu0 %v1421
    %1614 = vmatprep.subr.mxu0 0.0
    %1615 = vmatpush1.msra.mxu0 %v1422
    %1616 = vmatprep.subr.mxu0 0.0
    %1617 = vmatpush1.msra.mxu0 %v1423
    %1618 = vmatprep.subr.mxu0 0.0
    %1619 = vmatpush1.msra.mxu0 %v1424
    %1620 = vmatprep.subr.mxu0 0.0
    %1621 = vmatpush1.msra.mxu0 %v1425
    %1622 = vmatprep.subr.mxu0 0.0
    %1623 = vmatpush1.msra.mxu0 %v1426
    %1624 = vmatprep.subr.mxu0 0.0
    %1625 = vmatpush1.msra.mxu0 %v1427
    %1626 = vmatprep.subr.mxu0 0.0
    %1627 = vmatpush1.msra.mxu0 %v1428
    %1628 = vmatprep.subr.mxu0 0.0
    %1629 = vmatpush1.msra.mxu0 %v1429
    %1630 = vmatprep.subr.mxu0 0.0
    %1631 = vmatpush1.msra.mxu0 %v1430
    %1632 = vmatprep.subr.mxu0 0.0
    %1633 = vmatpush1.msra.mxu0 %v1431
    %1634 = vmatprep.subr.mxu0 0.0
    %1635 = vmatpush1.msra.mxu0 %v1432
    %1636 = vmatprep.subr.mxu0 0.0
    %1637 = vmatpush1.msra.mxu0 %v1433
    %1638 = vmatprep.mubr.f32.mxu0 %v1396
    %1639 = vmatmul.mubr.f32.gmra.mrb[0].mxu0 %v1395
    %v1640 = vpop.f32.mrb[0].mxu0
    %v1641 = vadd.f32 0.0, %v1640
    %v1642 = vpop.f32.mrb[0].mxu0
    %1643 = vdwg.mxu0
    %1644 = vmatprep.subr.mxu0 0.0
    %1645 = vmatpush1.msra.mxu0 %v1402
    %1646 = vmatprep.subr.mxu0 0.0
    %1647 = vmatpush1.msra.mxu0 %v1403
    %1648 = vmatprep.subr.mxu0 0.0
    %1649 = vmatpush1.msra.mxu0 %v1404
    %1650 = vmatprep.subr.mxu0 0.0
    %1651 = vmatpush1.msra.mxu0 %v1405
    %1652 = vmatprep.subr.mxu0 0.0
    %1653 = vmatpush1.msra.mxu0 %v1406
    %1654 = vmatprep.subr.mxu0 0.0
    %1655 = vmatpush1.msra.mxu0 %v1407
    %1656 = vmatprep.subr.mxu0 0.0
    %1657 = vmatpush1.msra.mxu0 %v1408
    %1658 = vmatprep.subr.mxu0 0.0
    %1659 = vmatpush1.msra.mxu0 %v1409
    %1660 = vmatprep.subr.mxu0 0.0
    %1661 = vmatpush1.msra.mxu0 %v1410
    %1662 = vmatprep.subr.mxu0 0.0
    %1663 = vmatpush1.msra.mxu0 %v1411
    %1664 = vmatprep.subr.mxu0 0.0
    %1665 = vmatpush1.msra.mxu0 %v1412
    %1666 = vmatprep.subr.mxu0 0.0
    %1667 = vmatpush1.msra.mxu0 %v1413
    %1668 = vmatprep.subr.mxu0 0.0
    %1669 = vmatpush1.msra.mxu0 %v1414
    %1670 = vmatprep.subr.mxu0 0.0
    %1671 = vmatpush1.msra.mxu0 %v1415
    %1672 = vmatprep.subr.mxu0 0.0
    %1673 = vmatpush1.msra.mxu0 %v1416
    %1674 = vmatprep.subr.mxu0 0.0
    %1675 = vmatpush1.msra.mxu0 %v1417
    %1676 = vmatprep.subr.mxu0 0.0
    %1677 = vmatpush1.msra.mxu0 %v1418
    %1678 = vmatprep.subr.mxu0 0.0
    %1679 = vmatpush1.msra.mxu0 %v1419
    %1680 = vmatprep.subr.mxu0 0.0
    %1681 = vmatpush1.msra.mxu0 %v1420
    %1682 = vmatprep.subr.mxu0 0.0
    %1683 = vmatpush1.msra.mxu0 %v1421
    %1684 = vmatprep.subr.mxu0 0.0
    %1685 = vmatpush1.msra.mxu0 %v1422
    %1686 = vmatprep.subr.mxu0 0.0
    %1687 = vmatpush1.msra.mxu0 %v1423
    %1688 = vmatprep.subr.mxu0 0.0
    %1689 = vmatpush1.msra.mxu0 %v1424
    %1690 = vmatprep.subr.mxu0 0.0
    %1691 = vmatpush1.msra.mxu0 %v1425
    %1692 = vmatprep.subr.mxu0 0.0
    %1693 = vmatpush1.msra.mxu0 %v1426
    %1694 = vmatprep.subr.mxu0 0.0
    %1695 = vmatpush1.msra.mxu0 %v1427
    %1696 = vmatprep.subr.mxu0 0.0
    %1697 = vmatpush1.msra.mxu0 %v1428
    %1698 = vmatprep.subr.mxu0 0.0
    %1699 = vmatpush1.msra.mxu0 %v1429
    %1700 = vmatprep.subr.mxu0 0.0
    %1701 = vmatpush1.msra.mxu0 %v1430
    %1702 = vmatprep.subr.mxu0 0.0
    %1703 = vmatpush1.msra.mxu0 %v1431
    %1704 = vmatprep.subr.mxu0 0.0
    %1705 = vmatpush1.msra.mxu0 %v1432
    %1706 = vmatprep.subr.mxu0 0.0
    %1707 = vmatpush1.msra.mxu0 %v1433
    %1708 = vmatprep.mubr.f32.mxu0 %v1397
    %1709 = vmatmul.mubr.f32.gmra.mrb[0].mxu0 %v1396
    %v1710 = vpop.f32.mrb[0].mxu0
    %v1711 = vadd.f32 0.0, %v1710
    %v1712 = vpop.f32.mrb[0].mxu0
    %1713 = vdwg.mxu0
    %1714 = vmatprep.subr.mxu0 0.0
    %1715 = vmatpush1.msra.mxu0 %v1402
    %1716 = vmatprep.subr.mxu0 0.0
    %1717 = vmatpush1.msra.mxu0 %v1403
    %1718 = vmatprep.subr.mxu0 0.0
    %1719 = vmatpush1.msra.mxu0 %v1404
    %1720 = vmatprep.subr.mxu0 0.0
    %1721 = vmatpush1.msra.mxu0 %v1405
    %1722 = vmatprep.subr.mxu0 0.0
    %1723 = vmatpush1.msra.mxu0 %v1406
    %1724 = vmatprep.subr.mxu0 0.0
    %1725 = vmatpush1.msra.mxu0 %v1407
    %1726 = vmatprep.subr.mxu0 0.0
    %1727 = vmatpush1.msra.mxu0 %v1408
    %1728 = vmatprep.subr.mxu0 0.0
    %1729 = vmatpush1.msra.mxu0 %v1409
    %1730 = vmatprep.subr.mxu0 0.0
    %1731 = vmatpush1.msra.mxu0 %v1410
    %1732 = vmatprep.subr.mxu0 0.0
    %1733 = vmatpush1.msra.mxu0 %v1411
    %1734 = vmatprep.subr.mxu0 0.0
    %1735 = vmatpush1.msra.mxu0 %v1412
    %1736 = vmatprep.subr.mxu0 0.0
    %1737 = vmatpush1.msra.mxu0 %v1413
    %1738 = vmatprep.subr.mxu0 0.0
    %1739 = vmatpush1.msra.mxu0 %v1414
    %1740 = vmatprep.subr.mxu0 0.0
    %1741 = vmatpush1.msra.mxu0 %v1415
    %1742 = vmatprep.subr.mxu0 0.0
    %1743 = vmatpush1.msra.mxu0 %v1416
    %1744 = vmatprep.subr.mxu0 0.0
    %1745 = vmatpush1.msra.mxu0 %v1417
    %1746 = vmatprep.subr.mxu0 0.0
    %1747 = vmatpush1.msra.mxu0 %v1418
    %1748 = vmatprep.subr.mxu0 0.0
    %1749 = vmatpush1.msra.mxu0 %v1419
    %1750 = vmatprep.subr.mxu0 0.0
    %1751 = vmatpush1.msra.mxu0 %v1420
    %1752 = vmatprep.subr.mxu0 0.0
    %1753 = vmatpush1.msra.mxu0 %v1421
    %1754 = vmatprep.subr.mxu0 0.0
    %1755 = vmatpush1.msra.mxu0 %v1422
    %1756 = vmatprep.subr.mxu0 0.0
    %1757 = vmatpush1.msra.mxu0 %v1423
    %1758 = vmatprep.subr.mxu0 0.0
    %1759 = vmatpush1.msra.mxu0 %v1424
    %1760 = vmatprep.subr.mxu0 0.0
    %1761 = vmatpush1.msra.mxu0 %v1425
    %1762 = vmatprep.subr.mxu0 0.0
    %1763 = vmatpush1.msra.mxu0 %v1426
    %1764 = vmatprep.subr.mxu0 0.0
    %1765 = vmatpush1.msra.mxu0 %v1427
    %1766 = vmatprep.subr.mxu0 0.0
    %1767 = vmatpush1.msra.mxu0 %v1428
    %1768 = vmatprep.subr.mxu0 0.0
    %1769 = vmatpush1.msra.mxu0 %v1429
    %1770 = vmatprep.subr.mxu0 0.0
    %1771 = vmatpush1.msra.mxu0 %v1430
    %1772 = vmatprep.subr.mxu0 0.0
    %1773 = vmatpush1.msra.mxu0 %v1431
    %1774 = vmatprep.subr.mxu0 0.0
    %1775 = vmatpush1.msra.mxu0 %v1432
    %1776 = vmatprep.subr.mxu0 0.0
    %1777 = vmatpush1.msra.mxu0 %v1433
    %1778 = vmatprep.mubr.f32.mxu0 %v1398
    %1779 = vmatmul.mubr.f32.gmra.mrb[0].mxu0 %v1397
    %v1780 = vpop.f32.mrb[0].mxu0
    %v1781 = vadd.f32 0.0, %v1780
    %v1782 = vpop.f32.mrb[0].mxu0
    %1783 = vdwg.mxu0
    %1784 = vmatprep.subr.mxu0 0.0
    %1785 = vmatpush1.msra.mxu0 %v1402
    %1786 = vmatprep.subr.mxu0 0.0
    %1787 = vmatpush1.msra.mxu0 %v1403
    %1788 = vmatprep.subr.mxu0 0.0
    %1789 = vmatpush1.msra.mxu0 %v1404
    %1790 = vmatprep.subr.mxu0 0.0
    %1791 = vmatpush1.msra.mxu0 %v1405
    %1792 = vmatprep.subr.mxu0 0.0
    %1793 = vmatpush1.msra.mxu0 %v1406
    %1794 = vmatprep.subr.mxu0 0.0
    %1795 = vmatpush1.msra.mxu0 %v1407
    %1796 = vmatprep.subr.mxu0 0.0
    %1797 = vmatpush1.msra.mxu0 %v1408
    %1798 = vmatprep.subr.mxu0 0.0
    %1799 = vmatpush1.msra.mxu0 %v1409
    %1800 = vmatprep.subr.mxu0 0.0
    %1801 = vmatpush1.msra.mxu0 %v1410
    %1802 = vmatprep.subr.mxu0 0.0
    %1803 = vmatpush1.msra.mxu0 %v1411
    %1804 = vmatprep.subr.mxu0 0.0
    %1805 = vmatpush1.msra.mxu0 %v1412
    %1806 = vmatprep.subr.mxu0 0.0
    %1807 = vmatpush1.msra.mxu0 %v1413
    %1808 = vmatprep.subr.mxu0 0.0
    %1809 = vmatpush1.msra.mxu0 %v1414
    %1810 = vmatprep.subr.mxu0 0.0
    %1811 = vmatpush1.msra.mxu0 %v1415
    %1812 = vmatprep.subr.mxu0 0.0
    %1813 = vmatpush1.msra.mxu0 %v1416
    %1814 = vmatprep.subr.mxu0 0.0
    %1815 = vmatpush1.msra.mxu0 %v1417
    %1816 = vmatprep.subr.mxu0 0.0
    %1817 = vmatpush1.msra.mxu0 %v1418
    %1818 = vmatprep.subr.mxu0 0.0
    %1819 = vmatpush1.msra.mxu0 %v1419
    %1820 = vmatprep.subr.mxu0 0.0
    %1821 = vmatpush1.msra.mxu0 %v1420
    %1822 = vmatprep.subr.mxu0 0.0
    %1823 = vmatpush1.msra.mxu0 %v1421
    %1824 = vmatprep.subr.mxu0 0.0
    %1825 = vmatpush1.msra.mxu0 %v1422
    %1826 = vmatprep.subr.mxu0 0.0
    %1827 = vmatpush1.msra.mxu0 %v1423
    %1828 = vmatprep.subr.mxu0 0.0
    %1829 = vmatpush1.msra.mxu0 %v1424
    %1830 = vmatprep.subr.mxu0 0.0
    %1831 = vmatpush1.msra.mxu0 %v1425
    %1832 = vmatprep.subr.mxu0 0.0
    %1833 = vmatpush1.msra.mxu0 %v1426
    %1834 = vmatprep.subr.mxu0 0.0
    %1835 = vmatpush1.msra.mxu0 %v1427
    %1836 = vmatprep.subr.mxu0 0.0
    %1837 = vmatpush1.msra.mxu0 %v1428
    %1838 = vmatprep.subr.mxu0 0.0
    %1839 = vmatpush1.msra.mxu0 %v1429
    %1840 = vmatprep.subr.mxu0 0.0
    %1841 = vmatpush1.msra.mxu0 %v1430
    %1842 = vmatprep.subr.mxu0 0.0
    %1843 = vmatpush1.msra.mxu0 %v1431
    %1844 = vmatprep.subr.mxu0 0.0
    %1845 = vmatpush1.msra.mxu0 %v1432
    %1846 = vmatprep.subr.mxu0 0.0
    %1847 = vmatpush1.msra.mxu0 %v1433
    %1848 = vmatprep.mubr.f32.mxu0 %v1399
    %1849 = vmatmul.mubr.f32.gmra.mrb[0].mxu0 %v1398
    %v1850 = vpop.f32.mrb[0].mxu0
    %v1851 = vadd.f32 0.0, %v1850
    %v1852 = vpop.f32.mrb[0].mxu0
    %1853 = vdwg.mxu0
    %1854 = vmatprep.subr.mxu0 0.0
    %1855 = vmatpush1.msra.mxu0 %v1402
    %1856 = vmatprep.subr.mxu0 0.0
    %1857 = vmatpush1.msra.mxu0 %v1403
    %1858 = vmatprep.subr.mxu0 0.0
    %1859 = vmatpush1.msra.mxu0 %v1404
    %1860 = vmatprep.subr.mxu0 0.0
    %1861 = vmatpush1.msra.mxu0 %v1405
    %1862 = vmatprep.subr.mxu0 0.0
    %1863 = vmatpush1.msra.mxu0 %v1406
    %1864 = vmatprep.subr.mxu0 0.0
    %1865 = vmatpush1.msra.mxu0 %v1407
    %1866 = vmatprep.subr.mxu0 0.0
    %1867 = vmatpush1.msra.mxu0 %v1408
    %1868 = vmatprep.subr.mxu0 0.0
    %1869 = vmatpush1.msra.mxu0 %v1409
    %1870 = vmatprep.subr.mxu0 0.0
    %1871 = vmatpush1.msra.mxu0 %v1410
    %1872 = vmatprep.subr.mxu0 0.0
    %1873 = vmatpush1.msra.mxu0 %v1411
    %1874 = vmatprep.subr.mxu0 0.0
    %1875 = vmatpush1.msra.mxu0 %v1412
    %1876 = vmatprep.subr.mxu0 0.0
    %1877 = vmatpush1.msra.mxu0 %v1413
    %1878 = vmatprep.subr.mxu0 0.0
    %1879 = vmatpush1.msra.mxu0 %v1414
    %1880 = vmatprep.subr.mxu0 0.0
    %1881 = vmatpush1.msra.mxu0 %v1415
    %1882 = vmatprep.subr.mxu0 0.0
    %1883 = vmatpush1.msra.mxu0 %v1416
    %1884 = vmatprep.subr.mxu0 0.0
    %1885 = vmatpush1.msra.mxu0 %v1417
    %1886 = vmatprep.subr.mxu0 0.0
    %1887 = vmatpush1.msra.mxu0 %v1418
    %1888 = vmatprep.subr.mxu0 0.0
    %1889 = vmatpush1.msra.mxu0 %v1419
    %1890 = vmatprep.subr.mxu0 0.0
    %1891 = vmatpush1.msra.mxu0 %v1420
    %1892 = vmatprep.subr.mxu0 0.0
    %1893 = vmatpush1.msra.mxu0 %v1421
    %1894 = vmatprep.subr.mxu0 0.0
    %1895 = vmatpush1.msra.mxu0 %v1422
    %1896 = vmatprep.subr.mxu0 0.0
    %1897 = vmatpush1.msra.mxu0 %v1423
    %1898 = vmatprep.subr.mxu0 0.0
    %1899 = vmatpush1.msra.mxu0 %v1424
    %1900 = vmatprep.subr.mxu0 0.0
    %1901 = vmatpush1.msra.mxu0 %v1425
    %1902 = vmatprep.subr.mxu0 0.0
    %1903 = vmatpush1.msra.mxu0 %v1426
    %1904 = vmatprep.subr.mxu0 0.0
    %1905 = vmatpush1.msra.mxu0 %v1427
    %1906 = vmatprep.subr.mxu0 0.0
    %1907 = vmatpush1.msra.mxu0 %v1428
    %1908 = vmatprep.subr.mxu0 0.0
    %1909 = vmatpush1.msra.mxu0 %v1429
    %1910 = vmatprep.subr.mxu0 0.0
    %1911 = vmatpush1.msra.mxu0 %v1430
    %1912 = vmatprep.subr.mxu0 0.0
    %1913 = vmatpush1.msra.mxu0 %v1431
    %1914 = vmatprep.subr.mxu0 0.0
    %1915 = vmatpush1.msra.mxu0 %v1432
    %1916 = vmatprep.subr.mxu0 0.0
    %1917 = vmatpush1.msra.mxu0 %v1433
    %1918 = vmatprep.mubr.f32.mxu0 %v1400
    %1919 = vmatmul.mubr.f32.gmra.mrb[0].mxu0 %v1399
    %v1920 = vpop.f32.mrb[0].mxu0
    %v1921 = vadd.f32 0.0, %v1920
    %v1922 = vpop.f32.mrb[0].mxu0
    %1923 = vdwg.mxu0
    %1924 = vmatprep.subr.mxu0 0.0
    %1925 = vmatpush1.msra.mxu0 %v1402
    %1926 = vmatprep.subr.mxu0 0.0
    %1927 = vmatpush1.msra.mxu0 %v1403
    %1928 = vmatprep.subr.mxu0 0.0
    %1929 = vmatpush1.msra.mxu0 %v1404
    %1930 = vmatprep.subr.mxu0 0.0
    %1931 = vmatpush1.msra.mxu0 %v1405
    %1932 = vmatprep.subr.mxu0 0.0
    %1933 = vmatpush1.msra.mxu0 %v1406
    %1934 = vmatprep.subr.mxu0 0.0
    %1935 = vmatpush1.msra.mxu0 %v1407
    %1936 = vmatprep.subr.mxu0 0.0
    %1937 = vmatpush1.msra.mxu0 %v1408
    %1938 = vmatprep.subr.mxu0 0.0
    %1939 = vmatpush1.msra.mxu0 %v1409
    %1940 = vmatprep.subr.mxu0 0.0
    %1941 = vmatpush1.msra.mxu0 %v1410
    %1942 = vmatprep.subr.mxu0 0.0
    %1943 = vmatpush1.msra.mxu0 %v1411
    %1944 = vmatprep.subr.mxu0 0.0
    %1945 = vmatpush1.msra.mxu0 %v1412
    %1946 = vmatprep.subr.mxu0 0.0
    %1947 = vmatpush1.msra.mxu0 %v1413
    %1948 = vmatprep.subr.mxu0 0.0
    %1949 = vmatpush1.msra.mxu0 %v1414
    %1950 = vmatprep.subr.mxu0 0.0
    %1951 = vmatpush1.msra.mxu0 %v1415
    %1952 = vmatprep.subr.mxu0 0.0
    %1953 = vmatpush1.msra.mxu0 %v1416
    %1954 = vmatprep.subr.mxu0 0.0
    %1955 = vmatpush1.msra.mxu0 %v1417
    %1956 = vmatprep.subr.mxu0 0.0
    %1957 = vmatpush1.msra.mxu0 %v1418
    %1958 = vmatprep.subr.mxu0 0.0
    %1959 = vmatpush1.msra.mxu0 %v1419
    %1960 = vmatprep.subr.mxu0 0.0
    %1961 = vmatpush1.msra.mxu0 %v1420
    %1962 = vmatprep.subr.mxu0 0.0
    %1963 = vmatpush1.msra.mxu0 %v1421
    %1964 = vmatprep.subr.mxu0 0.0
    %1965 = vmatpush1.msra.mxu0 %v1422
    %1966 = vmatprep.subr.mxu0 0.0
    %1967 = vmatpush1.msra.mxu0 %v1423
    %1968 = vmatprep.subr.mxu0 0.0
    %1969 = vmatpush1.msra.mxu0 %v1424
    %1970 = vmatprep.subr.mxu0 0.0
    %1971 = vmatpush1.msra.mxu0 %v1425
    %1972 = vmatprep.subr.mxu0 0.0
    %1973 = vmatpush1.msra.mxu0 %v1426
    %1974 = vmatprep.subr.mxu0 0.0
    %1975 = vmatpush1.msra.mxu0 %v1427
    %1976 = vmatprep.subr.mxu0 0.0
    %1977 = vmatpush1.msra.mxu0 %v1428
    %1978 = vmatprep.subr.mxu0 0.0
    %1979 = vmatpush1.msra.mxu0 %v1429
    %1980 = vmatprep.subr.mxu0 0.0
    %1981 = vmatpush1.msra.mxu0 %v1430
    %1982 = vmatprep.subr.mxu0 0.0
    %1983 = vmatpush1.msra.mxu0 %v1431
    %1984 = vmatprep.subr.mxu0 0.0
    %1985 = vmatpush1.msra.mxu0 %v1432
    %1986 = vmatprep.subr.mxu0 0.0
    %1987 = vmatpush1.msra.mxu0 %v1433
    %1988 = vmatprep.mubr.f32.mxu0 %v1401
    %1989 = vmatmul.mubr.f32.gmra.mrb[0].mxu0 %v1400
    %v1990 = vpop.f32.mrb[0].mxu0
    %v1991 = vadd.f32 0.0, %v1990
    %v1992 = vpop.f32.mrb[0].mxu0
    %1993 = vdwg.mxu0
    %s1994 = scalar_lea.vmem %s5, 256
    %v1995 = vld [vmem:[%s1994] sm:$0xff]
    %v1996 = vld [vmem:[%s1994 + $0x8] sm:$0xff]
    %v1997 = vld [vmem:[%s1994 + $0x10] sm:$0xff]
    %v1998 = vld [vmem:[%s1994 + $0x18] sm:$0xff]
    %v1999 = vld [vmem:[%s1994 + $0x20] sm:$0xff]
    %v2000 = vld [vmem:[%s1994 + $0x28] sm:$0xff]
    %v2001 = vld [vmem:[%s1994 + $0x30] sm:$0xff]
    %v2002 = vld [vmem:[%s1994 + $0x38] sm:$0xff]
    %v2003 = vld [vmem:[%s1994 + $0x40] sm:$0xff]
    %v2004 = vld [vmem:[%s1994 + $0x48] sm:$0xff]
    %v2005 = vld [vmem:[%s1994 + $0x50] sm:$0xff]
    %v2006 = vld [vmem:[%s1994 + $0x58] sm:$0xff]
    %v2007 = vld [vmem:[%s1994 + $0x60] sm:$0xff]
    %v2008 = vld [vmem:[%s1994 + $0x68] sm:$0xff]
    %v2009 = vld [vmem:[%s1994 + $0x70] sm:$0xff]
    %v2010 = vld [vmem:[%s1994 + $0x78] sm:$0xff]
    %v2011 = vld [vmem:[%s1994 + $0x80] sm:$0xff]
    %v2012 = vld [vmem:[%s1994 + $0x88] sm:$0xff]
    %v2013 = vld [vmem:[%s1994 + $0x90] sm:$0xff]
    %v2014 = vld [vmem:[%s1994 + $0x98] sm:$0xff]
    %v2015 = vld [vmem:[%s1994 + $0xa0] sm:$0xff]
    %v2016 = vld [vmem:[%s1994 + $0xa8] sm:$0xff]
    %v2017 = vld [vmem:[%s1994 + $0xb0] sm:$0xff]
    %v2018 = vld [vmem:[%s1994 + $0xb8] sm:$0xff]
    %v2019 = vld [vmem:[%s1994 + $0xc0] sm:$0xff]
    %v2020 = vld [vmem:[%s1994 + $0xc8] sm:$0xff]
    %v2021 = vld [vmem:[%s1994 + $0xd0] sm:$0xff]
    %v2022 = vld [vmem:[%s1994 + $0xd8] sm:$0xff]
    %v2023 = vld [vmem:[%s1994 + $0xe0] sm:$0xff]
    %v2024 = vld [vmem:[%s1994 + $0xe8] sm:$0xff]
    %v2025 = vld [vmem:[%s1994 + $0xf0] sm:$0xff]
    %v2026 = vld [vmem:[%s1994 + $0xf8] sm:$0xff]
    %2027 = vmatprep.subr.mxu0 0.0
    %2028 = vmatpush1.msra.mxu0 %v1995
    %2029 = vmatprep.subr.mxu0 0.0
    %2030 = vmatpush1.msra.mxu0 %v1996
    %2031 = vmatprep.subr.mxu0 0.0
    %2032 = vmatpush1.msra.mxu0 %v1997
    %2033 = vmatprep.subr.mxu0 0.0
    %2034 = vmatpush1.msra.mxu0 %v1998
    %2035 = vmatprep.subr.mxu0 0.0
    %2036 = vmatpush1.msra.mxu0 %v1999
    %2037 = vmatprep.subr.mxu0 0.0
    %2038 = vmatpush1.msra.mxu0 %v2000
    %2039 = vmatprep.subr.mxu0 0.0
    %2040 = vmatpush1.msra.mxu0 %v2001
    %2041 = vmatprep.subr.mxu0 0.0
    %2042 = vmatpush1.msra.mxu0 %v2002
    %2043 = vmatprep.subr.mxu0 0.0
    %2044 = vmatpush1.msra.mxu0 %v2003
    %2045 = vmatprep.subr.mxu0 0.0
    %2046 = vmatpush1.msra.mxu0 %v2004
    %2047 = vmatprep.subr.mxu0 0.0
    %2048 = vmatpush1.msra.mxu0 %v2005
    %2049 = vmatprep.subr.mxu0 0.0
    %2050 = vmatpush1.msra.mxu0 %v2006
    %2051 = vmatprep.subr.mxu0 0.0
    %2052 = vmatpush1.msra.mxu0 %v2007
    %2053 = vmatprep.subr.mxu0 0.0
    %2054 = vmatpush1.msra.mxu0 %v2008
    %2055 = vmatprep.subr.mxu0 0.0
    %2056 = vmatpush1.msra.mxu0 %v2009
    %2057 = vmatprep.subr.mxu0 0.0
    %2058 = vmatpush1.msra.mxu0 %v2010
    %2059 = vmatprep.subr.mxu0 0.0
    %2060 = vmatpush1.msra.mxu0 %v2011
    %2061 = vmatprep.subr.mxu0 0.0
    %2062 = vmatpush1.msra.mxu0 %v2012
    %2063 = vmatprep.subr.mxu0 0.0
    %2064 = vmatpush1.msra.mxu0 %v2013
    %2065 = vmatprep.subr.mxu0 0.0
    %2066 = vmatpush1.msra.mxu0 %v2014
    %2067 = vmatprep.subr.mxu0 0.0
    %2068 = vmatpush1.msra.mxu0 %v2015
    %2069 = vmatprep.subr.mxu0 0.0
    %2070 = vmatpush1.msra.mxu0 %v2016
    %2071 = vmatprep.subr.mxu0 0.0
    %2072 = vmatpush1.msra.mxu0 %v2017
    %2073 = vmatprep.subr.mxu0 0.0
    %2074 = vmatpush1.msra.mxu0 %v2018
    %2075 = vmatprep.subr.mxu0 0.0
    %2076 = vmatpush1.msra.mxu0 %v2019
    %2077 = vmatprep.subr.mxu0 0.0
    %2078 = vmatpush1.msra.mxu0 %v2020
    %2079 = vmatprep.subr.mxu0 0.0
    %2080 = vmatpush1.msra.mxu0 %v2021
    %2081 = vmatprep.subr.mxu0 0.0
    %2082 = vmatpush1.msra.mxu0 %v2022
    %2083 = vmatprep.subr.mxu0 0.0
    %2084 = vmatpush1.msra.mxu0 %v2023
    %2085 = vmatprep.subr.mxu0 0.0
    %2086 = vmatpush1.msra.mxu0 %v2024
    %2087 = vmatprep.subr.mxu0 0.0
    %2088 = vmatpush1.msra.mxu0 %v2025
    %2089 = vmatprep.subr.mxu0 0.0
    %2090 = vmatpush1.msra.mxu0 %v2026
    %2091 = vmatprep.mubr.f32.mxu0 %v1395
    %2092 = vmatmul.mubr.f32.gmra.mrb[0].mxu0 %v1394
    %v2093 = vpop.f32.mrb[0].mxu0
    %v2094 = vadd.f32 0.0, %v2093
    %v2095 = vpop.f32.mrb[0].mxu0
    %2096 = vdwg.mxu0
    %2097 = vmatprep.subr.mxu0 0.0
    %2098 = vmatpush1.msra.mxu0 %v1995
    %2099 = vmatprep.subr.mxu0 0.0
    %2100 = vmatpush1.msra.mxu0 %v1996
    %2101 = vmatprep.subr.mxu0 0.0
    %2102 = vmatpush1.msra.mxu0 %v1997
    %2103 = vmatprep.subr.mxu0 0.0
    %2104 = vmatpush1.msra.mxu0 %v1998
    %2105 = vmatprep.subr.mxu0 0.0
    %2106 = vmatpush1.msra.mxu0 %v1999
    %2107 = vmatprep.subr.mxu0 0.0
    %2108 = vmatpush1.msra.mxu0 %v2000
    %2109 = vmatprep.subr.mxu0 0.0
    %2110 = vmatpush1.msra.mxu0 %v2001
    %2111 = vmatprep.subr.mxu0 0.0
    %2112 = vmatpush1.msra.mxu0 %v2002
    %2113 = vmatprep.subr.mxu0 0.0
    %2114 = vmatpush1.msra.mxu0 %v2003
    %2115 = vmatprep.subr.mxu0 0.0
    %2116 = vmatpush1.msra.mxu0 %v2004
    %2117 = vmatprep.subr.mxu0 0.0
    %2118 = vmatpush1.msra.mxu0 %v2005
    %2119 = vmatprep.subr.mxu0 0.0
    %2120 = vmatpush1.msra.mxu0 %v2006
    %2121 = vmatprep.subr.mxu0 0.0
    %2122 = vmatpush1.msra.mxu0 %v2007
    %2123 = vmatprep.subr.mxu0 0.0
    %2124 = vmatpush1.msra.mxu0 %v2008
    %2125 = vmatprep.subr.mxu0 0.0
    %2126 = vmatpush1.msra.mxu0 %v2009
    %2127 = vmatprep.subr.mxu0 0.0
    %2128 = vmatpush1.msra.mxu0 %v2010
    %2129 = vmatprep.subr.mxu0 0.0
    %2130 = vmatpush1.msra.mxu0 %v2011
    %2131 = vmatprep.subr.mxu0 0.0
    %2132 = vmatpush1.msra.mxu0 %v2012
    %2133 = vmatprep.subr.mxu0 0.0
    %2134 = vmatpush1.msra.mxu0 %v2013
    %2135 = vmatprep.subr.mxu0 0.0
    %2136 = vmatpush1.msra.mxu0 %v2014
    %2137 = vmatprep.subr.mxu0 0.0
    %2138 = vmatpush1.msra.mxu0 %v2015
    %2139 = vmatprep.subr.mxu0 0.0
    %2140 = vmatpush1.msra.mxu0 %v2016
    %2141 = vmatprep.subr.mxu0 0.0
    %2142 = vmatpush1.msra.mxu0 %v2017
    %2143 = vmatprep.subr.mxu0 0.0
    %2144 = vmatpush1.msra.mxu0 %v2018
    %2145 = vmatprep.subr.mxu0 0.0
    %2146 = vmatpush1.msra.mxu0 %v2019
    %2147 = vmatprep.subr.mxu0 0.0
    %2148 = vmatpush1.msra.mxu0 %v2020
    %2149 = vmatprep.subr.mxu0 0.0
    %2150 = vmatpush1.msra.mxu0 %v2021
    %2151 = vmatprep.subr.mxu0 0.0
    %2152 = vmatpush1.msra.mxu0 %v2022
    %2153 = vmatprep.subr.mxu0 0.0
    %2154 = vmatpush1.msra.mxu0 %v2023
    %2155 = vmatprep.subr.mxu0 0.0
    %2156 = vmatpush1.msra.mxu0 %v2024
    %2157 = vmatprep.subr.mxu0 0.0
    %2158 = vmatpush1.msra.mxu0 %v2025
    %2159 = vmatprep.subr.mxu0 0.0
    %2160 = vmatpush1.msra.mxu0 %v2026
    %2161 = vmatprep.mubr.f32.mxu0 %v1396
    %2162 = vmatmul.mubr.f32.gmra.mrb[0].mxu0 %v1395
    %v2163 = vpop.f32.mrb[0].mxu0
    %v2164 = vadd.f32 0.0, %v2163
    %v2165 = vpop.f32.mrb[0].mxu0
    %2166 = vdwg.mxu0
    %2167 = vmatprep.subr.mxu0 0.0
    %2168 = vmatpush1.msra.mxu0 %v1995
    %2169 = vmatprep.subr.mxu0 0.0
    %2170 = vmatpush1.msra.mxu0 %v1996
    %2171 = vmatprep.subr.mxu0 0.0
    %2172 = vmatpush1.msra.mxu0 %v1997
    %2173 = vmatprep.subr.mxu0 0.0
    %2174 = vmatpush1.msra.mxu0 %v1998
    %2175 = vmatprep.subr.mxu0 0.0
    %2176 = vmatpush1.msra.mxu0 %v1999
    %2177 = vmatprep.subr.mxu0 0.0
    %2178 = vmatpush1.msra.mxu0 %v2000
    %2179 = vmatprep.subr.mxu0 0.0
    %2180 = vmatpush1.msra.mxu0 %v2001
    %2181 = vmatprep.subr.mxu0 0.0
    %2182 = vmatpush1.msra.mxu0 %v2002
    %2183 = vmatprep.subr.mxu0 0.0
    %2184 = vmatpush1.msra.mxu0 %v2003
    %2185 = vmatprep.subr.mxu0 0.0
    %2186 = vmatpush1.msra.mxu0 %v2004
    %2187 = vmatprep.subr.mxu0 0.0
    %2188 = vmatpush1.msra.mxu0 %v2005
    %2189 = vmatprep.subr.mxu0 0.0
    %2190 = vmatpush1.msra.mxu0 %v2006
    %2191 = vmatprep.subr.mxu0 0.0
    %2192 = vmatpush1.msra.mxu0 %v2007
    %2193 = vmatprep.subr.mxu0 0.0
    %2194 = vmatpush1.msra.mxu0 %v2008
    %2195 = vmatprep.subr.mxu0 0.0
    %2196 = vmatpush1.msra.mxu0 %v2009
    %2197 = vmatprep.subr.mxu0 0.0
    %2198 = vmatpush1.msra.mxu0 %v2010
    %2199 = vmatprep.subr.mxu0 0.0
    %2200 = vmatpush1.msra.mxu0 %v2011
    %2201 = vmatprep.subr.mxu0 0.0
    %2202 = vmatpush1.msra.mxu0 %v2012
    %2203 = vmatprep.subr.mxu0 0.0
    %2204 = vmatpush1.msra.mxu0 %v2013
    %2205 = vmatprep.subr.mxu0 0.0
    %2206 = vmatpush1.msra.mxu0 %v2014
    %2207 = vmatprep.subr.mxu0 0.0
    %2208 = vmatpush1.msra.mxu0 %v2015
    %2209 = vmatprep.subr.mxu0 0.0
    %2210 = vmatpush1.msra.mxu0 %v2016
    %2211 = vmatprep.subr.mxu0 0.0
    %2212 = vmatpush1.msra.mxu0 %v2017
    %2213 = vmatprep.subr.mxu0 0.0
    %2214 = vmatpush1.msra.mxu0 %v2018
    %2215 = vmatprep.subr.mxu0 0.0
    %2216 = vmatpush1.msra.mxu0 %v2019
    %2217 = vmatprep.subr.mxu0 0.0
    %2218 = vmatpush1.msra.mxu0 %v2020
    %2219 = vmatprep.subr.mxu0 0.0
    %2220 = vmatpush1.msra.mxu0 %v2021
    %2221 = vmatprep.subr.mxu0 0.0
    %2222 = vmatpush1.msra.mxu0 %v2022
    %2223 = vmatprep.subr.mxu0 0.0
    %2224 = vmatpush1.msra.mxu0 %v2023
    %2225 = vmatprep.subr.mxu0 0.0
    %2226 = vmatpush1.msra.mxu0 %v2024
    %2227 = vmatprep.subr.mxu0 0.0
    %2228 = vmatpush1.msra.mxu0 %v2025
    %2229 = vmatprep.subr.mxu0 0.0
    %2230 = vmatpush1.msra.mxu0 %v2026
    %2231 = vmatprep.mubr.f32.mxu0 %v1397
    %2232 = vmatmul.mubr.f32.gmra.mrb[0].mxu0 %v1396
    %v2233 = vpop.f32.mrb[0].mxu0
    %v2234 = vadd.f32 0.0, %v2233
    %v2235 = vpop.f32.mrb[0].mxu0
    %2236 = vdwg.mxu0
    %2237 = vmatprep.subr.mxu0 0.0
    %2238 = vmatpush1.msra.mxu0 %v1995
    %2239 = vmatprep.subr.mxu0 0.0
    %2240 = vmatpush1.msra.mxu0 %v1996
    %2241 = vmatprep.subr.mxu0 0.0
    %2242 = vmatpush1.msra.mxu0 %v1997
    %2243 = vmatprep.subr.mxu0 0.0
    %2244 = vmatpush1.msra.mxu0 %v1998
    %2245 = vmatprep.subr.mxu0 0.0
    %2246 = vmatpush1.msra.mxu0 %v1999
    %2247 = vmatprep.subr.mxu0 0.0
    %2248 = vmatpush1.msra.mxu0 %v2000
    %2249 = vmatprep.subr.mxu0 0.0
    %2250 = vmatpush1.msra.mxu0 %v2001
    %2251 = vmatprep.subr.mxu0 0.0
    %2252 = vmatpush1.msra.mxu0 %v2002
    %2253 = vmatprep.subr.mxu0 0.0
    %2254 = vmatpush1.msra.mxu0 %v2003
    %2255 = vmatprep.subr.mxu0 0.0
    %2256 = vmatpush1.msra.mxu0 %v2004
    %2257 = vmatprep.subr.mxu0 0.0
    %2258 = vmatpush1.msra.mxu0 %v2005
    %2259 = vmatprep.subr.mxu0 0.0
    %2260 = vmatpush1.msra.mxu0 %v2006
    %2261 = vmatprep.subr.mxu0 0.0
    %2262 = vmatpush1.msra.mxu0 %v2007
    %2263 = vmatprep.subr.mxu0 0.0
    %2264 = vmatpush1.msra.mxu0 %v2008
    %2265 = vmatprep.subr.mxu0 0.0
    %2266 = vmatpush1.msra.mxu0 %v2009
    %2267 = vmatprep.subr.mxu0 0.0
    %2268 = vmatpush1.msra.mxu0 %v2010
    %2269 = vmatprep.subr.mxu0 0.0
    %2270 = vmatpush1.msra.mxu0 %v2011
    %2271 = vmatprep.subr.mxu0 0.0
    %2272 = vmatpush1.msra.mxu0 %v2012
    %2273 = vmatprep.subr.mxu0 0.0
    %2274 = vmatpush1.msra.mxu0 %v2013
    %2275 = vmatprep.subr.mxu0 0.0
    %2276 = vmatpush1.msra.mxu0 %v2014
    %2277 = vmatprep.subr.mxu0 0.0
    %2278 = vmatpush1.msra.mxu0 %v2015
    %2279 = vmatprep.subr.mxu0 0.0
    %2280 = vmatpush1.msra.mxu0 %v2016
    %2281 = vmatprep.subr.mxu0 0.0
    %2282 = vmatpush1.msra.mxu0 %v2017
    %2283 = vmatprep.subr.mxu0 0.0
    %2284 = vmatpush1.msra.mxu0 %v2018
    %2285 = vmatprep.subr.mxu0 0.0
    %2286 = vmatpush1.msra.mxu0 %v2019
    %2287 = vmatprep.subr.mxu0 0.0
    %2288 = vmatpush1.msra.mxu0 %v2020
    %2289 = vmatprep.subr.mxu0 0.0
    %2290 = vmatpush1.msra.mxu0 %v2021
    %2291 = vmatprep.subr.mxu0 0.0
    %2292 = vmatpush1.msra.mxu0 %v2022
    %2293 = vmatprep.subr.mxu0 0.0
    %2294 = vmatpush1.msra.mxu0 %v2023
    %2295 = vmatprep.subr.mxu0 0.0
    %2296 = vmatpush1.msra.mxu0 %v2024
    %2297 = vmatprep.subr.mxu0 0.0
    %2298 = vmatpush1.msra.mxu0 %v2025
    %2299 = vmatprep.subr.mxu0 0.0
    %2300 = vmatpush1.msra.mxu0 %v2026
    %2301 = vmatprep.mubr.f32.mxu0 %v1398
    %2302 = vmatmul.mubr.f32.gmra.mrb[0].mxu0 %v1397
    %v2303 = vpop.f32.mrb[0].mxu0
    %v2304 = vadd.f32 0.0, %v2303
    %v2305 = vpop.f32.mrb[0].mxu0
    %2306 = vdwg.mxu0
    %2307 = vmatprep.subr.mxu0 0.0
    %2308 = vmatpush1.msra.mxu0 %v1995
    %2309 = vmatprep.subr.mxu0 0.0
    %2310 = vmatpush1.msra.mxu0 %v1996
    %2311 = vmatprep.subr.mxu0 0.0
    %2312 = vmatpush1.msra.mxu0 %v1997
    %2313 = vmatprep.subr.mxu0 0.0
    %2314 = vmatpush1.msra.mxu0 %v1998
    %2315 = vmatprep.subr.mxu0 0.0
    %2316 = vmatpush1.msra.mxu0 %v1999
    %2317 = vmatprep.subr.mxu0 0.0
    %2318 = vmatpush1.msra.mxu0 %v2000
    %2319 = vmatprep.subr.mxu0 0.0
    %2320 = vmatpush1.msra.mxu0 %v2001
    %2321 = vmatprep.subr.mxu0 0.0
    %2322 = vmatpush1.msra.mxu0 %v2002
    %2323 = vmatprep.subr.mxu0 0.0
    %2324 = vmatpush1.msra.mxu0 %v2003
    %2325 = vmatprep.subr.mxu0 0.0
    %2326 = vmatpush1.msra.mxu0 %v2004
    %2327 = vmatprep.subr.mxu0 0.0
    %2328 = vmatpush1.msra.mxu0 %v2005
    %2329 = vmatprep.subr.mxu0 0.0
    %2330 = vmatpush1.msra.mxu0 %v2006
    %2331 = vmatprep.subr.mxu0 0.0
    %2332 = vmatpush1.msra.mxu0 %v2007
    %2333 = vmatprep.subr.mxu0 0.0
    %2334 = vmatpush1.msra.mxu0 %v2008
    %2335 = vmatprep.subr.mxu0 0.0
    %2336 = vmatpush1.msra.mxu0 %v2009
    %2337 = vmatprep.subr.mxu0 0.0
    %2338 = vmatpush1.msra.mxu0 %v2010
    %2339 = vmatprep.subr.mxu0 0.0
    %2340 = vmatpush1.msra.mxu0 %v2011
    %2341 = vmatprep.subr.mxu0 0.0
    %2342 = vmatpush1.msra.mxu0 %v2012
    %2343 = vmatprep.subr.mxu0 0.0
    %2344 = vmatpush1.msra.mxu0 %v2013
    %2345 = vmatprep.subr.mxu0 0.0
    %2346 = vmatpush1.msra.mxu0 %v2014
    %2347 = vmatprep.subr.mxu0 0.0
    %2348 = vmatpush1.msra.mxu0 %v2015
    %2349 = vmatprep.subr.mxu0 0.0
    %2350 = vmatpush1.msra.mxu0 %v2016
    %2351 = vmatprep.subr.mxu0 0.0
    %2352 = vmatpush1.msra.mxu0 %v2017
    %2353 = vmatprep.subr.mxu0 0.0
    %2354 = vmatpush1.msra.mxu0 %v2018
    %2355 = vmatprep.subr.mxu0 0.0
    %2356 = vmatpush1.msra.mxu0 %v2019
    %2357 = vmatprep.subr.mxu0 0.0
    %2358 = vmatpush1.msra.mxu0 %v2020
    %2359 = vmatprep.subr.mxu0 0.0
    %2360 = vmatpush1.msra.mxu0 %v2021
    %2361 = vmatprep.subr.mxu0 0.0
    %2362 = vmatpush1.msra.mxu0 %v2022
    %2363 = vmatprep.subr.mxu0 0.0
    %2364 = vmatpush1.msra.mxu0 %v2023
    %2365 = vmatprep.subr.mxu0 0.0
    %2366 = vmatpush1.msra.mxu0 %v2024
    %2367 = vmatprep.subr.mxu0 0.0
    %2368 = vmatpush1.msra.mxu0 %v2025
    %2369 = vmatprep.subr.mxu0 0.0
    %2370 = vmatpush1.msra.mxu0 %v2026
    %2371 = vmatprep.mubr.f32.mxu0 %v1399
    %2372 = vmatmul.mubr.f32.gmra.mrb[0].mxu0 %v1398
    %v2373 = vpop.f32.mrb[0].mxu0
    %v2374 = vadd.f32 0.0, %v2373
    %v2375 = vpop.f32.mrb[0].mxu0
    %2376 = vdwg.mxu0
    %2377 = vmatprep.subr.mxu0 0.0
    %2378 = vmatpush1.msra.mxu0 %v1995
    %2379 = vmatprep.subr.mxu0 0.0
    %2380 = vmatpush1.msra.mxu0 %v1996
    %2381 = vmatprep.subr.mxu0 0.0
    %2382 = vmatpush1.msra.mxu0 %v1997
    %2383 = vmatprep.subr.mxu0 0.0
    %2384 = vmatpush1.msra.mxu0 %v1998
    %2385 = vmatprep.subr.mxu0 0.0
    %2386 = vmatpush1.msra.mxu0 %v1999
    %2387 = vmatprep.subr.mxu0 0.0
    %2388 = vmatpush1.msra.mxu0 %v2000
    %2389 = vmatprep.subr.mxu0 0.0
    %2390 = vmatpush1.msra.mxu0 %v2001
    %2391 = vmatprep.subr.mxu0 0.0
    %2392 = vmatpush1.msra.mxu0 %v2002
    %2393 = vmatprep.subr.mxu0 0.0
    %2394 = vmatpush1.msra.mxu0 %v2003
    %2395 = vmatprep.subr.mxu0 0.0
    %2396 = vmatpush1.msra.mxu0 %v2004
    %2397 = vmatprep.subr.mxu0 0.0
    %2398 = vmatpush1.msra.mxu0 %v2005
    %2399 = vmatprep.subr.mxu0 0.0
    %2400 = vmatpush1.msra.mxu0 %v2006
    %2401 = vmatprep.subr.mxu0 0.0
    %2402 = vmatpush1.msra.mxu0 %v2007
    %2403 = vmatprep.subr.mxu0 0.0
    %2404 = vmatpush1.msra.mxu0 %v2008
    %2405 = vmatprep.subr.mxu0 0.0
    %2406 = vmatpush1.msra.mxu0 %v2009
    %2407 = vmatprep.subr.mxu0 0.0
    %2408 = vmatpush1.msra.mxu0 %v2010
    %2409 = vmatprep.subr.mxu0 0.0
    %2410 = vmatpush1.msra.mxu0 %v2011
    %2411 = vmatprep.subr.mxu0 0.0
    %2412 = vmatpush1.msra.mxu0 %v2012
    %2413 = vmatprep.subr.mxu0 0.0
    %2414 = vmatpush1.msra.mxu0 %v2013
    %2415 = vmatprep.subr.mxu0 0.0
    %2416 = vmatpush1.msra.mxu0 %v2014
    %2417 = vmatprep.subr.mxu0 0.0
    %2418 = vmatpush1.msra.mxu0 %v2015
    %2419 = vmatprep.subr.mxu0 0.0
    %2420 = vmatpush1.msra.mxu0 %v2016
    %2421 = vmatprep.subr.mxu0 0.0
    %2422 = vmatpush1.msra.mxu0 %v2017
    %2423 = vmatprep.subr.mxu0 0.0
    %2424 = vmatpush1.msra.mxu0 %v2018
    %2425 = vmatprep.subr.mxu0 0.0
    %2426 = vmatpush1.msra.mxu0 %v2019
    %2427 = vmatprep.subr.mxu0 0.0
    %2428 = vmatpush1.msra.mxu0 %v2020
    %2429 = vmatprep.subr.mxu0 0.0
    %2430 = vmatpush1.msra.mxu0 %v2021
    %2431 = vmatprep.subr.mxu0 0.0
    %2432 = vmatpush1.msra.mxu0 %v2022
    %2433 = vmatprep.subr.mxu0 0.0
    %2434 = vmatpush1.msra.mxu0 %v2023
    %2435 = vmatprep.subr.mxu0 0.0
    %2436 = vmatpush1.msra.mxu0 %v2024
    %2437 = vmatprep.subr.mxu0 0.0
    %2438 = vmatpush1.msra.mxu0 %v2025
    %2439 = vmatprep.subr.mxu0 0.0
    %2440 = vmatpush1.msra.mxu0 %v2026
    %2441 = vmatprep.mubr.f32.mxu0 %v1400
    %2442 = vmatmul.mubr.f32.gmra.mrb[0].mxu0 %v1399
    %v2443 = vpop.f32.mrb[0].mxu0
    %v2444 = vadd.f32 0.0, %v2443
    %v2445 = vpop.f32.mrb[0].mxu0
    %2446 = vdwg.mxu0
    %2447 = vmatprep.subr.mxu0 0.0
    %2448 = vmatpush1.msra.mxu0 %v1995
    %2449 = vmatprep.subr.mxu0 0.0
    %2450 = vmatpush1.msra.mxu0 %v1996
    %2451 = vmatprep.subr.mxu0 0.0
    %2452 = vmatpush1.msra.mxu0 %v1997
    %2453 = vmatprep.subr.mxu0 0.0
    %2454 = vmatpush1.msra.mxu0 %v1998
    %2455 = vmatprep.subr.mxu0 0.0
    %2456 = vmatpush1.msra.mxu0 %v1999
    %2457 = vmatprep.subr.mxu0 0.0
    %2458 = vmatpush1.msra.mxu0 %v2000
    %2459 = vmatprep.subr.mxu0 0.0
    %2460 = vmatpush1.msra.mxu0 %v2001
    %2461 = vmatprep.subr.mxu0 0.0
    %2462 = vmatpush1.msra.mxu0 %v2002
    %2463 = vmatprep.subr.mxu0 0.0
    %2464 = vmatpush1.msra.mxu0 %v2003
    %2465 = vmatprep.subr.mxu0 0.0
    %2466 = vmatpush1.msra.mxu0 %v2004
    %2467 = vmatprep.subr.mxu0 0.0
    %2468 = vmatpush1.msra.mxu0 %v2005
    %2469 = vmatprep.subr.mxu0 0.0
    %2470 = vmatpush1.msra.mxu0 %v2006
    %2471 = vmatprep.subr.mxu0 0.0
    %2472 = vmatpush1.msra.mxu0 %v2007
    %2473 = vmatprep.subr.mxu0 0.0
    %2474 = vmatpush1.msra.mxu0 %v2008
    %2475 = vmatprep.subr.mxu0 0.0
    %2476 = vmatpush1.msra.mxu0 %v2009
    %2477 = vmatprep.subr.mxu0 0.0
    %2478 = vmatpush1.msra.mxu0 %v2010
    %2479 = vmatprep.subr.mxu0 0.0
    %2480 = vmatpush1.msra.mxu0 %v2011
    %2481 = vmatprep.subr.mxu0 0.0
    %2482 = vmatpush1.msra.mxu0 %v2012
    %2483 = vmatprep.subr.mxu0 0.0
    %2484 = vmatpush1.msra.mxu0 %v2013
    %2485 = vmatprep.subr.mxu0 0.0
    %2486 = vmatpush1.msra.mxu0 %v2014
    %2487 = vmatprep.subr.mxu0 0.0
    %2488 = vmatpush1.msra.mxu0 %v2015
    %2489 = vmatprep.subr.mxu0 0.0
    %2490 = vmatpush1.msra.mxu0 %v2016
    %2491 = vmatprep.subr.mxu0 0.0
    %2492 = vmatpush1.msra.mxu0 %v2017
    %2493 = vmatprep.subr.mxu0 0.0
    %2494 = vmatpush1.msra.mxu0 %v2018
    %2495 = vmatprep.subr.mxu0 0.0
    %2496 = vmatpush1.msra.mxu0 %v2019
    %2497 = vmatprep.subr.mxu0 0.0
    %2498 = vmatpush1.msra.mxu0 %v2020
    %2499 = vmatprep.subr.mxu0 0.0
    %2500 = vmatpush1.msra.mxu0 %v2021
    %2501 = vmatprep.subr.mxu0 0.0
    %2502 = vmatpush1.msra.mxu0 %v2022
    %2503 = vmatprep.subr.mxu0 0.0
    %2504 = vmatpush1.msra.mxu0 %v2023
    %2505 = vmatprep.subr.mxu0 0.0
    %2506 = vmatpush1.msra.mxu0 %v2024
    %2507 = vmatprep.subr.mxu0 0.0
    %2508 = vmatpush1.msra.mxu0 %v2025
    %2509 = vmatprep.subr.mxu0 0.0
    %2510 = vmatpush1.msra.mxu0 %v2026
    %2511 = vmatprep.mubr.f32.mxu0 %v1401
    %2512 = vmatmul.mubr.f32.gmra.mrb[0].mxu0 %v1400
    %v2513 = vpop.f32.mrb[0].mxu0
    %v2514 = vadd.f32 0.0, %v2513
    %v2515 = vpop.f32.mrb[0].mxu0
    %2516 = vdwg.mxu0
    %2517 = vmatprep.subr.mxu0 0.0
    %2518 = vmatpush1.msra.mxu0 %v1995
    %2519 = vmatprep.subr.mxu0 0.0
    %2520 = vmatpush1.msra.mxu0 %v1996
    %2521 = vmatprep.subr.mxu0 0.0
    %2522 = vmatpush1.msra.mxu0 %v1997
    %2523 = vmatprep.subr.mxu0 0.0
    %2524 = vmatpush1.msra.mxu0 %v1998
    %2525 = vmatprep.subr.mxu0 0.0
    %2526 = vmatpush1.msra.mxu0 %v1999
    %2527 = vmatprep.subr.mxu0 0.0
    %2528 = vmatpush1.msra.mxu0 %v2000
    %2529 = vmatprep.subr.mxu0 0.0
    %2530 = vmatpush1.msra.mxu0 %v2001
    %2531 = vmatprep.subr.mxu0 0.0
    %2532 = vmatpush1.msra.mxu0 %v2002
    %2533 = vmatprep.subr.mxu0 0.0
    %2534 = vmatpush1.msra.mxu0 %v2003
    %2535 = vmatprep.subr.mxu0 0.0
    %2536 = vmatpush1.msra.mxu0 %v2004
    %2537 = vmatprep.subr.mxu0 0.0
    %2538 = vmatpush1.msra.mxu0 %v2005
    %2539 = vmatprep.subr.mxu0 0.0
    %2540 = vmatpush1.msra.mxu0 %v2006
    %2541 = vmatprep.subr.mxu0 0.0
    %2542 = vmatpush1.msra.mxu0 %v2007
    %2543 = vmatprep.subr.mxu0 0.0
    %2544 = vmatpush1.msra.mxu0 %v2008
    %2545 = vmatprep.subr.mxu0 0.0
    %2546 = vmatpush1.msra.mxu0 %v2009
    %2547 = vmatprep.subr.mxu0 0.0
    %2548 = vmatpush1.msra.mxu0 %v2010
    %2549 = vmatprep.subr.mxu0 0.0
    %2550 = vmatpush1.msra.mxu0 %v2011
    %2551 = vmatprep.subr.mxu0 0.0
    %2552 = vmatpush1.msra.mxu0 %v2012
    %2553 = vmatprep.subr.mxu0 0.0
    %2554 = vmatpush1.msra.mxu0 %v2013
    %2555 = vmatprep.subr.mxu0 0.0
    %2556 = vmatpush1.msra.mxu0 %v2014
    %2557 = vmatprep.subr.mxu0 0.0
    %2558 = vmatpush1.msra.mxu0 %v2015
    %2559 = vmatprep.subr.mxu0 0.0
    %2560 = vmatpush1.msra.mxu0 %v2016
    %2561 = vmatprep.subr.mxu0 0.0
    %2562 = vmatpush1.msra.mxu0 %v2017
    %2563 = vmatprep.subr.mxu0 0.0
    %2564 = vmatpush1.msra.mxu0 %v2018
    %2565 = vmatprep.subr.mxu0 0.0
    %2566 = vmatpush1.msra.mxu0 %v2019
    %2567 = vmatprep.subr.mxu0 0.0
    %2568 = vmatpush1.msra.mxu0 %v2020
    %2569 = vmatprep.subr.mxu0 0.0
    %2570 = vmatpush1.msra.mxu0 %v2021
    %2571 = vmatprep.subr.mxu0 0.0
    %2572 = vmatpush1.msra.mxu0 %v2022
    %2573 = vmatprep.subr.mxu0 0.0
    %2574 = vmatpush1.msra.mxu0 %v2023
    %2575 = vmatprep.subr.mxu0 0.0
    %2576 = vmatpush1.msra.mxu0 %v2024
    %2577 = vmatprep.subr.mxu0 0.0
    %2578 = vmatpush1.msra.mxu0 %v2025
    %2579 = vmatprep.subr.mxu0 0.0
    %2580 = vmatpush1.msra.mxu0 %v2026
    %2581 = vmatprep.mubr.f32.mxu0 0.0
    %2582 = vmatmul.mubr.f32.gmra.mrb[0].mxu0 %v1401
    %v2583 = vpop.f32.mrb[0].mxu0
    %v2584 = vadd.f32 0.0, %v2583
    %v2585 = vpop.f32.mrb[0].mxu0
    %2586 = vdwg.mxu0
    %v2587 = vsel %vm452, %v1501, 0.0
    %v2588 = vrot.slane %v2587, 4
    %v2589 = vadd.f32 %v2587, %v2588
    %v2590 = vrot.slane %v2589, 2
    %v2591 = vadd.f32 %v2589, %v2590
    %v2592 = vrot.slane %v2591, 1
    %v2593 = vadd.f32 %v2591, %v2592
    %v2594 = vsel %vm452, %v2094, 0.0
    %v2595 = vrot.slane %v2594, 4
    %v2596 = vadd.f32 %v2594, %v2595
    %v2597 = vrot.slane %v2596, 2
    %v2598 = vadd.f32 %v2596, %v2597
    %v2599 = vrot.slane %v2598, 1
    %v2600 = vadd.f32 %v2598, %v2599
    %v2601 = vsel %vm452, %v1571, 0.0
    %v2602 = vrot.slane %v2601, 4
    %v2603 = vadd.f32 %v2601, %v2602
    %v2604 = vrot.slane %v2603, 2
    %v2605 = vadd.f32 %v2603, %v2604
    %v2606 = vrot.slane %v2605, 1
    %v2607 = vadd.f32 %v2605, %v2606
    %v2608 = vsel %vm452, %v2164, 0.0
    %v2609 = vrot.slane %v2608, 4
    %v2610 = vadd.f32 %v2608, %v2609
    %v2611 = vrot.slane %v2610, 2
    %v2612 = vadd.f32 %v2610, %v2611
    %v2613 = vrot.slane %v2612, 1
    %v2614 = vadd.f32 %v2612, %v2613
    %v2615 = vsel %vm452, %v1641, 0.0
    %v2616 = vrot.slane %v2615, 4
    %v2617 = vadd.f32 %v2615, %v2616
    %v2618 = vrot.slane %v2617, 2
    %v2619 = vadd.f32 %v2617, %v2618
    %v2620 = vrot.slane %v2619, 1
    %v2621 = vadd.f32 %v2619, %v2620
    %v2622 = vsel %vm452, %v2234, 0.0
    %v2623 = vrot.slane %v2622, 4
    %v2624 = vadd.f32 %v2622, %v2623
    %v2625 = vrot.slane %v2624, 2
    %v2626 = vadd.f32 %v2624, %v2625
    %v2627 = vrot.slane %v2626, 1
    %v2628 = vadd.f32 %v2626, %v2627
    %v2629 = vsel %vm452, %v1711, 0.0
    %v2630 = vrot.slane %v2629, 4
    %v2631 = vadd.f32 %v2629, %v2630
    %v2632 = vrot.slane %v2631, 2
    %v2633 = vadd.f32 %v2631, %v2632
    %v2634 = vrot.slane %v2633, 1
    %v2635 = vadd.f32 %v2633, %v2634
    %v2636 = vsel %vm452, %v2304, 0.0
    %v2637 = vrot.slane %v2636, 4
    %v2638 = vadd.f32 %v2636, %v2637
    %v2639 = vrot.slane %v2638, 2
    %v2640 = vadd.f32 %v2638, %v2639
    %v2641 = vrot.slane %v2640, 1
    %v2642 = vadd.f32 %v2640, %v2641
    %v2643 = vsel %vm452, %v1781, 0.0
    %v2644 = vrot.slane %v2643, 4
    %v2645 = vadd.f32 %v2643, %v2644
    %v2646 = vrot.slane %v2645, 2
    %v2647 = vadd.f32 %v2645, %v2646
    %v2648 = vrot.slane %v2647, 1
    %v2649 = vadd.f32 %v2647, %v2648
    %v2650 = vsel %vm452, %v2374, 0.0
    %v2651 = vrot.slane %v2650, 4
    %v2652 = vadd.f32 %v2650, %v2651
    %v2653 = vrot.slane %v2652, 2
    %v2654 = vadd.f32 %v2652, %v2653
    %v2655 = vrot.slane %v2654, 1
    %v2656 = vadd.f32 %v2654, %v2655
    %v2657 = vsel %vm452, %v1851, 0.0
    %v2658 = vrot.slane %v2657, 4
    %v2659 = vadd.f32 %v2657, %v2658
    %v2660 = vrot.slane %v2659, 2
    %v2661 = vadd.f32 %v2659, %v2660
    %v2662 = vrot.slane %v2661, 1
    %v2663 = vadd.f32 %v2661, %v2662
    %v2664 = vsel %vm452, %v2444, 0.0
    %v2665 = vrot.slane %v2664, 4
    %v2666 = vadd.f32 %v2664, %v2665
    %v2667 = vrot.slane %v2666, 2
    %v2668 = vadd.f32 %v2666, %v2667
    %v2669 = vrot.slane %v2668, 1
    %v2670 = vadd.f32 %v2668, %v2669
    %v2671 = vsel %vm452, %v1921, 0.0
    %v2672 = vrot.slane %v2671, 4
    %v2673 = vadd.f32 %v2671, %v2672
    %v2674 = vrot.slane %v2673, 2
    %v2675 = vadd.f32 %v2673, %v2674
    %v2676 = vrot.slane %v2675, 1
    %v2677 = vadd.f32 %v2675, %v2676
    %v2678 = vsel %vm452, %v2514, 0.0
    %v2679 = vrot.slane %v2678, 4
    %v2680 = vadd.f32 %v2678, %v2679
    %v2681 = vrot.slane %v2680, 2
    %v2682 = vadd.f32 %v2680, %v2681
    %v2683 = vrot.slane %v2682, 1
    %v2684 = vadd.f32 %v2682, %v2683
    %v2685 = vsel %vm452, %v1991, 0.0
    %v2686 = vrot.slane %v2685, 4
    %v2687 = vadd.f32 %v2685, %v2686
    %v2688 = vrot.slane %v2687, 2
    %v2689 = vadd.f32 %v2687, %v2688
    %v2690 = vrot.slane %v2689, 1
    %v2691 = vadd.f32 %v2689, %v2690
    %v2692 = vsel %vm452, %v2584, 0.0
    %v2693 = vrot.slane %v2692, 4
    %v2694 = vadd.f32 %v2692, %v2693
    %v2695 = vrot.slane %v2694, 2
    %v2696 = vadd.f32 %v2694, %v2695
    %v2697 = vrot.slane %v2696, 1
    %v2698 = vadd.f32 %v2696, %v2697
    %v2699 = vmul.f32 %v1501, %v1501
    %v2700 = vmul.f32 %v2094, %v2094
    %v2701 = vmul.f32 %v1571, %v1571
    %v2702 = vmul.f32 %v2164, %v2164
    %v2703 = vmul.f32 %v1641, %v1641
    %v2704 = vmul.f32 %v2234, %v2234
    %v2705 = vmul.f32 %v1711, %v1711
    %v2706 = vmul.f32 %v2304, %v2304
    %v2707 = vmul.f32 %v1781, %v1781
    %v2708 = vmul.f32 %v2374, %v2374
    %v2709 = vmul.f32 %v1851, %v1851
    %v2710 = vmul.f32 %v2444, %v2444
    %v2711 = vmul.f32 %v1921, %v1921
    %v2712 = vmul.f32 %v2514, %v2514
    %v2713 = vmul.f32 %v1991, %v1991
    %v2714 = vmul.f32 %v2584, %v2584
    %v2715 = vsel %vm452, %v2699, 0.0
    %v2716 = vrot.slane %v2715, 4
    %v2717 = vadd.f32 %v2715, %v2716
    %v2718 = vrot.slane %v2717, 2
    %v2719 = vadd.f32 %v2717, %v2718
    %v2720 = vrot.slane %v2719, 1
    %v2721 = vadd.f32 %v2719, %v2720
    %v2722 = vsel %vm452, %v2700, 0.0
    %v2723 = vrot.slane %v2722, 4
    %v2724 = vadd.f32 %v2722, %v2723
    %v2725 = vrot.slane %v2724, 2
    %v2726 = vadd.f32 %v2724, %v2725
    %v2727 = vrot.slane %v2726, 1
    %v2728 = vadd.f32 %v2726, %v2727
    %v2729 = vsel %vm452, %v2701, 0.0
    %v2730 = vrot.slane %v2729, 4
    %v2731 = vadd.f32 %v2729, %v2730
    %v2732 = vrot.slane %v2731, 2
    %v2733 = vadd.f32 %v2731, %v2732
    %v2734 = vrot.slane %v2733, 1
    %v2735 = vadd.f32 %v2733, %v2734
    %v2736 = vsel %vm452, %v2702, 0.0
    %v2737 = vrot.slane %v2736, 4
    %v2738 = vadd.f32 %v2736, %v2737
    %v2739 = vrot.slane %v2738, 2
    %v2740 = vadd.f32 %v2738, %v2739
    %v2741 = vrot.slane %v2740, 1
    %v2742 = vadd.f32 %v2740, %v2741
    %v2743 = vsel %vm452, %v2703, 0.0
    %v2744 = vrot.slane %v2743, 4
    %v2745 = vadd.f32 %v2743, %v2744
    %v2746 = vrot.slane %v2745, 2
    %v2747 = vadd.f32 %v2745, %v2746
    %v2748 = vrot.slane %v2747, 1
    %v2749 = vadd.f32 %v2747, %v2748
    %v2750 = vsel %vm452, %v2704, 0.0
    %v2751 = vrot.slane %v2750, 4
    %v2752 = vadd.f32 %v2750, %v2751
    %v2753 = vrot.slane %v2752, 2
    %v2754 = vadd.f32 %v2752, %v2753
    %v2755 = vrot.slane %v2754, 1
    %v2756 = vadd.f32 %v2754, %v2755
    %v2757 = vsel %vm452, %v2705, 0.0
    %v2758 = vrot.slane %v2757, 4
    %v2759 = vadd.f32 %v2757, %v2758
    %v2760 = vrot.slane %v2759, 2
    %v2761 = vadd.f32 %v2759, %v2760
    %v2762 = vrot.slane %v2761, 1
    %v2763 = vadd.f32 %v2761, %v2762
    %v2764 = vsel %vm452, %v2706, 0.0
    %v2765 = vrot.slane %v2764, 4
    %v2766 = vadd.f32 %v2764, %v2765
    %v2767 = vrot.slane %v2766, 2
    %v2768 = vadd.f32 %v2766, %v2767
    %v2769 = vrot.slane %v2768, 1
    %v2770 = vadd.f32 %v2768, %v2769
    %v2771 = vsel %vm452, %v2707, 0.0
    %v2772 = vrot.slane %v2771, 4
    %v2773 = vadd.f32 %v2771, %v2772
    %v2774 = vrot.slane %v2773, 2
    %v2775 = vadd.f32 %v2773, %v2774
    %v2776 = vrot.slane %v2775, 1
    %v2777 = vadd.f32 %v2775, %v2776
    %v2778 = vsel %vm452, %v2708, 0.0
    %v2779 = vrot.slane %v2778, 4
    %v2780 = vadd.f32 %v2778, %v2779
    %v2781 = vrot.slane %v2780, 2
    %v2782 = vadd.f32 %v2780, %v2781
    %v2783 = vrot.slane %v2782, 1
    %v2784 = vadd.f32 %v2782, %v2783
    %v2785 = vsel %vm452, %v2709, 0.0
    %v2786 = vrot.slane %v2785, 4
    %v2787 = vadd.f32 %v2785, %v2786
    %v2788 = vrot.slane %v2787, 2
    %v2789 = vadd.f32 %v2787, %v2788
    %v2790 = vrot.slane %v2789, 1
    %v2791 = vadd.f32 %v2789, %v2790
    %v2792 = vsel %vm452, %v2710, 0.0
    %v2793 = vrot.slane %v2792, 4
    %v2794 = vadd.f32 %v2792, %v2793
    %v2795 = vrot.slane %v2794, 2
    %v2796 = vadd.f32 %v2794, %v2795
    %v2797 = vrot.slane %v2796, 1
    %v2798 = vadd.f32 %v2796, %v2797
    %v2799 = vsel %vm452, %v2711, 0.0
    %v2800 = vrot.slane %v2799, 4
    %v2801 = vadd.f32 %v2799, %v2800
    %v2802 = vrot.slane %v2801, 2
    %v2803 = vadd.f32 %v2801, %v2802
    %v2804 = vrot.slane %v2803, 1
    %v2805 = vadd.f32 %v2803, %v2804
    %v2806 = vsel %vm452, %v2712, 0.0
    %v2807 = vrot.slane %v2806, 4
    %v2808 = vadd.f32 %v2806, %v2807
    %v2809 = vrot.slane %v2808, 2
    %v2810 = vadd.f32 %v2808, %v2809
    %v2811 = vrot.slane %v2810, 1
    %v2812 = vadd.f32 %v2810, %v2811
    %v2813 = vsel %vm452, %v2713, 0.0
    %v2814 = vrot.slane %v2813, 4
    %v2815 = vadd.f32 %v2813, %v2814
    %v2816 = vrot.slane %v2815, 2
    %v2817 = vadd.f32 %v2815, %v2816
    %v2818 = vrot.slane %v2817, 1
    %v2819 = vadd.f32 %v2817, %v2818
    %v2820 = vsel %vm452, %v2714, 0.0
    %v2821 = vrot.slane %v2820, 4
    %v2822 = vadd.f32 %v2820, %v2821
    %v2823 = vrot.slane %v2822, 2
    %v2824 = vadd.f32 %v2822, %v2823
    %v2825 = vrot.slane %v2824, 1
    %v2826 = vadd.f32 %v2824, %v2825
    %v2827 = vsel %vm573, %v2593, %v2721
    %v2828 = vsel %vm573, %v2600, %v2728
    %v2829 = vsel %vm573, %v2607, %v2735
    %v2830 = vsel %vm573, %v2614, %v2742
    %v2831 = vsel %vm573, %v2621, %v2749
    %v2832 = vsel %vm573, %v2628, %v2756
    %v2833 = vsel %vm573, %v2635, %v2763
    %v2834 = vsel %vm573, %v2642, %v2770
    %v2835 = vsel %vm573, %v2649, %v2777
    %v2836 = vsel %vm573, %v2656, %v2784
    %v2837 = vsel %vm573, %v2663, %v2791
    %v2838 = vsel %vm573, %v2670, %v2798
    %v2839 = vsel %vm573, %v2677, %v2805
    %v2840 = vsel %vm573, %v2684, %v2812
    %v2841 = vsel %vm573, %v2691, %v2819
    %v2842 = vsel %vm573, %v2698, %v2826
    %v2843 = vld [vmem:[%s6] sm:$0xff]
    %v2844 = vld [vmem:[%s6 + $0x8] sm:$0xff]
    %v2845 = vld [vmem:[%s6 + $0x10] sm:$0xff]
    %v2846 = vld [vmem:[%s6 + $0x18] sm:$0xff]
    %v2847 = vld [vmem:[%s6 + $0x20] sm:$0xff]
    %v2848 = vld [vmem:[%s6 + $0x28] sm:$0xff]
    %v2849 = vld [vmem:[%s6 + $0x30] sm:$0xff]
    %v2850 = vld [vmem:[%s6 + $0x38] sm:$0xff]
    %v2851 = vld [vmem:[%s6 + $0x40] sm:$0xff]
    %v2852 = vld [vmem:[%s6 + $0x48] sm:$0xff]
    %v2853 = vld [vmem:[%s6 + $0x50] sm:$0xff]
    %v2854 = vld [vmem:[%s6 + $0x58] sm:$0xff]
    %v2855 = vld [vmem:[%s6 + $0x60] sm:$0xff]
    %v2856 = vld [vmem:[%s6 + $0x68] sm:$0xff]
    %v2857 = vld [vmem:[%s6 + $0x70] sm:$0xff]
    %v2858 = vld [vmem:[%s6 + $0x78] sm:$0xff]
    %v2859 = vld [vmem:[%s6 + $0x80] sm:$0xff]
    %v2860 = vld [vmem:[%s6 + $0x88] sm:$0xff]
    %v2861 = vld [vmem:[%s6 + $0x90] sm:$0xff]
    %v2862 = vld [vmem:[%s6 + $0x98] sm:$0xff]
    %v2863 = vld [vmem:[%s6 + $0xa0] sm:$0xff]
    %v2864 = vld [vmem:[%s6 + $0xa8] sm:$0xff]
    %v2865 = vld [vmem:[%s6 + $0xb0] sm:$0xff]
    %v2866 = vld [vmem:[%s6 + $0xb8] sm:$0xff]
    %v2867 = vld [vmem:[%s6 + $0xc0] sm:$0xff]
    %v2868 = vld [vmem:[%s6 + $0xc8] sm:$0xff]
    %v2869 = vld [vmem:[%s6 + $0xd0] sm:$0xff]
    %v2870 = vld [vmem:[%s6 + $0xd8] sm:$0xff]
    %v2871 = vld [vmem:[%s6 + $0xe0] sm:$0xff]
    %v2872 = vld [vmem:[%s6 + $0xe8] sm:$0xff]
    %v2873 = vld [vmem:[%s6 + $0xf0] sm:$0xff]
    %v2874 = vld [vmem:[%s6 + $0xf8] sm:$0xff]
    %v2875 = vld [vmem:[%s6 + $0x100] sm:$0xff]
    %v2876 = vld [vmem:[%s6 + $0x108] sm:$0xff]
    %v2877 = vld [vmem:[%s6 + $0x110] sm:$0xff]
    %v2878 = vld [vmem:[%s6 + $0x118] sm:$0xff]
    %v2879 = vld [vmem:[%s6 + $0x120] sm:$0xff]
    %v2880 = vld [vmem:[%s6 + $0x128] sm:$0xff]
    %v2881 = vld [vmem:[%s6 + $0x130] sm:$0xff]
    %v2882 = vld [vmem:[%s6 + $0x138] sm:$0xff]
    %v2883 = vld [vmem:[%s6 + $0x140] sm:$0xff]
    %v2884 = vld [vmem:[%s6 + $0x148] sm:$0xff]
    %v2885 = vld [vmem:[%s6 + $0x150] sm:$0xff]
    %v2886 = vld [vmem:[%s6 + $0x158] sm:$0xff]
    %v2887 = vld [vmem:[%s6 + $0x160] sm:$0xff]
    %v2888 = vld [vmem:[%s6 + $0x168] sm:$0xff]
    %v2889 = vld [vmem:[%s6 + $0x170] sm:$0xff]
    %v2890 = vld [vmem:[%s6 + $0x178] sm:$0xff]
    %v2891 = vld [vmem:[%s6 + $0x180] sm:$0xff]
    %v2892 = vld [vmem:[%s6 + $0x188] sm:$0xff]
    %v2893 = vld [vmem:[%s6 + $0x190] sm:$0xff]
    %v2894 = vld [vmem:[%s6 + $0x198] sm:$0xff]
    %v2895 = vld [vmem:[%s6 + $0x1a0] sm:$0xff]
    %v2896 = vld [vmem:[%s6 + $0x1a8] sm:$0xff]
    %v2897 = vld [vmem:[%s6 + $0x1b0] sm:$0xff]
    %v2898 = vld [vmem:[%s6 + $0x1b8] sm:$0xff]
    %v2899 = vld [vmem:[%s6 + $0x1c0] sm:$0xff]
    %v2900 = vld [vmem:[%s6 + $0x1c8] sm:$0xff]
    %v2901 = vld [vmem:[%s6 + $0x1d0] sm:$0xff]
    %v2902 = vld [vmem:[%s6 + $0x1d8] sm:$0xff]
    %v2903 = vld [vmem:[%s6 + $0x1e0] sm:$0xff]
    %v2904 = vld [vmem:[%s6 + $0x1e8] sm:$0xff]
    %v2905 = vld [vmem:[%s6 + $0x1f0] sm:$0xff]
    %v2906 = vld [vmem:[%s6 + $0x1f8] sm:$0xff]
    %v2907 = vld [vmem:[%s6 + $0x200] sm:$0xff]
    %v2908 = vld [vmem:[%s6 + $0x208] sm:$0xff]
    %v2909 = vld [vmem:[%s6 + $0x210] sm:$0xff]
    %v2910 = vld [vmem:[%s6 + $0x218] sm:$0xff]
    %v2911 = vld [vmem:[%s6 + $0x220] sm:$0xff]
    %v2912 = vld [vmem:[%s6 + $0x228] sm:$0xff]
    %v2913 = vld [vmem:[%s6 + $0x230] sm:$0xff]
    %v2914 = vld [vmem:[%s6 + $0x238] sm:$0xff]
    %v2915 = vld [vmem:[%s6 + $0x240] sm:$0xff]
    %v2916 = vld [vmem:[%s6 + $0x248] sm:$0xff]
    %v2917 = vld [vmem:[%s6 + $0x250] sm:$0xff]
    %v2918 = vld [vmem:[%s6 + $0x258] sm:$0xff]
    %v2919 = vld [vmem:[%s6 + $0x260] sm:$0xff]
    %v2920 = vld [vmem:[%s6 + $0x268] sm:$0xff]
    %v2921 = vld [vmem:[%s6 + $0x270] sm:$0xff]
    %v2922 = vld [vmem:[%s6 + $0x278] sm:$0xff]
    %v2923 = vld [vmem:[%s6 + $0x280] sm:$0xff]
    %v2924 = vld [vmem:[%s6 + $0x288] sm:$0xff]
    %v2925 = vld [vmem:[%s6 + $0x290] sm:$0xff]
    %v2926 = vld [vmem:[%s6 + $0x298] sm:$0xff]
    %v2927 = vld [vmem:[%s6 + $0x2a0] sm:$0xff]
    %v2928 = vld [vmem:[%s6 + $0x2a8] sm:$0xff]
    %v2929 = vld [vmem:[%s6 + $0x2b0] sm:$0xff]
    %v2930 = vld [vmem:[%s6 + $0x2b8] sm:$0xff]
    %v2931 = vld [vmem:[%s6 + $0x2c0] sm:$0xff]
    %v2932 = vld [vmem:[%s6 + $0x2c8] sm:$0xff]
    %v2933 = vld [vmem:[%s6 + $0x2d0] sm:$0xff]
    %v2934 = vld [vmem:[%s6 + $0x2d8] sm:$0xff]
    %v2935 = vld [vmem:[%s6 + $0x2e0] sm:$0xff]
    %v2936 = vld [vmem:[%s6 + $0x2e8] sm:$0xff]
    %v2937 = vld [vmem:[%s6 + $0x2f0] sm:$0xff]
    %v2938 = vld [vmem:[%s6 + $0x2f8] sm:$0xff]
    %v2939 = vld [vmem:[%s6 + $0x300] sm:$0xff]
    %v2940 = vld [vmem:[%s6 + $0x308] sm:$0xff]
    %v2941 = vld [vmem:[%s6 + $0x310] sm:$0xff]
    %v2942 = vld [vmem:[%s6 + $0x318] sm:$0xff]
    %v2943 = vld [vmem:[%s6 + $0x320] sm:$0xff]
    %v2944 = vld [vmem:[%s6 + $0x328] sm:$0xff]
    %v2945 = vld [vmem:[%s6 + $0x330] sm:$0xff]
    %v2946 = vld [vmem:[%s6 + $0x338] sm:$0xff]
    %v2947 = vld [vmem:[%s6 + $0x340] sm:$0xff]
    %v2948 = vld [vmem:[%s6 + $0x348] sm:$0xff]
    %v2949 = vld [vmem:[%s6 + $0x350] sm:$0xff]
    %v2950 = vld [vmem:[%s6 + $0x358] sm:$0xff]
    %v2951 = vld [vmem:[%s6 + $0x360] sm:$0xff]
    %v2952 = vld [vmem:[%s6 + $0x368] sm:$0xff]
    %v2953 = vld [vmem:[%s6 + $0x370] sm:$0xff]
    %v2954 = vld [vmem:[%s6 + $0x378] sm:$0xff]
    %v2955 = vld [vmem:[%s6 + $0x380] sm:$0xff]
    %v2956 = vld [vmem:[%s6 + $0x388] sm:$0xff]
    %v2957 = vld [vmem:[%s6 + $0x390] sm:$0xff]
    %v2958 = vld [vmem:[%s6 + $0x398] sm:$0xff]
    %v2959 = vld [vmem:[%s6 + $0x3a0] sm:$0xff]
    %v2960 = vld [vmem:[%s6 + $0x3a8] sm:$0xff]
    %v2961 = vld [vmem:[%s6 + $0x3b0] sm:$0xff]
    %v2962 = vld [vmem:[%s6 + $0x3b8] sm:$0xff]
    %v2963 = vld [vmem:[%s6 + $0x3c0] sm:$0xff]
    %v2964 = vld [vmem:[%s6 + $0x3c8] sm:$0xff]
    %v2965 = vld [vmem:[%s6 + $0x3d0] sm:$0xff]
    %v2966 = vld [vmem:[%s6 + $0x3d8] sm:$0xff]
    %v2967 = vld [vmem:[%s6 + $0x3e0] sm:$0xff]
    %v2968 = vld [vmem:[%s6 + $0x3e8] sm:$0xff]
    %v2969 = vld [vmem:[%s6 + $0x3f0] sm:$0xff]
    %v2970 = vld [vmem:[%s6 + $0x3f8] sm:$0xff]
    %v2971 = vld [vmem:[%s6 + $0x400] sm:$0xff]
    %v2972 = vld [vmem:[%s6 + $0x408] sm:$0xff]
    %v2973 = vld [vmem:[%s6 + $0x410] sm:$0xff]
    %v2974 = vld [vmem:[%s6 + $0x418] sm:$0xff]
    %v2975 = vld [vmem:[%s6 + $0x420] sm:$0xff]
    %v2976 = vld [vmem:[%s6 + $0x428] sm:$0xff]
    %v2977 = vld [vmem:[%s6 + $0x430] sm:$0xff]
    %v2978 = vld [vmem:[%s6 + $0x438] sm:$0xff]
    %v2979 = vld [vmem:[%s6 + $0x440] sm:$0xff]
    %v2980 = vld [vmem:[%s6 + $0x448] sm:$0xff]
    %v2981 = vld [vmem:[%s6 + $0x450] sm:$0xff]
    %v2982 = vld [vmem:[%s6 + $0x458] sm:$0xff]
    %v2983 = vld [vmem:[%s6 + $0x460] sm:$0xff]
    %v2984 = vld [vmem:[%s6 + $0x468] sm:$0xff]
    %v2985 = vld [vmem:[%s6 + $0x470] sm:$0xff]
    %v2986 = vld [vmem:[%s6 + $0x478] sm:$0xff]
    %v2987 = vld [vmem:[%s6 + $0x480] sm:$0xff]
    %v2988 = vld [vmem:[%s6 + $0x488] sm:$0xff]
    %v2989 = vld [vmem:[%s6 + $0x490] sm:$0xff]
    %v2990 = vld [vmem:[%s6 + $0x498] sm:$0xff]
    %v2991 = vld [vmem:[%s6 + $0x4a0] sm:$0xff]
    %v2992 = vld [vmem:[%s6 + $0x4a8] sm:$0xff]
    %v2993 = vld [vmem:[%s6 + $0x4b0] sm:$0xff]
    %v2994 = vld [vmem:[%s6 + $0x4b8] sm:$0xff]
    %v2995 = vld [vmem:[%s6 + $0x4c0] sm:$0xff]
    %v2996 = vld [vmem:[%s6 + $0x4c8] sm:$0xff]
    %v2997 = vld [vmem:[%s6 + $0x4d0] sm:$0xff]
    %v2998 = vld [vmem:[%s6 + $0x4d8] sm:$0xff]
    %v2999 = vld [vmem:[%s6 + $0x4e0] sm:$0xff]
    %v3000 = vld [vmem:[%s6 + $0x4e8] sm:$0xff]
    %v3001 = vld [vmem:[%s6 + $0x4f0] sm:$0xff]
    %v3002 = vld [vmem:[%s6 + $0x4f8] sm:$0xff]
    %v3003 = vld [vmem:[%s6 + $0x500] sm:$0xff]
    %v3004 = vld [vmem:[%s6 + $0x508] sm:$0xff]
    %v3005 = vld [vmem:[%s6 + $0x510] sm:$0xff]
    %v3006 = vld [vmem:[%s6 + $0x518] sm:$0xff]
    %v3007 = vld [vmem:[%s6 + $0x520] sm:$0xff]
    %v3008 = vld [vmem:[%s6 + $0x528] sm:$0xff]
    %v3009 = vld [vmem:[%s6 + $0x530] sm:$0xff]
    %v3010 = vld [vmem:[%s6 + $0x538] sm:$0xff]
    %v3011 = vld [vmem:[%s6 + $0x540] sm:$0xff]
    %v3012 = vld [vmem:[%s6 + $0x548] sm:$0xff]
    %v3013 = vld [vmem:[%s6 + $0x550] sm:$0xff]
    %v3014 = vld [vmem:[%s6 + $0x558] sm:$0xff]
    %v3015 = vld [vmem:[%s6 + $0x560] sm:$0xff]
    %v3016 = vld [vmem:[%s6 + $0x568] sm:$0xff]
    %v3017 = vld [vmem:[%s6 + $0x570] sm:$0xff]
    %v3018 = vld [vmem:[%s6 + $0x578] sm:$0xff]
    %v3019 = vld [vmem:[%s6 + $0x580] sm:$0xff]
    %v3020 = vld [vmem:[%s6 + $0x588] sm:$0xff]
    %v3021 = vld [vmem:[%s6 + $0x590] sm:$0xff]
    %v3022 = vld [vmem:[%s6 + $0x598] sm:$0xff]
    %v3023 = vld [vmem:[%s6 + $0x5a0] sm:$0xff]
    %v3024 = vld [vmem:[%s6 + $0x5a8] sm:$0xff]
    %v3025 = vld [vmem:[%s6 + $0x5b0] sm:$0xff]
    %v3026 = vld [vmem:[%s6 + $0x5b8] sm:$0xff]
    %v3027 = vld [vmem:[%s6 + $0x5c0] sm:$0xff]
    %v3028 = vld [vmem:[%s6 + $0x5c8] sm:$0xff]
    %v3029 = vld [vmem:[%s6 + $0x5d0] sm:$0xff]
    %v3030 = vld [vmem:[%s6 + $0x5d8] sm:$0xff]
    %v3031 = vld [vmem:[%s6 + $0x5e0] sm:$0xff]
    %v3032 = vld [vmem:[%s6 + $0x5e8] sm:$0xff]
    %v3033 = vld [vmem:[%s6 + $0x5f0] sm:$0xff]
    %v3034 = vld [vmem:[%s6 + $0x5f8] sm:$0xff]
    %v3035 = vld [vmem:[%s6 + $0x600] sm:$0xff]
    %v3036 = vld [vmem:[%s6 + $0x608] sm:$0xff]
    %v3037 = vld [vmem:[%s6 + $0x610] sm:$0xff]
    %v3038 = vld [vmem:[%s6 + $0x618] sm:$0xff]
    %v3039 = vld [vmem:[%s6 + $0x620] sm:$0xff]
    %v3040 = vld [vmem:[%s6 + $0x628] sm:$0xff]
    %v3041 = vld [vmem:[%s6 + $0x630] sm:$0xff]
    %v3042 = vld [vmem:[%s6 + $0x638] sm:$0xff]
    %v3043 = vld [vmem:[%s6 + $0x640] sm:$0xff]
    %v3044 = vld [vmem:[%s6 + $0x648] sm:$0xff]
    %v3045 = vld [vmem:[%s6 + $0x650] sm:$0xff]
    %v3046 = vld [vmem:[%s6 + $0x658] sm:$0xff]
    %v3047 = vld [vmem:[%s6 + $0x660] sm:$0xff]
    %v3048 = vld [vmem:[%s6 + $0x668] sm:$0xff]
    %v3049 = vld [vmem:[%s6 + $0x670] sm:$0xff]
    %v3050 = vld [vmem:[%s6 + $0x678] sm:$0xff]
    %v3051 = vld [vmem:[%s6 + $0x680] sm:$0xff]
    %v3052 = vld [vmem:[%s6 + $0x688] sm:$0xff]
    %v3053 = vld [vmem:[%s6 + $0x690] sm:$0xff]
    %v3054 = vld [vmem:[%s6 + $0x698] sm:$0xff]
    %v3055 = vld [vmem:[%s6 + $0x6a0] sm:$0xff]
    %v3056 = vld [vmem:[%s6 + $0x6a8] sm:$0xff]
    %v3057 = vld [vmem:[%s6 + $0x6b0] sm:$0xff]
    %v3058 = vld [vmem:[%s6 + $0x6b8] sm:$0xff]
    %v3059 = vld [vmem:[%s6 + $0x6c0] sm:$0xff]
    %v3060 = vld [vmem:[%s6 + $0x6c8] sm:$0xff]
    %v3061 = vld [vmem:[%s6 + $0x6d0] sm:$0xff]
    %v3062 = vld [vmem:[%s6 + $0x6d8] sm:$0xff]
    %v3063 = vld [vmem:[%s6 + $0x6e0] sm:$0xff]
    %v3064 = vld [vmem:[%s6 + $0x6e8] sm:$0xff]
    %v3065 = vld [vmem:[%s6 + $0x6f0] sm:$0xff]
    %v3066 = vld [vmem:[%s6 + $0x6f8] sm:$0xff]
    %v3067 = vld [vmem:[%s6 + $0x700] sm:$0xff]
    %v3068 = vld [vmem:[%s6 + $0x708] sm:$0xff]
    %v3069 = vld [vmem:[%s6 + $0x710] sm:$0xff]
    %v3070 = vld [vmem:[%s6 + $0x718] sm:$0xff]
    %v3071 = vld [vmem:[%s6 + $0x720] sm:$0xff]
    %v3072 = vld [vmem:[%s6 + $0x728] sm:$0xff]
    %v3073 = vld [vmem:[%s6 + $0x730] sm:$0xff]
    %v3074 = vld [vmem:[%s6 + $0x738] sm:$0xff]
    %v3075 = vld [vmem:[%s6 + $0x740] sm:$0xff]
    %v3076 = vld [vmem:[%s6 + $0x748] sm:$0xff]
    %v3077 = vld [vmem:[%s6 + $0x750] sm:$0xff]
    %v3078 = vld [vmem:[%s6 + $0x758] sm:$0xff]
    %v3079 = vld [vmem:[%s6 + $0x760] sm:$0xff]
    %v3080 = vld [vmem:[%s6 + $0x768] sm:$0xff]
    %v3081 = vld [vmem:[%s6 + $0x770] sm:$0xff]
    %v3082 = vld [vmem:[%s6 + $0x778] sm:$0xff]
    %v3083 = vld [vmem:[%s6 + $0x780] sm:$0xff]
    %v3084 = vld [vmem:[%s6 + $0x788] sm:$0xff]
    %v3085 = vld [vmem:[%s6 + $0x790] sm:$0xff]
    %v3086 = vld [vmem:[%s6 + $0x798] sm:$0xff]
    %v3087 = vld [vmem:[%s6 + $0x7a0] sm:$0xff]
    %v3088 = vld [vmem:[%s6 + $0x7a8] sm:$0xff]
    %v3089 = vld [vmem:[%s6 + $0x7b0] sm:$0xff]
    %v3090 = vld [vmem:[%s6 + $0x7b8] sm:$0xff]
    %v3091 = vld [vmem:[%s6 + $0x7c0] sm:$0xff]
    %v3092 = vld [vmem:[%s6 + $0x7c8] sm:$0xff]
    %v3093 = vld [vmem:[%s6 + $0x7d0] sm:$0xff]
    %v3094 = vld [vmem:[%s6 + $0x7d8] sm:$0xff]
    %v3095 = vld [vmem:[%s6 + $0x7e0] sm:$0xff]
    %v3096 = vld [vmem:[%s6 + $0x7e8] sm:$0xff]
    %v3097 = vld [vmem:[%s6 + $0x7f0] sm:$0xff]
    %v3098 = vld [vmem:[%s6 + $0x7f8] sm:$0xff]
    %3099 = vmatprep.subr.mxu0 0.0
    %3100 = vmatpush1.msra.mxu0 %v2843
    %3101 = vmatprep.subr.mxu0 0.0
    %3102 = vmatpush1.msra.mxu0 %v2844
    %3103 = vmatprep.subr.mxu0 0.0
    %3104 = vmatpush1.msra.mxu0 %v2845
    %3105 = vmatprep.subr.mxu0 0.0
    %3106 = vmatpush1.msra.mxu0 %v2846
    %3107 = vmatprep.subr.mxu0 0.0
    %3108 = vmatpush1.msra.mxu0 %v2847
    %3109 = vmatprep.subr.mxu0 0.0
    %3110 = vmatpush1.msra.mxu0 %v2848
    %3111 = vmatprep.subr.mxu0 0.0
    %3112 = vmatpush1.msra.mxu0 %v2849
    %3113 = vmatprep.subr.mxu0 0.0
    %3114 = vmatpush1.msra.mxu0 %v2850
    %3115 = vmatprep.subr.mxu0 0.0
    %3116 = vmatpush1.msra.mxu0 %v2851
    %3117 = vmatprep.subr.mxu0 0.0
    %3118 = vmatpush1.msra.mxu0 %v2852
    %3119 = vmatprep.subr.mxu0 0.0
    %3120 = vmatpush1.msra.mxu0 %v2853
    %3121 = vmatprep.subr.mxu0 0.0
    %3122 = vmatpush1.msra.mxu0 %v2854
    %3123 = vmatprep.subr.mxu0 0.0
    %3124 = vmatpush1.msra.mxu0 %v2855
    %3125 = vmatprep.subr.mxu0 0.0
    %3126 = vmatpush1.msra.mxu0 %v2856
    %3127 = vmatprep.subr.mxu0 0.0
    %3128 = vmatpush1.msra.mxu0 %v2857
    %3129 = vmatprep.subr.mxu0 0.0
    %3130 = vmatpush1.msra.mxu0 %v2858
    %3131 = vmatprep.subr.mxu0 0.0
    %3132 = vmatpush1.msra.mxu0 %v2859
    %3133 = vmatprep.subr.mxu0 0.0
    %3134 = vmatpush1.msra.mxu0 %v2860
    %3135 = vmatprep.subr.mxu0 0.0
    %3136 = vmatpush1.msra.mxu0 %v2861
    %3137 = vmatprep.subr.mxu0 0.0
    %3138 = vmatpush1.msra.mxu0 %v2862
    %3139 = vmatprep.subr.mxu0 0.0
    %3140 = vmatpush1.msra.mxu0 %v2863
    %3141 = vmatprep.subr.mxu0 0.0
    %3142 = vmatpush1.msra.mxu0 %v2864
    %3143 = vmatprep.subr.mxu0 0.0
    %3144 = vmatpush1.msra.mxu0 %v2865
    %3145 = vmatprep.subr.mxu0 0.0
    %3146 = vmatpush1.msra.mxu0 %v2866
    %3147 = vmatprep.subr.mxu0 0.0
    %3148 = vmatpush1.msra.mxu0 %v2867
    %3149 = vmatprep.subr.mxu0 0.0
    %3150 = vmatpush1.msra.mxu0 %v2868
    %3151 = vmatprep.subr.mxu0 0.0
    %3152 = vmatpush1.msra.mxu0 %v2869
    %3153 = vmatprep.subr.mxu0 0.0
    %3154 = vmatpush1.msra.mxu0 %v2870
    %3155 = vmatprep.subr.mxu0 0.0
    %3156 = vmatpush1.msra.mxu0 %v2871
    %3157 = vmatprep.subr.mxu0 0.0
    %3158 = vmatpush1.msra.mxu0 %v2872
    %3159 = vmatprep.subr.mxu0 0.0
    %3160 = vmatpush1.msra.mxu0 %v2873
    %3161 = vmatprep.subr.mxu0 0.0
    %3162 = vmatpush1.msra.mxu0 %v2874
    %3163 = vmatprep.mubr.f32.mxu0 %v2828
    %3164 = vmatmul.mubr.f32.gmra.mrb[0].mxu0 %v2827
    %v3165 = vpop.f32.mrb[0].mxu0
    %v3166 = vadd.f32 0.0, %v3165
    %v3167 = vpop.f32.mrb[0].mxu0
    %3168 = vdwg.mxu0
    %3169 = vmatprep.subr.mxu0 0.0
    %3170 = vmatpush1.msra.mxu0 %v2875
    %3171 = vmatprep.subr.mxu0 0.0
    %3172 = vmatpush1.msra.mxu0 %v2876
    %3173 = vmatprep.subr.mxu0 0.0
    %3174 = vmatpush1.msra.mxu0 %v2877
    %3175 = vmatprep.subr.mxu0 0.0
    %3176 = vmatpush1.msra.mxu0 %v2878
    %3177 = vmatprep.subr.mxu0 0.0
    %3178 = vmatpush1.msra.mxu0 %v2879
    %3179 = vmatprep.subr.mxu0 0.0
    %3180 = vmatpush1.msra.mxu0 %v2880
    %3181 = vmatprep.subr.mxu0 0.0
    %3182 = vmatpush1.msra.mxu0 %v2881
    %3183 = vmatprep.subr.mxu0 0.0
    %3184 = vmatpush1.msra.mxu0 %v2882
    %3185 = vmatprep.subr.mxu0 0.0
    %3186 = vmatpush1.msra.mxu0 %v2883
    %3187 = vmatprep.subr.mxu0 0.0
    %3188 = vmatpush1.msra.mxu0 %v2884
    %3189 = vmatprep.subr.mxu0 0.0
    %3190 = vmatpush1.msra.mxu0 %v2885
    %3191 = vmatprep.subr.mxu0 0.0
    %3192 = vmatpush1.msra.mxu0 %v2886
    %3193 = vmatprep.subr.mxu0 0.0
    %3194 = vmatpush1.msra.mxu0 %v2887
    %3195 = vmatprep.subr.mxu0 0.0
    %3196 = vmatpush1.msra.mxu0 %v2888
    %3197 = vmatprep.subr.mxu0 0.0
    %3198 = vmatpush1.msra.mxu0 %v2889
    %3199 = vmatprep.subr.mxu0 0.0
    %3200 = vmatpush1.msra.mxu0 %v2890
    %3201 = vmatprep.subr.mxu0 0.0
    %3202 = vmatpush1.msra.mxu0 %v2891
    %3203 = vmatprep.subr.mxu0 0.0
    %3204 = vmatpush1.msra.mxu0 %v2892
    %3205 = vmatprep.subr.mxu0 0.0
    %3206 = vmatpush1.msra.mxu0 %v2893
    %3207 = vmatprep.subr.mxu0 0.0
    %3208 = vmatpush1.msra.mxu0 %v2894
    %3209 = vmatprep.subr.mxu0 0.0
    %3210 = vmatpush1.msra.mxu0 %v2895
    %3211 = vmatprep.subr.mxu0 0.0
    %3212 = vmatpush1.msra.mxu0 %v2896
    %3213 = vmatprep.subr.mxu0 0.0
    %3214 = vmatpush1.msra.mxu0 %v2897
    %3215 = vmatprep.subr.mxu0 0.0
    %3216 = vmatpush1.msra.mxu0 %v2898
    %3217 = vmatprep.subr.mxu0 0.0
    %3218 = vmatpush1.msra.mxu0 %v2899
    %3219 = vmatprep.subr.mxu0 0.0
    %3220 = vmatpush1.msra.mxu0 %v2900
    %3221 = vmatprep.subr.mxu0 0.0
    %3222 = vmatpush1.msra.mxu0 %v2901
    %3223 = vmatprep.subr.mxu0 0.0
    %3224 = vmatpush1.msra.mxu0 %v2902
    %3225 = vmatprep.subr.mxu0 0.0
    %3226 = vmatpush1.msra.mxu0 %v2903
    %3227 = vmatprep.subr.mxu0 0.0
    %3228 = vmatpush1.msra.mxu0 %v2904
    %3229 = vmatprep.subr.mxu0 0.0
    %3230 = vmatpush1.msra.mxu0 %v2905
    %3231 = vmatprep.subr.mxu0 0.0
    %3232 = vmatpush1.msra.mxu0 %v2906
    %3233 = vmatprep.mubr.f32.mxu0 %v2830
    %3234 = vmatmul.mubr.f32.gmra.mrb[0].mxu0 %v2829
    %v3235 = vpop.f32.mrb[0].mxu0
    %v3236 = vadd.f32 %v3166, %v3235
    %v3237 = vpop.f32.mrb[0].mxu0
    %3238 = vdwg.mxu0
    %3239 = vmatprep.subr.mxu0 0.0
    %3240 = vmatpush1.msra.mxu0 %v2907
    %3241 = vmatprep.subr.mxu0 0.0
    %3242 = vmatpush1.msra.mxu0 %v2908
    %3243 = vmatprep.subr.mxu0 0.0
    %3244 = vmatpush1.msra.mxu0 %v2909
    %3245 = vmatprep.subr.mxu0 0.0
    %3246 = vmatpush1.msra.mxu0 %v2910
    %3247 = vmatprep.subr.mxu0 0.0
    %3248 = vmatpush1.msra.mxu0 %v2911
    %3249 = vmatprep.subr.mxu0 0.0
    %3250 = vmatpush1.msra.mxu0 %v2912
    %3251 = vmatprep.subr.mxu0 0.0
    %3252 = vmatpush1.msra.mxu0 %v2913
    %3253 = vmatprep.subr.mxu0 0.0
    %3254 = vmatpush1.msra.mxu0 %v2914
    %3255 = vmatprep.subr.mxu0 0.0
    %3256 = vmatpush1.msra.mxu0 %v2915
    %3257 = vmatprep.subr.mxu0 0.0
    %3258 = vmatpush1.msra.mxu0 %v2916
    %3259 = vmatprep.subr.mxu0 0.0
    %3260 = vmatpush1.msra.mxu0 %v2917
    %3261 = vmatprep.subr.mxu0 0.0
    %3262 = vmatpush1.msra.mxu0 %v2918
    %3263 = vmatprep.subr.mxu0 0.0
    %3264 = vmatpush1.msra.mxu0 %v2919
    %3265 = vmatprep.subr.mxu0 0.0
    %3266 = vmatpush1.msra.mxu0 %v2920
    %3267 = vmatprep.subr.mxu0 0.0
    %3268 = vmatpush1.msra.mxu0 %v2921
    %3269 = vmatprep.subr.mxu0 0.0
    %3270 = vmatpush1.msra.mxu0 %v2922
    %3271 = vmatprep.subr.mxu0 0.0
    %3272 = vmatpush1.msra.mxu0 %v2923
    %3273 = vmatprep.subr.mxu0 0.0
    %3274 = vmatpush1.msra.mxu0 %v2924
    %3275 = vmatprep.subr.mxu0 0.0
    %3276 = vmatpush1.msra.mxu0 %v2925
    %3277 = vmatprep.subr.mxu0 0.0
    %3278 = vmatpush1.msra.mxu0 %v2926
    %3279 = vmatprep.subr.mxu0 0.0
    %3280 = vmatpush1.msra.mxu0 %v2927
    %3281 = vmatprep.subr.mxu0 0.0
    %3282 = vmatpush1.msra.mxu0 %v2928
    %3283 = vmatprep.subr.mxu0 0.0
    %3284 = vmatpush1.msra.mxu0 %v2929
    %3285 = vmatprep.subr.mxu0 0.0
    %3286 = vmatpush1.msra.mxu0 %v2930
    %3287 = vmatprep.subr.mxu0 0.0
    %3288 = vmatpush1.msra.mxu0 %v2931
    %3289 = vmatprep.subr.mxu0 0.0
    %3290 = vmatpush1.msra.mxu0 %v2932
    %3291 = vmatprep.subr.mxu0 0.0
    %3292 = vmatpush1.msra.mxu0 %v2933
    %3293 = vmatprep.subr.mxu0 0.0
    %3294 = vmatpush1.msra.mxu0 %v2934
    %3295 = vmatprep.subr.mxu0 0.0
    %3296 = vmatpush1.msra.mxu0 %v2935
    %3297 = vmatprep.subr.mxu0 0.0
    %3298 = vmatpush1.msra.mxu0 %v2936
    %3299 = vmatprep.subr.mxu0 0.0
    %3300 = vmatpush1.msra.mxu0 %v2937
    %3301 = vmatprep.subr.mxu0 0.0
    %3302 = vmatpush1.msra.mxu0 %v2938
    %3303 = vmatprep.mubr.f32.mxu0 %v2832
    %3304 = vmatmul.mubr.f32.gmra.mrb[0].mxu0 %v2831
    %v3305 = vpop.f32.mrb[0].mxu0
    %v3306 = vadd.f32 %v3236, %v3305
    %v3307 = vpop.f32.mrb[0].mxu0
    %3308 = vdwg.mxu0
    %3309 = vmatprep.subr.mxu0 0.0
    %3310 = vmatpush1.msra.mxu0 %v2939
    %3311 = vmatprep.subr.mxu0 0.0
    %3312 = vmatpush1.msra.mxu0 %v2940
    %3313 = vmatprep.subr.mxu0 0.0
    %3314 = vmatpush1.msra.mxu0 %v2941
    %3315 = vmatprep.subr.mxu0 0.0
    %3316 = vmatpush1.msra.mxu0 %v2942
    %3317 = vmatprep.subr.mxu0 0.0
    %3318 = vmatpush1.msra.mxu0 %v2943
    %3319 = vmatprep.subr.mxu0 0.0
    %3320 = vmatpush1.msra.mxu0 %v2944
    %3321 = vmatprep.subr.mxu0 0.0
    %3322 = vmatpush1.msra.mxu0 %v2945
    %3323 = vmatprep.subr.mxu0 0.0
    %3324 = vmatpush1.msra.mxu0 %v2946
    %3325 = vmatprep.subr.mxu0 0.0
    %3326 = vmatpush1.msra.mxu0 %v2947
    %3327 = vmatprep.subr.mxu0 0.0
    %3328 = vmatpush1.msra.mxu0 %v2948
    %3329 = vmatprep.subr.mxu0 0.0
    %3330 = vmatpush1.msra.mxu0 %v2949
    %3331 = vmatprep.subr.mxu0 0.0
    %3332 = vmatpush1.msra.mxu0 %v2950
    %3333 = vmatprep.subr.mxu0 0.0
    %3334 = vmatpush1.msra.mxu0 %v2951
    %3335 = vmatprep.subr.mxu0 0.0
    %3336 = vmatpush1.msra.mxu0 %v2952
    %3337 = vmatprep.subr.mxu0 0.0
    %3338 = vmatpush1.msra.mxu0 %v2953
    %3339 = vmatprep.subr.mxu0 0.0
    %3340 = vmatpush1.msra.mxu0 %v2954
    %3341 = vmatprep.subr.mxu0 0.0
    %3342 = vmatpush1.msra.mxu0 %v2955
    %3343 = vmatprep.subr.mxu0 0.0
    %3344 = vmatpush1.msra.mxu0 %v2956
    %3345 = vmatprep.subr.mxu0 0.0
    %3346 = vmatpush1.msra.mxu0 %v2957
    %3347 = vmatprep.subr.mxu0 0.0
    %3348 = vmatpush1.msra.mxu0 %v2958
    %3349 = vmatprep.subr.mxu0 0.0
    %3350 = vmatpush1.msra.mxu0 %v2959
    %3351 = vmatprep.subr.mxu0 0.0
    %3352 = vmatpush1.msra.mxu0 %v2960
    %3353 = vmatprep.subr.mxu0 0.0
    %3354 = vmatpush1.msra.mxu0 %v2961
    %3355 = vmatprep.subr.mxu0 0.0
    %3356 = vmatpush1.msra.mxu0 %v2962
    %3357 = vmatprep.subr.mxu0 0.0
    %3358 = vmatpush1.msra.mxu0 %v2963
    %3359 = vmatprep.subr.mxu0 0.0
    %3360 = vmatpush1.msra.mxu0 %v2964
    %3361 = vmatprep.subr.mxu0 0.0
    %3362 = vmatpush1.msra.mxu0 %v2965
    %3363 = vmatprep.subr.mxu0 0.0
    %3364 = vmatpush1.msra.mxu0 %v2966
    %3365 = vmatprep.subr.mxu0 0.0
    %3366 = vmatpush1.msra.mxu0 %v2967
    %3367 = vmatprep.subr.mxu0 0.0
    %3368 = vmatpush1.msra.mxu0 %v2968
    %3369 = vmatprep.subr.mxu0 0.0
    %3370 = vmatpush1.msra.mxu0 %v2969
    %3371 = vmatprep.subr.mxu0 0.0
    %3372 = vmatpush1.msra.mxu0 %v2970
    %3373 = vmatprep.mubr.f32.mxu0 %v2834
    %3374 = vmatmul.mubr.f32.gmra.mrb[0].mxu0 %v2833
    %v3375 = vpop.f32.mrb[0].mxu0
    %v3376 = vadd.f32 %v3306, %v3375
    %v3377 = vpop.f32.mrb[0].mxu0
    %3378 = vdwg.mxu0
    %3379 = vmatprep.subr.mxu0 0.0
    %3380 = vmatpush1.msra.mxu0 %v2971
    %3381 = vmatprep.subr.mxu0 0.0
    %3382 = vmatpush1.msra.mxu0 %v2972
    %3383 = vmatprep.subr.mxu0 0.0
    %3384 = vmatpush1.msra.mxu0 %v2973
    %3385 = vmatprep.subr.mxu0 0.0
    %3386 = vmatpush1.msra.mxu0 %v2974
    %3387 = vmatprep.subr.mxu0 0.0
    %3388 = vmatpush1.msra.mxu0 %v2975
    %3389 = vmatprep.subr.mxu0 0.0
    %3390 = vmatpush1.msra.mxu0 %v2976
    %3391 = vmatprep.subr.mxu0 0.0
    %3392 = vmatpush1.msra.mxu0 %v2977
    %3393 = vmatprep.subr.mxu0 0.0
    %3394 = vmatpush1.msra.mxu0 %v2978
    %3395 = vmatprep.subr.mxu0 0.0
    %3396 = vmatpush1.msra.mxu0 %v2979
    %3397 = vmatprep.subr.mxu0 0.0
    %3398 = vmatpush1.msra.mxu0 %v2980
    %3399 = vmatprep.subr.mxu0 0.0
    %3400 = vmatpush1.msra.mxu0 %v2981
    %3401 = vmatprep.subr.mxu0 0.0
    %3402 = vmatpush1.msra.mxu0 %v2982
    %3403 = vmatprep.subr.mxu0 0.0
    %3404 = vmatpush1.msra.mxu0 %v2983
    %3405 = vmatprep.subr.mxu0 0.0
    %3406 = vmatpush1.msra.mxu0 %v2984
    %3407 = vmatprep.subr.mxu0 0.0
    %3408 = vmatpush1.msra.mxu0 %v2985
    %3409 = vmatprep.subr.mxu0 0.0
    %3410 = vmatpush1.msra.mxu0 %v2986
    %3411 = vmatprep.subr.mxu0 0.0
    %3412 = vmatpush1.msra.mxu0 %v2987
    %3413 = vmatprep.subr.mxu0 0.0
    %3414 = vmatpush1.msra.mxu0 %v2988
    %3415 = vmatprep.subr.mxu0 0.0
    %3416 = vmatpush1.msra.mxu0 %v2989
    %3417 = vmatprep.subr.mxu0 0.0
    %3418 = vmatpush1.msra.mxu0 %v2990
    %3419 = vmatprep.subr.mxu0 0.0
    %3420 = vmatpush1.msra.mxu0 %v2991
    %3421 = vmatprep.subr.mxu0 0.0
    %3422 = vmatpush1.msra.mxu0 %v2992
    %3423 = vmatprep.subr.mxu0 0.0
    %3424 = vmatpush1.msra.mxu0 %v2993
    %3425 = vmatprep.subr.mxu0 0.0
    %3426 = vmatpush1.msra.mxu0 %v2994
    %3427 = vmatprep.subr.mxu0 0.0
    %3428 = vmatpush1.msra.mxu0 %v2995
    %3429 = vmatprep.subr.mxu0 0.0
    %3430 = vmatpush1.msra.mxu0 %v2996
    %3431 = vmatprep.subr.mxu0 0.0
    %3432 = vmatpush1.msra.mxu0 %v2997
    %3433 = vmatprep.subr.mxu0 0.0
    %3434 = vmatpush1.msra.mxu0 %v2998
    %3435 = vmatprep.subr.mxu0 0.0
    %3436 = vmatpush1.msra.mxu0 %v2999
    %3437 = vmatprep.subr.mxu0 0.0
    %3438 = vmatpush1.msra.mxu0 %v3000
    %3439 = vmatprep.subr.mxu0 0.0
    %3440 = vmatpush1.msra.mxu0 %v3001
    %3441 = vmatprep.subr.mxu0 0.0
    %3442 = vmatpush1.msra.mxu0 %v3002
    %3443 = vmatprep.mubr.f32.mxu0 %v2836
    %3444 = vmatmul.mubr.f32.gmra.mrb[0].mxu0 %v2835
    %v3445 = vpop.f32.mrb[0].mxu0
    %v3446 = vadd.f32 %v3376, %v3445
    %v3447 = vpop.f32.mrb[0].mxu0
    %3448 = vdwg.mxu0
    %3449 = vmatprep.subr.mxu0 0.0
    %3450 = vmatpush1.msra.mxu0 %v3003
    %3451 = vmatprep.subr.mxu0 0.0
    %3452 = vmatpush1.msra.mxu0 %v3004
    %3453 = vmatprep.subr.mxu0 0.0
    %3454 = vmatpush1.msra.mxu0 %v3005
    %3455 = vmatprep.subr.mxu0 0.0
    %3456 = vmatpush1.msra.mxu0 %v3006
    %3457 = vmatprep.subr.mxu0 0.0
    %3458 = vmatpush1.msra.mxu0 %v3007
    %3459 = vmatprep.subr.mxu0 0.0
    %3460 = vmatpush1.msra.mxu0 %v3008
    %3461 = vmatprep.subr.mxu0 0.0
    %3462 = vmatpush1.msra.mxu0 %v3009
    %3463 = vmatprep.subr.mxu0 0.0
    %3464 = vmatpush1.msra.mxu0 %v3010
    %3465 = vmatprep.subr.mxu0 0.0
    %3466 = vmatpush1.msra.mxu0 %v3011
    %3467 = vmatprep.subr.mxu0 0.0
    %3468 = vmatpush1.msra.mxu0 %v3012
    %3469 = vmatprep.subr.mxu0 0.0
    %3470 = vmatpush1.msra.mxu0 %v3013
    %3471 = vmatprep.subr.mxu0 0.0
    %3472 = vmatpush1.msra.mxu0 %v3014
    %3473 = vmatprep.subr.mxu0 0.0
    %3474 = vmatpush1.msra.mxu0 %v3015
    %3475 = vmatprep.subr.mxu0 0.0
    %3476 = vmatpush1.msra.mxu0 %v3016
    %3477 = vmatprep.subr.mxu0 0.0
    %3478 = vmatpush1.msra.mxu0 %v3017
    %3479 = vmatprep.subr.mxu0 0.0
    %3480 = vmatpush1.msra.mxu0 %v3018
    %3481 = vmatprep.subr.mxu0 0.0
    %3482 = vmatpush1.msra.mxu0 %v3019
    %3483 = vmatprep.subr.mxu0 0.0
    %3484 = vmatpush1.msra.mxu0 %v3020
    %3485 = vmatprep.subr.mxu0 0.0
    %3486 = vmatpush1.msra.mxu0 %v3021
    %3487 = vmatprep.subr.mxu0 0.0
    %3488 = vmatpush1.msra.mxu0 %v3022
    %3489 = vmatprep.subr.mxu0 0.0
    %3490 = vmatpush1.msra.mxu0 %v3023
    %3491 = vmatprep.subr.mxu0 0.0
    %3492 = vmatpush1.msra.mxu0 %v3024
    %3493 = vmatprep.subr.mxu0 0.0
    %3494 = vmatpush1.msra.mxu0 %v3025
    %3495 = vmatprep.subr.mxu0 0.0
    %3496 = vmatpush1.msra.mxu0 %v3026
    %3497 = vmatprep.subr.mxu0 0.0
    %3498 = vmatpush1.msra.mxu0 %v3027
    %3499 = vmatprep.subr.mxu0 0.0
    %3500 = vmatpush1.msra.mxu0 %v3028
    %3501 = vmatprep.subr.mxu0 0.0
    %3502 = vmatpush1.msra.mxu0 %v3029
    %3503 = vmatprep.subr.mxu0 0.0
    %3504 = vmatpush1.msra.mxu0 %v3030
    %3505 = vmatprep.subr.mxu0 0.0
    %3506 = vmatpush1.msra.mxu0 %v3031
    %3507 = vmatprep.subr.mxu0 0.0
    %3508 = vmatpush1.msra.mxu0 %v3032
    %3509 = vmatprep.subr.mxu0 0.0
    %3510 = vmatpush1.msra.mxu0 %v3033
    %3511 = vmatprep.subr.mxu0 0.0
    %3512 = vmatpush1.msra.mxu0 %v3034
    %3513 = vmatprep.mubr.f32.mxu0 %v2838
    %3514 = vmatmul.mubr.f32.gmra.mrb[0].mxu0 %v2837
    %v3515 = vpop.f32.mrb[0].mxu0
    %v3516 = vadd.f32 %v3446, %v3515
    %v3517 = vpop.f32.mrb[0].mxu0
    %3518 = vdwg.mxu0
    %3519 = vmatprep.subr.mxu0 0.0
    %3520 = vmatpush1.msra.mxu0 %v3035
    %3521 = vmatprep.subr.mxu0 0.0
    %3522 = vmatpush1.msra.mxu0 %v3036
    %3523 = vmatprep.subr.mxu0 0.0
    %3524 = vmatpush1.msra.mxu0 %v3037
    %3525 = vmatprep.subr.mxu0 0.0
    %3526 = vmatpush1.msra.mxu0 %v3038
    %3527 = vmatprep.subr.mxu0 0.0
    %3528 = vmatpush1.msra.mxu0 %v3039
    %3529 = vmatprep.subr.mxu0 0.0
    %3530 = vmatpush1.msra.mxu0 %v3040
    %3531 = vmatprep.subr.mxu0 0.0
    %3532 = vmatpush1.msra.mxu0 %v3041
    %3533 = vmatprep.subr.mxu0 0.0
    %3534 = vmatpush1.msra.mxu0 %v3042
    %3535 = vmatprep.subr.mxu0 0.0
    %3536 = vmatpush1.msra.mxu0 %v3043
    %3537 = vmatprep.subr.mxu0 0.0
    %3538 = vmatpush1.msra.mxu0 %v3044
    %3539 = vmatprep.subr.mxu0 0.0
    %3540 = vmatpush1.msra.mxu0 %v3045
    %3541 = vmatprep.subr.mxu0 0.0
    %3542 = vmatpush1.msra.mxu0 %v3046
    %3543 = vmatprep.subr.mxu0 0.0
    %3544 = vmatpush1.msra.mxu0 %v3047
    %3545 = vmatprep.subr.mxu0 0.0
    %3546 = vmatpush1.msra.mxu0 %v3048
    %3547 = vmatprep.subr.mxu0 0.0
    %3548 = vmatpush1.msra.mxu0 %v3049
    %3549 = vmatprep.subr.mxu0 0.0
    %3550 = vmatpush1.msra.mxu0 %v3050
    %3551 = vmatprep.subr.mxu0 0.0
    %3552 = vmatpush1.msra.mxu0 %v3051
    %3553 = vmatprep.subr.mxu0 0.0
    %3554 = vmatpush1.msra.mxu0 %v3052
    %3555 = vmatprep.subr.mxu0 0.0
    %3556 = vmatpush1.msra.mxu0 %v3053
    %3557 = vmatprep.subr.mxu0 0.0
    %3558 = vmatpush1.msra.mxu0 %v3054
    %3559 = vmatprep.subr.mxu0 0.0
    %3560 = vmatpush1.msra.mxu0 %v3055
    %3561 = vmatprep.subr.mxu0 0.0
    %3562 = vmatpush1.msra.mxu0 %v3056
    %3563 = vmatprep.subr.mxu0 0.0
    %3564 = vmatpush1.msra.mxu0 %v3057
    %3565 = vmatprep.subr.mxu0 0.0
    %3566 = vmatpush1.msra.mxu0 %v3058
    %3567 = vmatprep.subr.mxu0 0.0
    %3568 = vmatpush1.msra.mxu0 %v3059
    %3569 = vmatprep.subr.mxu0 0.0
    %3570 = vmatpush1.msra.mxu0 %v3060
    %3571 = vmatprep.subr.mxu0 0.0
    %3572 = vmatpush1.msra.mxu0 %v3061
    %3573 = vmatprep.subr.mxu0 0.0
    %3574 = vmatpush1.msra.mxu0 %v3062
    %3575 = vmatprep.subr.mxu0 0.0
    %3576 = vmatpush1.msra.mxu0 %v3063
    %3577 = vmatprep.subr.mxu0 0.0
    %3578 = vmatpush1.msra.mxu0 %v3064
    %3579 = vmatprep.subr.mxu0 0.0
    %3580 = vmatpush1.msra.mxu0 %v3065
    %3581 = vmatprep.subr.mxu0 0.0
    %3582 = vmatpush1.msra.mxu0 %v3066
    %3583 = vmatprep.mubr.f32.mxu0 %v2840
    %3584 = vmatmul.mubr.f32.gmra.mrb[0].mxu0 %v2839
    %v3585 = vpop.f32.mrb[0].mxu0
    %v3586 = vadd.f32 %v3516, %v3585
    %v3587 = vpop.f32.mrb[0].mxu0
    %3588 = vdwg.mxu0
    %3589 = vmatprep.subr.mxu0 0.0
    %3590 = vmatpush1.msra.mxu0 %v3067
    %3591 = vmatprep.subr.mxu0 0.0
    %3592 = vmatpush1.msra.mxu0 %v3068
    %3593 = vmatprep.subr.mxu0 0.0
    %3594 = vmatpush1.msra.mxu0 %v3069
    %3595 = vmatprep.subr.mxu0 0.0
    %3596 = vmatpush1.msra.mxu0 %v3070
    %3597 = vmatprep.subr.mxu0 0.0
    %3598 = vmatpush1.msra.mxu0 %v3071
    %3599 = vmatprep.subr.mxu0 0.0
    %3600 = vmatpush1.msra.mxu0 %v3072
    %3601 = vmatprep.subr.mxu0 0.0
    %3602 = vmatpush1.msra.mxu0 %v3073
    %3603 = vmatprep.subr.mxu0 0.0
    %3604 = vmatpush1.msra.mxu0 %v3074
    %3605 = vmatprep.subr.mxu0 0.0
    %3606 = vmatpush1.msra.mxu0 %v3075
    %3607 = vmatprep.subr.mxu0 0.0
    %3608 = vmatpush1.msra.mxu0 %v3076
    %3609 = vmatprep.subr.mxu0 0.0
    %3610 = vmatpush1.msra.mxu0 %v3077
    %3611 = vmatprep.subr.mxu0 0.0
    %3612 = vmatpush1.msra.mxu0 %v3078
    %3613 = vmatprep.subr.mxu0 0.0
    %3614 = vmatpush1.msra.mxu0 %v3079
    %3615 = vmatprep.subr.mxu0 0.0
    %3616 = vmatpush1.msra.mxu0 %v3080
    %3617 = vmatprep.subr.mxu0 0.0
    %3618 = vmatpush1.msra.mxu0 %v3081
    %3619 = vmatprep.subr.mxu0 0.0
    %3620 = vmatpush1.msra.mxu0 %v3082
    %3621 = vmatprep.subr.mxu0 0.0
    %3622 = vmatpush1.msra.mxu0 %v3083
    %3623 = vmatprep.subr.mxu0 0.0
    %3624 = vmatpush1.msra.mxu0 %v3084
    %3625 = vmatprep.subr.mxu0 0.0
    %3626 = vmatpush1.msra.mxu0 %v3085
    %3627 = vmatprep.subr.mxu0 0.0
    %3628 = vmatpush1.msra.mxu0 %v3086
    %3629 = vmatprep.subr.mxu0 0.0
    %3630 = vmatpush1.msra.mxu0 %v3087
    %3631 = vmatprep.subr.mxu0 0.0
    %3632 = vmatpush1.msra.mxu0 %v3088
    %3633 = vmatprep.subr.mxu0 0.0
    %3634 = vmatpush1.msra.mxu0 %v3089
    %3635 = vmatprep.subr.mxu0 0.0
    %3636 = vmatpush1.msra.mxu0 %v3090
    %3637 = vmatprep.subr.mxu0 0.0
    %3638 = vmatpush1.msra.mxu0 %v3091
    %3639 = vmatprep.subr.mxu0 0.0
    %3640 = vmatpush1.msra.mxu0 %v3092
    %3641 = vmatprep.subr.mxu0 0.0
    %3642 = vmatpush1.msra.mxu0 %v3093
    %3643 = vmatprep.subr.mxu0 0.0
    %3644 = vmatpush1.msra.mxu0 %v3094
    %3645 = vmatprep.subr.mxu0 0.0
    %3646 = vmatpush1.msra.mxu0 %v3095
    %3647 = vmatprep.subr.mxu0 0.0
    %3648 = vmatpush1.msra.mxu0 %v3096
    %3649 = vmatprep.subr.mxu0 0.0
    %3650 = vmatpush1.msra.mxu0 %v3097
    %3651 = vmatprep.subr.mxu0 0.0
    %3652 = vmatpush1.msra.mxu0 %v3098
    %3653 = vmatprep.mubr.f32.mxu0 %v2842
    %3654 = vmatmul.mubr.f32.gmra.mrb[0].mxu0 %v2841
    %v3655 = vpop.f32.mrb[0].mxu0
    %v3656 = vadd.f32 %v3586, %v3655
    %v3657 = vpop.f32.mrb[0].mxu0
    %3658 = vdwg.mxu0
    %v3659 = vmul.f32 %v3656, 0.001953125
    %v3660 = vmul.f32 %v3659, %v3659
    %v3662 = vrot.slane %v3660, 7
    %v3664 = vsub.f32 %v3659, %v3662
    %v3665 = vld [vmem:[%s8] sm:$0x1]
    %v3666 = vadd.f32 %v3664, 1e-05
    %v3667 = vrsqrt.pop %v3666
    %v3669 = vrot.slane %v3667, 1
    %v3671 = vmul.f32 %v3665, %v3669
    %v3672 = vld [vmem:[%s8 + $0x1] sm:$0x1]
    %v3673 = vmul.f32 %v3659, %v3671
    %v3674 = vsub.f32 %v3672, %v3673
    %v3676 = vrot.slane %v3674, 7
    %v3678 = vsel %vm573, %v3671, %v3676
    %v3679 = vld [vmem:[%s7] sm:$0xff]
    %v3680 = vld [vmem:[%s7 + $0x8] sm:$0xff]
    %v3681 = vld [vmem:[%s7 + $0x10] sm:$0xff]
    %v3682 = vld [vmem:[%s7 + $0x18] sm:$0xff]
    %v3683 = vld [vmem:[%s7 + $0x20] sm:$0xff]
    %v3684 = vld [vmem:[%s7 + $0x28] sm:$0xff]
    %v3685 = vld [vmem:[%s7 + $0x30] sm:$0xff]
    %v3686 = vld [vmem:[%s7 + $0x38] sm:$0xff]
    %v3687 = vld [vmem:[%s7 + $0x40] sm:$0xff]
    %v3688 = vld [vmem:[%s7 + $0x48] sm:$0xff]
    %v3689 = vld [vmem:[%s7 + $0x50] sm:$0xff]
    %v3690 = vld [vmem:[%s7 + $0x58] sm:$0xff]
    %v3691 = vld [vmem:[%s7 + $0x60] sm:$0xff]
    %v3692 = vld [vmem:[%s7 + $0x68] sm:$0xff]
    %v3693 = vld [vmem:[%s7 + $0x70] sm:$0xff]
    %v3694 = vld [vmem:[%s7 + $0x78] sm:$0xff]
    %vm3695 = vcmask 64512
    %v3697 = vsel %vm3695, %v3678, 0
    %3699 = vmatprep.subr.mxu0 %v3680
    %3700 = vmatpush1.msra.mxu0 %v3679
    %3701 = vmatprep.subr.mxu0 0.0
    %3702 = vmatpush1.msra.mxu0 0.0
    %3703 = vmatprep.subr.mxu0 0.0
    %3704 = vmatpush1.msra.mxu0 0.0
    %3705 = vmatprep.subr.mxu0 0.0
    %3706 = vmatpush1.msra.mxu0 0.0
    %3707 = vmatprep.subr.mxu0 0.0
    %3708 = vmatpush1.msra.mxu0 0.0
    %3709 = vmatprep.subr.mxu0 0.0
    %3710 = vmatpush1.msra.mxu0 0.0
    %3711 = vmatprep.subr.mxu0 0.0
    %3712 = vmatpush1.msra.mxu0 0.0
    %3713 = vmatprep.subr.mxu0 0.0
    %3714 = vmatpush1.msra.mxu0 0.0
    %3715 = vmatprep.subr.mxu0 0.0
    %3716 = vmatpush1.msra.mxu0 0.0
    %3717 = vmatprep.subr.mxu0 0.0
    %3718 = vmatpush1.msra.mxu0 0.0
    %3719 = vmatprep.subr.mxu0 0.0
    %3720 = vmatpush1.msra.mxu0 0.0
    %3721 = vmatprep.subr.mxu0 0.0
    %3722 = vmatpush1.msra.mxu0 0.0
    %3723 = vmatprep.subr.mxu0 0.0
    %3724 = vmatpush1.msra.mxu0 0.0
    %3725 = vmatprep.subr.mxu0 0.0
    %3726 = vmatpush1.msra.mxu0 0.0
    %3727 = vmatprep.subr.mxu0 0.0
    %3728 = vmatpush1.msra.mxu0 0.0
    %3729 = vmatprep.subr.mxu0 0.0
    %3730 = vmatpush1.msra.mxu0 0.0
    %3731 = vmatprep.subr.mxu0 0.0
    %3732 = vmatpush1.msra.mxu0 0.0
    %3733 = vmatprep.subr.mxu0 0.0
    %3734 = vmatpush1.msra.mxu0 0.0
    %3735 = vmatprep.subr.mxu0 0.0
    %3736 = vmatpush1.msra.mxu0 0.0
    %3737 = vmatprep.subr.mxu0 0.0
    %3738 = vmatpush1.msra.mxu0 0.0
    %3739 = vmatprep.subr.mxu0 0.0
    %3740 = vmatpush1.msra.mxu0 0.0
    %3741 = vmatprep.subr.mxu0 0.0
    %3742 = vmatpush1.msra.mxu0 0.0
    %3743 = vmatprep.subr.mxu0 0.0
    %3744 = vmatpush1.msra.mxu0 0.0
    %3745 = vmatprep.subr.mxu0 0.0
    %3746 = vmatpush1.msra.mxu0 0.0
    %3747 = vmatprep.subr.mxu0 0.0
    %3748 = vmatpush1.msra.mxu0 0.0
    %3749 = vmatprep.subr.mxu0 0.0
    %3750 = vmatpush1.msra.mxu0 0.0
    %3751 = vmatprep.subr.mxu0 0.0
    %3752 = vmatpush1.msra.mxu0 0.0
    %3753 = vmatprep.subr.mxu0 0.0
    %3754 = vmatpush1.msra.mxu0 0.0
    %3755 = vmatprep.subr.mxu0 0.0
    %3756 = vmatpush1.msra.mxu0 0.0
    %3757 = vmatprep.subr.mxu0 0.0
    %3758 = vmatpush1.msra.mxu0 0.0
    %3759 = vmatprep.subr.mxu0 0.0
    %3760 = vmatpush1.msra.mxu0 0.0
    %3761 = vmatprep.subr.mxu0 0.0
    %3762 = vmatpush1.msra.mxu0 0.0
    %3763 = vmatprep.mubr.f32.mxu0 0.0
    %3764 = vmatmul.mubr.f32.gmra.mrb[0].mxu0 %v3697
    %v3765 = vpop.f32.mrb[0].mxu0
    %v3766 = vadd.f32 0.0, %v3765
    %v3767 = vpop.f32.mrb[0].mxu0
    %v3768 = vadd.f32 0.0, %v3767
    %3769 = vdwg.mxu0
    %3770 = vmatprep.subr.mxu0 %v3682
    %3771 = vmatpush1.msra.mxu0 %v3681
    %3772 = vmatprep.subr.mxu0 0.0
    %3773 = vmatpush1.msra.mxu0 0.0
    %3774 = vmatprep.subr.mxu0 0.0
    %3775 = vmatpush1.msra.mxu0 0.0
    %3776 = vmatprep.subr.mxu0 0.0
    %3777 = vmatpush1.msra.mxu0 0.0
    %3778 = vmatprep.subr.mxu0 0.0
    %3779 = vmatpush1.msra.mxu0 0.0
    %3780 = vmatprep.subr.mxu0 0.0
    %3781 = vmatpush1.msra.mxu0 0.0
    %3782 = vmatprep.subr.mxu0 0.0
    %3783 = vmatpush1.msra.mxu0 0.0
    %3784 = vmatprep.subr.mxu0 0.0
    %3785 = vmatpush1.msra.mxu0 0.0
    %3786 = vmatprep.subr.mxu0 0.0
    %3787 = vmatpush1.msra.mxu0 0.0
    %3788 = vmatprep.subr.mxu0 0.0
    %3789 = vmatpush1.msra.mxu0 0.0
    %3790 = vmatprep.subr.mxu0 0.0
    %3791 = vmatpush1.msra.mxu0 0.0
    %3792 = vmatprep.subr.mxu0 0.0
    %3793 = vmatpush1.msra.mxu0 0.0
    %3794 = vmatprep.subr.mxu0 0.0
    %3795 = vmatpush1.msra.mxu0 0.0
    %3796 = vmatprep.subr.mxu0 0.0
    %3797 = vmatpush1.msra.mxu0 0.0
    %3798 = vmatprep.subr.mxu0 0.0
    %3799 = vmatpush1.msra.mxu0 0.0
    %3800 = vmatprep.subr.mxu0 0.0
    %3801 = vmatpush1.msra.mxu0 0.0
    %3802 = vmatprep.subr.mxu0 0.0
    %3803 = vmatpush1.msra.mxu0 0.0
    %3804 = vmatprep.subr.mxu0 0.0
    %3805 = vmatpush1.msra.mxu0 0.0
    %3806 = vmatprep.subr.mxu0 0.0
    %3807 = vmatpush1.msra.mxu0 0.0
    %3808 = vmatprep.subr.mxu0 0.0
    %3809 = vmatpush1.msra.mxu0 0.0
    %3810 = vmatprep.subr.mxu0 0.0
    %3811 = vmatpush1.msra.mxu0 0.0
    %3812 = vmatprep.subr.mxu0 0.0
    %3813 = vmatpush1.msra.mxu0 0.0
    %3814 = vmatprep.subr.mxu0 0.0
    %3815 = vmatpush1.msra.mxu0 0.0
    %3816 = vmatprep.subr.mxu0 0.0
    %3817 = vmatpush1.msra.mxu0 0.0
    %3818 = vmatprep.subr.mxu0 0.0
    %3819 = vmatpush1.msra.mxu0 0.0
    %3820 = vmatprep.subr.mxu0 0.0
    %3821 = vmatpush1.msra.mxu0 0.0
    %3822 = vmatprep.subr.mxu0 0.0
    %3823 = vmatpush1.msra.mxu0 0.0
    %3824 = vmatprep.subr.mxu0 0.0
    %3825 = vmatpush1.msra.mxu0 0.0
    %3826 = vmatprep.subr.mxu0 0.0
    %3827 = vmatpush1.msra.mxu0 0.0
    %3828 = vmatprep.subr.mxu0 0.0
    %3829 = vmatpush1.msra.mxu0 0.0
    %3830 = vmatprep.subr.mxu0 0.0
    %3831 = vmatpush1.msra.mxu0 0.0
    %3832 = vmatprep.subr.mxu0 0.0
    %3833 = vmatpush1.msra.mxu0 0.0
    %3834 = vmatprep.mubr.f32.mxu0 0.0
    %3835 = vmatmul.mubr.f32.gmra.mrb[0].mxu0 %v3697
    %v3836 = vpop.f32.mrb[0].mxu0
    %v3837 = vadd.f32 0.0, %v3836
    %v3838 = vpop.f32.mrb[0].mxu0
    %v3839 = vadd.f32 0.0, %v3838
    %3840 = vdwg.mxu0
    %3841 = vmatprep.subr.mxu0 %v3684
    %3842 = vmatpush1.msra.mxu0 %v3683
    %3843 = vmatprep.subr.mxu0 0.0
    %3844 = vmatpush1.msra.mxu0 0.0
    %3845 = vmatprep.subr.mxu0 0.0
    %3846 = vmatpush1.msra.mxu0 0.0
    %3847 = vmatprep.subr.mxu0 0.0
    %3848 = vmatpush1.msra.mxu0 0.0
    %3849 = vmatprep.subr.mxu0 0.0
    %3850 = vmatpush1.msra.mxu0 0.0
    %3851 = vmatprep.subr.mxu0 0.0
    %3852 = vmatpush1.msra.mxu0 0.0
    %3853 = vmatprep.subr.mxu0 0.0
    %3854 = vmatpush1.msra.mxu0 0.0
    %3855 = vmatprep.subr.mxu0 0.0
    %3856 = vmatpush1.msra.mxu0 0.0
    %3857 = vmatprep.subr.mxu0 0.0
    %3858 = vmatpush1.msra.mxu0 0.0
    %3859 = vmatprep.subr.mxu0 0.0
    %3860 = vmatpush1.msra.mxu0 0.0
    %3861 = vmatprep.subr.mxu0 0.0
    %3862 = vmatpush1.msra.mxu0 0.0
    %3863 = vmatprep.subr.mxu0 0.0
    %3864 = vmatpush1.msra.mxu0 0.0
    %3865 = vmatprep.subr.mxu0 0.0
    %3866 = vmatpush1.msra.mxu0 0.0
    %3867 = vmatprep.subr.mxu0 0.0
    %3868 = vmatpush1.msra.mxu0 0.0
    %3869 = vmatprep.subr.mxu0 0.0
    %3870 = vmatpush1.msra.mxu0 0.0
    %3871 = vmatprep.subr.mxu0 0.0
    %3872 = vmatpush1.msra.mxu0 0.0
    %3873 = vmatprep.subr.mxu0 0.0
    %3874 = vmatpush1.msra.mxu0 0.0
    %3875 = vmatprep.subr.mxu0 0.0
    %3876 = vmatpush1.msra.mxu0 0.0
    %3877 = vmatprep.subr.mxu0 0.0
    %3878 = vmatpush1.msra.mxu0 0.0
    %3879 = vmatprep.subr.mxu0 0.0
    %3880 = vmatpush1.msra.mxu0 0.0
    %3881 = vmatprep.subr.mxu0 0.0
    %3882 = vmatpush1.msra.mxu0 0.0
    %3883 = vmatprep.subr.mxu0 0.0
    %3884 = vmatpush1.msra.mxu0 0.0
    %3885 = vmatprep.subr.mxu0 0.0
    %3886 = vmatpush1.msra.mxu0 0.0
    %3887 = vmatprep.subr.mxu0 0.0
    %3888 = vmatpush1.msra.mxu0 0.0
    %3889 = vmatprep.subr.mxu0 0.0
    %3890 = vmatpush1.msra.mxu0 0.0
    %3891 = vmatprep.subr.mxu0 0.0
    %3892 = vmatpush1.msra.mxu0 0.0
    %3893 = vmatprep.subr.mxu0 0.0
    %3894 = vmatpush1.msra.mxu0 0.0
    %3895 = vmatprep.subr.mxu0 0.0
    %3896 = vmatpush1.msra.mxu0 0.0
    %3897 = vmatprep.subr.mxu0 0.0
    %3898 = vmatpush1.msra.mxu0 0.0
    %3899 = vmatprep.subr.mxu0 0.0
    %3900 = vmatpush1.msra.mxu0 0.0
    %3901 = vmatprep.subr.mxu0 0.0
    %3902 = vmatpush1.msra.mxu0 0.0
    %3903 = vmatprep.subr.mxu0 0.0
    %3904 = vmatpush1.msra.mxu0 0.0
    %3905 = vmatprep.mubr.f32.mxu0 0.0
    %3906 = vmatmul.mubr.f32.gmra.mrb[0].mxu0 %v3697
    %v3907 = vpop.f32.mrb[0].mxu0
    %v3908 = vadd.f32 0.0, %v3907
    %v3909 = vpop.f32.mrb[0].mxu0
    %v3910 = vadd.f32 0.0, %v3909
    %3911 = vdwg.mxu0
    %3912 = vmatprep.subr.mxu0 %v3686
    %3913 = vmatpush1.msra.mxu0 %v3685
    %3914 = vmatprep.subr.mxu0 0.0
    %3915 = vmatpush1.msra.mxu0 0.0
    %3916 = vmatprep.subr.mxu0 0.0
    %3917 = vmatpush1.msra.mxu0 0.0
    %3918 = vmatprep.subr.mxu0 0.0
    %3919 = vmatpush1.msra.mxu0 0.0
    %3920 = vmatprep.subr.mxu0 0.0
    %3921 = vmatpush1.msra.mxu0 0.0
    %3922 = vmatprep.subr.mxu0 0.0
    %3923 = vmatpush1.msra.mxu0 0.0
    %3924 = vmatprep.subr.mxu0 0.0
    %3925 = vmatpush1.msra.mxu0 0.0
    %3926 = vmatprep.subr.mxu0 0.0
    %3927 = vmatpush1.msra.mxu0 0.0
    %3928 = vmatprep.subr.mxu0 0.0
    %3929 = vmatpush1.msra.mxu0 0.0
    %3930 = vmatprep.subr.mxu0 0.0
    %3931 = vmatpush1.msra.mxu0 0.0
    %3932 = vmatprep.subr.mxu0 0.0
    %3933 = vmatpush1.msra.mxu0 0.0
    %3934 = vmatprep.subr.mxu0 0.0
    %3935 = vmatpush1.msra.mxu0 0.0
    %3936 = vmatprep.subr.mxu0 0.0
    %3937 = vmatpush1.msra.mxu0 0.0
    %3938 = vmatprep.subr.mxu0 0.0
    %3939 = vmatpush1.msra.mxu0 0.0
    %3940 = vmatprep.subr.mxu0 0.0
    %3941 = vmatpush1.msra.mxu0 0.0
    %3942 = vmatprep.subr.mxu0 0.0
    %3943 = vmatpush1.msra.mxu0 0.0
    %3944 = vmatprep.subr.mxu0 0.0
    %3945 = vmatpush1.msra.mxu0 0.0
    %3946 = vmatprep.subr.mxu0 0.0
    %3947 = vmatpush1.msra.mxu0 0.0
    %3948 = vmatprep.subr.mxu0 0.0
    %3949 = vmatpush1.msra.mxu0 0.0
    %3950 = vmatprep.subr.mxu0 0.0
    %3951 = vmatpush1.msra.mxu0 0.0
    %3952 = vmatprep.subr.mxu0 0.0
    %3953 = vmatpush1.msra.mxu0 0.0
    %3954 = vmatprep.subr.mxu0 0.0
    %3955 = vmatpush1.msra.mxu0 0.0
    %3956 = vmatprep.subr.mxu0 0.0
    %3957 = vmatpush1.msra.mxu0 0.0
    %3958 = vmatprep.subr.mxu0 0.0
    %3959 = vmatpush1.msra.mxu0 0.0
    %3960 = vmatprep.subr.mxu0 0.0
    %3961 = vmatpush1.msra.mxu0 0.0
    %3962 = vmatprep.subr.mxu0 0.0
    %3963 = vmatpush1.msra.mxu0 0.0
    %3964 = vmatprep.subr.mxu0 0.0
    %3965 = vmatpush1.msra.mxu0 0.0
    %3966 = vmatprep.subr.mxu0 0.0
    %3967 = vmatpush1.msra.mxu0 0.0
    %3968 = vmatprep.subr.mxu0 0.0
    %3969 = vmatpush1.msra.mxu0 0.0
    %3970 = vmatprep.subr.mxu0 0.0
    %3971 = vmatpush1.msra.mxu0 0.0
    %3972 = vmatprep.subr.mxu0 0.0
    %3973 = vmatpush1.msra.mxu0 0.0
    %3974 = vmatprep.subr.mxu0 0.0
    %3975 = vmatpush1.msra.mxu0 0.0
    %3976 = vmatprep.mubr.f32.mxu0 0.0
    %3977 = vmatmul.mubr.f32.gmra.mrb[0].mxu0 %v3697
    %v3978 = vpop.f32.mrb[0].mxu0
    %v3979 = vadd.f32 0.0, %v3978
    %v3980 = vpop.f32.mrb[0].mxu0
    %v3981 = vadd.f32 0.0, %v3980
    %3982 = vdwg.mxu0
    %3983 = vmatprep.subr.mxu0 %v3688
    %3984 = vmatpush1.msra.mxu0 %v3687
    %3985 = vmatprep.subr.mxu0 0.0
    %3986 = vmatpush1.msra.mxu0 0.0
    %3987 = vmatprep.subr.mxu0 0.0
    %3988 = vmatpush1.msra.mxu0 0.0
    %3989 = vmatprep.subr.mxu0 0.0
    %3990 = vmatpush1.msra.mxu0 0.0
    %3991 = vmatprep.subr.mxu0 0.0
    %3992 = vmatpush1.msra.mxu0 0.0
    %3993 = vmatprep.subr.mxu0 0.0
    %3994 = vmatpush1.msra.mxu0 0.0
    %3995 = vmatprep.subr.mxu0 0.0
    %3996 = vmatpush1.msra.mxu0 0.0
    %3997 = vmatprep.subr.mxu0 0.0
    %3998 = vmatpush1.msra.mxu0 0.0
    %3999 = vmatprep.subr.mxu0 0.0
    %4000 = vmatpush1.msra.mxu0 0.0
    %4001 = vmatprep.subr.mxu0 0.0
    %4002 = vmatpush1.msra.mxu0 0.0
    %4003 = vmatprep.subr.mxu0 0.0
    %4004 = vmatpush1.msra.mxu0 0.0
    %4005 = vmatprep.subr.mxu0 0.0
    %4006 = vmatpush1.msra.mxu0 0.0
    %4007 = vmatprep.subr.mxu0 0.0
    %4008 = vmatpush1.msra.mxu0 0.0
    %4009 = vmatprep.subr.mxu0 0.0
    %4010 = vmatpush1.msra.mxu0 0.0
    %4011 = vmatprep.subr.mxu0 0.0
    %4012 = vmatpush1.msra.mxu0 0.0
    %4013 = vmatprep.subr.mxu0 0.0
    %4014 = vmatpush1.msra.mxu0 0.0
    %4015 = vmatprep.subr.mxu0 0.0
    %4016 = vmatpush1.msra.mxu0 0.0
    %4017 = vmatprep.subr.mxu0 0.0
    %4018 = vmatpush1.msra.mxu0 0.0
    %4019 = vmatprep.subr.mxu0 0.0
    %4020 = vmatpush1.msra.mxu0 0.0
    %4021 = vmatprep.subr.mxu0 0.0
    %4022 = vmatpush1.msra.mxu0 0.0
    %4023 = vmatprep.subr.mxu0 0.0
    %4024 = vmatpush1.msra.mxu0 0.0
    %4025 = vmatprep.subr.mxu0 0.0
    %4026 = vmatpush1.msra.mxu0 0.0
    %4027 = vmatprep.subr.mxu0 0.0
    %4028 = vmatpush1.msra.mxu0 0.0
    %4029 = vmatprep.subr.mxu0 0.0
    %4030 = vmatpush1.msra.mxu0 0.0
    %4031 = vmatprep.subr.mxu0 0.0
    %4032 = vmatpush1.msra.mxu0 0.0
    %4033 = vmatprep.subr.mxu0 0.0
    %4034 = vmatpush1.msra.mxu0 0.0
    %4035 = vmatprep.subr.mxu0 0.0
    %4036 = vmatpush1.msra.mxu0 0.0
    %4037 = vmatprep.subr.mxu0 0.0
    %4038 = vmatpush1.msra.mxu0 0.0
    %4039 = vmatprep.subr.mxu0 0.0
    %4040 = vmatpush1.msra.mxu0 0.0
    %4041 = vmatprep.subr.mxu0 0.0
    %4042 = vmatpush1.msra.mxu0 0.0
    %4043 = vmatprep.subr.mxu0 0.0
    %4044 = vmatpush1.msra.mxu0 0.0
    %4045 = vmatprep.subr.mxu0 0.0
    %4046 = vmatpush1.msra.mxu0 0.0
    %4047 = vmatprep.mubr.f32.mxu0 0.0
    %4048 = vmatmul.mubr.f32.gmra.mrb[0].mxu0 %v3697
    %v4049 = vpop.f32.mrb[0].mxu0
    %v4050 = vadd.f32 0.0, %v4049
    %v4051 = vpop.f32.mrb[0].mxu0
    %v4052 = vadd.f32 0.0, %v4051
    %4053 = vdwg.mxu0
    %4054 = vmatprep.subr.mxu0 %v3690
    %4055 = vmatpush1.msra.mxu0 %v3689
    %4056 = vmatprep.subr.mxu0 0.0
    %4057 = vmatpush1.msra.mxu0 0.0
    %4058 = vmatprep.subr.mxu0 0.0
    %4059 = vmatpush1.msra.mxu0 0.0
    %4060 = vmatprep.subr.mxu0 0.0
    %4061 = vmatpush1.msra.mxu0 0.0
    %4062 = vmatprep.subr.mxu0 0.0
    %4063 = vmatpush1.msra.mxu0 0.0
    %4064 = vmatprep.subr.mxu0 0.0
    %4065 = vmatpush1.msra.mxu0 0.0
    %4066 = vmatprep.subr.mxu0 0.0
    %4067 = vmatpush1.msra.mxu0 0.0
    %4068 = vmatprep.subr.mxu0 0.0
    %4069 = vmatpush1.msra.mxu0 0.0
    %4070 = vmatprep.subr.mxu0 0.0
    %4071 = vmatpush1.msra.mxu0 0.0
    %4072 = vmatprep.subr.mxu0 0.0
    %4073 = vmatpush1.msra.mxu0 0.0
    %4074 = vmatprep.subr.mxu0 0.0
    %4075 = vmatpush1.msra.mxu0 0.0
    %4076 = vmatprep.subr.mxu0 0.0
    %4077 = vmatpush1.msra.mxu0 0.0
    %4078 = vmatprep.subr.mxu0 0.0
    %4079 = vmatpush1.msra.mxu0 0.0
    %4080 = vmatprep.subr.mxu0 0.0
    %4081 = vmatpush1.msra.mxu0 0.0
    %4082 = vmatprep.subr.mxu0 0.0
    %4083 = vmatpush1.msra.mxu0 0.0
    %4084 = vmatprep.subr.mxu0 0.0
    %4085 = vmatpush1.msra.mxu0 0.0
    %4086 = vmatprep.subr.mxu0 0.0
    %4087 = vmatpush1.msra.mxu0 0.0
    %4088 = vmatprep.subr.mxu0 0.0
    %4089 = vmatpush1.msra.mxu0 0.0
    %4090 = vmatprep.subr.mxu0 0.0
    %4091 = vmatpush1.msra.mxu0 0.0
    %4092 = vmatprep.subr.mxu0 0.0
    %4093 = vmatpush1.msra.mxu0 0.0
    %4094 = vmatprep.subr.mxu0 0.0
    %4095 = vmatpush1.msra.mxu0 0.0
    %4096 = vmatprep.subr.mxu0 0.0
    %4097 = vmatpush1.msra.mxu0 0.0
    %4098 = vmatprep.subr.mxu0 0.0
    %4099 = vmatpush1.msra.mxu0 0.0
    %4100 = vmatprep.subr.mxu0 0.0
    %4101 = vmatpush1.msra.mxu0 0.0
    %4102 = vmatprep.subr.mxu0 0.0
    %4103 = vmatpush1.msra.mxu0 0.0
    %4104 = vmatprep.subr.mxu0 0.0
    %4105 = vmatpush1.msra.mxu0 0.0
    %4106 = vmatprep.subr.mxu0 0.0
    %4107 = vmatpush1.msra.mxu0 0.0
    %4108 = vmatprep.subr.mxu0 0.0
    %4109 = vmatpush1.msra.mxu0 0.0
    %4110 = vmatprep.subr.mxu0 0.0
    %4111 = vmatpush1.msra.mxu0 0.0
    %4112 = vmatprep.subr.mxu0 0.0
    %4113 = vmatpush1.msra.mxu0 0.0
    %4114 = vmatprep.subr.mxu0 0.0
    %4115 = vmatpush1.msra.mxu0 0.0
    %4116 = vmatprep.subr.mxu0 0.0
    %4117 = vmatpush1.msra.mxu0 0.0
    %4118 = vmatprep.mubr.f32.mxu0 0.0
    %4119 = vmatmul.mubr.f32.gmra.mrb[0].mxu0 %v3697
    %v4120 = vpop.f32.mrb[0].mxu0
    %v4121 = vadd.f32 0.0, %v4120
    %v4122 = vpop.f32.mrb[0].mxu0
    %v4123 = vadd.f32 0.0, %v4122
    %4124 = vdwg.mxu0
    %4125 = vmatprep.subr.mxu0 %v3692
    %4126 = vmatpush1.msra.mxu0 %v3691
    %4127 = vmatprep.subr.mxu0 0.0
    %4128 = vmatpush1.msra.mxu0 0.0
    %4129 = vmatprep.subr.mxu0 0.0
    %4130 = vmatpush1.msra.mxu0 0.0
    %4131 = vmatprep.subr.mxu0 0.0
    %4132 = vmatpush1.msra.mxu0 0.0
    %4133 = vmatprep.subr.mxu0 0.0
    %4134 = vmatpush1.msra.mxu0 0.0
    %4135 = vmatprep.subr.mxu0 0.0
    %4136 = vmatpush1.msra.mxu0 0.0
    %4137 = vmatprep.subr.mxu0 0.0
    %4138 = vmatpush1.msra.mxu0 0.0
    %4139 = vmatprep.subr.mxu0 0.0
    %4140 = vmatpush1.msra.mxu0 0.0
    %4141 = vmatprep.subr.mxu0 0.0
    %4142 = vmatpush1.msra.mxu0 0.0
    %4143 = vmatprep.subr.mxu0 0.0
    %4144 = vmatpush1.msra.mxu0 0.0
    %4145 = vmatprep.subr.mxu0 0.0
    %4146 = vmatpush1.msra.mxu0 0.0
    %4147 = vmatprep.subr.mxu0 0.0
    %4148 = vmatpush1.msra.mxu0 0.0
    %4149 = vmatprep.subr.mxu0 0.0
    %4150 = vmatpush1.msra.mxu0 0.0
    %4151 = vmatprep.subr.mxu0 0.0
    %4152 = vmatpush1.msra.mxu0 0.0
    %4153 = vmatprep.subr.mxu0 0.0
    %4154 = vmatpush1.msra.mxu0 0.0
    %4155 = vmatprep.subr.mxu0 0.0
    %4156 = vmatpush1.msra.mxu0 0.0
    %4157 = vmatprep.subr.mxu0 0.0
    %4158 = vmatpush1.msra.mxu0 0.0
    %4159 = vmatprep.subr.mxu0 0.0
    %4160 = vmatpush1.msra.mxu0 0.0
    %4161 = vmatprep.subr.mxu0 0.0
    %4162 = vmatpush1.msra.mxu0 0.0
    %4163 = vmatprep.subr.mxu0 0.0
    %4164 = vmatpush1.msra.mxu0 0.0
    %4165 = vmatprep.subr.mxu0 0.0
    %4166 = vmatpush1.msra.mxu0 0.0
    %4167 = vmatprep.subr.mxu0 0.0
    %4168 = vmatpush1.msra.mxu0 0.0
    %4169 = vmatprep.subr.mxu0 0.0
    %4170 = vmatpush1.msra.mxu0 0.0
    %4171 = vmatprep.subr.mxu0 0.0
    %4172 = vmatpush1.msra.mxu0 0.0
    %4173 = vmatprep.subr.mxu0 0.0
    %4174 = vmatpush1.msra.mxu0 0.0
    %4175 = vmatprep.subr.mxu0 0.0
    %4176 = vmatpush1.msra.mxu0 0.0
    %4177 = vmatprep.subr.mxu0 0.0
    %4178 = vmatpush1.msra.mxu0 0.0
    %4179 = vmatprep.subr.mxu0 0.0
    %4180 = vmatpush1.msra.mxu0 0.0
    %4181 = vmatprep.subr.mxu0 0.0
    %4182 = vmatpush1.msra.mxu0 0.0
    %4183 = vmatprep.subr.mxu0 0.0
    %4184 = vmatpush1.msra.mxu0 0.0
    %4185 = vmatprep.subr.mxu0 0.0
    %4186 = vmatpush1.msra.mxu0 0.0
    %4187 = vmatprep.subr.mxu0 0.0
    %4188 = vmatpush1.msra.mxu0 0.0
    %4189 = vmatprep.mubr.f32.mxu0 0.0
    %4190 = vmatmul.mubr.f32.gmra.mrb[0].mxu0 %v3697
    %v4191 = vpop.f32.mrb[0].mxu0
    %v4192 = vadd.f32 0.0, %v4191
    %v4193 = vpop.f32.mrb[0].mxu0
    %v4194 = vadd.f32 0.0, %v4193
    %4195 = vdwg.mxu0
    %4196 = vmatprep.subr.mxu0 %v3694
    %4197 = vmatpush1.msra.mxu0 %v3693
    %4198 = vmatprep.subr.mxu0 0.0
    %4199 = vmatpush1.msra.mxu0 0.0
    %4200 = vmatprep.subr.mxu0 0.0
    %4201 = vmatpush1.msra.mxu0 0.0
    %4202 = vmatprep.subr.mxu0 0.0
    %4203 = vmatpush1.msra.mxu0 0.0
    %4204 = vmatprep.subr.mxu0 0.0
    %4205 = vmatpush1.msra.mxu0 0.0
    %4206 = vmatprep.subr.mxu0 0.0
    %4207 = vmatpush1.msra.mxu0 0.0
    %4208 = vmatprep.subr.mxu0 0.0
    %4209 = vmatpush1.msra.mxu0 0.0
    %4210 = vmatprep.subr.mxu0 0.0
    %4211 = vmatpush1.msra.mxu0 0.0
    %4212 = vmatprep.subr.mxu0 0.0
    %4213 = vmatpush1.msra.mxu0 0.0
    %4214 = vmatprep.subr.mxu0 0.0
    %4215 = vmatpush1.msra.mxu0 0.0
    %4216 = vmatprep.subr.mxu0 0.0
    %4217 = vmatpush1.msra.mxu0 0.0
    %4218 = vmatprep.subr.mxu0 0.0
    %4219 = vmatpush1.msra.mxu0 0.0
    %4220 = vmatprep.subr.mxu0 0.0
    %4221 = vmatpush1.msra.mxu0 0.0
    %4222 = vmatprep.subr.mxu0 0.0
    %4223 = vmatpush1.msra.mxu0 0.0
    %4224 = vmatprep.subr.mxu0 0.0
    %4225 = vmatpush1.msra.mxu0 0.0
    %4226 = vmatprep.subr.mxu0 0.0
    %4227 = vmatpush1.msra.mxu0 0.0
    %4228 = vmatprep.subr.mxu0 0.0
    %4229 = vmatpush1.msra.mxu0 0.0
    %4230 = vmatprep.subr.mxu0 0.0
    %4231 = vmatpush1.msra.mxu0 0.0
    %4232 = vmatprep.subr.mxu0 0.0
    %4233 = vmatpush1.msra.mxu0 0.0
    %4234 = vmatprep.subr.mxu0 0.0
    %4235 = vmatpush1.msra.mxu0 0.0
    %4236 = vmatprep.subr.mxu0 0.0
    %4237 = vmatpush1.msra.mxu0 0.0
    %4238 = vmatprep.subr.mxu0 0.0
    %4239 = vmatpush1.msra.mxu0 0.0
    %4240 = vmatprep.subr.mxu0 0.0
    %4241 = vmatpush1.msra.mxu0 0.0
    %4242 = vmatprep.subr.mxu0 0.0
    %4243 = vmatpush1.msra.mxu0 0.0
    %4244 = vmatprep.subr.mxu0 0.0
    %4245 = vmatpush1.msra.mxu0 0.0
    %4246 = vmatprep.subr.mxu0 0.0
    %4247 = vmatpush1.msra.mxu0 0.0
    %4248 = vmatprep.subr.mxu0 0.0
    %4249 = vmatpush1.msra.mxu0 0.0
    %4250 = vmatprep.subr.mxu0 0.0
    %4251 = vmatpush1.msra.mxu0 0.0
    %4252 = vmatprep.subr.mxu0 0.0
    %4253 = vmatpush1.msra.mxu0 0.0
    %4254 = vmatprep.subr.mxu0 0.0
    %4255 = vmatpush1.msra.mxu0 0.0
    %4256 = vmatprep.subr.mxu0 0.0
    %4257 = vmatpush1.msra.mxu0 0.0
    %4258 = vmatprep.subr.mxu0 0.0
    %4259 = vmatpush1.msra.mxu0 0.0
    %4260 = vmatprep.mubr.f32.mxu0 0.0
    %4261 = vmatmul.mubr.f32.gmra.mrb[0].mxu0 %v3697
    %v4262 = vpop.f32.mrb[0].mxu0
    %v4263 = vadd.f32 0.0, %v4262
    %v4264 = vpop.f32.mrb[0].mxu0
    %v4265 = vadd.f32 0.0, %v4264
    %4266 = vdwg.mxu0
    %v4267 = vlaneseq
    %v4268 = vshrl.u32 %v4267, 7
    %v4269 = vsub.s32 0, %v4268
    %v4270 = vrot.slane %v3766, %v4269
    %v4271 = vlaneseq
    %v4272 = vshrl.u32 %v4271, 7
    %v4273 = vsub.s32 0, %v4272
    %v4274 = vrot.slane %v3768, %v4273
    %v4275 = vlaneseq
    %v4276 = vshrl.u32 %v4275, 7
    %v4277 = vsub.s32 0, %v4276
    %v4278 = vrot.slane %v3837, %v4277
    %v4279 = vlaneseq
    %v4280 = vshrl.u32 %v4279, 7
    %v4281 = vsub.s32 0, %v4280
    %v4282 = vrot.slane %v3839, %v4281
    %v4283 = vlaneseq
    %v4284 = vshrl.u32 %v4283, 7
    %v4285 = vsub.s32 0, %v4284
    %v4286 = vrot.slane %v3908, %v4285
    %v4287 = vlaneseq
    %v4288 = vshrl.u32 %v4287, 7
    %v4289 = vsub.s32 0, %v4288
    %v4290 = vrot.slane %v3910, %v4289
    %v4291 = vlaneseq
    %v4292 = vshrl.u32 %v4291, 7
    %v4293 = vsub.s32 0, %v4292
    %v4294 = vrot.slane %v3979, %v4293
    %v4295 = vlaneseq
    %v4296 = vshrl.u32 %v4295, 7
    %v4297 = vsub.s32 0, %v4296
    %v4298 = vrot.slane %v3981, %v4297
    %v4299 = vlaneseq
    %v4300 = vshrl.u32 %v4299, 7
    %v4301 = vsub.s32 0, %v4300
    %v4302 = vrot.slane %v4050, %v4301
    %v4303 = vlaneseq
    %v4304 = vshrl.u32 %v4303, 7
    %v4305 = vsub.s32 0, %v4304
    %v4306 = vrot.slane %v4052, %v4305
    %v4307 = vlaneseq
    %v4308 = vshrl.u32 %v4307, 7
    %v4309 = vsub.s32 0, %v4308
    %v4310 = vrot.slane %v4121, %v4309
    %v4311 = vlaneseq
    %v4312 = vshrl.u32 %v4311, 7
    %v4313 = vsub.s32 0, %v4312
    %v4314 = vrot.slane %v4123, %v4313
    %v4315 = vlaneseq
    %v4316 = vshrl.u32 %v4315, 7
    %v4317 = vsub.s32 0, %v4316
    %v4318 = vrot.slane %v4192, %v4317
    %v4319 = vlaneseq
    %v4320 = vshrl.u32 %v4319, 7
    %v4321 = vsub.s32 0, %v4320
    %v4322 = vrot.slane %v4194, %v4321
    %v4323 = vlaneseq
    %v4324 = vshrl.u32 %v4323, 7
    %v4325 = vsub.s32 0, %v4324
    %v4326 = vrot.slane %v4263, %v4325
    %v4327 = vlaneseq
    %v4328 = vshrl.u32 %v4327, 7
    %v4329 = vsub.s32 0, %v4328
    %v4330 = vrot.slane %v4265, %v4329
    %v4331 = vmul.f32 %v1501, %v4270
    %v4332 = vmul.f32 %v2094, %v4274
    %v4333 = vmul.f32 %v1571, %v4278
    %v4334 = vmul.f32 %v2164, %v4282
    %v4335 = vmul.f32 %v1641, %v4286
    %v4336 = vmul.f32 %v2234, %v4290
    %v4337 = vmul.f32 %v1711, %v4294
    %v4338 = vmul.f32 %v2304, %v4298
    %v4339 = vmul.f32 %v1781, %v4302
    %v4340 = vmul.f32 %v2374, %v4306
    %v4341 = vmul.f32 %v1851, %v4310
    %v4342 = vmul.f32 %v2444, %v4314
    %v4343 = vmul.f32 %v1921, %v4318
    %v4344 = vmul.f32 %v2514, %v4322
    %v4345 = vmul.f32 %v1991, %v4326
    %v4346 = vmul.f32 %v2584, %v4330
    %v4347 = vlaneseq
    %v4348 = vshrl.u32 %v4347, 7
    %v4349 = vsub.s32 1, %v4348
    %v4350 = vrot.slane %v3766, %v4349
    %v4351 = vlaneseq
    %v4352 = vshrl.u32 %v4351, 7
    %v4353 = vsub.s32 1, %v4352
    %v4354 = vrot.slane %v3768, %v4353
    %v4355 = vlaneseq
    %v4356 = vshrl.u32 %v4355, 7
    %v4357 = vsub.s32 1, %v4356
    %v4358 = vrot.slane %v3837, %v4357
    %v4359 = vlaneseq
    %v4360 = vshrl.u32 %v4359, 7
    %v4361 = vsub.s32 1, %v4360
    %v4362 = vrot.slane %v3839, %v4361
    %v4363 = vlaneseq
    %v4364 = vshrl.u32 %v4363, 7
    %v4365 = vsub.s32 1, %v4364
    %v4366 = vrot.slane %v3908, %v4365
    %v4367 = vlaneseq
    %v4368 = vshrl.u32 %v4367, 7
    %v4369 = vsub.s32 1, %v4368
    %v4370 = vrot.slane %v3910, %v4369
    %v4371 = vlaneseq
    %v4372 = vshrl.u32 %v4371, 7
    %v4373 = vsub.s32 1, %v4372
    %v4374 = vrot.slane %v3979, %v4373
    %v4375 = vlaneseq
    %v4376 = vshrl.u32 %v4375, 7
    %v4377 = vsub.s32 1, %v4376
    %v4378 = vrot.slane %v3981, %v4377
    %v4379 = vlaneseq
    %v4380 = vshrl.u32 %v4379, 7
    %v4381 = vsub.s32 1, %v4380
    %v4382 = vrot.slane %v4050, %v4381
    %v4383 = vlaneseq
    %v4384 = vshrl.u32 %v4383, 7
    %v4385 = vsub.s32 1, %v4384
    %v4386 = vrot.slane %v4052, %v4385
    %v4387 = vlaneseq
    %v4388 = vshrl.u32 %v4387, 7
    %v4389 = vsub.s32 1, %v4388
    %v4390 = vrot.slane %v4121, %v4389
    %v4391 = vlaneseq
    %v4392 = vshrl.u32 %v4391, 7
    %v4393 = vsub.s32 1, %v4392
    %v4394 = vrot.slane %v4123, %v4393
    %v4395 = vlaneseq
    %v4396 = vshrl.u32 %v4395, 7
    %v4397 = vsub.s32 1, %v4396
    %v4398 = vrot.slane %v4192, %v4397
    %v4399 = vlaneseq
    %v4400 = vshrl.u32 %v4399, 7
    %v4401 = vsub.s32 1, %v4400
    %v4402 = vrot.slane %v4194, %v4401
    %v4403 = vlaneseq
    %v4404 = vshrl.u32 %v4403, 7
    %v4405 = vsub.s32 1, %v4404
    %v4406 = vrot.slane %v4263, %v4405
    %v4407 = vlaneseq
    %v4408 = vshrl.u32 %v4407, 7
    %v4409 = vsub.s32 1, %v4408
    %v4410 = vrot.slane %v4265, %v4409
    %v4411 = vadd.f32 %v4331, %v4350
    %v4412 = vadd.f32 %v4332, %v4354
    %v4413 = vadd.f32 %v4333, %v4358
    %v4414 = vadd.f32 %v4334, %v4362
    %v4415 = vadd.f32 %v4335, %v4366
    %v4416 = vadd.f32 %v4336, %v4370
    %v4417 = vadd.f32 %v4337, %v4374
    %v4418 = vadd.f32 %v4338, %v4378
    %v4419 = vadd.f32 %v4339, %v4382
    %v4420 = vadd.f32 %v4340, %v4386
    %v4421 = vadd.f32 %v4341, %v4390
    %v4422 = vadd.f32 %v4342, %v4394
    %v4423 = vadd.f32 %v4343, %v4398
    %v4424 = vadd.f32 %v4344, %v4402
    %v4425 = vadd.f32 %v4345, %v4406
    %v4426 = vadd.f32 %v4346, %v4410
    %v4427 = vmax.f32 %v4411, 0.0
    %v4428 = vmax.f32 %v4412, 0.0
    %v4429 = vmax.f32 %v4413, 0.0
    %v4430 = vmax.f32 %v4414, 0.0
    %v4431 = vmax.f32 %v4415, 0.0
    %v4432 = vmax.f32 %v4416, 0.0
    %v4433 = vmax.f32 %v4417, 0.0
    %v4434 = vmax.f32 %v4418, 0.0
    %v4435 = vmax.f32 %v4419, 0.0
    %v4436 = vmax.f32 %v4420, 0.0
    %v4437 = vmax.f32 %v4421, 0.0
    %v4438 = vmax.f32 %v4422, 0.0
    %v4439 = vmax.f32 %v4423, 0.0
    %v4440 = vmax.f32 %v4424, 0.0
    %v4441 = vmax.f32 %v4425, 0.0
    %v4442 = vmax.f32 %v4426, 0.0
    %v4443 = vld [vmem:[%s9] sm:$0xff]
    %v4444 = vld [vmem:[%s9 + $0x8] sm:$0xff]
    %v4445 = vld [vmem:[%s9 + $0x10] sm:$0xff]
    %v4446 = vld [vmem:[%s9 + $0x18] sm:$0xff]
    %v4447 = vld [vmem:[%s9 + $0x20] sm:$0xff]
    %v4448 = vld [vmem:[%s9 + $0x28] sm:$0xff]
    %v4449 = vld [vmem:[%s9 + $0x30] sm:$0xff]
    %v4450 = vld [vmem:[%s9 + $0x38] sm:$0xff]
    %v4451 = vld [vmem:[%s9 + $0x40] sm:$0xff]
    %v4452 = vld [vmem:[%s9 + $0x48] sm:$0xff]
    %v4453 = vld [vmem:[%s9 + $0x50] sm:$0xff]
    %v4454 = vld [vmem:[%s9 + $0x58] sm:$0xff]
    %v4455 = vld [vmem:[%s9 + $0x60] sm:$0xff]
    %v4456 = vld [vmem:[%s9 + $0x68] sm:$0xff]
    %v4457 = vld [vmem:[%s9 + $0x70] sm:$0xff]
    %v4458 = vld [vmem:[%s9 + $0x78] sm:$0xff]
    %v4459 = vld [vmem:[%s9 + $0x80] sm:$0xff]
    %v4460 = vld [vmem:[%s9 + $0x88] sm:$0xff]
    %v4461 = vld [vmem:[%s9 + $0x90] sm:$0xff]
    %v4462 = vld [vmem:[%s9 + $0x98] sm:$0xff]
    %v4463 = vld [vmem:[%s9 + $0xa0] sm:$0xff]
    %v4464 = vld [vmem:[%s9 + $0xa8] sm:$0xff]
    %v4465 = vld [vmem:[%s9 + $0xb0] sm:$0xff]
    %v4466 = vld [vmem:[%s9 + $0xb8] sm:$0xff]
    %v4467 = vld [vmem:[%s9 + $0xc0] sm:$0xff]
    %v4468 = vld [vmem:[%s9 + $0xc8] sm:$0xff]
    %v4469 = vld [vmem:[%s9 + $0xd0] sm:$0xff]
    %v4470 = vld [vmem:[%s9 + $0xd8] sm:$0xff]
    %v4471 = vld [vmem:[%s9 + $0xe0] sm:$0xff]
    %v4472 = vld [vmem:[%s9 + $0xe8] sm:$0xff]
    %v4473 = vld [vmem:[%s9 + $0xf0] sm:$0xff]
    %v4474 = vld [vmem:[%s9 + $0xf8] sm:$0xff]
    %4475 = vmatprep.subr.mxu0 0.0
    %4476 = vmatpush1.msra.mxu0 %v4443
    %4477 = vmatprep.subr.mxu0 0.0
    %4478 = vmatpush1.msra.mxu0 %v4444
    %4479 = vmatprep.subr.mxu0 0.0
    %4480 = vmatpush1.msra.mxu0 %v4445
    %4481 = vmatprep.subr.mxu0 0.0
    %4482 = vmatpush1.msra.mxu0 %v4446
    %4483 = vmatprep.subr.mxu0 0.0
    %4484 = vmatpush1.msra.mxu0 %v4447
    %4485 = vmatprep.subr.mxu0 0.0
    %4486 = vmatpush1.msra.mxu0 %v4448
    %4487 = vmatprep.subr.mxu0 0.0
    %4488 = vmatpush1.msra.mxu0 %v4449
    %4489 = vmatprep.subr.mxu0 0.0
    %4490 = vmatpush1.msra.mxu0 %v4450
    %4491 = vmatprep.subr.mxu0 0.0
    %4492 = vmatpush1.msra.mxu0 %v4451
    %4493 = vmatprep.subr.mxu0 0.0
    %4494 = vmatpush1.msra.mxu0 %v4452
    %4495 = vmatprep.subr.mxu0 0.0
    %4496 = vmatpush1.msra.mxu0 %v4453
    %4497 = vmatprep.subr.mxu0 0.0
    %4498 = vmatpush1.msra.mxu0 %v4454
    %4499 = vmatprep.subr.mxu0 0.0
    %4500 = vmatpush1.msra.mxu0 %v4455
    %4501 = vmatprep.subr.mxu0 0.0
    %4502 = vmatpush1.msra.mxu0 %v4456
    %4503 = vmatprep.subr.mxu0 0.0
    %4504 = vmatpush1.msra.mxu0 %v4457
    %4505 = vmatprep.subr.mxu0 0.0
    %4506 = vmatpush1.msra.mxu0 %v4458
    %4507 = vmatprep.subr.mxu0 0.0
    %4508 = vmatpush1.msra.mxu0 %v4459
    %4509 = vmatprep.subr.mxu0 0.0
    %4510 = vmatpush1.msra.mxu0 %v4460
    %4511 = vmatprep.subr.mxu0 0.0
    %4512 = vmatpush1.msra.mxu0 %v4461
    %4513 = vmatprep.subr.mxu0 0.0
    %4514 = vmatpush1.msra.mxu0 %v4462
    %4515 = vmatprep.subr.mxu0 0.0
    %4516 = vmatpush1.msra.mxu0 %v4463
    %4517 = vmatprep.subr.mxu0 0.0
    %4518 = vmatpush1.msra.mxu0 %v4464
    %4519 = vmatprep.subr.mxu0 0.0
    %4520 = vmatpush1.msra.mxu0 %v4465
    %4521 = vmatprep.subr.mxu0 0.0
    %4522 = vmatpush1.msra.mxu0 %v4466
    %4523 = vmatprep.subr.mxu0 0.0
    %4524 = vmatpush1.msra.mxu0 %v4467
    %4525 = vmatprep.subr.mxu0 0.0
    %4526 = vmatpush1.msra.mxu0 %v4468
    %4527 = vmatprep.subr.mxu0 0.0
    %4528 = vmatpush1.msra.mxu0 %v4469
    %4529 = vmatprep.subr.mxu0 0.0
    %4530 = vmatpush1.msra.mxu0 %v4470
    %4531 = vmatprep.subr.mxu0 0.0
    %4532 = vmatpush1.msra.mxu0 %v4471
    %4533 = vmatprep.subr.mxu0 0.0
    %4534 = vmatpush1.msra.mxu0 %v4472
    %4535 = vmatprep.subr.mxu0 0.0
    %4536 = vmatpush1.msra.mxu0 %v4473
    %4537 = vmatprep.subr.mxu0 0.0
    %4538 = vmatpush1.msra.mxu0 %v4474
    %4539 = vmatprep.mubr.f32.mxu0 %v4427
    %4540 = vmatmul.mubr.f32.gmra.mrb[0].mxu0 0.0
    %v4541 = vpop.f32.mrb[0].mxu0
    %v4542 = vadd.f32 0.0, %v4541
    %v4543 = vpop.f32.mrb[0].mxu0
    %4544 = vdwg.mxu0
    %4545 = vmatprep.subr.mxu0 0.0
    %4546 = vmatpush1.msra.mxu0 %v4443
    %4547 = vmatprep.subr.mxu0 0.0
    %4548 = vmatpush1.msra.mxu0 %v4444
    %4549 = vmatprep.subr.mxu0 0.0
    %4550 = vmatpush1.msra.mxu0 %v4445
    %4551 = vmatprep.subr.mxu0 0.0
    %4552 = vmatpush1.msra.mxu0 %v4446
    %4553 = vmatprep.subr.mxu0 0.0
    %4554 = vmatpush1.msra.mxu0 %v4447
    %4555 = vmatprep.subr.mxu0 0.0
    %4556 = vmatpush1.msra.mxu0 %v4448
    %4557 = vmatprep.subr.mxu0 0.0
    %4558 = vmatpush1.msra.mxu0 %v4449
    %4559 = vmatprep.subr.mxu0 0.0
    %4560 = vmatpush1.msra.mxu0 %v4450
    %4561 = vmatprep.subr.mxu0 0.0
    %4562 = vmatpush1.msra.mxu0 %v4451
    %4563 = vmatprep.subr.mxu0 0.0
    %4564 = vmatpush1.msra.mxu0 %v4452
    %4565 = vmatprep.subr.mxu0 0.0
    %4566 = vmatpush1.msra.mxu0 %v4453
    %4567 = vmatprep.subr.mxu0 0.0
    %4568 = vmatpush1.msra.mxu0 %v4454
    %4569 = vmatprep.subr.mxu0 0.0
    %4570 = vmatpush1.msra.mxu0 %v4455
    %4571 = vmatprep.subr.mxu0 0.0
    %4572 = vmatpush1.msra.mxu0 %v4456
    %4573 = vmatprep.subr.mxu0 0.0
    %4574 = vmatpush1.msra.mxu0 %v4457
    %4575 = vmatprep.subr.mxu0 0.0
    %4576 = vmatpush1.msra.mxu0 %v4458
    %4577 = vmatprep.subr.mxu0 0.0
    %4578 = vmatpush1.msra.mxu0 %v4459
    %4579 = vmatprep.subr.mxu0 0.0
    %4580 = vmatpush1.msra.mxu0 %v4460
    %4581 = vmatprep.subr.mxu0 0.0
    %4582 = vmatpush1.msra.mxu0 %v4461
    %4583 = vmatprep.subr.mxu0 0.0
    %4584 = vmatpush1.msra.mxu0 %v4462
    %4585 = vmatprep.subr.mxu0 0.0
    %4586 = vmatpush1.msra.mxu0 %v4463
    %4587 = vmatprep.subr.mxu0 0.0
    %4588 = vmatpush1.msra.mxu0 %v4464
    %4589 = vmatprep.subr.mxu0 0.0
    %4590 = vmatpush1.msra.mxu0 %v4465
    %4591 = vmatprep.subr.mxu0 0.0
    %4592 = vmatpush1.msra.mxu0 %v4466
    %4593 = vmatprep.subr.mxu0 0.0
    %4594 = vmatpush1.msra.mxu0 %v4467
    %4595 = vmatprep.subr.mxu0 0.0
    %4596 = vmatpush1.msra.mxu0 %v4468
    %4597 = vmatprep.subr.mxu0 0.0
    %4598 = vmatpush1.msra.mxu0 %v4469
    %4599 = vmatprep.subr.mxu0 0.0
    %4600 = vmatpush1.msra.mxu0 %v4470
    %4601 = vmatprep.subr.mxu0 0.0
    %4602 = vmatpush1.msra.mxu0 %v4471
    %4603 = vmatprep.subr.mxu0 0.0
    %4604 = vmatpush1.msra.mxu0 %v4472
    %4605 = vmatprep.subr.mxu0 0.0
    %4606 = vmatpush1.msra.mxu0 %v4473
    %4607 = vmatprep.subr.mxu0 0.0
    %4608 = vmatpush1.msra.mxu0 %v4474
    %4609 = vmatprep.mubr.f32.mxu0 %v4428
    %4610 = vmatmul.mubr.f32.gmra.mrb[0].mxu0 %v4427
    %v4611 = vpop.f32.mrb[0].mxu0
    %v4612 = vadd.f32 0.0, %v4611
    %v4613 = vpop.f32.mrb[0].mxu0
    %4614 = vdwg.mxu0
    %4615 = vmatprep.subr.mxu0 0.0
    %4616 = vmatpush1.msra.mxu0 %v4443
    %4617 = vmatprep.subr.mxu0 0.0
    %4618 = vmatpush1.msra.mxu0 %v4444
    %4619 = vmatprep.subr.mxu0 0.0
    %4620 = vmatpush1.msra.mxu0 %v4445
    %4621 = vmatprep.subr.mxu0 0.0
    %4622 = vmatpush1.msra.mxu0 %v4446
    %4623 = vmatprep.subr.mxu0 0.0
    %4624 = vmatpush1.msra.mxu0 %v4447
    %4625 = vmatprep.subr.mxu0 0.0
    %4626 = vmatpush1.msra.mxu0 %v4448
    %4627 = vmatprep.subr.mxu0 0.0
    %4628 = vmatpush1.msra.mxu0 %v4449
    %4629 = vmatprep.subr.mxu0 0.0
    %4630 = vmatpush1.msra.mxu0 %v4450
    %4631 = vmatprep.subr.mxu0 0.0
    %4632 = vmatpush1.msra.mxu0 %v4451
    %4633 = vmatprep.subr.mxu0 0.0
    %4634 = vmatpush1.msra.mxu0 %v4452
    %4635 = vmatprep.subr.mxu0 0.0
    %4636 = vmatpush1.msra.mxu0 %v4453
    %4637 = vmatprep.subr.mxu0 0.0
    %4638 = vmatpush1.msra.mxu0 %v4454
    %4639 = vmatprep.subr.mxu0 0.0
    %4640 = vmatpush1.msra.mxu0 %v4455
    %4641 = vmatprep.subr.mxu0 0.0
    %4642 = vmatpush1.msra.mxu0 %v4456
    %4643 = vmatprep.subr.mxu0 0.0
    %4644 = vmatpush1.msra.mxu0 %v4457
    %4645 = vmatprep.subr.mxu0 0.0
    %4646 = vmatpush1.msra.mxu0 %v4458
    %4647 = vmatprep.subr.mxu0 0.0
    %4648 = vmatpush1.msra.mxu0 %v4459
    %4649 = vmatprep.subr.mxu0 0.0
    %4650 = vmatpush1.msra.mxu0 %v4460
    %4651 = vmatprep.subr.mxu0 0.0
    %4652 = vmatpush1.msra.mxu0 %v4461
    %4653 = vmatprep.subr.mxu0 0.0
    %4654 = vmatpush1.msra.mxu0 %v4462
    %4655 = vmatprep.subr.mxu0 0.0
    %4656 = vmatpush1.msra.mxu0 %v4463
    %4657 = vmatprep.subr.mxu0 0.0
    %4658 = vmatpush1.msra.mxu0 %v4464
    %4659 = vmatprep.subr.mxu0 0.0
    %4660 = vmatpush1.msra.mxu0 %v4465
    %4661 = vmatprep.subr.mxu0 0.0
    %4662 = vmatpush1.msra.mxu0 %v4466
    %4663 = vmatprep.subr.mxu0 0.0
    %4664 = vmatpush1.msra.mxu0 %v4467
    %4665 = vmatprep.subr.mxu0 0.0
    %4666 = vmatpush1.msra.mxu0 %v4468
    %4667 = vmatprep.subr.mxu0 0.0
    %4668 = vmatpush1.msra.mxu0 %v4469
    %4669 = vmatprep.subr.mxu0 0.0
    %4670 = vmatpush1.msra.mxu0 %v4470
    %4671 = vmatprep.subr.mxu0 0.0
    %4672 = vmatpush1.msra.mxu0 %v4471
    %4673 = vmatprep.subr.mxu0 0.0
    %4674 = vmatpush1.msra.mxu0 %v4472
    %4675 = vmatprep.subr.mxu0 0.0
    %4676 = vmatpush1.msra.mxu0 %v4473
    %4677 = vmatprep.subr.mxu0 0.0
    %4678 = vmatpush1.msra.mxu0 %v4474
    %4679 = vmatprep.mubr.f32.mxu0 %v4429
    %4680 = vmatmul.mubr.f32.gmra.mrb[0].mxu0 %v4428
    %v4681 = vpop.f32.mrb[0].mxu0
    %v4682 = vadd.f32 0.0, %v4681
    %v4683 = vpop.f32.mrb[0].mxu0
    %4684 = vdwg.mxu0
    %4685 = vmatprep.subr.mxu0 0.0
    %4686 = vmatpush1.msra.mxu0 %v4443
    %4687 = vmatprep.subr.mxu0 0.0
    %4688 = vmatpush1.msra.mxu0 %v4444
    %4689 = vmatprep.subr.mxu0 0.0
    %4690 = vmatpush1.msra.mxu0 %v4445
    %4691 = vmatprep.subr.mxu0 0.0
    %4692 = vmatpush1.msra.mxu0 %v4446
    %4693 = vmatprep.subr.mxu0 0.0
    %4694 = vmatpush1.msra.mxu0 %v4447
    %4695 = vmatprep.subr.mxu0 0.0
    %4696 = vmatpush1.msra.mxu0 %v4448
    %4697 = vmatprep.subr.mxu0 0.0
    %4698 = vmatpush1.msra.mxu0 %v4449
    %4699 = vmatprep.subr.mxu0 0.0
    %4700 = vmatpush1.msra.mxu0 %v4450
    %4701 = vmatprep.subr.mxu0 0.0
    %4702 = vmatpush1.msra.mxu0 %v4451
    %4703 = vmatprep.subr.mxu0 0.0
    %4704 = vmatpush1.msra.mxu0 %v4452
    %4705 = vmatprep.subr.mxu0 0.0
    %4706 = vmatpush1.msra.mxu0 %v4453
    %4707 = vmatprep.subr.mxu0 0.0
    %4708 = vmatpush1.msra.mxu0 %v4454
    %4709 = vmatprep.subr.mxu0 0.0
    %4710 = vmatpush1.msra.mxu0 %v4455
    %4711 = vmatprep.subr.mxu0 0.0
    %4712 = vmatpush1.msra.mxu0 %v4456
    %4713 = vmatprep.subr.mxu0 0.0
    %4714 = vmatpush1.msra.mxu0 %v4457
    %4715 = vmatprep.subr.mxu0 0.0
    %4716 = vmatpush1.msra.mxu0 %v4458
    %4717 = vmatprep.subr.mxu0 0.0
    %4718 = vmatpush1.msra.mxu0 %v4459
    %4719 = vmatprep.subr.mxu0 0.0
    %4720 = vmatpush1.msra.mxu0 %v4460
    %4721 = vmatprep.subr.mxu0 0.0
    %4722 = vmatpush1.msra.mxu0 %v4461
    %4723 = vmatprep.subr.mxu0 0.0
    %4724 = vmatpush1.msra.mxu0 %v4462
    %4725 = vmatprep.subr.mxu0 0.0
    %4726 = vmatpush1.msra.mxu0 %v4463
    %4727 = vmatprep.subr.mxu0 0.0
    %4728 = vmatpush1.msra.mxu0 %v4464
    %4729 = vmatprep.subr.mxu0 0.0
    %4730 = vmatpush1.msra.mxu0 %v4465
    %4731 = vmatprep.subr.mxu0 0.0
    %4732 = vmatpush1.msra.mxu0 %v4466
    %4733 = vmatprep.subr.mxu0 0.0
    %4734 = vmatpush1.msra.mxu0 %v4467
    %4735 = vmatprep.subr.mxu0 0.0
    %4736 = vmatpush1.msra.mxu0 %v4468
    %4737 = vmatprep.subr.mxu0 0.0
    %4738 = vmatpush1.msra.mxu0 %v4469
    %4739 = vmatprep.subr.mxu0 0.0
    %4740 = vmatpush1.msra.mxu0 %v4470
    %4741 = vmatprep.subr.mxu0 0.0
    %4742 = vmatpush1.msra.mxu0 %v4471
    %4743 = vmatprep.subr.mxu0 0.0
    %4744 = vmatpush1.msra.mxu0 %v4472
    %4745 = vmatprep.subr.mxu0 0.0
    %4746 = vmatpush1.msra.mxu0 %v4473
    %4747 = vmatprep.subr.mxu0 0.0
    %4748 = vmatpush1.msra.mxu0 %v4474
    %4749 = vmatprep.mubr.f32.mxu0 %v4430
    %4750 = vmatmul.mubr.f32.gmra.mrb[0].mxu0 %v4429
    %v4751 = vpop.f32.mrb[0].mxu0
    %v4752 = vadd.f32 0.0, %v4751
    %v4753 = vpop.f32.mrb[0].mxu0
    %4754 = vdwg.mxu0
    %4755 = vmatprep.subr.mxu0 0.0
    %4756 = vmatpush1.msra.mxu0 %v4443
    %4757 = vmatprep.subr.mxu0 0.0
    %4758 = vmatpush1.msra.mxu0 %v4444
    %4759 = vmatprep.subr.mxu0 0.0
    %4760 = vmatpush1.msra.mxu0 %v4445
    %4761 = vmatprep.subr.mxu0 0.0
    %4762 = vmatpush1.msra.mxu0 %v4446
    %4763 = vmatprep.subr.mxu0 0.0
    %4764 = vmatpush1.msra.mxu0 %v4447
    %4765 = vmatprep.subr.mxu0 0.0
    %4766 = vmatpush1.msra.mxu0 %v4448
    %4767 = vmatprep.subr.mxu0 0.0
    %4768 = vmatpush1.msra.mxu0 %v4449
    %4769 = vmatprep.subr.mxu0 0.0
    %4770 = vmatpush1.msra.mxu0 %v4450
    %4771 = vmatprep.subr.mxu0 0.0
    %4772 = vmatpush1.msra.mxu0 %v4451
    %4773 = vmatprep.subr.mxu0 0.0
    %4774 = vmatpush1.msra.mxu0 %v4452
    %4775 = vmatprep.subr.mxu0 0.0
    %4776 = vmatpush1.msra.mxu0 %v4453
    %4777 = vmatprep.subr.mxu0 0.0
    %4778 = vmatpush1.msra.mxu0 %v4454
    %4779 = vmatprep.subr.mxu0 0.0
    %4780 = vmatpush1.msra.mxu0 %v4455
    %4781 = vmatprep.subr.mxu0 0.0
    %4782 = vmatpush1.msra.mxu0 %v4456
    %4783 = vmatprep.subr.mxu0 0.0
    %4784 = vmatpush1.msra.mxu0 %v4457
    %4785 = vmatprep.subr.mxu0 0.0
    %4786 = vmatpush1.msra.mxu0 %v4458
    %4787 = vmatprep.subr.mxu0 0.0
    %4788 = vmatpush1.msra.mxu0 %v4459
    %4789 = vmatprep.subr.mxu0 0.0
    %4790 = vmatpush1.msra.mxu0 %v4460
    %4791 = vmatprep.subr.mxu0 0.0
    %4792 = vmatpush1.msra.mxu0 %v4461
    %4793 = vmatprep.subr.mxu0 0.0
    %4794 = vmatpush1.msra.mxu0 %v4462
    %4795 = vmatprep.subr.mxu0 0.0
    %4796 = vmatpush1.msra.mxu0 %v4463
    %4797 = vmatprep.subr.mxu0 0.0
    %4798 = vmatpush1.msra.mxu0 %v4464
    %4799 = vmatprep.subr.mxu0 0.0
    %4800 = vmatpush1.msra.mxu0 %v4465
    %4801 = vmatprep.subr.mxu0 0.0
    %4802 = vmatpush1.msra.mxu0 %v4466
    %4803 = vmatprep.subr.mxu0 0.0
    %4804 = vmatpush1.msra.mxu0 %v4467
    %4805 = vmatprep.subr.mxu0 0.0
    %4806 = vmatpush1.msra.mxu0 %v4468
    %4807 = vmatprep.subr.mxu0 0.0
    %4808 = vmatpush1.msra.mxu0 %v4469
    %4809 = vmatprep.subr.mxu0 0.0
    %4810 = vmatpush1.msra.mxu0 %v4470
    %4811 = vmatprep.subr.mxu0 0.0
    %4812 = vmatpush1.msra.mxu0 %v4471
    %4813 = vmatprep.subr.mxu0 0.0
    %4814 = vmatpush1.msra.mxu0 %v4472
    %4815 = vmatprep.subr.mxu0 0.0
    %4816 = vmatpush1.msra.mxu0 %v4473
    %4817 = vmatprep.subr.mxu0 0.0
    %4818 = vmatpush1.msra.mxu0 %v4474
    %4819 = vmatprep.mubr.f32.mxu0 %v4431
    %4820 = vmatmul.mubr.f32.gmra.mrb[0].mxu0 %v4430
    %v4821 = vpop.f32.mrb[0].mxu0
    %v4822 = vadd.f32 0.0, %v4821
    %v4823 = vpop.f32.mrb[0].mxu0
    %4824 = vdwg.mxu0
    %4825 = vmatprep.subr.mxu0 0.0
    %4826 = vmatpush1.msra.mxu0 %v4443
    %4827 = vmatprep.subr.mxu0 0.0
    %4828 = vmatpush1.msra.mxu0 %v4444
    %4829 = vmatprep.subr.mxu0 0.0
    %4830 = vmatpush1.msra.mxu0 %v4445
    %4831 = vmatprep.subr.mxu0 0.0
    %4832 = vmatpush1.msra.mxu0 %v4446
    %4833 = vmatprep.subr.mxu0 0.0
    %4834 = vmatpush1.msra.mxu0 %v4447
    %4835 = vmatprep.subr.mxu0 0.0
    %4836 = vmatpush1.msra.mxu0 %v4448
    %4837 = vmatprep.subr.mxu0 0.0
    %4838 = vmatpush1.msra.mxu0 %v4449
    %4839 = vmatprep.subr.mxu0 0.0
    %4840 = vmatpush1.msra.mxu0 %v4450
    %4841 = vmatprep.subr.mxu0 0.0
    %4842 = vmatpush1.msra.mxu0 %v4451
    %4843 = vmatprep.subr.mxu0 0.0
    %4844 = vmatpush1.msra.mxu0 %v4452
    %4845 = vmatprep.subr.mxu0 0.0
    %4846 = vmatpush1.msra.mxu0 %v4453
    %4847 = vmatprep.subr.mxu0 0.0
    %4848 = vmatpush1.msra.mxu0 %v4454
    %4849 = vmatprep.subr.mxu0 0.0
    %4850 = vmatpush1.msra.mxu0 %v4455
    %4851 = vmatprep.subr.mxu0 0.0
    %4852 = vmatpush1.msra.mxu0 %v4456
    %4853 = vmatprep.subr.mxu0 0.0
    %4854 = vmatpush1.msra.mxu0 %v4457
    %4855 = vmatprep.subr.mxu0 0.0
    %4856 = vmatpush1.msra.mxu0 %v4458
    %4857 = vmatprep.subr.mxu0 0.0
    %4858 = vmatpush1.msra.mxu0 %v4459
    %4859 = vmatprep.subr.mxu0 0.0
    %4860 = vmatpush1.msra.mxu0 %v4460
    %4861 = vmatprep.subr.mxu0 0.0
    %4862 = vmatpush1.msra.mxu0 %v4461
    %4863 = vmatprep.subr.mxu0 0.0
    %4864 = vmatpush1.msra.mxu0 %v4462
    %4865 = vmatprep.subr.mxu0 0.0
    %4866 = vmatpush1.msra.mxu0 %v4463
    %4867 = vmatprep.subr.mxu0 0.0
    %4868 = vmatpush1.msra.mxu0 %v4464
    %4869 = vmatprep.subr.mxu0 0.0
    %4870 = vmatpush1.msra.mxu0 %v4465
    %4871 = vmatprep.subr.mxu0 0.0
    %4872 = vmatpush1.msra.mxu0 %v4466
    %4873 = vmatprep.subr.mxu0 0.0
    %4874 = vmatpush1.msra.mxu0 %v4467
    %4875 = vmatprep.subr.mxu0 0.0
    %4876 = vmatpush1.msra.mxu0 %v4468
    %4877 = vmatprep.subr.mxu0 0.0
    %4878 = vmatpush1.msra.mxu0 %v4469
    %4879 = vmatprep.subr.mxu0 0.0
    %4880 = vmatpush1.msra.mxu0 %v4470
    %4881 = vmatprep.subr.mxu0 0.0
    %4882 = vmatpush1.msra.mxu0 %v4471
    %4883 = vmatprep.subr.mxu0 0.0
    %4884 = vmatpush1.msra.mxu0 %v4472
    %4885 = vmatprep.subr.mxu0 0.0
    %4886 = vmatpush1.msra.mxu0 %v4473
    %4887 = vmatprep.subr.mxu0 0.0
    %4888 = vmatpush1.msra.mxu0 %v4474
    %4889 = vmatprep.mubr.f32.mxu0 %v4432
    %4890 = vmatmul.mubr.f32.gmra.mrb[0].mxu0 %v4431
    %v4891 = vpop.f32.mrb[0].mxu0
    %v4892 = vadd.f32 0.0, %v4891
    %v4893 = vpop.f32.mrb[0].mxu0
    %4894 = vdwg.mxu0
    %4895 = vmatprep.subr.mxu0 0.0
    %4896 = vmatpush1.msra.mxu0 %v4443
    %4897 = vmatprep.subr.mxu0 0.0
    %4898 = vmatpush1.msra.mxu0 %v4444
    %4899 = vmatprep.subr.mxu0 0.0
    %4900 = vmatpush1.msra.mxu0 %v4445
    %4901 = vmatprep.subr.mxu0 0.0
    %4902 = vmatpush1.msra.mxu0 %v4446
    %4903 = vmatprep.subr.mxu0 0.0
    %4904 = vmatpush1.msra.mxu0 %v4447
    %4905 = vmatprep.subr.mxu0 0.0
    %4906 = vmatpush1.msra.mxu0 %v4448
    %4907 = vmatprep.subr.mxu0 0.0
    %4908 = vmatpush1.msra.mxu0 %v4449
    %4909 = vmatprep.subr.mxu0 0.0
    %4910 = vmatpush1.msra.mxu0 %v4450
    %4911 = vmatprep.subr.mxu0 0.0
    %4912 = vmatpush1.msra.mxu0 %v4451
    %4913 = vmatprep.subr.mxu0 0.0
    %4914 = vmatpush1.msra.mxu0 %v4452
    %4915 = vmatprep.subr.mxu0 0.0
    %4916 = vmatpush1.msra.mxu0 %v4453
    %4917 = vmatprep.subr.mxu0 0.0
    %4918 = vmatpush1.msra.mxu0 %v4454
    %4919 = vmatprep.subr.mxu0 0.0
    %4920 = vmatpush1.msra.mxu0 %v4455
    %4921 = vmatprep.subr.mxu0 0.0
    %4922 = vmatpush1.msra.mxu0 %v4456
    %4923 = vmatprep.subr.mxu0 0.0
    %4924 = vmatpush1.msra.mxu0 %v4457
    %4925 = vmatprep.subr.mxu0 0.0
    %4926 = vmatpush1.msra.mxu0 %v4458
    %4927 = vmatprep.subr.mxu0 0.0
    %4928 = vmatpush1.msra.mxu0 %v4459
    %4929 = vmatprep.subr.mxu0 0.0
    %4930 = vmatpush1.msra.mxu0 %v4460
    %4931 = vmatprep.subr.mxu0 0.0
    %4932 = vmatpush1.msra.mxu0 %v4461
    %4933 = vmatprep.subr.mxu0 0.0
    %4934 = vmatpush1.msra.mxu0 %v4462
    %4935 = vmatprep.subr.mxu0 0.0
    %4936 = vmatpush1.msra.mxu0 %v4463
    %4937 = vmatprep.subr.mxu0 0.0
    %4938 = vmatpush1.msra.mxu0 %v4464
    %4939 = vmatprep.subr.mxu0 0.0
    %4940 = vmatpush1.msra.mxu0 %v4465
    %4941 = vmatprep.subr.mxu0 0.0
    %4942 = vmatpush1.msra.mxu0 %v4466
    %4943 = vmatprep.subr.mxu0 0.0
    %4944 = vmatpush1.msra.mxu0 %v4467
    %4945 = vmatprep.subr.mxu0 0.0
    %4946 = vmatpush1.msra.mxu0 %v4468
    %4947 = vmatprep.subr.mxu0 0.0
    %4948 = vmatpush1.msra.mxu0 %v4469
    %4949 = vmatprep.subr.mxu0 0.0
    %4950 = vmatpush1.msra.mxu0 %v4470
    %4951 = vmatprep.subr.mxu0 0.0
    %4952 = vmatpush1.msra.mxu0 %v4471
    %4953 = vmatprep.subr.mxu0 0.0
    %4954 = vmatpush1.msra.mxu0 %v4472
    %4955 = vmatprep.subr.mxu0 0.0
    %4956 = vmatpush1.msra.mxu0 %v4473
    %4957 = vmatprep.subr.mxu0 0.0
    %4958 = vmatpush1.msra.mxu0 %v4474
    %4959 = vmatprep.mubr.f32.mxu0 %v4433
    %4960 = vmatmul.mubr.f32.gmra.mrb[0].mxu0 %v4432
    %v4961 = vpop.f32.mrb[0].mxu0
    %v4962 = vadd.f32 0.0, %v4961
    %v4963 = vpop.f32.mrb[0].mxu0
    %4964 = vdwg.mxu0
    %4965 = vmatprep.subr.mxu0 0.0
    %4966 = vmatpush1.msra.mxu0 %v4443
    %4967 = vmatprep.subr.mxu0 0.0
    %4968 = vmatpush1.msra.mxu0 %v4444
    %4969 = vmatprep.subr.mxu0 0.0
    %4970 = vmatpush1.msra.mxu0 %v4445
    %4971 = vmatprep.subr.mxu0 0.0
    %4972 = vmatpush1.msra.mxu0 %v4446
    %4973 = vmatprep.subr.mxu0 0.0
    %4974 = vmatpush1.msra.mxu0 %v4447
    %4975 = vmatprep.subr.mxu0 0.0
    %4976 = vmatpush1.msra.mxu0 %v4448
    %4977 = vmatprep.subr.mxu0 0.0
    %4978 = vmatpush1.msra.mxu0 %v4449
    %4979 = vmatprep.subr.mxu0 0.0
    %4980 = vmatpush1.msra.mxu0 %v4450
    %4981 = vmatprep.subr.mxu0 0.0
    %4982 = vmatpush1.msra.mxu0 %v4451
    %4983 = vmatprep.subr.mxu0 0.0
    %4984 = vmatpush1.msra.mxu0 %v4452
    %4985 = vmatprep.subr.mxu0 0.0
    %4986 = vmatpush1.msra.mxu0 %v4453
    %4987 = vmatprep.subr.mxu0 0.0
    %4988 = vmatpush1.msra.mxu0 %v4454
    %4989 = vmatprep.subr.mxu0 0.0
    %4990 = vmatpush1.msra.mxu0 %v4455
    %4991 = vmatprep.subr.mxu0 0.0
    %4992 = vmatpush1.msra.mxu0 %v4456
    %4993 = vmatprep.subr.mxu0 0.0
    %4994 = vmatpush1.msra.mxu0 %v4457
    %4995 = vmatprep.subr.mxu0 0.0
    %4996 = vmatpush1.msra.mxu0 %v4458
    %4997 = vmatprep.subr.mxu0 0.0
    %4998 = vmatpush1.msra.mxu0 %v4459
    %4999 = vmatprep.subr.mxu0 0.0
    %5000 = vmatpush1.msra.mxu0 %v4460
    %5001 = vmatprep.subr.mxu0 0.0
    %5002 = vmatpush1.msra.mxu0 %v4461
    %5003 = vmatprep.subr.mxu0 0.0
    %5004 = vmatpush1.msra.mxu0 %v4462
    %5005 = vmatprep.subr.mxu0 0.0
    %5006 = vmatpush1.msra.mxu0 %v4463
    %5007 = vmatprep.subr.mxu0 0.0
    %5008 = vmatpush1.msra.mxu0 %v4464
    %5009 = vmatprep.subr.mxu0 0.0
    %5010 = vmatpush1.msra.mxu0 %v4465
    %5011 = vmatprep.subr.mxu0 0.0
    %5012 = vmatpush1.msra.mxu0 %v4466
    %5013 = vmatprep.subr.mxu0 0.0
    %5014 = vmatpush1.msra.mxu0 %v4467
    %5015 = vmatprep.subr.mxu0 0.0
    %5016 = vmatpush1.msra.mxu0 %v4468
    %5017 = vmatprep.subr.mxu0 0.0
    %5018 = vmatpush1.msra.mxu0 %v4469
    %5019 = vmatprep.subr.mxu0 0.0
    %5020 = vmatpush1.msra.mxu0 %v4470
    %5021 = vmatprep.subr.mxu0 0.0
    %5022 = vmatpush1.msra.mxu0 %v4471
    %5023 = vmatprep.subr.mxu0 0.0
    %5024 = vmatpush1.msra.mxu0 %v4472
    %5025 = vmatprep.subr.mxu0 0.0
    %5026 = vmatpush1.msra.mxu0 %v4473
    %5027 = vmatprep.subr.mxu0 0.0
    %5028 = vmatpush1.msra.mxu0 %v4474
    %5029 = vmatprep.mubr.f32.mxu0 %v4434
    %5030 = vmatmul.mubr.f32.gmra.mrb[0].mxu0 %v4433
    %v5031 = vpop.f32.mrb[0].mxu0
    %v5032 = vadd.f32 0.0, %v5031
    %v5033 = vpop.f32.mrb[0].mxu0
    %5034 = vdwg.mxu0
    %5035 = vmatprep.subr.mxu0 0.0
    %5036 = vmatpush1.msra.mxu0 %v4443
    %5037 = vmatprep.subr.mxu0 0.0
    %5038 = vmatpush1.msra.mxu0 %v4444
    %5039 = vmatprep.subr.mxu0 0.0
    %5040 = vmatpush1.msra.mxu0 %v4445
    %5041 = vmatprep.subr.mxu0 0.0
    %5042 = vmatpush1.msra.mxu0 %v4446
    %5043 = vmatprep.subr.mxu0 0.0
    %5044 = vmatpush1.msra.mxu0 %v4447
    %5045 = vmatprep.subr.mxu0 0.0
    %5046 = vmatpush1.msra.mxu0 %v4448
    %5047 = vmatprep.subr.mxu0 0.0
    %5048 = vmatpush1.msra.mxu0 %v4449
    %5049 = vmatprep.subr.mxu0 0.0
    %5050 = vmatpush1.msra.mxu0 %v4450
    %5051 = vmatprep.subr.mxu0 0.0
    %5052 = vmatpush1.msra.mxu0 %v4451
    %5053 = vmatprep.subr.mxu0 0.0
    %5054 = vmatpush1.msra.mxu0 %v4452
    %5055 = vmatprep.subr.mxu0 0.0
    %5056 = vmatpush1.msra.mxu0 %v4453
    %5057 = vmatprep.subr.mxu0 0.0
    %5058 = vmatpush1.msra.mxu0 %v4454
    %5059 = vmatprep.subr.mxu0 0.0
    %5060 = vmatpush1.msra.mxu0 %v4455
    %5061 = vmatprep.subr.mxu0 0.0
    %5062 = vmatpush1.msra.mxu0 %v4456
    %5063 = vmatprep.subr.mxu0 0.0
    %5064 = vmatpush1.msra.mxu0 %v4457
    %5065 = vmatprep.subr.mxu0 0.0
    %5066 = vmatpush1.msra.mxu0 %v4458
    %5067 = vmatprep.subr.mxu0 0.0
    %5068 = vmatpush1.msra.mxu0 %v4459
    %5069 = vmatprep.subr.mxu0 0.0
    %5070 = vmatpush1.msra.mxu0 %v4460
    %5071 = vmatprep.subr.mxu0 0.0
    %5072 = vmatpush1.msra.mxu0 %v4461
    %5073 = vmatprep.subr.mxu0 0.0
    %5074 = vmatpush1.msra.mxu0 %v4462
    %5075 = vmatprep.subr.mxu0 0.0
    %5076 = vmatpush1.msra.mxu0 %v4463
    %5077 = vmatprep.subr.mxu0 0.0
    %5078 = vmatpush1.msra.mxu0 %v4464
    %5079 = vmatprep.subr.mxu0 0.0
    %5080 = vmatpush1.msra.mxu0 %v4465
    %5081 = vmatprep.subr.mxu0 0.0
    %5082 = vmatpush1.msra.mxu0 %v4466
    %5083 = vmatprep.subr.mxu0 0.0
    %5084 = vmatpush1.msra.mxu0 %v4467
    %5085 = vmatprep.subr.mxu0 0.0
    %5086 = vmatpush1.msra.mxu0 %v4468
    %5087 = vmatprep.subr.mxu0 0.0
    %5088 = vmatpush1.msra.mxu0 %v4469
    %5089 = vmatprep.subr.mxu0 0.0
    %5090 = vmatpush1.msra.mxu0 %v4470
    %5091 = vmatprep.subr.mxu0 0.0
    %5092 = vmatpush1.msra.mxu0 %v4471
    %5093 = vmatprep.subr.mxu0 0.0
    %5094 = vmatpush1.msra.mxu0 %v4472
    %5095 = vmatprep.subr.mxu0 0.0
    %5096 = vmatpush1.msra.mxu0 %v4473
    %5097 = vmatprep.subr.mxu0 0.0
    %5098 = vmatpush1.msra.mxu0 %v4474
    %5099 = vmatprep.mubr.f32.mxu0 %v4435
    %5100 = vmatmul.mubr.f32.gmra.mrb[0].mxu0 %v4434
    %v5101 = vpop.f32.mrb[0].mxu0
    %v5102 = vadd.f32 0.0, %v5101
    %v5103 = vpop.f32.mrb[0].mxu0
    %5104 = vdwg.mxu0
    %5105 = vmatprep.subr.mxu0 0.0
    %5106 = vmatpush1.msra.mxu0 %v4443
    %5107 = vmatprep.subr.mxu0 0.0
    %5108 = vmatpush1.msra.mxu0 %v4444
    %5109 = vmatprep.subr.mxu0 0.0
    %5110 = vmatpush1.msra.mxu0 %v4445
    %5111 = vmatprep.subr.mxu0 0.0
    %5112 = vmatpush1.msra.mxu0 %v4446
    %5113 = vmatprep.subr.mxu0 0.0
    %5114 = vmatpush1.msra.mxu0 %v4447
    %5115 = vmatprep.subr.mxu0 0.0
    %5116 = vmatpush1.msra.mxu0 %v4448
    %5117 = vmatprep.subr.mxu0 0.0
    %5118 = vmatpush1.msra.mxu0 %v4449
    %5119 = vmatprep.subr.mxu0 0.0
    %5120 = vmatpush1.msra.mxu0 %v4450
    %5121 = vmatprep.subr.mxu0 0.0
    %5122 = vmatpush1.msra.mxu0 %v4451
    %5123 = vmatprep.subr.mxu0 0.0
    %5124 = vmatpush1.msra.mxu0 %v4452
    %5125 = vmatprep.subr.mxu0 0.0
    %5126 = vmatpush1.msra.mxu0 %v4453
    %5127 = vmatprep.subr.mxu0 0.0
    %5128 = vmatpush1.msra.mxu0 %v4454
    %5129 = vmatprep.subr.mxu0 0.0
    %5130 = vmatpush1.msra.mxu0 %v4455
    %5131 = vmatprep.subr.mxu0 0.0
    %5132 = vmatpush1.msra.mxu0 %v4456
    %5133 = vmatprep.subr.mxu0 0.0
    %5134 = vmatpush1.msra.mxu0 %v4457
    %5135 = vmatprep.subr.mxu0 0.0
    %5136 = vmatpush1.msra.mxu0 %v4458
    %5137 = vmatprep.subr.mxu0 0.0
    %5138 = vmatpush1.msra.mxu0 %v4459
    %5139 = vmatprep.subr.mxu0 0.0
    %5140 = vmatpush1.msra.mxu0 %v4460
    %5141 = vmatprep.subr.mxu0 0.0
    %5142 = vmatpush1.msra.mxu0 %v4461
    %5143 = vmatprep.subr.mxu0 0.0
    %5144 = vmatpush1.msra.mxu0 %v4462
    %5145 = vmatprep.subr.mxu0 0.0
    %5146 = vmatpush1.msra.mxu0 %v4463
    %5147 = vmatprep.subr.mxu0 0.0
    %5148 = vmatpush1.msra.mxu0 %v4464
    %5149 = vmatprep.subr.mxu0 0.0
    %5150 = vmatpush1.msra.mxu0 %v4465
    %5151 = vmatprep.subr.mxu0 0.0
    %5152 = vmatpush1.msra.mxu0 %v4466
    %5153 = vmatprep.subr.mxu0 0.0
    %5154 = vmatpush1.msra.mxu0 %v4467
    %5155 = vmatprep.subr.mxu0 0.0
    %5156 = vmatpush1.msra.mxu0 %v4468
    %5157 = vmatprep.subr.mxu0 0.0
    %5158 = vmatpush1.msra.mxu0 %v4469
    %5159 = vmatprep.subr.mxu0 0.0
    %5160 = vmatpush1.msra.mxu0 %v4470
    %5161 = vmatprep.subr.mxu0 0.0
    %5162 = vmatpush1.msra.mxu0 %v4471
    %5163 = vmatprep.subr.mxu0 0.0
    %5164 = vmatpush1.msra.mxu0 %v4472
    %5165 = vmatprep.subr.mxu0 0.0
    %5166 = vmatpush1.msra.mxu0 %v4473
    %5167 = vmatprep.subr.mxu0 0.0
    %5168 = vmatpush1.msra.mxu0 %v4474
    %5169 = vmatprep.mubr.f32.mxu0 %v4436
    %5170 = vmatmul.mubr.f32.gmra.mrb[0].mxu0 %v4435
    %v5171 = vpop.f32.mrb[0].mxu0
    %v5172 = vadd.f32 0.0, %v5171
    %v5173 = vpop.f32.mrb[0].mxu0
    %5174 = vdwg.mxu0
    %5175 = vmatprep.subr.mxu0 0.0
    %5176 = vmatpush1.msra.mxu0 %v4443
    %5177 = vmatprep.subr.mxu0 0.0
    %5178 = vmatpush1.msra.mxu0 %v4444
    %5179 = vmatprep.subr.mxu0 0.0
    %5180 = vmatpush1.msra.mxu0 %v4445
    %5181 = vmatprep.subr.mxu0 0.0
    %5182 = vmatpush1.msra.mxu0 %v4446
    %5183 = vmatprep.subr.mxu0 0.0
    %5184 = vmatpush1.msra.mxu0 %v4447
    %5185 = vmatprep.subr.mxu0 0.0
    %5186 = vmatpush1.msra.mxu0 %v4448
    %5187 = vmatprep.subr.mxu0 0.0
    %5188 = vmatpush1.msra.mxu0 %v4449
    %5189 = vmatprep.subr.mxu0 0.0
    %5190 = vmatpush1.msra.mxu0 %v4450
    %5191 = vmatprep.subr.mxu0 0.0
    %5192 = vmatpush1.msra.mxu0 %v4451
    %5193 = vmatprep.subr.mxu0 0.0
    %5194 = vmatpush1.msra.mxu0 %v4452
    %5195 = vmatprep.subr.mxu0 0.0
    %5196 = vmatpush1.msra.mxu0 %v4453
    %5197 = vmatprep.subr.mxu0 0.0
    %5198 = vmatpush1.msra.mxu0 %v4454
    %5199 = vmatprep.subr.mxu0 0.0
    %5200 = vmatpush1.msra.mxu0 %v4455
    %5201 = vmatprep.subr.mxu0 0.0
    %5202 = vmatpush1.msra.mxu0 %v4456
    %5203 = vmatprep.subr.mxu0 0.0
    %5204 = vmatpush1.msra.mxu0 %v4457
    %5205 = vmatprep.subr.mxu0 0.0
    %5206 = vmatpush1.msra.mxu0 %v4458
    %5207 = vmatprep.subr.mxu0 0.0
    %5208 = vmatpush1.msra.mxu0 %v4459
    %5209 = vmatprep.subr.mxu0 0.0
    %5210 = vmatpush1.msra.mxu0 %v4460
    %5211 = vmatprep.subr.mxu0 0.0
    %5212 = vmatpush1.msra.mxu0 %v4461
    %5213 = vmatprep.subr.mxu0 0.0
    %5214 = vmatpush1.msra.mxu0 %v4462
    %5215 = vmatprep.subr.mxu0 0.0
    %5216 = vmatpush1.msra.mxu0 %v4463
    %5217 = vmatprep.subr.mxu0 0.0
    %5218 = vmatpush1.msra.mxu0 %v4464
    %5219 = vmatprep.subr.mxu0 0.0
    %5220 = vmatpush1.msra.mxu0 %v4465
    %5221 = vmatprep.subr.mxu0 0.0
    %5222 = vmatpush1.msra.mxu0 %v4466
    %5223 = vmatprep.subr.mxu0 0.0
    %5224 = vmatpush1.msra.mxu0 %v4467
    %5225 = vmatprep.subr.mxu0 0.0
    %5226 = vmatpush1.msra.mxu0 %v4468
    %5227 = vmatprep.subr.mxu0 0.0
    %5228 = vmatpush1.msra.mxu0 %v4469
    %5229 = vmatprep.subr.mxu0 0.0
    %5230 = vmatpush1.msra.mxu0 %v4470
    %5231 = vmatprep.subr.mxu0 0.0
    %5232 = vmatpush1.msra.mxu0 %v4471
    %5233 = vmatprep.subr.mxu0 0.0
    %5234 = vmatpush1.msra.mxu0 %v4472
    %5235 = vmatprep.subr.mxu0 0.0
    %5236 = vmatpush1.msra.mxu0 %v4473
    %5237 = vmatprep.subr.mxu0 0.0
    %5238 = vmatpush1.msra.mxu0 %v4474
    %5239 = vmatprep.mubr.f32.mxu0 %v4437
    %5240 = vmatmul.mubr.f32.gmra.mrb[0].mxu0 %v4436
    %v5241 = vpop.f32.mrb[0].mxu0
    %v5242 = vadd.f32 0.0, %v5241
    %v5243 = vpop.f32.mrb[0].mxu0
    %5244 = vdwg.mxu0
    %5245 = vmatprep.subr.mxu0 0.0
    %5246 = vmatpush1.msra.mxu0 %v4443
    %5247 = vmatprep.subr.mxu0 0.0
    %5248 = vmatpush1.msra.mxu0 %v4444
    %5249 = vmatprep.subr.mxu0 0.0
    %5250 = vmatpush1.msra.mxu0 %v4445
    %5251 = vmatprep.subr.mxu0 0.0
    %5252 = vmatpush1.msra.mxu0 %v4446
    %5253 = vmatprep.subr.mxu0 0.0
    %5254 = vmatpush1.msra.mxu0 %v4447
    %5255 = vmatprep.subr.mxu0 0.0
    %5256 = vmatpush1.msra.mxu0 %v4448
    %5257 = vmatprep.subr.mxu0 0.0
    %5258 = vmatpush1.msra.mxu0 %v4449
    %5259 = vmatprep.subr.mxu0 0.0
    %5260 = vmatpush1.msra.mxu0 %v4450
    %5261 = vmatprep.subr.mxu0 0.0
    %5262 = vmatpush1.msra.mxu0 %v4451
    %5263 = vmatprep.subr.mxu0 0.0
    %5264 = vmatpush1.msra.mxu0 %v4452
    %5265 = vmatprep.subr.mxu0 0.0
    %5266 = vmatpush1.msra.mxu0 %v4453
    %5267 = vmatprep.subr.mxu0 0.0
    %5268 = vmatpush1.msra.mxu0 %v4454
    %5269 = vmatprep.subr.mxu0 0.0
    %5270 = vmatpush1.msra.mxu0 %v4455
    %5271 = vmatprep.subr.mxu0 0.0
    %5272 = vmatpush1.msra.mxu0 %v4456
    %5273 = vmatprep.subr.mxu0 0.0
    %5274 = vmatpush1.msra.mxu0 %v4457
    %5275 = vmatprep.subr.mxu0 0.0
    %5276 = vmatpush1.msra.mxu0 %v4458
    %5277 = vmatprep.subr.mxu0 0.0
    %5278 = vmatpush1.msra.mxu0 %v4459
    %5279 = vmatprep.subr.mxu0 0.0
    %5280 = vmatpush1.msra.mxu0 %v4460
    %5281 = vmatprep.subr.mxu0 0.0
    %5282 = vmatpush1.msra.mxu0 %v4461
    %5283 = vmatprep.subr.mxu0 0.0
    %5284 = vmatpush1.msra.mxu0 %v4462
    %5285 = vmatprep.subr.mxu0 0.0
    %5286 = vmatpush1.msra.mxu0 %v4463
    %5287 = vmatprep.subr.mxu0 0.0
    %5288 = vmatpush1.msra.mxu0 %v4464
    %5289 = vmatprep.subr.mxu0 0.0
    %5290 = vmatpush1.msra.mxu0 %v4465
    %5291 = vmatprep.subr.mxu0 0.0
    %5292 = vmatpush1.msra.mxu0 %v4466
    %5293 = vmatprep.subr.mxu0 0.0
    %5294 = vmatpush1.msra.mxu0 %v4467
    %5295 = vmatprep.subr.mxu0 0.0
    %5296 = vmatpush1.msra.mxu0 %v4468
    %5297 = vmatprep.subr.mxu0 0.0
    %5298 = vmatpush1.msra.mxu0 %v4469
    %5299 = vmatprep.subr.mxu0 0.0
    %5300 = vmatpush1.msra.mxu0 %v4470
    %5301 = vmatprep.subr.mxu0 0.0
    %5302 = vmatpush1.msra.mxu0 %v4471
    %5303 = vmatprep.subr.mxu0 0.0
    %5304 = vmatpush1.msra.mxu0 %v4472
    %5305 = vmatprep.subr.mxu0 0.0
    %5306 = vmatpush1.msra.mxu0 %v4473
    %5307 = vmatprep.subr.mxu0 0.0
    %5308 = vmatpush1.msra.mxu0 %v4474
    %5309 = vmatprep.mubr.f32.mxu0 %v4438
    %5310 = vmatmul.mubr.f32.gmra.mrb[0].mxu0 %v4437
    %v5311 = vpop.f32.mrb[0].mxu0
    %v5312 = vadd.f32 0.0, %v5311
    %v5313 = vpop.f32.mrb[0].mxu0
    %5314 = vdwg.mxu0
    %5315 = vmatprep.subr.mxu0 0.0
    %5316 = vmatpush1.msra.mxu0 %v4443
    %5317 = vmatprep.subr.mxu0 0.0
    %5318 = vmatpush1.msra.mxu0 %v4444
    %5319 = vmatprep.subr.mxu0 0.0
    %5320 = vmatpush1.msra.mxu0 %v4445
    %5321 = vmatprep.subr.mxu0 0.0
    %5322 = vmatpush1.msra.mxu0 %v4446
    %5323 = vmatprep.subr.mxu0 0.0
    %5324 = vmatpush1.msra.mxu0 %v4447
    %5325 = vmatprep.subr.mxu0 0.0
    %5326 = vmatpush1.msra.mxu0 %v4448
    %5327 = vmatprep.subr.mxu0 0.0
    %5328 = vmatpush1.msra.mxu0 %v4449
    %5329 = vmatprep.subr.mxu0 0.0
    %5330 = vmatpush1.msra.mxu0 %v4450
    %5331 = vmatprep.subr.mxu0 0.0
    %5332 = vmatpush1.msra.mxu0 %v4451
    %5333 = vmatprep.subr.mxu0 0.0
    %5334 = vmatpush1.msra.mxu0 %v4452
    %5335 = vmatprep.subr.mxu0 0.0
    %5336 = vmatpush1.msra.mxu0 %v4453
    %5337 = vmatprep.subr.mxu0 0.0
    %5338 = vmatpush1.msra.mxu0 %v4454
    %5339 = vmatprep.subr.mxu0 0.0
    %5340 = vmatpush1.msra.mxu0 %v4455
    %5341 = vmatprep.subr.mxu0 0.0
    %5342 = vmatpush1.msra.mxu0 %v4456
    %5343 = vmatprep.subr.mxu0 0.0
    %5344 = vmatpush1.msra.mxu0 %v4457
    %5345 = vmatprep.subr.mxu0 0.0
    %5346 = vmatpush1.msra.mxu0 %v4458
    %5347 = vmatprep.subr.mxu0 0.0
    %5348 = vmatpush1.msra.mxu0 %v4459
    %5349 = vmatprep.subr.mxu0 0.0
    %5350 = vmatpush1.msra.mxu0 %v4460
    %5351 = vmatprep.subr.mxu0 0.0
    %5352 = vmatpush1.msra.mxu0 %v4461
    %5353 = vmatprep.subr.mxu0 0.0
    %5354 = vmatpush1.msra.mxu0 %v4462
    %5355 = vmatprep.subr.mxu0 0.0
    %5356 = vmatpush1.msra.mxu0 %v4463
    %5357 = vmatprep.subr.mxu0 0.0
    %5358 = vmatpush1.msra.mxu0 %v4464
    %5359 = vmatprep.subr.mxu0 0.0
    %5360 = vmatpush1.msra.mxu0 %v4465
    %5361 = vmatprep.subr.mxu0 0.0
    %5362 = vmatpush1.msra.mxu0 %v4466
    %5363 = vmatprep.subr.mxu0 0.0
    %5364 = vmatpush1.msra.mxu0 %v4467
    %5365 = vmatprep.subr.mxu0 0.0
    %5366 = vmatpush1.msra.mxu0 %v4468
    %5367 = vmatprep.subr.mxu0 0.0
    %5368 = vmatpush1.msra.mxu0 %v4469
    %5369 = vmatprep.subr.mxu0 0.0
    %5370 = vmatpush1.msra.mxu0 %v4470
    %5371 = vmatprep.subr.mxu0 0.0
    %5372 = vmatpush1.msra.mxu0 %v4471
    %5373 = vmatprep.subr.mxu0 0.0
    %5374 = vmatpush1.msra.mxu0 %v4472
    %5375 = vmatprep.subr.mxu0 0.0
    %5376 = vmatpush1.msra.mxu0 %v4473
    %5377 = vmatprep.subr.mxu0 0.0
    %5378 = vmatpush1.msra.mxu0 %v4474
    %5379 = vmatprep.mubr.f32.mxu0 %v4439
    %5380 = vmatmul.mubr.f32.gmra.mrb[0].mxu0 %v4438
    %v5381 = vpop.f32.mrb[0].mxu0
    %v5382 = vadd.f32 0.0, %v5381
    %v5383 = vpop.f32.mrb[0].mxu0
    %5384 = vdwg.mxu0
    %5385 = vmatprep.subr.mxu0 0.0
    %5386 = vmatpush1.msra.mxu0 %v4443
    %5387 = vmatprep.subr.mxu0 0.0
    %5388 = vmatpush1.msra.mxu0 %v4444
    %5389 = vmatprep.subr.mxu0 0.0
    %5390 = vmatpush1.msra.mxu0 %v4445
    %5391 = vmatprep.subr.mxu0 0.0
    %5392 = vmatpush1.msra.mxu0 %v4446
    %5393 = vmatprep.subr.mxu0 0.0
    %5394 = vmatpush1.msra.mxu0 %v4447
    %5395 = vmatprep.subr.mxu0 0.0
    %5396 = vmatpush1.msra.mxu0 %v4448
    %5397 = vmatprep.subr.mxu0 0.0
    %5398 = vmatpush1.msra.mxu0 %v4449
    %5399 = vmatprep.subr.mxu0 0.0
    %5400 = vmatpush1.msra.mxu0 %v4450
    %5401 = vmatprep.subr.mxu0 0.0
    %5402 = vmatpush1.msra.mxu0 %v4451
    %5403 = vmatprep.subr.mxu0 0.0
    %5404 = vmatpush1.msra.mxu0 %v4452
    %5405 = vmatprep.subr.mxu0 0.0
    %5406 = vmatpush1.msra.mxu0 %v4453
    %5407 = vmatprep.subr.mxu0 0.0
    %5408 = vmatpush1.msra.mxu0 %v4454
    %5409 = vmatprep.subr.mxu0 0.0
    %5410 = vmatpush1.msra.mxu0 %v4455
    %5411 = vmatprep.subr.mxu0 0.0
    %5412 = vmatpush1.msra.mxu0 %v4456
    %5413 = vmatprep.subr.mxu0 0.0
    %5414 = vmatpush1.msra.mxu0 %v4457
    %5415 = vmatprep.subr.mxu0 0.0
    %5416 = vmatpush1.msra.mxu0 %v4458
    %5417 = vmatprep.subr.mxu0 0.0
    %5418 = vmatpush1.msra.mxu0 %v4459
    %5419 = vmatprep.subr.mxu0 0.0
    %5420 = vmatpush1.msra.mxu0 %v4460
    %5421 = vmatprep.subr.mxu0 0.0
    %5422 = vmatpush1.msra.mxu0 %v4461
    %5423 = vmatprep.subr.mxu0 0.0
    %5424 = vmatpush1.msra.mxu0 %v4462
    %5425 = vmatprep.subr.mxu0 0.0
    %5426 = vmatpush1.msra.mxu0 %v4463
    %5427 = vmatprep.subr.mxu0 0.0
    %5428 = vmatpush1.msra.mxu0 %v4464
    %5429 = vmatprep.subr.mxu0 0.0
    %5430 = vmatpush1.msra.mxu0 %v4465
    %5431 = vmatprep.subr.mxu0 0.0
    %5432 = vmatpush1.msra.mxu0 %v4466
    %5433 = vmatprep.subr.mxu0 0.0
    %5434 = vmatpush1.msra.mxu0 %v4467
    %5435 = vmatprep.subr.mxu0 0.0
    %5436 = vmatpush1.msra.mxu0 %v4468
    %5437 = vmatprep.subr.mxu0 0.0
    %5438 = vmatpush1.msra.mxu0 %v4469
    %5439 = vmatprep.subr.mxu0 0.0
    %5440 = vmatpush1.msra.mxu0 %v4470
    %5441 = vmatprep.subr.mxu0 0.0
    %5442 = vmatpush1.msra.mxu0 %v4471
    %5443 = vmatprep.subr.mxu0 0.0
    %5444 = vmatpush1.msra.mxu0 %v4472
    %5445 = vmatprep.subr.mxu0 0.0
    %5446 = vmatpush1.msra.mxu0 %v4473
    %5447 = vmatprep.subr.mxu0 0.0
    %5448 = vmatpush1.msra.mxu0 %v4474
    %5449 = vmatprep.mubr.f32.mxu0 %v4440
    %5450 = vmatmul.mubr.f32.gmra.mrb[0].mxu0 %v4439
    %v5451 = vpop.f32.mrb[0].mxu0
    %v5452 = vadd.f32 0.0, %v5451
    %v5453 = vpop.f32.mrb[0].mxu0
    %5454 = vdwg.mxu0
    %5455 = vmatprep.subr.mxu0 0.0
    %5456 = vmatpush1.msra.mxu0 %v4443
    %5457 = vmatprep.subr.mxu0 0.0
    %5458 = vmatpush1.msra.mxu0 %v4444
    %5459 = vmatprep.subr.mxu0 0.0
    %5460 = vmatpush1.msra.mxu0 %v4445
    %5461 = vmatprep.subr.mxu0 0.0
    %5462 = vmatpush1.msra.mxu0 %v4446
    %5463 = vmatprep.subr.mxu0 0.0
    %5464 = vmatpush1.msra.mxu0 %v4447
    %5465 = vmatprep.subr.mxu0 0.0
    %5466 = vmatpush1.msra.mxu0 %v4448
    %5467 = vmatprep.subr.mxu0 0.0
    %5468 = vmatpush1.msra.mxu0 %v4449
    %5469 = vmatprep.subr.mxu0 0.0
    %5470 = vmatpush1.msra.mxu0 %v4450
    %5471 = vmatprep.subr.mxu0 0.0
    %5472 = vmatpush1.msra.mxu0 %v4451
    %5473 = vmatprep.subr.mxu0 0.0
    %5474 = vmatpush1.msra.mxu0 %v4452
    %5475 = vmatprep.subr.mxu0 0.0
    %5476 = vmatpush1.msra.mxu0 %v4453
    %5477 = vmatprep.subr.mxu0 0.0
    %5478 = vmatpush1.msra.mxu0 %v4454
    %5479 = vmatprep.subr.mxu0 0.0
    %5480 = vmatpush1.msra.mxu0 %v4455
    %5481 = vmatprep.subr.mxu0 0.0
    %5482 = vmatpush1.msra.mxu0 %v4456
    %5483 = vmatprep.subr.mxu0 0.0
    %5484 = vmatpush1.msra.mxu0 %v4457
    %5485 = vmatprep.subr.mxu0 0.0
    %5486 = vmatpush1.msra.mxu0 %v4458
    %5487 = vmatprep.subr.mxu0 0.0
    %5488 = vmatpush1.msra.mxu0 %v4459
    %5489 = vmatprep.subr.mxu0 0.0
    %5490 = vmatpush1.msra.mxu0 %v4460
    %5491 = vmatprep.subr.mxu0 0.0
    %5492 = vmatpush1.msra.mxu0 %v4461
    %5493 = vmatprep.subr.mxu0 0.0
    %5494 = vmatpush1.msra.mxu0 %v4462
    %5495 = vmatprep.subr.mxu0 0.0
    %5496 = vmatpush1.msra.mxu0 %v4463
    %5497 = vmatprep.subr.mxu0 0.0
    %5498 = vmatpush1.msra.mxu0 %v4464
    %5499 = vmatprep.subr.mxu0 0.0
    %5500 = vmatpush1.msra.mxu0 %v4465
    %5501 = vmatprep.subr.mxu0 0.0
    %5502 = vmatpush1.msra.mxu0 %v4466
    %5503 = vmatprep.subr.mxu0 0.0
    %5504 = vmatpush1.msra.mxu0 %v4467
    %5505 = vmatprep.subr.mxu0 0.0
    %5506 = vmatpush1.msra.mxu0 %v4468
    %5507 = vmatprep.subr.mxu0 0.0
    %5508 = vmatpush1.msra.mxu0 %v4469
    %5509 = vmatprep.subr.mxu0 0.0
    %5510 = vmatpush1.msra.mxu0 %v4470
    %5511 = vmatprep.subr.mxu0 0.0
    %5512 = vmatpush1.msra.mxu0 %v4471
    %5513 = vmatprep.subr.mxu0 0.0
    %5514 = vmatpush1.msra.mxu0 %v4472
    %5515 = vmatprep.subr.mxu0 0.0
    %5516 = vmatpush1.msra.mxu0 %v4473
    %5517 = vmatprep.subr.mxu0 0.0
    %5518 = vmatpush1.msra.mxu0 %v4474
    %5519 = vmatprep.mubr.f32.mxu0 %v4441
    %5520 = vmatmul.mubr.f32.gmra.mrb[0].mxu0 %v4440
    %v5521 = vpop.f32.mrb[0].mxu0
    %v5522 = vadd.f32 0.0, %v5521
    %v5523 = vpop.f32.mrb[0].mxu0
    %5524 = vdwg.mxu0
    %5525 = vmatprep.subr.mxu0 0.0
    %5526 = vmatpush1.msra.mxu0 %v4443
    %5527 = vmatprep.subr.mxu0 0.0
    %5528 = vmatpush1.msra.mxu0 %v4444
    %5529 = vmatprep.subr.mxu0 0.0
    %5530 = vmatpush1.msra.mxu0 %v4445
    %5531 = vmatprep.subr.mxu0 0.0
    %5532 = vmatpush1.msra.mxu0 %v4446
    %5533 = vmatprep.subr.mxu0 0.0
    %5534 = vmatpush1.msra.mxu0 %v4447
    %5535 = vmatprep.subr.mxu0 0.0
    %5536 = vmatpush1.msra.mxu0 %v4448
    %5537 = vmatprep.subr.mxu0 0.0
    %5538 = vmatpush1.msra.mxu0 %v4449
    %5539 = vmatprep.subr.mxu0 0.0
    %5540 = vmatpush1.msra.mxu0 %v4450
    %5541 = vmatprep.subr.mxu0 0.0
    %5542 = vmatpush1.msra.mxu0 %v4451
    %5543 = vmatprep.subr.mxu0 0.0
    %5544 = vmatpush1.msra.mxu0 %v4452
    %5545 = vmatprep.subr.mxu0 0.0
    %5546 = vmatpush1.msra.mxu0 %v4453
    %5547 = vmatprep.subr.mxu0 0.0
    %5548 = vmatpush1.msra.mxu0 %v4454
    %5549 = vmatprep.subr.mxu0 0.0
    %5550 = vmatpush1.msra.mxu0 %v4455
    %5551 = vmatprep.subr.mxu0 0.0
    %5552 = vmatpush1.msra.mxu0 %v4456
    %5553 = vmatprep.subr.mxu0 0.0
    %5554 = vmatpush1.msra.mxu0 %v4457
    %5555 = vmatprep.subr.mxu0 0.0
    %5556 = vmatpush1.msra.mxu0 %v4458
    %5557 = vmatprep.subr.mxu0 0.0
    %5558 = vmatpush1.msra.mxu0 %v4459
    %5559 = vmatprep.subr.mxu0 0.0
    %5560 = vmatpush1.msra.mxu0 %v4460
    %5561 = vmatprep.subr.mxu0 0.0
    %5562 = vmatpush1.msra.mxu0 %v4461
    %5563 = vmatprep.subr.mxu0 0.0
    %5564 = vmatpush1.msra.mxu0 %v4462
    %5565 = vmatprep.subr.mxu0 0.0
    %5566 = vmatpush1.msra.mxu0 %v4463
    %5567 = vmatprep.subr.mxu0 0.0
    %5568 = vmatpush1.msra.mxu0 %v4464
    %5569 = vmatprep.subr.mxu0 0.0
    %5570 = vmatpush1.msra.mxu0 %v4465
    %5571 = vmatprep.subr.mxu0 0.0
    %5572 = vmatpush1.msra.mxu0 %v4466
    %5573 = vmatprep.subr.mxu0 0.0
    %5574 = vmatpush1.msra.mxu0 %v4467
    %5575 = vmatprep.subr.mxu0 0.0
    %5576 = vmatpush1.msra.mxu0 %v4468
    %5577 = vmatprep.subr.mxu0 0.0
    %5578 = vmatpush1.msra.mxu0 %v4469
    %5579 = vmatprep.subr.mxu0 0.0
    %5580 = vmatpush1.msra.mxu0 %v4470
    %5581 = vmatprep.subr.mxu0 0.0
    %5582 = vmatpush1.msra.mxu0 %v4471
    %5583 = vmatprep.subr.mxu0 0.0
    %5584 = vmatpush1.msra.mxu0 %v4472
    %5585 = vmatprep.subr.mxu0 0.0
    %5586 = vmatpush1.msra.mxu0 %v4473
    %5587 = vmatprep.subr.mxu0 0.0
    %5588 = vmatpush1.msra.mxu0 %v4474
    %5589 = vmatprep.mubr.f32.mxu0 %v4442
    %5590 = vmatmul.mubr.f32.gmra.mrb[0].mxu0 %v4441
    %v5591 = vpop.f32.mrb[0].mxu0
    %v5592 = vadd.f32 0.0, %v5591
    %v5593 = vpop.f32.mrb[0].mxu0
    %5594 = vdwg.mxu0
    %s5595 = scalar_lea.vmem %s9, 256
    %v5596 = vld [vmem:[%s5595] sm:$0xff]
    %v5597 = vld [vmem:[%s5595 + $0x8] sm:$0xff]
    %v5598 = vld [vmem:[%s5595 + $0x10] sm:$0xff]
    %v5599 = vld [vmem:[%s5595 + $0x18] sm:$0xff]
    %v5600 = vld [vmem:[%s5595 + $0x20] sm:$0xff]
    %v5601 = vld [vmem:[%s5595 + $0x28] sm:$0xff]
    %v5602 = vld [vmem:[%s5595 + $0x30] sm:$0xff]
    %v5603 = vld [vmem:[%s5595 + $0x38] sm:$0xff]
    %v5604 = vld [vmem:[%s5595 + $0x40] sm:$0xff]
    %v5605 = vld [vmem:[%s5595 + $0x48] sm:$0xff]
    %v5606 = vld [vmem:[%s5595 + $0x50] sm:$0xff]
    %v5607 = vld [vmem:[%s5595 + $0x58] sm:$0xff]
    %v5608 = vld [vmem:[%s5595 + $0x60] sm:$0xff]
    %v5609 = vld [vmem:[%s5595 + $0x68] sm:$0xff]
    %v5610 = vld [vmem:[%s5595 + $0x70] sm:$0xff]
    %v5611 = vld [vmem:[%s5595 + $0x78] sm:$0xff]
    %v5612 = vld [vmem:[%s5595 + $0x80] sm:$0xff]
    %v5613 = vld [vmem:[%s5595 + $0x88] sm:$0xff]
    %v5614 = vld [vmem:[%s5595 + $0x90] sm:$0xff]
    %v5615 = vld [vmem:[%s5595 + $0x98] sm:$0xff]
    %v5616 = vld [vmem:[%s5595 + $0xa0] sm:$0xff]
    %v5617 = vld [vmem:[%s5595 + $0xa8] sm:$0xff]
    %v5618 = vld [vmem:[%s5595 + $0xb0] sm:$0xff]
    %v5619 = vld [vmem:[%s5595 + $0xb8] sm:$0xff]
    %v5620 = vld [vmem:[%s5595 + $0xc0] sm:$0xff]
    %v5621 = vld [vmem:[%s5595 + $0xc8] sm:$0xff]
    %v5622 = vld [vmem:[%s5595 + $0xd0] sm:$0xff]
    %v5623 = vld [vmem:[%s5595 + $0xd8] sm:$0xff]
    %v5624 = vld [vmem:[%s5595 + $0xe0] sm:$0xff]
    %v5625 = vld [vmem:[%s5595 + $0xe8] sm:$0xff]
    %v5626 = vld [vmem:[%s5595 + $0xf0] sm:$0xff]
    %v5627 = vld [vmem:[%s5595 + $0xf8] sm:$0xff]
    %5628 = vmatprep.subr.mxu0 0.0
    %5629 = vmatpush1.msra.mxu0 %v5596
    %5630 = vmatprep.subr.mxu0 0.0
    %5631 = vmatpush1.msra.mxu0 %v5597
    %5632 = vmatprep.subr.mxu0 0.0
    %5633 = vmatpush1.msra.mxu0 %v5598
    %5634 = vmatprep.subr.mxu0 0.0
    %5635 = vmatpush1.msra.mxu0 %v5599
    %5636 = vmatprep.subr.mxu0 0.0
    %5637 = vmatpush1.msra.mxu0 %v5600
    %5638 = vmatprep.subr.mxu0 0.0
    %5639 = vmatpush1.msra.mxu0 %v5601
    %5640 = vmatprep.subr.mxu0 0.0
    %5641 = vmatpush1.msra.mxu0 %v5602
    %5642 = vmatprep.subr.mxu0 0.0
    %5643 = vmatpush1.msra.mxu0 %v5603
    %5644 = vmatprep.subr.mxu0 0.0
    %5645 = vmatpush1.msra.mxu0 %v5604
    %5646 = vmatprep.subr.mxu0 0.0
    %5647 = vmatpush1.msra.mxu0 %v5605
    %5648 = vmatprep.subr.mxu0 0.0
    %5649 = vmatpush1.msra.mxu0 %v5606
    %5650 = vmatprep.subr.mxu0 0.0
    %5651 = vmatpush1.msra.mxu0 %v5607
    %5652 = vmatprep.subr.mxu0 0.0
    %5653 = vmatpush1.msra.mxu0 %v5608
    %5654 = vmatprep.subr.mxu0 0.0
    %5655 = vmatpush1.msra.mxu0 %v5609
    %5656 = vmatprep.subr.mxu0 0.0
    %5657 = vmatpush1.msra.mxu0 %v5610
    %5658 = vmatprep.subr.mxu0 0.0
    %5659 = vmatpush1.msra.mxu0 %v5611
    %5660 = vmatprep.subr.mxu0 0.0
    %5661 = vmatpush1.msra.mxu0 %v5612
    %5662 = vmatprep.subr.mxu0 0.0
    %5663 = vmatpush1.msra.mxu0 %v5613
    %5664 = vmatprep.subr.mxu0 0.0
    %5665 = vmatpush1.msra.mxu0 %v5614
    %5666 = vmatprep.subr.mxu0 0.0
    %5667 = vmatpush1.msra.mxu0 %v5615
    %5668 = vmatprep.subr.mxu0 0.0
    %5669 = vmatpush1.msra.mxu0 %v5616
    %5670 = vmatprep.subr.mxu0 0.0
    %5671 = vmatpush1.msra.mxu0 %v5617
    %5672 = vmatprep.subr.mxu0 0.0
    %5673 = vmatpush1.msra.mxu0 %v5618
    %5674 = vmatprep.subr.mxu0 0.0
    %5675 = vmatpush1.msra.mxu0 %v5619
    %5676 = vmatprep.subr.mxu0 0.0
    %5677 = vmatpush1.msra.mxu0 %v5620
    %5678 = vmatprep.subr.mxu0 0.0
    %5679 = vmatpush1.msra.mxu0 %v5621
    %5680 = vmatprep.subr.mxu0 0.0
    %5681 = vmatpush1.msra.mxu0 %v5622
    %5682 = vmatprep.subr.mxu0 0.0
    %5683 = vmatpush1.msra.mxu0 %v5623
    %5684 = vmatprep.subr.mxu0 0.0
    %5685 = vmatpush1.msra.mxu0 %v5624
    %5686 = vmatprep.subr.mxu0 0.0
    %5687 = vmatpush1.msra.mxu0 %v5625
    %5688 = vmatprep.subr.mxu0 0.0
    %5689 = vmatpush1.msra.mxu0 %v5626
    %5690 = vmatprep.subr.mxu0 0.0
    %5691 = vmatpush1.msra.mxu0 %v5627
    %5692 = vmatprep.mubr.f32.mxu0 %v4428
    %5693 = vmatmul.mubr.f32.gmra.mrb[0].mxu0 %v4427
    %v5694 = vpop.f32.mrb[0].mxu0
    %v5695 = vadd.f32 0.0, %v5694
    %v5696 = vpop.f32.mrb[0].mxu0
    %5697 = vdwg.mxu0
    %5698 = vmatprep.subr.mxu0 0.0
    %5699 = vmatpush1.msra.mxu0 %v5596
    %5700 = vmatprep.subr.mxu0 0.0
    %5701 = vmatpush1.msra.mxu0 %v5597
    %5702 = vmatprep.subr.mxu0 0.0
    %5703 = vmatpush1.msra.mxu0 %v5598
    %5704 = vmatprep.subr.mxu0 0.0
    %5705 = vmatpush1.msra.mxu0 %v5599
    %5706 = vmatprep.subr.mxu0 0.0
    %5707 = vmatpush1.msra.mxu0 %v5600
    %5708 = vmatprep.subr.mxu0 0.0
    %5709 = vmatpush1.msra.mxu0 %v5601
    %5710 = vmatprep.subr.mxu0 0.0
    %5711 = vmatpush1.msra.mxu0 %v5602
    %5712 = vmatprep.subr.mxu0 0.0
    %5713 = vmatpush1.msra.mxu0 %v5603
    %5714 = vmatprep.subr.mxu0 0.0
    %5715 = vmatpush1.msra.mxu0 %v5604
    %5716 = vmatprep.subr.mxu0 0.0
    %5717 = vmatpush1.msra.mxu0 %v5605
    %5718 = vmatprep.subr.mxu0 0.0
    %5719 = vmatpush1.msra.mxu0 %v5606
    %5720 = vmatprep.subr.mxu0 0.0
    %5721 = vmatpush1.msra.mxu0 %v5607
    %5722 = vmatprep.subr.mxu0 0.0
    %5723 = vmatpush1.msra.mxu0 %v5608
    %5724 = vmatprep.subr.mxu0 0.0
    %5725 = vmatpush1.msra.mxu0 %v5609
    %5726 = vmatprep.subr.mxu0 0.0
    %5727 = vmatpush1.msra.mxu0 %v5610
    %5728 = vmatprep.subr.mxu0 0.0
    %5729 = vmatpush1.msra.mxu0 %v5611
    %5730 = vmatprep.subr.mxu0 0.0
    %5731 = vmatpush1.msra.mxu0 %v5612
    %5732 = vmatprep.subr.mxu0 0.0
    %5733 = vmatpush1.msra.mxu0 %v5613
    %5734 = vmatprep.subr.mxu0 0.0
    %5735 = vmatpush1.msra.mxu0 %v5614
    %5736 = vmatprep.subr.mxu0 0.0
    %5737 = vmatpush1.msra.mxu0 %v5615
    %5738 = vmatprep.subr.mxu0 0.0
    %5739 = vmatpush1.msra.mxu0 %v5616
    %5740 = vmatprep.subr.mxu0 0.0
    %5741 = vmatpush1.msra.mxu0 %v5617
    %5742 = vmatprep.subr.mxu0 0.0
    %5743 = vmatpush1.msra.mxu0 %v5618
    %5744 = vmatprep.subr.mxu0 0.0
    %5745 = vmatpush1.msra.mxu0 %v5619
    %5746 = vmatprep.subr.mxu0 0.0
    %5747 = vmatpush1.msra.mxu0 %v5620
    %5748 = vmatprep.subr.mxu0 0.0
    %5749 = vmatpush1.msra.mxu0 %v5621
    %5750 = vmatprep.subr.mxu0 0.0
    %5751 = vmatpush1.msra.mxu0 %v5622
    %5752 = vmatprep.subr.mxu0 0.0
    %5753 = vmatpush1.msra.mxu0 %v5623
    %5754 = vmatprep.subr.mxu0 0.0
    %5755 = vmatpush1.msra.mxu0 %v5624
    %5756 = vmatprep.subr.mxu0 0.0
    %5757 = vmatpush1.msra.mxu0 %v5625
    %5758 = vmatprep.subr.mxu0 0.0
    %5759 = vmatpush1.msra.mxu0 %v5626
    %5760 = vmatprep.subr.mxu0 0.0
    %5761 = vmatpush1.msra.mxu0 %v5627
    %5762 = vmatprep.mubr.f32.mxu0 %v4429
    %5763 = vmatmul.mubr.f32.gmra.mrb[0].mxu0 %v4428
    %v5764 = vpop.f32.mrb[0].mxu0
    %v5765 = vadd.f32 0.0, %v5764
    %v5766 = vpop.f32.mrb[0].mxu0
    %5767 = vdwg.mxu0
    %5768 = vmatprep.subr.mxu0 0.0
    %5769 = vmatpush1.msra.mxu0 %v5596
    %5770 = vmatprep.subr.mxu0 0.0
    %5771 = vmatpush1.msra.mxu0 %v5597
    %5772 = vmatprep.subr.mxu0 0.0
    %5773 = vmatpush1.msra.mxu0 %v5598
    %5774 = vmatprep.subr.mxu0 0.0
    %5775 = vmatpush1.msra.mxu0 %v5599
    %5776 = vmatprep.subr.mxu0 0.0
    %5777 = vmatpush1.msra.mxu0 %v5600
    %5778 = vmatprep.subr.mxu0 0.0
    %5779 = vmatpush1.msra.mxu0 %v5601
    %5780 = vmatprep.subr.mxu0 0.0
    %5781 = vmatpush1.msra.mxu0 %v5602
    %5782 = vmatprep.subr.mxu0 0.0
    %5783 = vmatpush1.msra.mxu0 %v5603
    %5784 = vmatprep.subr.mxu0 0.0
    %5785 = vmatpush1.msra.mxu0 %v5604
    %5786 = vmatprep.subr.mxu0 0.0
    %5787 = vmatpush1.msra.mxu0 %v5605
    %5788 = vmatprep.subr.mxu0 0.0
    %5789 = vmatpush1.msra.mxu0 %v5606
    %5790 = vmatprep.subr.mxu0 0.0
    %5791 = vmatpush1.msra.mxu0 %v5607
    %5792 = vmatprep.subr.mxu0 0.0
    %5793 = vmatpush1.msra.mxu0 %v5608
    %5794 = vmatprep.subr.mxu0 0.0
    %5795 = vmatpush1.msra.mxu0 %v5609
    %5796 = vmatprep.subr.mxu0 0.0
    %5797 = vmatpush1.msra.mxu0 %v5610
    %5798 = vmatprep.subr.mxu0 0.0
    %5799 = vmatpush1.msra.mxu0 %v5611
    %5800 = vmatprep.subr.mxu0 0.0
    %5801 = vmatpush1.msra.mxu0 %v5612
    %5802 = vmatprep.subr.mxu0 0.0
    %5803 = vmatpush1.msra.mxu0 %v5613
    %5804 = vmatprep.subr.mxu0 0.0
    %5805 = vmatpush1.msra.mxu0 %v5614
    %5806 = vmatprep.subr.mxu0 0.0
    %5807 = vmatpush1.msra.mxu0 %v5615
    %5808 = vmatprep.subr.mxu0 0.0
    %5809 = vmatpush1.msra.mxu0 %v5616
    %5810 = vmatprep.subr.mxu0 0.0
    %5811 = vmatpush1.msra.mxu0 %v5617
    %5812 = vmatprep.subr.mxu0 0.0
    %5813 = vmatpush1.msra.mxu0 %v5618
    %5814 = vmatprep.subr.mxu0 0.0
    %5815 = vmatpush1.msra.mxu0 %v5619
    %5816 = vmatprep.subr.mxu0 0.0
    %5817 = vmatpush1.msra.mxu0 %v5620
    %5818 = vmatprep.subr.mxu0 0.0
    %5819 = vmatpush1.msra.mxu0 %v5621
    %5820 = vmatprep.subr.mxu0 0.0
    %5821 = vmatpush1.msra.mxu0 %v5622
    %5822 = vmatprep.subr.mxu0 0.0
    %5823 = vmatpush1.msra.mxu0 %v5623
    %5824 = vmatprep.subr.mxu0 0.0
    %5825 = vmatpush1.msra.mxu0 %v5624
    %5826 = vmatprep.subr.mxu0 0.0
    %5827 = vmatpush1.msra.mxu0 %v5625
    %5828 = vmatprep.subr.mxu0 0.0
    %5829 = vmatpush1.msra.mxu0 %v5626
    %5830 = vmatprep.subr.mxu0 0.0
    %5831 = vmatpush1.msra.mxu0 %v5627
    %5832 = vmatprep.mubr.f32.mxu0 %v4430
    %5833 = vmatmul.mubr.f32.gmra.mrb[0].mxu0 %v4429
    %v5834 = vpop.f32.mrb[0].mxu0
    %v5835 = vadd.f32 0.0, %v5834
    %v5836 = vpop.f32.mrb[0].mxu0
    %5837 = vdwg.mxu0
    %5838 = vmatprep.subr.mxu0 0.0
    %5839 = vmatpush1.msra.mxu0 %v5596
    %5840 = vmatprep.subr.mxu0 0.0
    %5841 = vmatpush1.msra.mxu0 %v5597
    %5842 = vmatprep.subr.mxu0 0.0
    %5843 = vmatpush1.msra.mxu0 %v5598
    %5844 = vmatprep.subr.mxu0 0.0
    %5845 = vmatpush1.msra.mxu0 %v5599
    %5846 = vmatprep.subr.mxu0 0.0
    %5847 = vmatpush1.msra.mxu0 %v5600
    %5848 = vmatprep.subr.mxu0 0.0
    %5849 = vmatpush1.msra.mxu0 %v5601
    %5850 = vmatprep.subr.mxu0 0.0
    %5851 = vmatpush1.msra.mxu0 %v5602
    %5852 = vmatprep.subr.mxu0 0.0
    %5853 = vmatpush1.msra.mxu0 %v5603
    %5854 = vmatprep.subr.mxu0 0.0
    %5855 = vmatpush1.msra.mxu0 %v5604
    %5856 = vmatprep.subr.mxu0 0.0
    %5857 = vmatpush1.msra.mxu0 %v5605
    %5858 = vmatprep.subr.mxu0 0.0
    %5859 = vmatpush1.msra.mxu0 %v5606
    %5860 = vmatprep.subr.mxu0 0.0
    %5861 = vmatpush1.msra.mxu0 %v5607
    %5862 = vmatprep.subr.mxu0 0.0
    %5863 = vmatpush1.msra.mxu0 %v5608
    %5864 = vmatprep.subr.mxu0 0.0
    %5865 = vmatpush1.msra.mxu0 %v5609
    %5866 = vmatprep.subr.mxu0 0.0
    %5867 = vmatpush1.msra.mxu0 %v5610
    %5868 = vmatprep.subr.mxu0 0.0
    %5869 = vmatpush1.msra.mxu0 %v5611
    %5870 = vmatprep.subr.mxu0 0.0
    %5871 = vmatpush1.msra.mxu0 %v5612
    %5872 = vmatprep.subr.mxu0 0.0
    %5873 = vmatpush1.msra.mxu0 %v5613
    %5874 = vmatprep.subr.mxu0 0.0
    %5875 = vmatpush1.msra.mxu0 %v5614
    %5876 = vmatprep.subr.mxu0 0.0
    %5877 = vmatpush1.msra.mxu0 %v5615
    %5878 = vmatprep.subr.mxu0 0.0
    %5879 = vmatpush1.msra.mxu0 %v5616
    %5880 = vmatprep.subr.mxu0 0.0
    %5881 = vmatpush1.msra.mxu0 %v5617
    %5882 = vmatprep.subr.mxu0 0.0
    %5883 = vmatpush1.msra.mxu0 %v5618
    %5884 = vmatprep.subr.mxu0 0.0
    %5885 = vmatpush1.msra.mxu0 %v5619
    %5886 = vmatprep.subr.mxu0 0.0
    %5887 = vmatpush1.msra.mxu0 %v5620
    %5888 = vmatprep.subr.mxu0 0.0
    %5889 = vmatpush1.msra.mxu0 %v5621
    %5890 = vmatprep.subr.mxu0 0.0
    %5891 = vmatpush1.msra.mxu0 %v5622
    %5892 = vmatprep.subr.mxu0 0.0
    %5893 = vmatpush1.msra.mxu0 %v5623
    %5894 = vmatprep.subr.mxu0 0.0
    %5895 = vmatpush1.msra.mxu0 %v5624
    %5896 = vmatprep.subr.mxu0 0.0
    %5897 = vmatpush1.msra.mxu0 %v5625
    %5898 = vmatprep.subr.mxu0 0.0
    %5899 = vmatpush1.msra.mxu0 %v5626
    %5900 = vmatprep.subr.mxu0 0.0
    %5901 = vmatpush1.msra.mxu0 %v5627
    %5902 = vmatprep.mubr.f32.mxu0 %v4431
    %5903 = vmatmul.mubr.f32.gmra.mrb[0].mxu0 %v4430
    %v5904 = vpop.f32.mrb[0].mxu0
    %v5905 = vadd.f32 0.0, %v5904
    %v5906 = vpop.f32.mrb[0].mxu0
    %5907 = vdwg.mxu0
    %5908 = vmatprep.subr.mxu0 0.0
    %5909 = vmatpush1.msra.mxu0 %v5596
    %5910 = vmatprep.subr.mxu0 0.0
    %5911 = vmatpush1.msra.mxu0 %v5597
    %5912 = vmatprep.subr.mxu0 0.0
    %5913 = vmatpush1.msra.mxu0 %v5598
    %5914 = vmatprep.subr.mxu0 0.0
    %5915 = vmatpush1.msra.mxu0 %v5599
    %5916 = vmatprep.subr.mxu0 0.0
    %5917 = vmatpush1.msra.mxu0 %v5600
    %5918 = vmatprep.subr.mxu0 0.0
    %5919 = vmatpush1.msra.mxu0 %v5601
    %5920 = vmatprep.subr.mxu0 0.0
    %5921 = vmatpush1.msra.mxu0 %v5602
    %5922 = vmatprep.subr.mxu0 0.0
    %5923 = vmatpush1.msra.mxu0 %v5603
    %5924 = vmatprep.subr.mxu0 0.0
    %5925 = vmatpush1.msra.mxu0 %v5604
    %5926 = vmatprep.subr.mxu0 0.0
    %5927 = vmatpush1.msra.mxu0 %v5605
    %5928 = vmatprep.subr.mxu0 0.0
    %5929 = vmatpush1.msra.mxu0 %v5606
    %5930 = vmatprep.subr.mxu0 0.0
    %5931 = vmatpush1.msra.mxu0 %v5607
    %5932 = vmatprep.subr.mxu0 0.0
    %5933 = vmatpush1.msra.mxu0 %v5608
    %5934 = vmatprep.subr.mxu0 0.0
    %5935 = vmatpush1.msra.mxu0 %v5609
    %5936 = vmatprep.subr.mxu0 0.0
    %5937 = vmatpush1.msra.mxu0 %v5610
    %5938 = vmatprep.subr.mxu0 0.0
    %5939 = vmatpush1.msra.mxu0 %v5611
    %5940 = vmatprep.subr.mxu0 0.0
    %5941 = vmatpush1.msra.mxu0 %v5612
    %5942 = vmatprep.subr.mxu0 0.0
    %5943 = vmatpush1.msra.mxu0 %v5613
    %5944 = vmatprep.subr.mxu0 0.0
    %5945 = vmatpush1.msra.mxu0 %v5614
    %5946 = vmatprep.subr.mxu0 0.0
    %5947 = vmatpush1.msra.mxu0 %v5615
    %5948 = vmatprep.subr.mxu0 0.0
    %5949 = vmatpush1.msra.mxu0 %v5616
    %5950 = vmatprep.subr.mxu0 0.0
    %5951 = vmatpush1.msra.mxu0 %v5617
    %5952 = vmatprep.subr.mxu0 0.0
    %5953 = vmatpush1.msra.mxu0 %v5618
    %5954 = vmatprep.subr.mxu0 0.0
    %5955 = vmatpush1.msra.mxu0 %v5619
    %5956 = vmatprep.subr.mxu0 0.0
    %5957 = vmatpush1.msra.mxu0 %v5620
    %5958 = vmatprep.subr.mxu0 0.0
    %5959 = vmatpush1.msra.mxu0 %v5621
    %5960 = vmatprep.subr.mxu0 0.0
    %5961 = vmatpush1.msra.mxu0 %v5622
    %5962 = vmatprep.subr.mxu0 0.0
    %5963 = vmatpush1.msra.mxu0 %v5623
    %5964 = vmatprep.subr.mxu0 0.0
    %5965 = vmatpush1.msra.mxu0 %v5624
    %5966 = vmatprep.subr.mxu0 0.0
    %5967 = vmatpush1.msra.mxu0 %v5625
    %5968 = vmatprep.subr.mxu0 0.0
    %5969 = vmatpush1.msra.mxu0 %v5626
    %5970 = vmatprep.subr.mxu0 0.0
    %5971 = vmatpush1.msra.mxu0 %v5627
    %5972 = vmatprep.mubr.f32.mxu0 %v4432
    %5973 = vmatmul.mubr.f32.gmra.mrb[0].mxu0 %v4431
    %v5974 = vpop.f32.mrb[0].mxu0
    %v5975 = vadd.f32 0.0, %v5974
    %v5976 = vpop.f32.mrb[0].mxu0
    %5977 = vdwg.mxu0
    %5978 = vmatprep.subr.mxu0 0.0
    %5979 = vmatpush1.msra.mxu0 %v5596
    %5980 = vmatprep.subr.mxu0 0.0
    %5981 = vmatpush1.msra.mxu0 %v5597
    %5982 = vmatprep.subr.mxu0 0.0
    %5983 = vmatpush1.msra.mxu0 %v5598
    %5984 = vmatprep.subr.mxu0 0.0
    %5985 = vmatpush1.msra.mxu0 %v5599
    %5986 = vmatprep.subr.mxu0 0.0
    %5987 = vmatpush1.msra.mxu0 %v5600
    %5988 = vmatprep.subr.mxu0 0.0
    %5989 = vmatpush1.msra.mxu0 %v5601
    %5990 = vmatprep.subr.mxu0 0.0
    %5991 = vmatpush1.msra.mxu0 %v5602
    %5992 = vmatprep.subr.mxu0 0.0
    %5993 = vmatpush1.msra.mxu0 %v5603
    %5994 = vmatprep.subr.mxu0 0.0
    %5995 = vmatpush1.msra.mxu0 %v5604
    %5996 = vmatprep.subr.mxu0 0.0
    %5997 = vmatpush1.msra.mxu0 %v5605
    %5998 = vmatprep.subr.mxu0 0.0
    %5999 = vmatpush1.msra.mxu0 %v5606
    %6000 = vmatprep.subr.mxu0 0.0
    %6001 = vmatpush1.msra.mxu0 %v5607
    %6002 = vmatprep.subr.mxu0 0.0
    %6003 = vmatpush1.msra.mxu0 %v5608
    %6004 = vmatprep.subr.mxu0 0.0
    %6005 = vmatpush1.msra.mxu0 %v5609
    %6006 = vmatprep.subr.mxu0 0.0
    %6007 = vmatpush1.msra.mxu0 %v5610
    %6008 = vmatprep.subr.mxu0 0.0
    %6009 = vmatpush1.msra.mxu0 %v5611
    %6010 = vmatprep.subr.mxu0 0.0
    %6011 = vmatpush1.msra.mxu0 %v5612
    %6012 = vmatprep.subr.mxu0 0.0
    %6013 = vmatpush1.msra.mxu0 %v5613
    %6014 = vmatprep.subr.mxu0 0.0
    %6015 = vmatpush1.msra.mxu0 %v5614
    %6016 = vmatprep.subr.mxu0 0.0
    %6017 = vmatpush1.msra.mxu0 %v5615
    %6018 = vmatprep.subr.mxu0 0.0
    %6019 = vmatpush1.msra.mxu0 %v5616
    %6020 = vmatprep.subr.mxu0 0.0
    %6021 = vmatpush1.msra.mxu0 %v5617
    %6022 = vmatprep.subr.mxu0 0.0
    %6023 = vmatpush1.msra.mxu0 %v5618
    %6024 = vmatprep.subr.mxu0 0.0
    %6025 = vmatpush1.msra.mxu0 %v5619
    %6026 = vmatprep.subr.mxu0 0.0
    %6027 = vmatpush1.msra.mxu0 %v5620
    %6028 = vmatprep.subr.mxu0 0.0
    %6029 = vmatpush1.msra.mxu0 %v5621
    %6030 = vmatprep.subr.mxu0 0.0
    %6031 = vmatpush1.msra.mxu0 %v5622
    %6032 = vmatprep.subr.mxu0 0.0
    %6033 = vmatpush1.msra.mxu0 %v5623
    %6034 = vmatprep.subr.mxu0 0.0
    %6035 = vmatpush1.msra.mxu0 %v5624
    %6036 = vmatprep.subr.mxu0 0.0
    %6037 = vmatpush1.msra.mxu0 %v5625
    %6038 = vmatprep.subr.mxu0 0.0
    %6039 = vmatpush1.msra.mxu0 %v5626
    %6040 = vmatprep.subr.mxu0 0.0
    %6041 = vmatpush1.msra.mxu0 %v5627
    %6042 = vmatprep.mubr.f32.mxu0 %v4433
    %6043 = vmatmul.mubr.f32.gmra.mrb[0].mxu0 %v4432
    %v6044 = vpop.f32.mrb[0].mxu0
    %v6045 = vadd.f32 0.0, %v6044
    %v6046 = vpop.f32.mrb[0].mxu0
    %6047 = vdwg.mxu0
    %6048 = vmatprep.subr.mxu0 0.0
    %6049 = vmatpush1.msra.mxu0 %v5596
    %6050 = vmatprep.subr.mxu0 0.0
    %6051 = vmatpush1.msra.mxu0 %v5597
    %6052 = vmatprep.subr.mxu0 0.0
    %6053 = vmatpush1.msra.mxu0 %v5598
    %6054 = vmatprep.subr.mxu0 0.0
    %6055 = vmatpush1.msra.mxu0 %v5599
    %6056 = vmatprep.subr.mxu0 0.0
    %6057 = vmatpush1.msra.mxu0 %v5600
    %6058 = vmatprep.subr.mxu0 0.0
    %6059 = vmatpush1.msra.mxu0 %v5601
    %6060 = vmatprep.subr.mxu0 0.0
    %6061 = vmatpush1.msra.mxu0 %v5602
    %6062 = vmatprep.subr.mxu0 0.0
    %6063 = vmatpush1.msra.mxu0 %v5603
    %6064 = vmatprep.subr.mxu0 0.0
    %6065 = vmatpush1.msra.mxu0 %v5604
    %6066 = vmatprep.subr.mxu0 0.0
    %6067 = vmatpush1.msra.mxu0 %v5605
    %6068 = vmatprep.subr.mxu0 0.0
    %6069 = vmatpush1.msra.mxu0 %v5606
    %6070 = vmatprep.subr.mxu0 0.0
    %6071 = vmatpush1.msra.mxu0 %v5607
    %6072 = vmatprep.subr.mxu0 0.0
    %6073 = vmatpush1.msra.mxu0 %v5608
    %6074 = vmatprep.subr.mxu0 0.0
    %6075 = vmatpush1.msra.mxu0 %v5609
    %6076 = vmatprep.subr.mxu0 0.0
    %6077 = vmatpush1.msra.mxu0 %v5610
    %6078 = vmatprep.subr.mxu0 0.0
    %6079 = vmatpush1.msra.mxu0 %v5611
    %6080 = vmatprep.subr.mxu0 0.0
    %6081 = vmatpush1.msra.mxu0 %v5612
    %6082 = vmatprep.subr.mxu0 0.0
    %6083 = vmatpush1.msra.mxu0 %v5613
    %6084 = vmatprep.subr.mxu0 0.0
    %6085 = vmatpush1.msra.mxu0 %v5614
    %6086 = vmatprep.subr.mxu0 0.0
    %6087 = vmatpush1.msra.mxu0 %v5615
    %6088 = vmatprep.subr.mxu0 0.0
    %6089 = vmatpush1.msra.mxu0 %v5616
    %6090 = vmatprep.subr.mxu0 0.0
    %6091 = vmatpush1.msra.mxu0 %v5617
    %6092 = vmatprep.subr.mxu0 0.0
    %6093 = vmatpush1.msra.mxu0 %v5618
    %6094 = vmatprep.subr.mxu0 0.0
    %6095 = vmatpush1.msra.mxu0 %v5619
    %6096 = vmatprep.subr.mxu0 0.0
    %6097 = vmatpush1.msra.mxu0 %v5620
    %6098 = vmatprep.subr.mxu0 0.0
    %6099 = vmatpush1.msra.mxu0 %v5621
    %6100 = vmatprep.subr.mxu0 0.0
    %6101 = vmatpush1.msra.mxu0 %v5622
    %6102 = vmatprep.subr.mxu0 0.0
    %6103 = vmatpush1.msra.mxu0 %v5623
    %6104 = vmatprep.subr.mxu0 0.0
    %6105 = vmatpush1.msra.mxu0 %v5624
    %6106 = vmatprep.subr.mxu0 0.0
    %6107 = vmatpush1.msra.mxu0 %v5625
    %6108 = vmatprep.subr.mxu0 0.0
    %6109 = vmatpush1.msra.mxu0 %v5626
    %6110 = vmatprep.subr.mxu0 0.0
    %6111 = vmatpush1.msra.mxu0 %v5627
    %6112 = vmatprep.mubr.f32.mxu0 %v4434
    %6113 = vmatmul.mubr.f32.gmra.mrb[0].mxu0 %v4433
    %v6114 = vpop.f32.mrb[0].mxu0
    %v6115 = vadd.f32 0.0, %v6114
    %v6116 = vpop.f32.mrb[0].mxu0
    %6117 = vdwg.mxu0
    %6118 = vmatprep.subr.mxu0 0.0
    %6119 = vmatpush1.msra.mxu0 %v5596
    %6120 = vmatprep.subr.mxu0 0.0
    %6121 = vmatpush1.msra.mxu0 %v5597
    %6122 = vmatprep.subr.mxu0 0.0
    %6123 = vmatpush1.msra.mxu0 %v5598
    %6124 = vmatprep.subr.mxu0 0.0
    %6125 = vmatpush1.msra.mxu0 %v5599
    %6126 = vmatprep.subr.mxu0 0.0
    %6127 = vmatpush1.msra.mxu0 %v5600
    %6128 = vmatprep.subr.mxu0 0.0
    %6129 = vmatpush1.msra.mxu0 %v5601
    %6130 = vmatprep.subr.mxu0 0.0
    %6131 = vmatpush1.msra.mxu0 %v5602
    %6132 = vmatprep.subr.mxu0 0.0
    %6133 = vmatpush1.msra.mxu0 %v5603
    %6134 = vmatprep.subr.mxu0 0.0
    %6135 = vmatpush1.msra.mxu0 %v5604
    %6136 = vmatprep.subr.mxu0 0.0
    %6137 = vmatpush1.msra.mxu0 %v5605
    %6138 = vmatprep.subr.mxu0 0.0
    %6139 = vmatpush1.msra.mxu0 %v5606
    %6140 = vmatprep.subr.mxu0 0.0
    %6141 = vmatpush1.msra.mxu0 %v5607
    %6142 = vmatprep.subr.mxu0 0.0
    %6143 = vmatpush1.msra.mxu0 %v5608
    %6144 = vmatprep.subr.mxu0 0.0
    %6145 = vmatpush1.msra.mxu0 %v5609
    %6146 = vmatprep.subr.mxu0 0.0
    %6147 = vmatpush1.msra.mxu0 %v5610
    %6148 = vmatprep.subr.mxu0 0.0
    %6149 = vmatpush1.msra.mxu0 %v5611
    %6150 = vmatprep.subr.mxu0 0.0
    %6151 = vmatpush1.msra.mxu0 %v5612
    %6152 = vmatprep.subr.mxu0 0.0
    %6153 = vmatpush1.msra.mxu0 %v5613
    %6154 = vmatprep.subr.mxu0 0.0
    %6155 = vmatpush1.msra.mxu0 %v5614
    %6156 = vmatprep.subr.mxu0 0.0
    %6157 = vmatpush1.msra.mxu0 %v5615
    %6158 = vmatprep.subr.mxu0 0.0
    %6159 = vmatpush1.msra.mxu0 %v5616
    %6160 = vmatprep.subr.mxu0 0.0
    %6161 = vmatpush1.msra.mxu0 %v5617
    %6162 = vmatprep.subr.mxu0 0.0
    %6163 = vmatpush1.msra.mxu0 %v5618
    %6164 = vmatprep.subr.mxu0 0.0
    %6165 = vmatpush1.msra.mxu0 %v5619
    %6166 = vmatprep.subr.mxu0 0.0
    %6167 = vmatpush1.msra.mxu0 %v5620
    %6168 = vmatprep.subr.mxu0 0.0
    %6169 = vmatpush1.msra.mxu0 %v5621
    %6170 = vmatprep.subr.mxu0 0.0
    %6171 = vmatpush1.msra.mxu0 %v5622
    %6172 = vmatprep.subr.mxu0 0.0
    %6173 = vmatpush1.msra.mxu0 %v5623
    %6174 = vmatprep.subr.mxu0 0.0
    %6175 = vmatpush1.msra.mxu0 %v5624
    %6176 = vmatprep.subr.mxu0 0.0
    %6177 = vmatpush1.msra.mxu0 %v5625
    %6178 = vmatprep.subr.mxu0 0.0
    %6179 = vmatpush1.msra.mxu0 %v5626
    %6180 = vmatprep.subr.mxu0 0.0
    %6181 = vmatpush1.msra.mxu0 %v5627
    %6182 = vmatprep.mubr.f32.mxu0 %v4435
    %6183 = vmatmul.mubr.f32.gmra.mrb[0].mxu0 %v4434
    %v6184 = vpop.f32.mrb[0].mxu0
    %v6185 = vadd.f32 0.0, %v6184
    %v6186 = vpop.f32.mrb[0].mxu0
    %6187 = vdwg.mxu0
    %6188 = vmatprep.subr.mxu0 0.0
    %6189 = vmatpush1.msra.mxu0 %v5596
    %6190 = vmatprep.subr.mxu0 0.0
    %6191 = vmatpush1.msra.mxu0 %v5597
    %6192 = vmatprep.subr.mxu0 0.0
    %6193 = vmatpush1.msra.mxu0 %v5598
    %6194 = vmatprep.subr.mxu0 0.0
    %6195 = vmatpush1.msra.mxu0 %v5599
    %6196 = vmatprep.subr.mxu0 0.0
    %6197 = vmatpush1.msra.mxu0 %v5600
    %6198 = vmatprep.subr.mxu0 0.0
    %6199 = vmatpush1.msra.mxu0 %v5601
    %6200 = vmatprep.subr.mxu0 0.0
    %6201 = vmatpush1.msra.mxu0 %v5602
    %6202 = vmatprep.subr.mxu0 0.0
    %6203 = vmatpush1.msra.mxu0 %v5603
    %6204 = vmatprep.subr.mxu0 0.0
    %6205 = vmatpush1.msra.mxu0 %v5604
    %6206 = vmatprep.subr.mxu0 0.0
    %6207 = vmatpush1.msra.mxu0 %v5605
    %6208 = vmatprep.subr.mxu0 0.0
    %6209 = vmatpush1.msra.mxu0 %v5606
    %6210 = vmatprep.subr.mxu0 0.0
    %6211 = vmatpush1.msra.mxu0 %v5607
    %6212 = vmatprep.subr.mxu0 0.0
    %6213 = vmatpush1.msra.mxu0 %v5608
    %6214 = vmatprep.subr.mxu0 0.0
    %6215 = vmatpush1.msra.mxu0 %v5609
    %6216 = vmatprep.subr.mxu0 0.0
    %6217 = vmatpush1.msra.mxu0 %v5610
    %6218 = vmatprep.subr.mxu0 0.0
    %6219 = vmatpush1.msra.mxu0 %v5611
    %6220 = vmatprep.subr.mxu0 0.0
    %6221 = vmatpush1.msra.mxu0 %v5612
    %6222 = vmatprep.subr.mxu0 0.0
    %6223 = vmatpush1.msra.mxu0 %v5613
    %6224 = vmatprep.subr.mxu0 0.0
    %6225 = vmatpush1.msra.mxu0 %v5614
    %6226 = vmatprep.subr.mxu0 0.0
    %6227 = vmatpush1.msra.mxu0 %v5615
    %6228 = vmatprep.subr.mxu0 0.0
    %6229 = vmatpush1.msra.mxu0 %v5616
    %6230 = vmatprep.subr.mxu0 0.0
    %6231 = vmatpush1.msra.mxu0 %v5617
    %6232 = vmatprep.subr.mxu0 0.0
    %6233 = vmatpush1.msra.mxu0 %v5618
    %6234 = vmatprep.subr.mxu0 0.0
    %6235 = vmatpush1.msra.mxu0 %v5619
    %6236 = vmatprep.subr.mxu0 0.0
    %6237 = vmatpush1.msra.mxu0 %v5620
    %6238 = vmatprep.subr.mxu0 0.0
    %6239 = vmatpush1.msra.mxu0 %v5621
    %6240 = vmatprep.subr.mxu0 0.0
    %6241 = vmatpush1.msra.mxu0 %v5622
    %6242 = vmatprep.subr.mxu0 0.0
    %6243 = vmatpush1.msra.mxu0 %v5623
    %6244 = vmatprep.subr.mxu0 0.0
    %6245 = vmatpush1.msra.mxu0 %v5624
    %6246 = vmatprep.subr.mxu0 0.0
    %6247 = vmatpush1.msra.mxu0 %v5625
    %6248 = vmatprep.subr.mxu0 0.0
    %6249 = vmatpush1.msra.mxu0 %v5626
    %6250 = vmatprep.subr.mxu0 0.0
    %6251 = vmatpush1.msra.mxu0 %v5627
    %6252 = vmatprep.mubr.f32.mxu0 %v4436
    %6253 = vmatmul.mubr.f32.gmra.mrb[0].mxu0 %v4435
    %v6254 = vpop.f32.mrb[0].mxu0
    %v6255 = vadd.f32 0.0, %v6254
    %v6256 = vpop.f32.mrb[0].mxu0
    %6257 = vdwg.mxu0
    %6258 = vmatprep.subr.mxu0 0.0
    %6259 = vmatpush1.msra.mxu0 %v5596
    %6260 = vmatprep.subr.mxu0 0.0
    %6261 = vmatpush1.msra.mxu0 %v5597
    %6262 = vmatprep.subr.mxu0 0.0
    %6263 = vmatpush1.msra.mxu0 %v5598
    %6264 = vmatprep.subr.mxu0 0.0
    %6265 = vmatpush1.msra.mxu0 %v5599
    %6266 = vmatprep.subr.mxu0 0.0
    %6267 = vmatpush1.msra.mxu0 %v5600
    %6268 = vmatprep.subr.mxu0 0.0
    %6269 = vmatpush1.msra.mxu0 %v5601
    %6270 = vmatprep.subr.mxu0 0.0
    %6271 = vmatpush1.msra.mxu0 %v5602
    %6272 = vmatprep.subr.mxu0 0.0
    %6273 = vmatpush1.msra.mxu0 %v5603
    %6274 = vmatprep.subr.mxu0 0.0
    %6275 = vmatpush1.msra.mxu0 %v5604
    %6276 = vmatprep.subr.mxu0 0.0
    %6277 = vmatpush1.msra.mxu0 %v5605
    %6278 = vmatprep.subr.mxu0 0.0
    %6279 = vmatpush1.msra.mxu0 %v5606
    %6280 = vmatprep.subr.mxu0 0.0
    %6281 = vmatpush1.msra.mxu0 %v5607
    %6282 = vmatprep.subr.mxu0 0.0
    %6283 = vmatpush1.msra.mxu0 %v5608
    %6284 = vmatprep.subr.mxu0 0.0
    %6285 = vmatpush1.msra.mxu0 %v5609
    %6286 = vmatprep.subr.mxu0 0.0
    %6287 = vmatpush1.msra.mxu0 %v5610
    %6288 = vmatprep.subr.mxu0 0.0
    %6289 = vmatpush1.msra.mxu0 %v5611
    %6290 = vmatprep.subr.mxu0 0.0
    %6291 = vmatpush1.msra.mxu0 %v5612
    %6292 = vmatprep.subr.mxu0 0.0
    %6293 = vmatpush1.msra.mxu0 %v5613
    %6294 = vmatprep.subr.mxu0 0.0
    %6295 = vmatpush1.msra.mxu0 %v5614
    %6296 = vmatprep.subr.mxu0 0.0
    %6297 = vmatpush1.msra.mxu0 %v5615
    %6298 = vmatprep.subr.mxu0 0.0
    %6299 = vmatpush1.msra.mxu0 %v5616
    %6300 = vmatprep.subr.mxu0 0.0
    %6301 = vmatpush1.msra.mxu0 %v5617
    %6302 = vmatprep.subr.mxu0 0.0
    %6303 = vmatpush1.msra.mxu0 %v5618
    %6304 = vmatprep.subr.mxu0 0.0
    %6305 = vmatpush1.msra.mxu0 %v5619
    %6306 = vmatprep.subr.mxu0 0.0
    %6307 = vmatpush1.msra.mxu0 %v5620
    %6308 = vmatprep.subr.mxu0 0.0
    %6309 = vmatpush1.msra.mxu0 %v5621
    %6310 = vmatprep.subr.mxu0 0.0
    %6311 = vmatpush1.msra.mxu0 %v5622
    %6312 = vmatprep.subr.mxu0 0.0
    %6313 = vmatpush1.msra.mxu0 %v5623
    %6314 = vmatprep.subr.mxu0 0.0
    %6315 = vmatpush1.msra.mxu0 %v5624
    %6316 = vmatprep.subr.mxu0 0.0
    %6317 = vmatpush1.msra.mxu0 %v5625
    %6318 = vmatprep.subr.mxu0 0.0
    %6319 = vmatpush1.msra.mxu0 %v5626
    %6320 = vmatprep.subr.mxu0 0.0
    %6321 = vmatpush1.msra.mxu0 %v5627
    %6322 = vmatprep.mubr.f32.mxu0 %v4437
    %6323 = vmatmul.mubr.f32.gmra.mrb[0].mxu0 %v4436
    %v6324 = vpop.f32.mrb[0].mxu0
    %v6325 = vadd.f32 0.0, %v6324
    %v6326 = vpop.f32.mrb[0].mxu0
    %6327 = vdwg.mxu0
    %6328 = vmatprep.subr.mxu0 0.0
    %6329 = vmatpush1.msra.mxu0 %v5596
    %6330 = vmatprep.subr.mxu0 0.0
    %6331 = vmatpush1.msra.mxu0 %v5597
    %6332 = vmatprep.subr.mxu0 0.0
    %6333 = vmatpush1.msra.mxu0 %v5598
    %6334 = vmatprep.subr.mxu0 0.0
    %6335 = vmatpush1.msra.mxu0 %v5599
    %6336 = vmatprep.subr.mxu0 0.0
    %6337 = vmatpush1.msra.mxu0 %v5600
    %6338 = vmatprep.subr.mxu0 0.0
    %6339 = vmatpush1.msra.mxu0 %v5601
    %6340 = vmatprep.subr.mxu0 0.0
    %6341 = vmatpush1.msra.mxu0 %v5602
    %6342 = vmatprep.subr.mxu0 0.0
    %6343 = vmatpush1.msra.mxu0 %v5603
    %6344 = vmatprep.subr.mxu0 0.0
    %6345 = vmatpush1.msra.mxu0 %v5604
    %6346 = vmatprep.subr.mxu0 0.0
    %6347 = vmatpush1.msra.mxu0 %v5605
    %6348 = vmatprep.subr.mxu0 0.0
    %6349 = vmatpush1.msra.mxu0 %v5606
    %6350 = vmatprep.subr.mxu0 0.0
    %6351 = vmatpush1.msra.mxu0 %v5607
    %6352 = vmatprep.subr.mxu0 0.0
    %6353 = vmatpush1.msra.mxu0 %v5608
    %6354 = vmatprep.subr.mxu0 0.0
    %6355 = vmatpush1.msra.mxu0 %v5609
    %6356 = vmatprep.subr.mxu0 0.0
    %6357 = vmatpush1.msra.mxu0 %v5610
    %6358 = vmatprep.subr.mxu0 0.0
    %6359 = vmatpush1.msra.mxu0 %v5611
    %6360 = vmatprep.subr.mxu0 0.0
    %6361 = vmatpush1.msra.mxu0 %v5612
    %6362 = vmatprep.subr.mxu0 0.0
    %6363 = vmatpush1.msra.mxu0 %v5613
    %6364 = vmatprep.subr.mxu0 0.0
    %6365 = vmatpush1.msra.mxu0 %v5614
    %6366 = vmatprep.subr.mxu0 0.0
    %6367 = vmatpush1.msra.mxu0 %v5615
    %6368 = vmatprep.subr.mxu0 0.0
    %6369 = vmatpush1.msra.mxu0 %v5616
    %6370 = vmatprep.subr.mxu0 0.0
    %6371 = vmatpush1.msra.mxu0 %v5617
    %6372 = vmatprep.subr.mxu0 0.0
    %6373 = vmatpush1.msra.mxu0 %v5618
    %6374 = vmatprep.subr.mxu0 0.0
    %6375 = vmatpush1.msra.mxu0 %v5619
    %6376 = vmatprep.subr.mxu0 0.0
    %6377 = vmatpush1.msra.mxu0 %v5620
    %6378 = vmatprep.subr.mxu0 0.0
    %6379 = vmatpush1.msra.mxu0 %v5621
    %6380 = vmatprep.subr.mxu0 0.0
    %6381 = vmatpush1.msra.mxu0 %v5622
    %6382 = vmatprep.subr.mxu0 0.0
    %6383 = vmatpush1.msra.mxu0 %v5623
    %6384 = vmatprep.subr.mxu0 0.0
    %6385 = vmatpush1.msra.mxu0 %v5624
    %6386 = vmatprep.subr.mxu0 0.0
    %6387 = vmatpush1.msra.mxu0 %v5625
    %6388 = vmatprep.subr.mxu0 0.0
    %6389 = vmatpush1.msra.mxu0 %v5626
    %6390 = vmatprep.subr.mxu0 0.0
    %6391 = vmatpush1.msra.mxu0 %v5627
    %6392 = vmatprep.mubr.f32.mxu0 %v4438
    %6393 = vmatmul.mubr.f32.gmra.mrb[0].mxu0 %v4437
    %v6394 = vpop.f32.mrb[0].mxu0
    %v6395 = vadd.f32 0.0, %v6394
    %v6396 = vpop.f32.mrb[0].mxu0
    %6397 = vdwg.mxu0
    %6398 = vmatprep.subr.mxu0 0.0
    %6399 = vmatpush1.msra.mxu0 %v5596
    %6400 = vmatprep.subr.mxu0 0.0
    %6401 = vmatpush1.msra.mxu0 %v5597
    %6402 = vmatprep.subr.mxu0 0.0
    %6403 = vmatpush1.msra.mxu0 %v5598
    %6404 = vmatprep.subr.mxu0 0.0
    %6405 = vmatpush1.msra.mxu0 %v5599
    %6406 = vmatprep.subr.mxu0 0.0
    %6407 = vmatpush1.msra.mxu0 %v5600
    %6408 = vmatprep.subr.mxu0 0.0
    %6409 = vmatpush1.msra.mxu0 %v5601
    %6410 = vmatprep.subr.mxu0 0.0
    %6411 = vmatpush1.msra.mxu0 %v5602
    %6412 = vmatprep.subr.mxu0 0.0
    %6413 = vmatpush1.msra.mxu0 %v5603
    %6414 = vmatprep.subr.mxu0 0.0
    %6415 = vmatpush1.msra.mxu0 %v5604
    %6416 = vmatprep.subr.mxu0 0.0
    %6417 = vmatpush1.msra.mxu0 %v5605
    %6418 = vmatprep.subr.mxu0 0.0
    %6419 = vmatpush1.msra.mxu0 %v5606
    %6420 = vmatprep.subr.mxu0 0.0
    %6421 = vmatpush1.msra.mxu0 %v5607
    %6422 = vmatprep.subr.mxu0 0.0
    %6423 = vmatpush1.msra.mxu0 %v5608
    %6424 = vmatprep.subr.mxu0 0.0
    %6425 = vmatpush1.msra.mxu0 %v5609
    %6426 = vmatprep.subr.mxu0 0.0
    %6427 = vmatpush1.msra.mxu0 %v5610
    %6428 = vmatprep.subr.mxu0 0.0
    %6429 = vmatpush1.msra.mxu0 %v5611
    %6430 = vmatprep.subr.mxu0 0.0
    %6431 = vmatpush1.msra.mxu0 %v5612
    %6432 = vmatprep.subr.mxu0 0.0
    %6433 = vmatpush1.msra.mxu0 %v5613
    %6434 = vmatprep.subr.mxu0 0.0
    %6435 = vmatpush1.msra.mxu0 %v5614
    %6436 = vmatprep.subr.mxu0 0.0
    %6437 = vmatpush1.msra.mxu0 %v5615
    %6438 = vmatprep.subr.mxu0 0.0
    %6439 = vmatpush1.msra.mxu0 %v5616
    %6440 = vmatprep.subr.mxu0 0.0
    %6441 = vmatpush1.msra.mxu0 %v5617
    %6442 = vmatprep.subr.mxu0 0.0
    %6443 = vmatpush1.msra.mxu0 %v5618
    %6444 = vmatprep.subr.mxu0 0.0
    %6445 = vmatpush1.msra.mxu0 %v5619
    %6446 = vmatprep.subr.mxu0 0.0
    %6447 = vmatpush1.msra.mxu0 %v5620
    %6448 = vmatprep.subr.mxu0 0.0
    %6449 = vmatpush1.msra.mxu0 %v5621
    %6450 = vmatprep.subr.mxu0 0.0
    %6451 = vmatpush1.msra.mxu0 %v5622
    %6452 = vmatprep.subr.mxu0 0.0
    %6453 = vmatpush1.msra.mxu0 %v5623
    %6454 = vmatprep.subr.mxu0 0.0
    %6455 = vmatpush1.msra.mxu0 %v5624
    %6456 = vmatprep.subr.mxu0 0.0
    %6457 = vmatpush1.msra.mxu0 %v5625
    %6458 = vmatprep.subr.mxu0 0.0
    %6459 = vmatpush1.msra.mxu0 %v5626
    %6460 = vmatprep.subr.mxu0 0.0
    %6461 = vmatpush1.msra.mxu0 %v5627
    %6462 = vmatprep.mubr.f32.mxu0 %v4439
    %6463 = vmatmul.mubr.f32.gmra.mrb[0].mxu0 %v4438
    %v6464 = vpop.f32.mrb[0].mxu0
    %v6465 = vadd.f32 0.0, %v6464
    %v6466 = vpop.f32.mrb[0].mxu0
    %6467 = vdwg.mxu0
    %6468 = vmatprep.subr.mxu0 0.0
    %6469 = vmatpush1.msra.mxu0 %v5596
    %6470 = vmatprep.subr.mxu0 0.0
    %6471 = vmatpush1.msra.mxu0 %v5597
    %6472 = vmatprep.subr.mxu0 0.0
    %6473 = vmatpush1.msra.mxu0 %v5598
    %6474 = vmatprep.subr.mxu0 0.0
    %6475 = vmatpush1.msra.mxu0 %v5599
    %6476 = vmatprep.subr.mxu0 0.0
    %6477 = vmatpush1.msra.mxu0 %v5600
    %6478 = vmatprep.subr.mxu0 0.0
    %6479 = vmatpush1.msra.mxu0 %v5601
    %6480 = vmatprep.subr.mxu0 0.0
    %6481 = vmatpush1.msra.mxu0 %v5602
    %6482 = vmatprep.subr.mxu0 0.0
    %6483 = vmatpush1.msra.mxu0 %v5603
    %6484 = vmatprep.subr.mxu0 0.0
    %6485 = vmatpush1.msra.mxu0 %v5604
    %6486 = vmatprep.subr.mxu0 0.0
    %6487 = vmatpush1.msra.mxu0 %v5605
    %6488 = vmatprep.subr.mxu0 0.0
    %6489 = vmatpush1.msra.mxu0 %v5606
    %6490 = vmatprep.subr.mxu0 0.0
    %6491 = vmatpush1.msra.mxu0 %v5607
    %6492 = vmatprep.subr.mxu0 0.0
    %6493 = vmatpush1.msra.mxu0 %v5608
    %6494 = vmatprep.subr.mxu0 0.0
    %6495 = vmatpush1.msra.mxu0 %v5609
    %6496 = vmatprep.subr.mxu0 0.0
    %6497 = vmatpush1.msra.mxu0 %v5610
    %6498 = vmatprep.subr.mxu0 0.0
    %6499 = vmatpush1.msra.mxu0 %v5611
    %6500 = vmatprep.subr.mxu0 0.0
    %6501 = vmatpush1.msra.mxu0 %v5612
    %6502 = vmatprep.subr.mxu0 0.0
    %6503 = vmatpush1.msra.mxu0 %v5613
    %6504 = vmatprep.subr.mxu0 0.0
    %6505 = vmatpush1.msra.mxu0 %v5614
    %6506 = vmatprep.subr.mxu0 0.0
    %6507 = vmatpush1.msra.mxu0 %v5615
    %6508 = vmatprep.subr.mxu0 0.0
    %6509 = vmatpush1.msra.mxu0 %v5616
    %6510 = vmatprep.subr.mxu0 0.0
    %6511 = vmatpush1.msra.mxu0 %v5617
    %6512 = vmatprep.subr.mxu0 0.0
    %6513 = vmatpush1.msra.mxu0 %v5618
    %6514 = vmatprep.subr.mxu0 0.0
    %6515 = vmatpush1.msra.mxu0 %v5619
    %6516 = vmatprep.subr.mxu0 0.0
    %6517 = vmatpush1.msra.mxu0 %v5620
    %6518 = vmatprep.subr.mxu0 0.0
    %6519 = vmatpush1.msra.mxu0 %v5621
    %6520 = vmatprep.subr.mxu0 0.0
    %6521 = vmatpush1.msra.mxu0 %v5622
    %6522 = vmatprep.subr.mxu0 0.0
    %6523 = vmatpush1.msra.mxu0 %v5623
    %6524 = vmatprep.subr.mxu0 0.0
    %6525 = vmatpush1.msra.mxu0 %v5624
    %6526 = vmatprep.subr.mxu0 0.0
    %6527 = vmatpush1.msra.mxu0 %v5625
    %6528 = vmatprep.subr.mxu0 0.0
    %6529 = vmatpush1.msra.mxu0 %v5626
    %6530 = vmatprep.subr.mxu0 0.0
    %6531 = vmatpush1.msra.mxu0 %v5627
    %6532 = vmatprep.mubr.f32.mxu0 %v4440
    %6533 = vmatmul.mubr.f32.gmra.mrb[0].mxu0 %v4439
    %v6534 = vpop.f32.mrb[0].mxu0
    %v6535 = vadd.f32 0.0, %v6534
    %v6536 = vpop.f32.mrb[0].mxu0
    %6537 = vdwg.mxu0
    %6538 = vmatprep.subr.mxu0 0.0
    %6539 = vmatpush1.msra.mxu0 %v5596
    %6540 = vmatprep.subr.mxu0 0.0
    %6541 = vmatpush1.msra.mxu0 %v5597
    %6542 = vmatprep.subr.mxu0 0.0
    %6543 = vmatpush1.msra.mxu0 %v5598
    %6544 = vmatprep.subr.mxu0 0.0
    %6545 = vmatpush1.msra.mxu0 %v5599
    %6546 = vmatprep.subr.mxu0 0.0
    %6547 = vmatpush1.msra.mxu0 %v5600
    %6548 = vmatprep.subr.mxu0 0.0
    %6549 = vmatpush1.msra.mxu0 %v5601
    %6550 = vmatprep.subr.mxu0 0.0
    %6551 = vmatpush1.msra.mxu0 %v5602
    %6552 = vmatprep.subr.mxu0 0.0
    %6553 = vmatpush1.msra.mxu0 %v5603
    %6554 = vmatprep.subr.mxu0 0.0
    %6555 = vmatpush1.msra.mxu0 %v5604
    %6556 = vmatprep.subr.mxu0 0.0
    %6557 = vmatpush1.msra.mxu0 %v5605
    %6558 = vmatprep.subr.mxu0 0.0
    %6559 = vmatpush1.msra.mxu0 %v5606
    %6560 = vmatprep.subr.mxu0 0.0
    %6561 = vmatpush1.msra.mxu0 %v5607
    %6562 = vmatprep.subr.mxu0 0.0
    %6563 = vmatpush1.msra.mxu0 %v5608
    %6564 = vmatprep.subr.mxu0 0.0
    %6565 = vmatpush1.msra.mxu0 %v5609
    %6566 = vmatprep.subr.mxu0 0.0
    %6567 = vmatpush1.msra.mxu0 %v5610
    %6568 = vmatprep.subr.mxu0 0.0
    %6569 = vmatpush1.msra.mxu0 %v5611
    %6570 = vmatprep.subr.mxu0 0.0
    %6571 = vmatpush1.msra.mxu0 %v5612
    %6572 = vmatprep.subr.mxu0 0.0
    %6573 = vmatpush1.msra.mxu0 %v5613
    %6574 = vmatprep.subr.mxu0 0.0
    %6575 = vmatpush1.msra.mxu0 %v5614
    %6576 = vmatprep.subr.mxu0 0.0
    %6577 = vmatpush1.msra.mxu0 %v5615
    %6578 = vmatprep.subr.mxu0 0.0
    %6579 = vmatpush1.msra.mxu0 %v5616
    %6580 = vmatprep.subr.mxu0 0.0
    %6581 = vmatpush1.msra.mxu0 %v5617
    %6582 = vmatprep.subr.mxu0 0.0
    %6583 = vmatpush1.msra.mxu0 %v5618
    %6584 = vmatprep.subr.mxu0 0.0
    %6585 = vmatpush1.msra.mxu0 %v5619
    %6586 = vmatprep.subr.mxu0 0.0
    %6587 = vmatpush1.msra.mxu0 %v5620
    %6588 = vmatprep.subr.mxu0 0.0
    %6589 = vmatpush1.msra.mxu0 %v5621
    %6590 = vmatprep.subr.mxu0 0.0
    %6591 = vmatpush1.msra.mxu0 %v5622
    %6592 = vmatprep.subr.mxu0 0.0
    %6593 = vmatpush1.msra.mxu0 %v5623
    %6594 = vmatprep.subr.mxu0 0.0
    %6595 = vmatpush1.msra.mxu0 %v5624
    %6596 = vmatprep.subr.mxu0 0.0
    %6597 = vmatpush1.msra.mxu0 %v5625
    %6598 = vmatprep.subr.mxu0 0.0
    %6599 = vmatpush1.msra.mxu0 %v5626
    %6600 = vmatprep.subr.mxu0 0.0
    %6601 = vmatpush1.msra.mxu0 %v5627
    %6602 = vmatprep.mubr.f32.mxu0 %v4441
    %6603 = vmatmul.mubr.f32.gmra.mrb[0].mxu0 %v4440
    %v6604 = vpop.f32.mrb[0].mxu0
    %v6605 = vadd.f32 0.0, %v6604
    %v6606 = vpop.f32.mrb[0].mxu0
    %6607 = vdwg.mxu0
    %6608 = vmatprep.subr.mxu0 0.0
    %6609 = vmatpush1.msra.mxu0 %v5596
    %6610 = vmatprep.subr.mxu0 0.0
    %6611 = vmatpush1.msra.mxu0 %v5597
    %6612 = vmatprep.subr.mxu0 0.0
    %6613 = vmatpush1.msra.mxu0 %v5598
    %6614 = vmatprep.subr.mxu0 0.0
    %6615 = vmatpush1.msra.mxu0 %v5599
    %6616 = vmatprep.subr.mxu0 0.0
    %6617 = vmatpush1.msra.mxu0 %v5600
    %6618 = vmatprep.subr.mxu0 0.0
    %6619 = vmatpush1.msra.mxu0 %v5601
    %6620 = vmatprep.subr.mxu0 0.0
    %6621 = vmatpush1.msra.mxu0 %v5602
    %6622 = vmatprep.subr.mxu0 0.0
    %6623 = vmatpush1.msra.mxu0 %v5603
    %6624 = vmatprep.subr.mxu0 0.0
    %6625 = vmatpush1.msra.mxu0 %v5604
    %6626 = vmatprep.subr.mxu0 0.0
    %6627 = vmatpush1.msra.mxu0 %v5605
    %6628 = vmatprep.subr.mxu0 0.0
    %6629 = vmatpush1.msra.mxu0 %v5606
    %6630 = vmatprep.subr.mxu0 0.0
    %6631 = vmatpush1.msra.mxu0 %v5607
    %6632 = vmatprep.subr.mxu0 0.0
    %6633 = vmatpush1.msra.mxu0 %v5608
    %6634 = vmatprep.subr.mxu0 0.0
    %6635 = vmatpush1.msra.mxu0 %v5609
    %6636 = vmatprep.subr.mxu0 0.0
    %6637 = vmatpush1.msra.mxu0 %v5610
    %6638 = vmatprep.subr.mxu0 0.0
    %6639 = vmatpush1.msra.mxu0 %v5611
    %6640 = vmatprep.subr.mxu0 0.0
    %6641 = vmatpush1.msra.mxu0 %v5612
    %6642 = vmatprep.subr.mxu0 0.0
    %6643 = vmatpush1.msra.mxu0 %v5613
    %6644 = vmatprep.subr.mxu0 0.0
    %6645 = vmatpush1.msra.mxu0 %v5614
    %6646 = vmatprep.subr.mxu0 0.0
    %6647 = vmatpush1.msra.mxu0 %v5615
    %6648 = vmatprep.subr.mxu0 0.0
    %6649 = vmatpush1.msra.mxu0 %v5616
    %6650 = vmatprep.subr.mxu0 0.0
    %6651 = vmatpush1.msra.mxu0 %v5617
    %6652 = vmatprep.subr.mxu0 0.0
    %6653 = vmatpush1.msra.mxu0 %v5618
    %6654 = vmatprep.subr.mxu0 0.0
    %6655 = vmatpush1.msra.mxu0 %v5619
    %6656 = vmatprep.subr.mxu0 0.0
    %6657 = vmatpush1.msra.mxu0 %v5620
    %6658 = vmatprep.subr.mxu0 0.0
    %6659 = vmatpush1.msra.mxu0 %v5621
    %6660 = vmatprep.subr.mxu0 0.0
    %6661 = vmatpush1.msra.mxu0 %v5622
    %6662 = vmatprep.subr.mxu0 0.0
    %6663 = vmatpush1.msra.mxu0 %v5623
    %6664 = vmatprep.subr.mxu0 0.0
    %6665 = vmatpush1.msra.mxu0 %v5624
    %6666 = vmatprep.subr.mxu0 0.0
    %6667 = vmatpush1.msra.mxu0 %v5625
    %6668 = vmatprep.subr.mxu0 0.0
    %6669 = vmatpush1.msra.mxu0 %v5626
    %6670 = vmatprep.subr.mxu0 0.0
    %6671 = vmatpush1.msra.mxu0 %v5627
    %6672 = vmatprep.mubr.f32.mxu0 %v4442
    %6673 = vmatmul.mubr.f32.gmra.mrb[0].mxu0 %v4441
    %v6674 = vpop.f32.mrb[0].mxu0
    %v6675 = vadd.f32 0.0, %v6674
    %v6676 = vpop.f32.mrb[0].mxu0
    %6677 = vdwg.mxu0
    %6678 = vmatprep.subr.mxu0 0.0
    %6679 = vmatpush1.msra.mxu0 %v5596
    %6680 = vmatprep.subr.mxu0 0.0
    %6681 = vmatpush1.msra.mxu0 %v5597
    %6682 = vmatprep.subr.mxu0 0.0
    %6683 = vmatpush1.msra.mxu0 %v5598
    %6684 = vmatprep.subr.mxu0 0.0
    %6685 = vmatpush1.msra.mxu0 %v5599
    %6686 = vmatprep.subr.mxu0 0.0
    %6687 = vmatpush1.msra.mxu0 %v5600
    %6688 = vmatprep.subr.mxu0 0.0
    %6689 = vmatpush1.msra.mxu0 %v5601
    %6690 = vmatprep.subr.mxu0 0.0
    %6691 = vmatpush1.msra.mxu0 %v5602
    %6692 = vmatprep.subr.mxu0 0.0
    %6693 = vmatpush1.msra.mxu0 %v5603
    %6694 = vmatprep.subr.mxu0 0.0
    %6695 = vmatpush1.msra.mxu0 %v5604
    %6696 = vmatprep.subr.mxu0 0.0
    %6697 = vmatpush1.msra.mxu0 %v5605
    %6698 = vmatprep.subr.mxu0 0.0
    %6699 = vmatpush1.msra.mxu0 %v5606
    %6700 = vmatprep.subr.mxu0 0.0
    %6701 = vmatpush1.msra.mxu0 %v5607
    %6702 = vmatprep.subr.mxu0 0.0
    %6703 = vmatpush1.msra.mxu0 %v5608
    %6704 = vmatprep.subr.mxu0 0.0
    %6705 = vmatpush1.msra.mxu0 %v5609
    %6706 = vmatprep.subr.mxu0 0.0
    %6707 = vmatpush1.msra.mxu0 %v5610
    %6708 = vmatprep.subr.mxu0 0.0
    %6709 = vmatpush1.msra.mxu0 %v5611
    %6710 = vmatprep.subr.mxu0 0.0
    %6711 = vmatpush1.msra.mxu0 %v5612
    %6712 = vmatprep.subr.mxu0 0.0
    %6713 = vmatpush1.msra.mxu0 %v5613
    %6714 = vmatprep.subr.mxu0 0.0
    %6715 = vmatpush1.msra.mxu0 %v5614
    %6716 = vmatprep.subr.mxu0 0.0
    %6717 = vmatpush1.msra.mxu0 %v5615
    %6718 = vmatprep.subr.mxu0 0.0
    %6719 = vmatpush1.msra.mxu0 %v5616
    %6720 = vmatprep.subr.mxu0 0.0
    %6721 = vmatpush1.msra.mxu0 %v5617
    %6722 = vmatprep.subr.mxu0 0.0
    %6723 = vmatpush1.msra.mxu0 %v5618
    %6724 = vmatprep.subr.mxu0 0.0
    %6725 = vmatpush1.msra.mxu0 %v5619
    %6726 = vmatprep.subr.mxu0 0.0
    %6727 = vmatpush1.msra.mxu0 %v5620
    %6728 = vmatprep.subr.mxu0 0.0
    %6729 = vmatpush1.msra.mxu0 %v5621
    %6730 = vmatprep.subr.mxu0 0.0
    %6731 = vmatpush1.msra.mxu0 %v5622
    %6732 = vmatprep.subr.mxu0 0.0
    %6733 = vmatpush1.msra.mxu0 %v5623
    %6734 = vmatprep.subr.mxu0 0.0
    %6735 = vmatpush1.msra.mxu0 %v5624
    %6736 = vmatprep.subr.mxu0 0.0
    %6737 = vmatpush1.msra.mxu0 %v5625
    %6738 = vmatprep.subr.mxu0 0.0
    %6739 = vmatpush1.msra.mxu0 %v5626
    %6740 = vmatprep.subr.mxu0 0.0
    %6741 = vmatpush1.msra.mxu0 %v5627
    %6742 = vmatprep.mubr.f32.mxu0 0.0
    %6743 = vmatmul.mubr.f32.gmra.mrb[0].mxu0 %v4442
    %v6744 = vpop.f32.mrb[0].mxu0
    %v6745 = vadd.f32 0.0, %v6744
    %v6746 = vpop.f32.mrb[0].mxu0
    %6747 = vdwg.mxu0
    %v6748 = vld [vmem:[%s10] sm:$0xff]
    %v6749 = vld [vmem:[%s10 + $0x8] sm:$0xff]
    %v6750 = vld [vmem:[%s10 + $0x10] sm:$0xff]
    %v6751 = vld [vmem:[%s10 + $0x18] sm:$0xff]
    %v6756 = vlaneseq
    %v6757 = vshrl.u32 %v6756, 7
    %v6758 = vsub.s32 0, %v6757
    %v6759 = vrot.slane %v6748, %v6758
    %v6760 = vlaneseq
    %v6761 = vshrl.u32 %v6760, 7
    %v6762 = vsub.s32 1, %v6761
    %v6763 = vrot.slane %v6748, %v6762
    %v6764 = vlaneseq
    %v6765 = vshrl.u32 %v6764, 7
    %v6766 = vsub.s32 2, %v6765
    %v6767 = vrot.slane %v6748, %v6766
    %v6768 = vlaneseq
    %v6769 = vshrl.u32 %v6768, 7
    %v6770 = vsub.s32 3, %v6769
    %v6771 = vrot.slane %v6748, %v6770
    %v6772 = vlaneseq
    %v6773 = vshrl.u32 %v6772, 7
    %v6774 = vsub.s32 4, %v6773
    %v6775 = vrot.slane %v6748, %v6774
    %v6776 = vlaneseq
    %v6777 = vshrl.u32 %v6776, 7
    %v6778 = vsub.s32 5, %v6777
    %v6779 = vrot.slane %v6748, %v6778
    %v6780 = vlaneseq
    %v6781 = vshrl.u32 %v6780, 7
    %v6782 = vsub.s32 6, %v6781
    %v6783 = vrot.slane %v6748, %v6782
    %v6784 = vlaneseq
    %v6785 = vshrl.u32 %v6784, 7
    %v6786 = vsub.s32 7, %v6785
    %v6787 = vrot.slane %v6748, %v6786
    %v6788 = vlaneseq
    %v6789 = vshrl.u32 %v6788, 7
    %v6790 = vsub.s32 0, %v6789
    %v6791 = vrot.slane %v6749, %v6790
    %v6792 = vlaneseq
    %v6793 = vshrl.u32 %v6792, 7
    %v6794 = vsub.s32 1, %v6793
    %v6795 = vrot.slane %v6749, %v6794
    %v6796 = vlaneseq
    %v6797 = vshrl.u32 %v6796, 7
    %v6798 = vsub.s32 2, %v6797
    %v6799 = vrot.slane %v6749, %v6798
    %v6800 = vlaneseq
    %v6801 = vshrl.u32 %v6800, 7
    %v6802 = vsub.s32 3, %v6801
    %v6803 = vrot.slane %v6749, %v6802
    %v6804 = vlaneseq
    %v6805 = vshrl.u32 %v6804, 7
    %v6806 = vsub.s32 4, %v6805
    %v6807 = vrot.slane %v6749, %v6806
    %v6808 = vlaneseq
    %v6809 = vshrl.u32 %v6808, 7
    %v6810 = vsub.s32 5, %v6809
    %v6811 = vrot.slane %v6749, %v6810
    %v6812 = vlaneseq
    %v6813 = vshrl.u32 %v6812, 7
    %v6814 = vsub.s32 6, %v6813
    %v6815 = vrot.slane %v6749, %v6814
    %v6816 = vlaneseq
    %v6817 = vshrl.u32 %v6816, 7
    %v6818 = vsub.s32 7, %v6817
    %v6819 = vrot.slane %v6749, %v6818
    %v6820 = vlaneseq
    %v6821 = vshrl.u32 %v6820, 7
    %v6822 = vsub.s32 0, %v6821
    %v6823 = vrot.slane %v6750, %v6822
    %v6824 = vlaneseq
    %v6825 = vshrl.u32 %v6824, 7
    %v6826 = vsub.s32 1, %v6825
    %v6827 = vrot.slane %v6750, %v6826
    %v6828 = vlaneseq
    %v6829 = vshrl.u32 %v6828, 7
    %v6830 = vsub.s32 2, %v6829
    %v6831 = vrot.slane %v6750, %v6830
    %v6832 = vlaneseq
    %v6833 = vshrl.u32 %v6832, 7
    %v6834 = vsub.s32 3, %v6833
    %v6835 = vrot.slane %v6750, %v6834
    %v6836 = vlaneseq
    %v6837 = vshrl.u32 %v6836, 7
    %v6838 = vsub.s32 4, %v6837
    %v6839 = vrot.slane %v6750, %v6838
    %v6840 = vlaneseq
    %v6841 = vshrl.u32 %v6840, 7
    %v6842 = vsub.s32 5, %v6841
    %v6843 = vrot.slane %v6750, %v6842
    %v6844 = vlaneseq
    %v6845 = vshrl.u32 %v6844, 7
    %v6846 = vsub.s32 6, %v6845
    %v6847 = vrot.slane %v6750, %v6846
    %v6848 = vlaneseq
    %v6849 = vshrl.u32 %v6848, 7
    %v6850 = vsub.s32 7, %v6849
    %v6851 = vrot.slane %v6750, %v6850
    %v6852 = vlaneseq
    %v6853 = vshrl.u32 %v6852, 7
    %v6854 = vsub.s32 0, %v6853
    %v6855 = vrot.slane %v6751, %v6854
    %v6856 = vlaneseq
    %v6857 = vshrl.u32 %v6856, 7
    %v6858 = vsub.s32 1, %v6857
    %v6859 = vrot.slane %v6751, %v6858
    %v6860 = vlaneseq
    %v6861 = vshrl.u32 %v6860, 7
    %v6862 = vsub.s32 2, %v6861
    %v6863 = vrot.slane %v6751, %v6862
    %v6864 = vlaneseq
    %v6865 = vshrl.u32 %v6864, 7
    %v6866 = vsub.s32 3, %v6865
    %v6867 = vrot.slane %v6751, %v6866
    %v6868 = vlaneseq
    %v6869 = vshrl.u32 %v6868, 7
    %v6870 = vsub.s32 4, %v6869
    %v6871 = vrot.slane %v6751, %v6870
    %v6872 = vlaneseq
    %v6873 = vshrl.u32 %v6872, 7
    %v6874 = vsub.s32 5, %v6873
    %v6875 = vrot.slane %v6751, %v6874
    %v6876 = vlaneseq
    %v6877 = vshrl.u32 %v6876, 7
    %v6878 = vsub.s32 6, %v6877
    %v6879 = vrot.slane %v6751, %v6878
    %v6880 = vlaneseq
    %v6881 = vshrl.u32 %v6880, 7
    %v6882 = vsub.s32 7, %v6881
    %v6883 = vrot.slane %v6751, %v6882
    %v6916 = vadd.f32 %v4542, %v6759
    %v6917 = vadd.f32 %v5695, %v6763
    %v6918 = vadd.f32 %v4612, %v6767
    %v6919 = vadd.f32 %v5765, %v6771
    %v6920 = vadd.f32 %v4682, %v6775
    %v6921 = vadd.f32 %v5835, %v6779
    %v6922 = vadd.f32 %v4752, %v6783
    %v6923 = vadd.f32 %v5905, %v6787
    %v6924 = vadd.f32 %v4822, %v6791
    %v6925 = vadd.f32 %v5975, %v6795
    %v6926 = vadd.f32 %v4892, %v6799
    %v6927 = vadd.f32 %v6045, %v6803
    %v6928 = vadd.f32 %v4962, %v6807
    %v6929 = vadd.f32 %v6115, %v6811
    %v6930 = vadd.f32 %v5032, %v6815
    %v6931 = vadd.f32 %v6185, %v6819
    %v6932 = vadd.f32 %v5102, %v6823
    %v6933 = vadd.f32 %v6255, %v6827
    %v6934 = vadd.f32 %v5172, %v6831
    %v6935 = vadd.f32 %v6325, %v6835
    %v6936 = vadd.f32 %v5242, %v6839
    %v6937 = vadd.f32 %v6395, %v6843
    %v6938 = vadd.f32 %v5312, %v6847
    %v6939 = vadd.f32 %v6465, %v6851
    %v6940 = vadd.f32 %v5382, %v6855
    %v6941 = vadd.f32 %v6535, %v6859
    %v6942 = vadd.f32 %v5452, %v6863
    %v6943 = vadd.f32 %v6605, %v6867
    %v6944 = vadd.f32 %v5522, %v6871
    %v6945 = vadd.f32 %v6675, %v6875
    %v6946 = vadd.f32 %v5592, %v6879
    %v6947 = vadd.f32 %v6745, %v6883
    %v6948 = vtanh.pop %v6916
    %v6949 = vtanh.pop %v6917
    %v6950 = vtanh.pop %v6918
    %v6951 = vtanh.pop %v6919
    %v6952 = vtanh.pop %v6920
    %v6953 = vtanh.pop %v6921
    %v6954 = vtanh.pop %v6922
    %v6955 = vtanh.pop %v6923
    %v6956 = vtanh.pop %v6924
    %v6957 = vtanh.pop %v6925
    %v6958 = vtanh.pop %v6926
    %v6959 = vtanh.pop %v6927
    %v6960 = vtanh.pop %v6928
    %v6961 = vtanh.pop %v6929
    %v6962 = vtanh.pop %v6930
    %v6963 = vtanh.pop %v6931
    %v6964 = vtanh.pop %v6932
    %v6965 = vtanh.pop %v6933
    %v6966 = vtanh.pop %v6934
    %v6967 = vtanh.pop %v6935
    %v6968 = vtanh.pop %v6936
    %v6969 = vtanh.pop %v6937
    %v6970 = vtanh.pop %v6938
    %v6971 = vtanh.pop %v6939
    %v6972 = vtanh.pop %v6940
    %v6973 = vtanh.pop %v6941
    %v6974 = vtanh.pop %v6942
    %v6975 = vtanh.pop %v6943
    %v6976 = vtanh.pop %v6944
    %v6977 = vtanh.pop %v6945
    %v6978 = vtanh.pop %v6946
    %v6979 = vtanh.pop %v6947
    %v7012 = vcombine.low %v6948, %v6949
    %v7013 = vcombine.low %v6950, %v6951
    %v7015 = vunpack.c.l.s4 1983009808
    %v7016 = vunpack.c.0.s8 %v7015
    %v7017 = vlaneseq
    %v7018 = vshrl.u32 %v7017, 7
    %v7019 = vsub.s32 %v7016, %v7018
    %v7020 = vrot.slane %v7012, %v7019
    %v7022 = vunpack.c.l.s4 1983009808
    %v7023 = vunpack.c.0.s8 %v7022
    %v7024 = vlaneseq
    %v7025 = vshrl.u32 %v7024, 7
    %v7026 = vsub.s32 %v7023, %v7025
    %v7027 = vrot.slane %v7013, %v7026
    %v7028 = vcombine.low %v7020, %v7027
    %v7029 = vcombine.low %v6952, %v6953
    %v7030 = vcombine.low %v6954, %v6955
    %v7032 = vunpack.c.l.s4 1983009808
    %v7033 = vunpack.c.0.s8 %v7032
    %v7034 = vlaneseq
    %v7035 = vshrl.u32 %v7034, 7
    %v7036 = vsub.s32 %v7033, %v7035
    %v7037 = vrot.slane %v7029, %v7036
    %v7039 = vunpack.c.l.s4 1983009808
    %v7040 = vunpack.c.0.s8 %v7039
    %v7041 = vlaneseq
    %v7042 = vshrl.u32 %v7041, 7
    %v7043 = vsub.s32 %v7040, %v7042
    %v7044 = vrot.slane %v7030, %v7043
    %v7045 = vcombine.low %v7037, %v7044
    %v7046 = vcombine.low %v6956, %v6957
    %v7047 = vcombine.low %v6958, %v6959
    %v7049 = vunpack.c.l.s4 1983009808
    %v7050 = vunpack.c.0.s8 %v7049
    %v7051 = vlaneseq
    %v7052 = vshrl.u32 %v7051, 7
    %v7053 = vsub.s32 %v7050, %v7052
    %v7054 = vrot.slane %v7046, %v7053
    %v7056 = vunpack.c.l.s4 1983009808
    %v7057 = vunpack.c.0.s8 %v7056
    %v7058 = vlaneseq
    %v7059 = vshrl.u32 %v7058, 7
    %v7060 = vsub.s32 %v7057, %v7059
    %v7061 = vrot.slane %v7047, %v7060
    %v7062 = vcombine.low %v7054, %v7061
    %v7063 = vcombine.low %v6960, %v6961
    %v7064 = vcombine.low %v6962, %v6963
    %v7066 = vunpack.c.l.s4 1983009808
    %v7067 = vunpack.c.0.s8 %v7066
    %v7068 = vlaneseq
    %v7069 = vshrl.u32 %v7068, 7
    %v7070 = vsub.s32 %v7067, %v7069
    %v7071 = vrot.slane %v7063, %v7070
    %v7073 = vunpack.c.l.s4 1983009808
    %v7074 = vunpack.c.0.s8 %v7073
    %v7075 = vlaneseq
    %v7076 = vshrl.u32 %v7075, 7
    %v7077 = vsub.s32 %v7074, %v7076
    %v7078 = vrot.slane %v7064, %v7077
    %v7079 = vcombine.low %v7071, %v7078
    %v7080 = vcombine.low %v6964, %v6965
    %v7081 = vcombine.low %v6966, %v6967
    %v7083 = vunpack.c.l.s4 1983009808
    %v7084 = vunpack.c.0.s8 %v7083
    %v7085 = vlaneseq
    %v7086 = vshrl.u32 %v7085, 7
    %v7087 = vsub.s32 %v7084, %v7086
    %v7088 = vrot.slane %v7080, %v7087
    %v7090 = vunpack.c.l.s4 1983009808
    %v7091 = vunpack.c.0.s8 %v7090
    %v7092 = vlaneseq
    %v7093 = vshrl.u32 %v7092, 7
    %v7094 = vsub.s32 %v7091, %v7093
    %v7095 = vrot.slane %v7081, %v7094
    %v7096 = vcombine.low %v7088, %v7095
    %v7097 = vcombine.low %v6968, %v6969
    %v7098 = vcombine.low %v6970, %v6971
    %v7100 = vunpack.c.l.s4 1983009808
    %v7101 = vunpack.c.0.s8 %v7100
    %v7102 = vlaneseq
    %v7103 = vshrl.u32 %v7102, 7
    %v7104 = vsub.s32 %v7101, %v7103
    %v7105 = vrot.slane %v7097, %v7104
    %v7107 = vunpack.c.l.s4 1983009808
    %v7108 = vunpack.c.0.s8 %v7107
    %v7109 = vlaneseq
    %v7110 = vshrl.u32 %v7109, 7
    %v7111 = vsub.s32 %v7108, %v7110
    %v7112 = vrot.slane %v7098, %v7111
    %v7113 = vcombine.low %v7105, %v7112
    %v7114 = vcombine.low %v6972, %v6973
    %v7115 = vcombine.low %v6974, %v6975
    %v7117 = vunpack.c.l.s4 1983009808
    %v7118 = vunpack.c.0.s8 %v7117
    %v7119 = vlaneseq
    %v7120 = vshrl.u32 %v7119, 7
    %v7121 = vsub.s32 %v7118, %v7120
    %v7122 = vrot.slane %v7114, %v7121
    %v7124 = vunpack.c.l.s4 1983009808
    %v7125 = vunpack.c.0.s8 %v7124
    %v7126 = vlaneseq
    %v7127 = vshrl.u32 %v7126, 7
    %v7128 = vsub.s32 %v7125, %v7127
    %v7129 = vrot.slane %v7115, %v7128
    %v7130 = vcombine.low %v7122, %v7129
    %v7131 = vcombine.low %v6976, %v6977
    %v7132 = vcombine.low %v6978, %v6979
    %v7134 = vunpack.c.l.s4 1983009808
    %v7135 = vunpack.c.0.s8 %v7134
    %v7136 = vlaneseq
    %v7137 = vshrl.u32 %v7136, 7
    %v7138 = vsub.s32 %v7135, %v7137
    %v7139 = vrot.slane %v7131, %v7138
    %v7141 = vunpack.c.l.s4 1983009808
    %v7142 = vunpack.c.0.s8 %v7141
    %v7143 = vlaneseq
    %v7144 = vshrl.u32 %v7143, 7
    %v7145 = vsub.s32 %v7142, %v7144
    %v7146 = vrot.slane %v7132, %v7145
    %v7147 = vcombine.low %v7139, %v7146
    %7156 = vst [vmem:[#allocation2] sm:$0xff] %v7028
    %7157 = vst [vmem:[#allocation2 + $0x8] sm:$0xff] %v7045
    %7158 = vst [vmem:[#allocation2 + $0x10] sm:$0xff] %v7062
    %7159 = vst [vmem:[#allocation2 + $0x18] sm:$0xff] %v7079
    %7160 = vst [vmem:[#allocation2 + $0x20] sm:$0xff] %v7096
    %7161 = vst [vmem:[#allocation2 + $0x28] sm:$0xff] %v7113
    %7162 = vst [vmem:[#allocation2 + $0x30] sm:$0xff] %v7130
    %7163 = vst [vmem:[#allocation2 + $0x38] sm:$0xff] %v7147
    // Predicated region
    $region46: #{tpu_custom_call.1} parent=1 // pred_check
      _
    $region47: #{tpu_custom_call.1} parent=1 // pred_check_branch
      %7165 = sbr.rel (0) target = $region49
    $region48: #{tpu_custom_call.1} parent=1 // pred_region
      %s7167 = ssub.s32 1024, 1024
      %7168 = vsyncadd [#allocation3], %s7167
      %s7170 = sshll.u32 [#allocation2], 4
      %s7171 = int_to_ptr.vmem [resolvable:$true] %s7170
      %7173 = dma.vmem_to_hbm [thread:$0]  %s7171, 1024, %s11, [#allocation3]
    $region49: #{tpu_custom_call.1} parent=1 // pred_fallthru
      _
    // Predicated region
    $region50: #{tpu_custom_call.1} parent=1 // pred_check
      _
    $region51: #{tpu_custom_call.1} parent=1 // pred_check_branch
      %7175 = sbr.rel (0) target = $region53
    $region52: #{tpu_custom_call.1} parent=1 // pred_region
      %7176 = dma.done [#allocation3], 1024
    $region53: #{tpu_custom_call.1} parent=1 // pred_fallthru
      _
    %7177 = vsyncpa [#allocation3], 1

</llo_original>
